<compile_context>
chip_gen: v7x
topology: tpu7x:2x2x1
jax: 0.10.0
libtpu: 0.0.40
codegen_flags: <defaults>
</compile_context>

<pallas_src>
import functools

import jax
import jax.numpy as jnp
from jax import lax
from jax.experimental import pallas as pl
from jax.experimental.pallas import tpu as pltpu


def _round_up(n, m):
    return ((n + m - 1) // m) * m


def _decoder_kernel(L, W, D, x_ref, w_ref, b_ref, o_ref):
    # x_ref : (M, L)        batch tile of samples
    # w_ref : (5, L, W*D)   all 5 decoder weights, VMEM-resident across the grid
    # b_ref : (5, W*D)      all 5 decoder biases (flattened), VMEM-resident
    # o_ref : (M, W, D)     normalized output tile
    x = x_ref[...]                                          # (M, L)
    M = x.shape[0]

    # Per-row routing from the trailing flags; float->int truncation matches
    # Python int(). Mirrors the original if/elif chain.
    i1 = x[:, L - 1:L].astype(jnp.int32)                    # (M, 1)
    i2 = x[:, L - 2:L - 1].astype(jnp.int32)
    i3 = x[:, L - 3:L - 2].astype(jnp.int32)
    route = jnp.where(
        i1 == 0,
        jnp.where(i2 == 0, 0, jnp.where(i3 == 0, 3, 4)),    # decoder0 / 3 / 4
        jnp.where(i2 == 0, 1, 2),                           # decoder1 / 2
    )                                                       # (M, 1) int32

    b_all = b_ref[...]                                      # (5, W*D), ~20 KB

    # Compute the tile against each of the 5 resident decoders and select the
    # routed result per row. K=L underfills the MXU anyway, so the 5x matmul
    # cost is negligible versus streaming routed weights from HBM per sample.
    y = jnp.zeros((M, W * D), jnp.float32)
    for r in range(5):                                      # static unroll
        yr = jnp.dot(x, w_ref[r],
                     preferred_element_type=jnp.float32)    # (M, W*D)
        yr = yr + b_all[r:r + 1, :]                         # bias, broadcast over M
        y = jnp.where(route == r, yr, y)

    # do_norm: L2-normalize each length-D complex-interleaved vector.
    y = y.reshape(M, W, D)                                  # once per tile
    s = jnp.sum(y * y, axis=-1, keepdims=True)              # (M, W, 1)
    o_ref[...] = y * lax.rsqrt(s)                           # EUP rsqrt + VPU mul


@functools.partial(jax.jit, static_argnames=("W", "D", "m_tile"))
def decoder_forward(x, weights, biases, *, W, D, m_tile=128):
    B, L = x.shape
    # Batch tile: multiple of 8 sublanes, capped at m_tile (128 saturates the
    # v5e MXU; K=L underfills v6e/v7x regardless, so 128 is a good default).
    mt = min(m_tile, _round_up(B, 8))
    Bp = _round_up(B, mt)
    x_pad = jnp.pad(x, ((0, Bp - B), (0, 0)))   # padded rows -> decoder0, sliced off
    b_flat = biases.reshape(5, W * D)

    kernel = functools.partial(_decoder_kernel, L, W, D)
    out = pl.pallas_call(
        kernel,
        out_shape=jax.ShapeDtypeStruct((Bp, W, D), jnp.float32),
        grid=(Bp // mt,),
        in_specs=[
            # current batch tile
            pl.BlockSpec((mt, L), lambda b: (b, 0)),
            # weights/biases: constant block index -> fetched once, stay in VMEM
            pl.BlockSpec((5, L, W * D), lambda b: (0, 0, 0)),
            pl.BlockSpec((5, W * D), lambda b: (0, 0)),
        ],
        out_specs=pl.BlockSpec((mt, W, D), lambda b: (b, 0, 0)),
        compiler_params=pltpu.CompilerParams(
            # each grid step writes a disjoint output tile -> safe to shard
            # across v7x's two TensorCores; harmless on v5e/v6e
            dimension_semantics=("parallel",)),
    )(x_pad, weights, b_flat)
    return out[:B]


def _route(x):
    # Mirrors the Python if/elif chain on int(i[-1]), int(i[-2]), int(i[-3]).
    i1 = x[:, -1].astype(jnp.int32)
    i2 = x[:, -2].astype(jnp.int32)
    i3 = x[:, -3].astype(jnp.int32)
    return jnp.where(
        i1 == 0,
        jnp.where(i2 == 0, 0, jnp.where(i3 == 0, 3, 4)),
        jnp.where(i2 == 0, 1, 2),
    ).astype(jnp.int32)


def decoder_forward_ref(x, weights, biases):
    # Pure-JAX reference of the same semantics.
    idx = _route(x)
    B = x.shape[0]
    _, W, D = biases.shape
    y = jnp.einsum("bl,blo->bo", x, weights[idx])
    y = y.reshape(B, W, D) + biases[idx]
    norm = jnp.sqrt(jnp.sum(y * y, axis=-1, keepdims=True))
    return y / norm


if __name__ == "__main__":
    B, L, W, D = 300, 32, 8, 128   # small synthetic shapes; D even (complex pairs)

    key = jax.random.PRNGKey(0)
    kx, kw, kb, kf = jax.random.split(key, 4)

    x = jax.random.normal(kx, (B, L), dtype=jnp.float32)
    # random 0/1 trailing flags so every decoder route is exercised
    flags = jax.random.randint(kf, (B, 3), 0, 2).astype(jnp.float32)
    x = x.at[:, -3:].set(flags)

    # Deterministic synthetic parameters for the 5 routed decoders.
    weights = 0.05 * jax.random.normal(kw, (5, L, W * D), dtype=jnp.float32)
    biases = 0.05 * jax.random.normal(kb, (5, W, D), dtype=jnp.float32)

    out = decoder_forward(x, weights, biases, W=W, D=D)
    out = jax.block_until_ready(out)

    ref = decoder_forward_ref(x, weights, biases)
    assert out.shape == (B, W, D)
    err = float(jnp.max(jnp.abs(out - ref)))
    assert err < 2e-3, "max abs err = %g" % err

    print("KERNEL_OK")
</pallas_src>

<mosaic_0001>
module attributes {stable_mosaic.version = 11 : i64} {
  func.func @_decoder_kernel(%arg0: i32, %arg1: memref<128x32xf32, #tpu.memory_space<vmem>>, %arg2: memref<5x32x1024xf32, #tpu.memory_space<vmem>>, %arg3: memref<5x1024xf32, #tpu.memory_space<vmem>>, %arg4: memref<128x8x128xf32, #tpu.memory_space<vmem>>) attributes {dimension_semantics = [#tpu.dimension_semantics<parallel>], iteration_bounds = array<i64: 3>, scalar_prefetch = 0 : i64, scratch_operands = 0 : i64, tpu.core_type = #tpu.core_type<tc>, window_params = [{transform_indices = @transform_0, window_bounds = array<i64: 128, 32>}, {pipeline_mode = #tpu.pipeline_mode<synchronous>, transform_indices = @transform_1, window_bounds = array<i64: 5, 32, 1024>}, {pipeline_mode = #tpu.pipeline_mode<synchronous>, transform_indices = @transform_2, window_bounds = array<i64: 5, 1024>}, {transform_indices = @transform_3, window_bounds = array<i64: 128, 8, 128>}]} {
    %c0 = arith.constant 0 : index
    %c0_0 = arith.constant 0 : index
    %0 = vector.load %arg1[%c0, %c0_0] : memref<128x32xf32, #tpu.memory_space<vmem>>, vector<128x32xf32>
    %1 = vector.extract_strided_slice %0 {offsets = [0, 31], sizes = [128, 1], strides = [1, 1]} : vector<128x32xf32> to vector<128x1xf32>
    %2 = arith.fptosi %1 : vector<128x1xf32> to vector<128x1xi32>
    %3 = vector.extract_strided_slice %0 {offsets = [0, 30], sizes = [128, 1], strides = [1, 1]} : vector<128x32xf32> to vector<128x1xf32>
    %4 = arith.fptosi %3 : vector<128x1xf32> to vector<128x1xi32>
    %5 = vector.extract_strided_slice %0 {offsets = [0, 29], sizes = [128, 1], strides = [1, 1]} : vector<128x32xf32> to vector<128x1xf32>
    %6 = arith.fptosi %5 : vector<128x1xf32> to vector<128x1xi32>
    %c0_i32 = arith.constant 0 : i32
    %7 = vector.broadcast %c0_i32 : i32 to vector<128x1xi32>
    %8 = arith.cmpi eq, %2, %7 : vector<128x1xi32>
    %c0_i32_1 = arith.constant 0 : i32
    %9 = vector.broadcast %c0_i32_1 : i32 to vector<128x1xi32>
    %10 = arith.cmpi eq, %4, %9 : vector<128x1xi32>
    %c0_i32_2 = arith.constant 0 : i32
    %11 = vector.broadcast %c0_i32_2 : i32 to vector<128x1xi32>
    %12 = arith.cmpi eq, %6, %11 : vector<128x1xi32>
    %c3_i32 = arith.constant 3 : i32
    %c4_i32 = arith.constant 4 : i32
    %13 = vector.broadcast %c3_i32 : i32 to vector<128x1xi32>
    %14 = vector.broadcast %c4_i32 : i32 to vector<128x1xi32>
    %15 = arith.select %12, %13, %14 : vector<128x1xi1>, vector<128x1xi32>
    %c0_i32_3 = arith.constant 0 : i32
    %16 = vector.broadcast %c0_i32_3 : i32 to vector<128x1xi32>
    %17 = arith.select %10, %16, %15 : vector<128x1xi1>, vector<128x1xi32>
    %c0_i32_4 = arith.constant 0 : i32
    %18 = vector.broadcast %c0_i32_4 : i32 to vector<128x1xi32>
    %19 = arith.cmpi eq, %4, %18 : vector<128x1xi32>
    %c1_i32 = arith.constant 1 : i32
    %c2_i32 = arith.constant 2 : i32
    %20 = vector.broadcast %c1_i32 : i32 to vector<128x1xi32>
    %21 = vector.broadcast %c2_i32 : i32 to vector<128x1xi32>
    %22 = arith.select %19, %20, %21 : vector<128x1xi1>, vector<128x1xi32>
    %23 = arith.select %8, %17, %22 : vector<128x1xi1>, vector<128x1xi32>
    %c0_5 = arith.constant 0 : index
    %c0_6 = arith.constant 0 : index
    %24 = vector.load %arg3[%c0_5, %c0_6] : memref<5x1024xf32, #tpu.memory_space<vmem>>, vector<5x1024xf32>
    %cst = arith.constant 0.000000e+00 : f32
    %25 = vector.broadcast %cst : f32 to vector<128x1024xf32>
    %c0_7 = arith.constant 0 : index
    %c0_8 = arith.constant 0 : index
    %c0_9 = arith.constant 0 : index
    %26 = vector.load %arg2[%c0_7, %c0_8, %c0_9] : memref<5x32x1024xf32, #tpu.memory_space<vmem>>, vector<1x32x1024xf32>
    %27 = vector.shape_cast %26 : vector<1x32x1024xf32> to vector<32x1024xf32>
    %cst_10 = arith.constant dense<0.000000e+00> : vector<128x1024xf32>
    %28 = tpu.matmul %0, %27, %cst_10 {dimension_numbers = #tpu.dot_dimension_numbers<[1], [0], [0], [1], [0, 0, 1, 1], [], []>} : vector<128x32xf32>, vector<32x1024xf32>, vector<128x1024xf32> -> vector<128x1024xf32>
    %29 = vector.extract_strided_slice %24 {offsets = [0, 0], sizes = [1, 1024], strides = [1, 1]} : vector<5x1024xf32> to vector<1x1024xf32>
    %30 = vector.broadcast %29 : vector<1x1024xf32> to vector<128x1024xf32>
    %31 = arith.addf %28, %30 : vector<128x1024xf32>
    %c0_i32_11 = arith.constant 0 : i32
    %32 = vector.broadcast %c0_i32_11 : i32 to vector<128x1xi32>
    %33 = arith.cmpi eq, %23, %32 : vector<128x1xi32>
    %34 = vector.shape_cast %33 : vector<128x1xi1> to vector<128x1xi1>
    %35 = vector.broadcast %34 : vector<128x1xi1> to vector<128x1024xi1>
    %36 = arith.select %35, %31, %25 : vector<128x1024xi1>, vector<128x1024xf32>
    %c1 = arith.constant 1 : index
    %c0_12 = arith.constant 0 : index
    %c0_13 = arith.constant 0 : index
    %37 = vector.load %arg2[%c1, %c0_12, %c0_13] : memref<5x32x1024xf32, #tpu.memory_space<vmem>>, vector<1x32x1024xf32>
    %38 = vector.shape_cast %37 : vector<1x32x1024xf32> to vector<32x1024xf32>
    %cst_14 = arith.constant dense<0.000000e+00> : vector<128x1024xf32>
    %39 = tpu.matmul %0, %38, %cst_14 {dimension_numbers = #tpu.dot_dimension_numbers<[1], [0], [0], [1], [0, 0, 1, 1], [], []>} : vector<128x32xf32>, vector<32x1024xf32>, vector<128x1024xf32> -> vector<128x1024xf32>
    %40 = vector.extract_strided_slice %24 {offsets = [1, 0], sizes = [1, 1024], strides = [1, 1]} : vector<5x1024xf32> to vector<1x1024xf32>
    %41 = vector.broadcast %40 : vector<1x1024xf32> to vector<128x1024xf32>
    %42 = arith.addf %39, %41 : vector<128x1024xf32>
    %c1_i32_15 = arith.constant 1 : i32
    %43 = vector.broadcast %c1_i32_15 : i32 to vector<128x1xi32>
    %44 = arith.cmpi eq, %23, %43 : vector<128x1xi32>
    %45 = vector.shape_cast %44 : vector<128x1xi1> to vector<128x1xi1>
    %46 = vector.broadcast %45 : vector<128x1xi1> to vector<128x1024xi1>
    %47 = arith.select %46, %42, %36 : vector<128x1024xi1>, vector<128x1024xf32>
    %c2 = arith.constant 2 : index
    %c0_16 = arith.constant 0 : index
    %c0_17 = arith.constant 0 : index
    %48 = vector.load %arg2[%c2, %c0_16, %c0_17] : memref<5x32x1024xf32, #tpu.memory_space<vmem>>, vector<1x32x1024xf32>
    %49 = vector.shape_cast %48 : vector<1x32x1024xf32> to vector<32x1024xf32>
    %cst_18 = arith.constant dense<0.000000e+00> : vector<128x1024xf32>
    %50 = tpu.matmul %0, %49, %cst_18 {dimension_numbers = #tpu.dot_dimension_numbers<[1], [0], [0], [1], [0, 0, 1, 1], [], []>} : vector<128x32xf32>, vector<32x1024xf32>, vector<128x1024xf32> -> vector<128x1024xf32>
    %51 = vector.extract_strided_slice %24 {offsets = [2, 0], sizes = [1, 1024], strides = [1, 1]} : vector<5x1024xf32> to vector<1x1024xf32>
    %52 = vector.broadcast %51 : vector<1x1024xf32> to vector<128x1024xf32>
    %53 = arith.addf %50, %52 : vector<128x1024xf32>
    %c2_i32_19 = arith.constant 2 : i32
    %54 = vector.broadcast %c2_i32_19 : i32 to vector<128x1xi32>
    %55 = arith.cmpi eq, %23, %54 : vector<128x1xi32>
    %56 = vector.shape_cast %55 : vector<128x1xi1> to vector<128x1xi1>
    %57 = vector.broadcast %56 : vector<128x1xi1> to vector<128x1024xi1>
    %58 = arith.select %57, %53, %47 : vector<128x1024xi1>, vector<128x1024xf32>
    %c3 = arith.constant 3 : index
    %c0_20 = arith.constant 0 : index
    %c0_21 = arith.constant 0 : index
    %59 = vector.load %arg2[%c3, %c0_20, %c0_21] : memref<5x32x1024xf32, #tpu.memory_space<vmem>>, vector<1x32x1024xf32>
    %60 = vector.shape_cast %59 : vector<1x32x1024xf32> to vector<32x1024xf32>
    %cst_22 = arith.constant dense<0.000000e+00> : vector<128x1024xf32>
    %61 = tpu.matmul %0, %60, %cst_22 {dimension_numbers = #tpu.dot_dimension_numbers<[1], [0], [0], [1], [0, 0, 1, 1], [], []>} : vector<128x32xf32>, vector<32x1024xf32>, vector<128x1024xf32> -> vector<128x1024xf32>
    %62 = vector.extract_strided_slice %24 {offsets = [3, 0], sizes = [1, 1024], strides = [1, 1]} : vector<5x1024xf32> to vector<1x1024xf32>
    %63 = vector.broadcast %62 : vector<1x1024xf32> to vector<128x1024xf32>
    %64 = arith.addf %61, %63 : vector<128x1024xf32>
    %c3_i32_23 = arith.constant 3 : i32
    %65 = vector.broadcast %c3_i32_23 : i32 to vector<128x1xi32>
    %66 = arith.cmpi eq, %23, %65 : vector<128x1xi32>
    %67 = vector.shape_cast %66 : vector<128x1xi1> to vector<128x1xi1>
    %68 = vector.broadcast %67 : vector<128x1xi1> to vector<128x1024xi1>
    %69 = arith.select %68, %64, %58 : vector<128x1024xi1>, vector<128x1024xf32>
    %c4 = arith.constant 4 : index
    %c0_24 = arith.constant 0 : index
    %c0_25 = arith.constant 0 : index
    %70 = vector.load %arg2[%c4, %c0_24, %c0_25] : memref<5x32x1024xf32, #tpu.memory_space<vmem>>, vector<1x32x1024xf32>
    %71 = vector.shape_cast %70 : vector<1x32x1024xf32> to vector<32x1024xf32>
    %cst_26 = arith.constant dense<0.000000e+00> : vector<128x1024xf32>
    %72 = tpu.matmul %0, %71, %cst_26 {dimension_numbers = #tpu.dot_dimension_numbers<[1], [0], [0], [1], [0, 0, 1, 1], [], []>} : vector<128x32xf32>, vector<32x1024xf32>, vector<128x1024xf32> -> vector<128x1024xf32>
    %73 = vector.extract_strided_slice %24 {offsets = [4, 0], sizes = [1, 1024], strides = [1, 1]} : vector<5x1024xf32> to vector<1x1024xf32>
    %74 = vector.broadcast %73 : vector<1x1024xf32> to vector<128x1024xf32>
    %75 = arith.addf %72, %74 : vector<128x1024xf32>
    %c4_i32_27 = arith.constant 4 : i32
    %76 = vector.broadcast %c4_i32_27 : i32 to vector<128x1xi32>
    %77 = arith.cmpi eq, %23, %76 : vector<128x1xi32>
    %78 = vector.shape_cast %77 : vector<128x1xi1> to vector<128x1xi1>
    %79 = vector.broadcast %78 : vector<128x1xi1> to vector<128x1024xi1>
    %80 = arith.select %79, %75, %69 : vector<128x1024xi1>, vector<128x1024xf32>
    %81 = vector.shape_cast %80 : vector<128x1024xf32> to vector<128x8x128xf32>
    %82 = arith.mulf %81, %81 : vector<128x8x128xf32>
    %cst_28 = arith.constant dense<0.000000e+00> : vector<128x8xf32>
    %83 = vector.multi_reduction <add>, %82, %cst_28 [2] : vector<128x8x128xf32> to vector<128x8xf32>
    %84 = vector.shape_cast %83 : vector<128x8xf32> to vector<128x8x1xf32>
    %85 = math.rsqrt %84 : vector<128x8x1xf32>
    %86 = vector.broadcast %85 : vector<128x8x1xf32> to vector<128x8x128xf32>
    %87 = arith.mulf %81, %86 : vector<128x8x128xf32>
    %c0_29 = arith.constant 0 : index
    %c0_30 = arith.constant 0 : index
    %c0_31 = arith.constant 0 : index
    %88 = vector.load %arg4[%c0_29, %c0_30, %c0_31] : memref<128x8x128xf32, #tpu.memory_space<vmem>>, vector<128x8x128xf32>
    tpu.vector_store %arg4[%c0_29, %c0_30, %c0_31], %87 {strides = array<i32>} : memref<128x8x128xf32, #tpu.memory_space<vmem>>, vector<128x8x128xf32>,
    return
  }
  func.func @transform_0(%arg0: i32) -> (i32, i32) {
    %c0_i32 = arith.constant 0 : i32
    %c0_i32_0 = arith.constant 0 : i32
    return %arg0, %c0_i32 : i32, i32
  }
  func.func @transform_1(%arg0: i32) -> (i32, i32, i32) {
    %c0_i32 = arith.constant 0 : i32
    %c0_i32_0 = arith.constant 0 : i32
    %c0_i32_1 = arith.constant 0 : i32
    %c0_i32_2 = arith.constant 0 : i32
    return %c0_i32, %c0_i32_0, %c0_i32_1 : i32, i32, i32
  }
  func.func @transform_2(%arg0: i32) -> (i32, i32) {
    %c0_i32 = arith.constant 0 : i32
    %c0_i32_0 = arith.constant 0 : i32
    %c0_i32_1 = arith.constant 0 : i32
    return %c0_i32, %c0_i32_0 : i32, i32
  }
  func.func @transform_3(%arg0: i32) -> (i32, i32, i32) {
    %c0_i32 = arith.constant 0 : i32
    %c0_i32_0 = arith.constant 0 : i32
    %c0_i32_1 = arith.constant 0 : i32
    return %arg0, %c0_i32, %c0_i32_0 : i32, i32, i32
  }
}

</mosaic_0001>

<llo_original>
// kernel: decoder_forward.1
$region0: #{decoder_forward.1}
  #allocation0 [shape = 'u32[]', space=smem, size = 0x4, offset = 0x4, fixed_abs, tag = 'smem constant byte address 0x4 - core index']
  #allocation1 [shape = 'u32[144,128]{1,0:T(1,128)}', space=vmem, size = 0x12000, scoped, tag = 'internal scratch']
  %s0 = inlined_call_operand.vmem [shape: f32[384,32], index: 0, kind: input, shape index: {}]
  %s1 = inlined_call_operand.hbm [shape: f32[5,32,1024], index: 1, kind: input, shape index: {}]
  %s2 = inlined_call_operand.vmem [shape: f32[5,1024], index: 2, kind: input, shape index: {}]
  %s3 = inlined_call_operand.vmem [shape: f32[384,8,128], index: 3, kind: output, shape index: {}]
  %s4 = sld [smem:[#allocation0]]
  $region49: #{decoder_forward.1} parent=0
    _
  %s6 = ssub.s32 1, %s4
  %s7 = scalar_select 0, %s6, %s4
  $region1: #{decoder_forward.1} parent=0
    #allocation2 [shape = 'u8[655360]{0}', space=vmem, size = 0xa0000, scoped, tag = 'input window, operand 1, single buffered']
    #allocation3 [shape = 's32[2]{0}', space=sflag, size = 0x8, scoped, tag = 'scoped memory for decoder_forward.1']
    %8 = vsyncpa [#allocation3], 0
    loop: start=0, step=1, limit=5
    $region2: #{decoder_forward.1} parent=1 // loop_pre_header
      _
    $region3: #{decoder_forward.1} parent=1 // loop_header
      %s10 = sphi 0, %s14
      %p11 = scmp.ge.s32.totalorder %s10, 5
      %s20 = sphi 0, %s22
      %s23 = sphi 0, %s20
      %s24 = sphi 0, %s23
      %s40 = sphi 0, %s24
      %s44 = sphi 0, %s44
      %s46 = sphi 0, %s44
      %s47 = sphi 0, %s46
      %s61 = sphi 0, %s47
      %s65 = sphi 0, %s65
      %s67 = sphi 0, %s65
      %s68 = sphi 0, %s67
      %s82 = sphi 0, %s68
      %s88 = sphi 0, %s90
      %s91 = sphi 0, %s88
      %s92 = sphi 0, %s91
      %s108 = sphi 0, %s92
    $region4: #{decoder_forward.1} parent=1 // loop_header_branch
      %13 = sbr.rel (%p11) target = $region8
    $region5: #{decoder_forward.1} parent=1 // loop_body
      %s15 = ssub.s32 %s10, 1
      %s16 = ssub.s32 %s10, 2
      %s17 = sadd.s32 %s10, 1
      %s18 = ssub.s32 %s10, %s17
      %p19 = scmp.eq.s32.totalorder %s18, 0
      %s21 = sadd.s32 %s20, 1
      %s22 = scalar_select %p19, %s20, %s21
      %p25 = pneg %p19
      %p26 = scmp.eq.s32.totalorder %s10, 2
      %p27 = por %p25, %p26
      %p28 = scmp.ne.s32.totalorder %s20, %s23
      %p29 = scmp.eq.s32.totalorder %s10, 0
      %p30 = por %p28, %p29
      %p31 = scmp.ne.s32.totalorder %s20, %s23
      %p32 = scmp.eq.s32.totalorder %s15, 2
      %p33 = por %p31, %p32
      %p34 = scmp.ne.s32.totalorder %s23, %s24
      %p35 = scmp.eq.s32.totalorder %s15, 0
      %p36 = por %p34, %p35
      %p37 = scmp.ne.s32.totalorder %s23, %s24
      %p38 = scmp.eq.s32.totalorder %s16, 2
      %p39 = por %p37, %p38
      %p41 = scmp.ne.s32.totalorder %s24, %s40
      %p42 = scmp.eq.s32.totalorder %s16, 0
      %p43 = por %p41, %p42
      %s45 = sadd.s32 %s44, 1
      %p48 = scmp.eq.s32.totalorder %s10, 2
      %p49 = scmp.ne.s32.totalorder %s44, %s46
      %p50 = scmp.eq.s32.totalorder %s10, 0
      %p51 = por %p49, %p50
      %p52 = scmp.ne.s32.totalorder %s44, %s46
      %p53 = scmp.eq.s32.totalorder %s15, 2
      %p54 = por %p52, %p53
      %p55 = scmp.ne.s32.totalorder %s46, %s47
      %p56 = scmp.eq.s32.totalorder %s15, 0
      %p57 = por %p55, %p56
      %p58 = scmp.ne.s32.totalorder %s46, %s47
      %p59 = scmp.eq.s32.totalorder %s16, 2
      %p60 = por %p58, %p59
      %p62 = scmp.ne.s32.totalorder %s47, %s61
      %p63 = scmp.eq.s32.totalorder %s16, 0
      %p64 = por %p62, %p63
      %s66 = sadd.s32 %s65, 1
      %p69 = scmp.eq.s32.totalorder %s10, 2
      %p70 = scmp.ne.s32.totalorder %s65, %s67
      %p71 = scmp.eq.s32.totalorder %s10, 0
      %p72 = por %p70, %p71
      %p73 = scmp.ne.s32.totalorder %s65, %s67
      %p74 = scmp.eq.s32.totalorder %s15, 2
      %p75 = por %p73, %p74
      %p76 = scmp.ne.s32.totalorder %s67, %s68
      %p77 = scmp.eq.s32.totalorder %s15, 0
      %p78 = por %p76, %p77
      %p79 = scmp.ne.s32.totalorder %s67, %s68
      %p80 = scmp.eq.s32.totalorder %s16, 2
      %p81 = por %p79, %p80
      %p83 = scmp.ne.s32.totalorder %s68, %s82
      %p84 = scmp.eq.s32.totalorder %s16, 0
      %p85 = por %p83, %p84
      %s86 = ssub.s32 %s10, %s17
      %p87 = scmp.eq.s32.totalorder %s86, 0
      %s89 = sadd.s32 %s88, 1
      %s90 = scalar_select %p87, %s88, %s89
      %p93 = pneg %p87
      %p94 = scmp.eq.s32.totalorder %s10, 2
      %p95 = por %p93, %p94
      %p96 = scmp.ne.s32.totalorder %s88, %s91
      %p97 = scmp.eq.s32.totalorder %s10, 0
      %p98 = por %p96, %p97
      %p99 = scmp.ne.s32.totalorder %s88, %s91
      %p100 = scmp.eq.s32.totalorder %s15, 2
      %p101 = por %p99, %p100
      %p102 = scmp.ne.s32.totalorder %s91, %s92
      %p103 = scmp.eq.s32.totalorder %s15, 0
      %p104 = por %p102, %p103
      %p105 = scmp.ne.s32.totalorder %s91, %s92
      %p106 = scmp.eq.s32.totalorder %s16, 2
      %p107 = por %p105, %p106
      %p109 = scmp.ne.s32.totalorder %s92, %s108
      %p110 = scmp.eq.s32.totalorder %s16, 0
      %p111 = por %p109, %p110
      %p112 = scmp.le.s32.totalorder 1, %s10
      %p113 = scmp.lt.s32.totalorder %s10, 4
      %p114 = pnand %p112, %p113
      %p115 = pneg %p114
      // Predicated region
      $region9: #{decoder_forward.1} parent=5 // pred_check
        _
      $region10: #{decoder_forward.1} parent=5 // pred_check_branch
        %117 = sbr.rel (%p114) target = $region12
      $region11: #{decoder_forward.1} parent=5 // pred_region
        %s118 = ssub.s32 %s10, 1
        // Predicated region
        $region13: #{decoder_forward.1} parent=11 // pred_check
          %p119 = pneg %p57
        $region14: #{decoder_forward.1} parent=11 // pred_check_branch
          %121 = sbr.rel (%p119) target = $region16
        $region15: #{decoder_forward.1} parent=11 // pred_region
          %s123 = ssub.s32 20480, 20480
          %124 = vsyncadd [#allocation3], %s123
          %s125 = sshll.u32 [#allocation2], 4
          %s126 = int_to_ptr.vmem [resolvable:$true] %s125
          %131 = dma.hbm_to_vmem [thread:$0]  %s1, 20480, %s126, [#allocation3], 1024, 1024, 64
        $region16: #{decoder_forward.1} parent=11 // pred_fallthru
          _
        // Predicated region
        $region17: #{decoder_forward.1} parent=11 // pred_check
          %p132 = pneg %p78
        $region18: #{decoder_forward.1} parent=11 // pred_check_branch
          %134 = sbr.rel (%p132) target = $region20
        $region19: #{decoder_forward.1} parent=11 // pred_region
          _
        $region20: #{decoder_forward.1} parent=11 // pred_fallthru
          _
      $region12: #{decoder_forward.1} parent=5 // pred_fallthru
        _
      %p135 = scmp.lt.s32.totalorder %s10, 3
      // Predicated region
      $region21: #{decoder_forward.1} parent=5 // pred_check
        %p136 = pneg %p135
      $region22: #{decoder_forward.1} parent=5 // pred_check_branch
        %138 = sbr.rel (%p136) target = $region24
      $region23: #{decoder_forward.1} parent=5 // pred_region
        // Predicated region
        $region25: #{decoder_forward.1} parent=23 // pred_check
          %p139 = pneg %p30
        $region26: #{decoder_forward.1} parent=23 // pred_check_branch
          %141 = sbr.rel (%p139) target = $region28
        $region27: #{decoder_forward.1} parent=23 // pred_region
          %s142 = smul.u32 16, %s10
          %p143 = scmp.lt.s32.totalorder %s142, 47
          %s144 = scalar_select %p143, %s142, 47
          %s145 = smul.addr %s144, 8
          %s146 = scalar_lea.vmem %s0, %s145
          %s147 = smul.u32 16, %s10
        $region28: #{decoder_forward.1} parent=23 // pred_fallthru
          _
      $region24: #{decoder_forward.1} parent=5 // pred_fallthru
        _
      %p148 = scmp.le.s32.totalorder 1, %s10
      %p149 = scmp.lt.s32.totalorder %s10, 4
      %p150 = pnand %p148, %p149
      %p151 = pneg %p150
      // Predicated region
      $region29: #{decoder_forward.1} parent=5 // pred_check
        _
      $region30: #{decoder_forward.1} parent=5 // pred_check_branch
        %153 = sbr.rel (%p150) target = $region32
      $region31: #{decoder_forward.1} parent=5 // pred_region
        %s154 = ssub.s32 %s10, 1
        // Predicated region
        $region33: #{decoder_forward.1} parent=31 // pred_check
          %p155 = pneg %p57
        $region34: #{decoder_forward.1} parent=31 // pred_check_branch
          %157 = sbr.rel (%p155) target = $region36
        $region35: #{decoder_forward.1} parent=31 // pred_region
          %158 = dma.done [#allocation3], 20480
        $region36: #{decoder_forward.1} parent=31 // pred_fallthru
          _
        %s159 = smul.u32 16, %s15
        %p160 = scmp.lt.s32.totalorder %s159, 47
        %s161 = scalar_select %p160, %s159, 47
        %s162 = smul.addr %s161, 8
        %s163 = scalar_lea.vmem %s0, %s162
        %p164 = pneg %p36
        %p165 = pneg %p33
        %p166 = pneg %p57
        %p167 = pneg %p54
        %p168 = pneg %p78
        %p169 = pneg %p75
        %p170 = pneg %p104
        %p171 = pneg %p101
        %s172 = smul.u32 128, %s15
        %p173 = scmp.lt.s32.totalorder %s172, 383
        %s174 = scalar_select %p173, %s172, 383
        %s175 = smul.addr %s174, 8
        %s176 = scalar_lea.vmem %s3, %s175
        %s177 = smul.u32 16, %s15
        %p178 = scmp.lt.s32.totalorder %s177, 47
        %s179 = scalar_select %p178, %s177, 47
        %s180 = smul.addr %s179, 8
        %s181 = scalar_lea.vmem %s0, %s180
        %s182 = smul.u32 16, %s15
        %s183 = smul.u32 128, %s15
        %p184 = scmp.lt.s32.totalorder %s183, 383
        %s185 = scalar_select %p184, %s183, 383
        %s186 = smul.addr %s185, 8
        %s187 = scalar_lea.vmem %s3, %s186
        %s188 = smul.u32 128, %s15
        %v189 = vld [vmem:[%s181] sm:$0xff]
        %v190 = vld [vmem:[%s181 + $0x8] sm:$0xff]
        %v191 = vld [vmem:[%s181 + $0x10] sm:$0xff]
        %v192 = vld [vmem:[%s181 + $0x18] sm:$0xff]
        %v193 = vld [vmem:[%s181 + $0x20] sm:$0xff]
        %v194 = vld [vmem:[%s181 + $0x28] sm:$0xff]
        %v195 = vld [vmem:[%s181 + $0x30] sm:$0xff]
        %v196 = vld [vmem:[%s181 + $0x38] sm:$0xff]
        %v197 = vld [vmem:[%s181 + $0x40] sm:$0xff]
        %v198 = vld [vmem:[%s181 + $0x48] sm:$0xff]
        %v199 = vld [vmem:[%s181 + $0x50] sm:$0xff]
        %v200 = vld [vmem:[%s181 + $0x58] sm:$0xff]
        %v201 = vld [vmem:[%s181 + $0x60] sm:$0xff]
        %v202 = vld [vmem:[%s181 + $0x68] sm:$0xff]
        %v203 = vld [vmem:[%s181 + $0x70] sm:$0xff]
        %v204 = vld [vmem:[%s181 + $0x78] sm:$0xff]
        %v205 = vcvt.f32.s32.to.zero.pseudo %v189
        %v206 = vcvt.f32.s32.to.zero.pseudo %v190
        %v207 = vcvt.f32.s32.to.zero.pseudo %v191
        %v208 = vcvt.f32.s32.to.zero.pseudo %v192
        %v209 = vcvt.f32.s32.to.zero.pseudo %v193
        %v210 = vcvt.f32.s32.to.zero.pseudo %v194
        %v211 = vcvt.f32.s32.to.zero.pseudo %v195
        %v212 = vcvt.f32.s32.to.zero.pseudo %v196
        %v213 = vcvt.f32.s32.to.zero.pseudo %v197
        %v214 = vcvt.f32.s32.to.zero.pseudo %v198
        %v215 = vcvt.f32.s32.to.zero.pseudo %v199
        %v216 = vcvt.f32.s32.to.zero.pseudo %v200
        %v217 = vcvt.f32.s32.to.zero.pseudo %v201
        %v218 = vcvt.f32.s32.to.zero.pseudo %v202
        %v219 = vcvt.f32.s32.to.zero.pseudo %v203
        %v220 = vcvt.f32.s32.to.zero.pseudo %v204
        %vm221 = vcmp.eq.s32.totalorder %v205, 0
        %vm222 = vcmp.eq.s32.totalorder %v206, 0
        %vm223 = vcmp.eq.s32.totalorder %v207, 0
        %vm224 = vcmp.eq.s32.totalorder %v208, 0
        %vm225 = vcmp.eq.s32.totalorder %v209, 0
        %vm226 = vcmp.eq.s32.totalorder %v210, 0
        %vm227 = vcmp.eq.s32.totalorder %v211, 0
        %vm228 = vcmp.eq.s32.totalorder %v212, 0
        %vm229 = vcmp.eq.s32.totalorder %v213, 0
        %vm230 = vcmp.eq.s32.totalorder %v214, 0
        %vm231 = vcmp.eq.s32.totalorder %v215, 0
        %vm232 = vcmp.eq.s32.totalorder %v216, 0
        %vm233 = vcmp.eq.s32.totalorder %v217, 0
        %vm234 = vcmp.eq.s32.totalorder %v218, 0
        %vm235 = vcmp.eq.s32.totalorder %v219, 0
        %vm236 = vcmp.eq.s32.totalorder %v220, 0
        %v237 = vsel %vm221, 3, 4
        %v238 = vsel %vm222, 3, 4
        %v239 = vsel %vm223, 3, 4
        %v240 = vsel %vm224, 3, 4
        %v241 = vsel %vm225, 3, 4
        %v242 = vsel %vm226, 3, 4
        %v243 = vsel %vm227, 3, 4
        %v244 = vsel %vm228, 3, 4
        %v245 = vsel %vm229, 3, 4
        %v246 = vsel %vm230, 3, 4
        %v247 = vsel %vm231, 3, 4
        %v248 = vsel %vm232, 3, 4
        %v249 = vsel %vm233, 3, 4
        %v250 = vsel %vm234, 3, 4
        %v251 = vsel %vm235, 3, 4
        %v252 = vsel %vm236, 3, 4
        %253 = vrot.lane.b32.xlu0 %v237, 1
        %v254 = vpop.permute.xlu0 %253
        %255 = vrot.lane.b32.xlu0 %v238, 1
        %v256 = vpop.permute.xlu0 %255
        %257 = vrot.lane.b32.xlu0 %v239, 1
        %v258 = vpop.permute.xlu0 %257
        %259 = vrot.lane.b32.xlu0 %v240, 1
        %v260 = vpop.permute.xlu0 %259
        %261 = vrot.lane.b32.xlu0 %v241, 1
        %v262 = vpop.permute.xlu0 %261
        %263 = vrot.lane.b32.xlu0 %v242, 1
        %v264 = vpop.permute.xlu0 %263
        %265 = vrot.lane.b32.xlu0 %v243, 1
        %v266 = vpop.permute.xlu0 %265
        %267 = vrot.lane.b32.xlu0 %v244, 1
        %v268 = vpop.permute.xlu0 %267
        %269 = vrot.lane.b32.xlu0 %v245, 1
        %v270 = vpop.permute.xlu0 %269
        %271 = vrot.lane.b32.xlu0 %v246, 1
        %v272 = vpop.permute.xlu0 %271
        %273 = vrot.lane.b32.xlu0 %v247, 1
        %v274 = vpop.permute.xlu0 %273
        %275 = vrot.lane.b32.xlu0 %v248, 1
        %v276 = vpop.permute.xlu0 %275
        %277 = vrot.lane.b32.xlu0 %v249, 1
        %v278 = vpop.permute.xlu0 %277
        %279 = vrot.lane.b32.xlu0 %v250, 1
        %v280 = vpop.permute.xlu0 %279
        %281 = vrot.lane.b32.xlu0 %v251, 1
        %v282 = vpop.permute.xlu0 %281
        %283 = vrot.lane.b32.xlu0 %v252, 1
        %v284 = vpop.permute.xlu0 %283
        %v285 = vsel %vm221, 0, %v254
        %v286 = vsel %vm222, 0, %v256
        %v287 = vsel %vm223, 0, %v258
        %v288 = vsel %vm224, 0, %v260
        %v289 = vsel %vm225, 0, %v262
        %v290 = vsel %vm226, 0, %v264
        %v291 = vsel %vm227, 0, %v266
        %v292 = vsel %vm228, 0, %v268
        %v293 = vsel %vm229, 0, %v270
        %v294 = vsel %vm230, 0, %v272
        %v295 = vsel %vm231, 0, %v274
        %v296 = vsel %vm232, 0, %v276
        %v297 = vsel %vm233, 0, %v278
        %v298 = vsel %vm234, 0, %v280
        %v299 = vsel %vm235, 0, %v282
        %v300 = vsel %vm236, 0, %v284
        %v301 = vsel %vm221, 1, 2
        %v302 = vsel %vm222, 1, 2
        %v303 = vsel %vm223, 1, 2
        %v304 = vsel %vm224, 1, 2
        %v305 = vsel %vm225, 1, 2
        %v306 = vsel %vm226, 1, 2
        %v307 = vsel %vm227, 1, 2
        %v308 = vsel %vm228, 1, 2
        %v309 = vsel %vm229, 1, 2
        %v310 = vsel %vm230, 1, 2
        %v311 = vsel %vm231, 1, 2
        %v312 = vsel %vm232, 1, 2
        %v313 = vsel %vm233, 1, 2
        %v314 = vsel %vm234, 1, 2
        %v315 = vsel %vm235, 1, 2
        %v316 = vsel %vm236, 1, 2
        %317 = vrot.lane.b32.xlu0 %v285, 1
        %v318 = vpop.permute.xlu0 %317
        %319 = vrot.lane.b32.xlu0 %v286, 1
        %v320 = vpop.permute.xlu0 %319
        %321 = vrot.lane.b32.xlu0 %v287, 1
        %v322 = vpop.permute.xlu0 %321
        %323 = vrot.lane.b32.xlu0 %v288, 1
        %v324 = vpop.permute.xlu0 %323
        %325 = vrot.lane.b32.xlu0 %v289, 1
        %v326 = vpop.permute.xlu0 %325
        %327 = vrot.lane.b32.xlu0 %v290, 1
        %v328 = vpop.permute.xlu0 %327
        %329 = vrot.lane.b32.xlu0 %v291, 1
        %v330 = vpop.permute.xlu0 %329
        %331 = vrot.lane.b32.xlu0 %v292, 1
        %v332 = vpop.permute.xlu0 %331
        %333 = vrot.lane.b32.xlu0 %v293, 1
        %v334 = vpop.permute.xlu0 %333
        %335 = vrot.lane.b32.xlu0 %v294, 1
        %v336 = vpop.permute.xlu0 %335
        %337 = vrot.lane.b32.xlu0 %v295, 1
        %v338 = vpop.permute.xlu0 %337
        %339 = vrot.lane.b32.xlu0 %v296, 1
        %v340 = vpop.permute.xlu0 %339
        %341 = vrot.lane.b32.xlu0 %v297, 1
        %v342 = vpop.permute.xlu0 %341
        %343 = vrot.lane.b32.xlu0 %v298, 1
        %v344 = vpop.permute.xlu0 %343
        %345 = vrot.lane.b32.xlu0 %v299, 1
        %v346 = vpop.permute.xlu0 %345
        %347 = vrot.lane.b32.xlu0 %v300, 1
        %v348 = vpop.permute.xlu0 %347
        %349 = vrot.lane.b32.xlu0 %v301, 1
        %v350 = vpop.permute.xlu0 %349
        %351 = vrot.lane.b32.xlu0 %v302, 1
        %v352 = vpop.permute.xlu0 %351
        %353 = vrot.lane.b32.xlu0 %v303, 1
        %v354 = vpop.permute.xlu0 %353
        %355 = vrot.lane.b32.xlu0 %v304, 1
        %v356 = vpop.permute.xlu0 %355
        %357 = vrot.lane.b32.xlu0 %v305, 1
        %v358 = vpop.permute.xlu0 %357
        %359 = vrot.lane.b32.xlu0 %v306, 1
        %v360 = vpop.permute.xlu0 %359
        %361 = vrot.lane.b32.xlu0 %v307, 1
        %v362 = vpop.permute.xlu0 %361
        %363 = vrot.lane.b32.xlu0 %v308, 1
        %v364 = vpop.permute.xlu0 %363
        %365 = vrot.lane.b32.xlu0 %v309, 1
        %v366 = vpop.permute.xlu0 %365
        %367 = vrot.lane.b32.xlu0 %v310, 1
        %v368 = vpop.permute.xlu0 %367
        %369 = vrot.lane.b32.xlu0 %v311, 1
        %v370 = vpop.permute.xlu0 %369
        %371 = vrot.lane.b32.xlu0 %v312, 1
        %v372 = vpop.permute.xlu0 %371
        %373 = vrot.lane.b32.xlu0 %v313, 1
        %v374 = vpop.permute.xlu0 %373
        %375 = vrot.lane.b32.xlu0 %v314, 1
        %v376 = vpop.permute.xlu0 %375
        %377 = vrot.lane.b32.xlu0 %v315, 1
        %v378 = vpop.permute.xlu0 %377
        %379 = vrot.lane.b32.xlu0 %v316, 1
        %v380 = vpop.permute.xlu0 %379
        %v381 = vsel %vm221, %v318, %v350
        %v382 = vsel %vm222, %v320, %v352
        %v383 = vsel %vm223, %v322, %v354
        %v384 = vsel %vm224, %v324, %v356
        %v385 = vsel %vm225, %v326, %v358
        %v386 = vsel %vm226, %v328, %v360
        %v387 = vsel %vm227, %v330, %v362
        %v388 = vsel %vm228, %v332, %v364
        %v389 = vsel %vm229, %v334, %v366
        %v390 = vsel %vm230, %v336, %v368
        %v391 = vsel %vm231, %v338, %v370
        %v392 = vsel %vm232, %v340, %v372
        %v393 = vsel %vm233, %v342, %v374
        %v394 = vsel %vm234, %v344, %v376
        %v395 = vsel %vm235, %v346, %v378
        %v396 = vsel %vm236, %v348, %v380
        %v397 = vld [vmem:[%s2] sm:$0x1f]
        %v398 = vld [vmem:[%s2 + $0x8] sm:$0x1f]
        %v399 = vld [vmem:[%s2 + $0x10] sm:$0x1f]
        %v400 = vld [vmem:[%s2 + $0x18] sm:$0x1f]
        %v401 = vld [vmem:[%s2 + $0x20] sm:$0x1f]
        %v402 = vld [vmem:[%s2 + $0x28] sm:$0x1f]
        %v403 = vld [vmem:[%s2 + $0x30] sm:$0x1f]
        %v404 = vld [vmem:[%s2 + $0x38] sm:$0x1f]
        %v405 = vld [vmem:[#allocation2] sm:$0xff]
        %v406 = vld [vmem:[#allocation2 + $0x8] sm:$0xff]
        %v407 = vld [vmem:[#allocation2 + $0x10] sm:$0xff]
        %v408 = vld [vmem:[#allocation2 + $0x18] sm:$0xff]
        %v409 = vld [vmem:[#allocation2 + $0x20] sm:$0xff]
        %v410 = vld [vmem:[#allocation2 + $0x28] sm:$0xff]
        %v411 = vld [vmem:[#allocation2 + $0x30] sm:$0xff]
        %v412 = vld [vmem:[#allocation2 + $0x38] sm:$0xff]
        %v413 = vld [vmem:[#allocation2 + $0x40] sm:$0xff]
        %v414 = vld [vmem:[#allocation2 + $0x48] sm:$0xff]
        %v415 = vld [vmem:[#allocation2 + $0x50] sm:$0xff]
        %v416 = vld [vmem:[#allocation2 + $0x58] sm:$0xff]
        %v417 = vld [vmem:[#allocation2 + $0x60] sm:$0xff]
        %v418 = vld [vmem:[#allocation2 + $0x68] sm:$0xff]
        %v419 = vld [vmem:[#allocation2 + $0x70] sm:$0xff]
        %v420 = vld [vmem:[#allocation2 + $0x78] sm:$0xff]
        %v421 = vld [vmem:[#allocation2 + $0x80] sm:$0xff]
        %v422 = vld [vmem:[#allocation2 + $0x88] sm:$0xff]
        %v423 = vld [vmem:[#allocation2 + $0x90] sm:$0xff]
        %v424 = vld [vmem:[#allocation2 + $0x98] sm:$0xff]
        %v425 = vld [vmem:[#allocation2 + $0xa0] sm:$0xff]
        %v426 = vld [vmem:[#allocation2 + $0xa8] sm:$0xff]
        %v427 = vld [vmem:[#allocation2 + $0xb0] sm:$0xff]
        %v428 = vld [vmem:[#allocation2 + $0xb8] sm:$0xff]
        %v429 = vld [vmem:[#allocation2 + $0xc0] sm:$0xff]
        %v430 = vld [vmem:[#allocation2 + $0xc8] sm:$0xff]
        %v431 = vld [vmem:[#allocation2 + $0xd0] sm:$0xff]
        %v432 = vld [vmem:[#allocation2 + $0xd8] sm:$0xff]
        %v433 = vld [vmem:[#allocation2 + $0xe0] sm:$0xff]
        %v434 = vld [vmem:[#allocation2 + $0xe8] sm:$0xff]
        %v435 = vld [vmem:[#allocation2 + $0xf0] sm:$0xff]
        %v436 = vld [vmem:[#allocation2 + $0xf8] sm:$0xff]
        %v437 = vlaneseq
        %v438 = vshrl.u32 %v437, 7
        %v439 = vsub.s32 0, %v438
        %v440 = vrot.slane %v397, %v439
        %v441 = vlaneseq
        %v442 = vshrl.u32 %v441, 7
        %v443 = vsub.s32 0, %v442
        %v444 = vrot.slane %v398, %v443
        %v445 = vlaneseq
        %v446 = vshrl.u32 %v445, 7
        %v447 = vsub.s32 0, %v446
        %v448 = vrot.slane %v399, %v447
        %v449 = vlaneseq
        %v450 = vshrl.u32 %v449, 7
        %v451 = vsub.s32 0, %v450
        %v452 = vrot.slane %v400, %v451
        %v453 = vlaneseq
        %v454 = vshrl.u32 %v453, 7
        %v455 = vsub.s32 0, %v454
        %v456 = vrot.slane %v401, %v455
        %v457 = vlaneseq
        %v458 = vshrl.u32 %v457, 7
        %v459 = vsub.s32 0, %v458
        %v460 = vrot.slane %v402, %v459
        %v461 = vlaneseq
        %v462 = vshrl.u32 %v461, 7
        %v463 = vsub.s32 0, %v462
        %v464 = vrot.slane %v403, %v463
        %v465 = vlaneseq
        %v466 = vshrl.u32 %v465, 7
        %v467 = vsub.s32 0, %v466
        %v468 = vrot.slane %v404, %v467
        %vm469 = vcmask 261120
        %v471 = vsel %vm469, %v189, 0
        %v474 = vsel %vm469, %v190, 0
        %v477 = vsel %vm469, %v191, 0
        %v480 = vsel %vm469, %v192, 0
        %v483 = vsel %vm469, %v193, 0
        %v486 = vsel %vm469, %v194, 0
        %v489 = vsel %vm469, %v195, 0
        %v492 = vsel %vm469, %v196, 0
        %v495 = vsel %vm469, %v197, 0
        %v498 = vsel %vm469, %v198, 0
        %v501 = vsel %vm469, %v199, 0
        %v504 = vsel %vm469, %v200, 0
        %v507 = vsel %vm469, %v201, 0
        %v510 = vsel %vm469, %v202, 0
        %v513 = vsel %vm469, %v203, 0
        %v516 = vsel %vm469, %v204, 0
        %518 = vmatprep.subr.mxu0 %v406
        %519 = vmatpush1.msra.mxu0 %v405
        %520 = vmatprep.subr.mxu0 %v414
        %521 = vmatpush1.msra.mxu0 %v413
        %522 = vmatprep.subr.mxu0 %v422
        %523 = vmatpush1.msra.mxu0 %v421
        %524 = vmatprep.subr.mxu0 %v430
        %525 = vmatpush1.msra.mxu0 %v429
        %526 = vmatprep.subr.mxu0 0.0
        %527 = vmatpush1.msra.mxu0 0.0
        %528 = vmatprep.subr.mxu0 0.0
        %529 = vmatpush1.msra.mxu0 0.0
        %530 = vmatprep.subr.mxu0 0.0
        %531 = vmatpush1.msra.mxu0 0.0
        %532 = vmatprep.subr.mxu0 0.0
        %533 = vmatpush1.msra.mxu0 0.0
        %534 = vmatprep.subr.mxu0 0.0
        %535 = vmatpush1.msra.mxu0 0.0
        %536 = vmatprep.subr.mxu0 0.0
        %537 = vmatpush1.msra.mxu0 0.0
        %538 = vmatprep.subr.mxu0 0.0
        %539 = vmatpush1.msra.mxu0 0.0
        %540 = vmatprep.subr.mxu0 0.0
        %541 = vmatpush1.msra.mxu0 0.0
        %542 = vmatprep.subr.mxu0 0.0
        %543 = vmatpush1.msra.mxu0 0.0
        %544 = vmatprep.subr.mxu0 0.0
        %545 = vmatpush1.msra.mxu0 0.0
        %546 = vmatprep.subr.mxu0 0.0
        %547 = vmatpush1.msra.mxu0 0.0
        %548 = vmatprep.subr.mxu0 0.0
        %549 = vmatpush1.msra.mxu0 0.0
        %550 = vmatprep.subr.mxu0 0.0
        %551 = vmatpush1.msra.mxu0 0.0
        %552 = vmatprep.subr.mxu0 0.0
        %553 = vmatpush1.msra.mxu0 0.0
        %554 = vmatprep.subr.mxu0 0.0
        %555 = vmatpush1.msra.mxu0 0.0
        %556 = vmatprep.subr.mxu0 0.0
        %557 = vmatpush1.msra.mxu0 0.0
        %558 = vmatprep.subr.mxu0 0.0
        %559 = vmatpush1.msra.mxu0 0.0
        %560 = vmatprep.subr.mxu0 0.0
        %561 = vmatpush1.msra.mxu0 0.0
        %562 = vmatprep.subr.mxu0 0.0
        %563 = vmatpush1.msra.mxu0 0.0
        %564 = vmatprep.subr.mxu0 0.0
        %565 = vmatpush1.msra.mxu0 0.0
        %566 = vmatprep.subr.mxu0 0.0
        %567 = vmatpush1.msra.mxu0 0.0
        %568 = vmatprep.subr.mxu0 0.0
        %569 = vmatpush1.msra.mxu0 0.0
        %570 = vmatprep.subr.mxu0 0.0
        %571 = vmatpush1.msra.mxu0 0.0
        %572 = vmatprep.subr.mxu0 0.0
        %573 = vmatpush1.msra.mxu0 0.0
        %574 = vmatprep.subr.mxu0 0.0
        %575 = vmatpush1.msra.mxu0 0.0
        %576 = vmatprep.subr.mxu0 0.0
        %577 = vmatpush1.msra.mxu0 0.0
        %578 = vmatprep.subr.mxu0 0.0
        %579 = vmatpush1.msra.mxu0 0.0
        %580 = vmatprep.subr.mxu0 0.0
        %581 = vmatpush1.msra.mxu0 0.0
        %582 = vmatprep.mubr.f32.mxu0 0.0
        %583 = vmatmul.mubr.f32.gmra.mrb[0].mxu0 %v471
        %v584 = vpop.f32.mrb[0].mxu0
        %v585 = vadd.f32 %v440, %v584
        %v586 = vpop.f32.mrb[0].mxu0
        %v587 = vadd.f32 %v444, %v586
        %588 = vmatprep.mubr.f32.mxu0 0.0
        %589 = vmatmul.mubr.f32.gmra.mrb[0].mxu0 %v474
        %v590 = vpop.f32.mrb[0].mxu0
        %v591 = vadd.f32 %v440, %v590
        %v592 = vpop.f32.mrb[0].mxu0
        %v593 = vadd.f32 %v444, %v592
        %594 = vmatprep.mubr.f32.mxu0 0.0
        %595 = vmatmul.mubr.f32.gmra.mrb[0].mxu0 %v477
        %v596 = vpop.f32.mrb[0].mxu0
        %v597 = vadd.f32 %v440, %v596
        %v598 = vpop.f32.mrb[0].mxu0
        %v599 = vadd.f32 %v444, %v598
        %600 = vmatprep.mubr.f32.mxu0 0.0
        %601 = vmatmul.mubr.f32.gmra.mrb[0].mxu0 %v480
        %v602 = vpop.f32.mrb[0].mxu0
        %v603 = vadd.f32 %v440, %v602
        %v604 = vpop.f32.mrb[0].mxu0
        %v605 = vadd.f32 %v444, %v604
        %606 = vmatprep.mubr.f32.mxu0 0.0
        %607 = vmatmul.mubr.f32.gmra.mrb[0].mxu0 %v483
        %v608 = vpop.f32.mrb[0].mxu0
        %v609 = vadd.f32 %v440, %v608
        %v610 = vpop.f32.mrb[0].mxu0
        %v611 = vadd.f32 %v444, %v610
        %612 = vmatprep.mubr.f32.mxu0 0.0
        %613 = vmatmul.mubr.f32.gmra.mrb[0].mxu0 %v486
        %v614 = vpop.f32.mrb[0].mxu0
        %v615 = vadd.f32 %v440, %v614
        %v616 = vpop.f32.mrb[0].mxu0
        %v617 = vadd.f32 %v444, %v616
        %618 = vmatprep.mubr.f32.mxu0 0.0
        %619 = vmatmul.mubr.f32.gmra.mrb[0].mxu0 %v489
        %v620 = vpop.f32.mrb[0].mxu0
        %v621 = vadd.f32 %v440, %v620
        %v622 = vpop.f32.mrb[0].mxu0
        %v623 = vadd.f32 %v444, %v622
        %624 = vmatprep.mubr.f32.mxu0 0.0
        %625 = vmatmul.mubr.f32.gmra.mrb[0].mxu0 %v492
        %v626 = vpop.f32.mrb[0].mxu0
        %v627 = vadd.f32 %v440, %v626
        %v628 = vpop.f32.mrb[0].mxu0
        %v629 = vadd.f32 %v444, %v628
        %630 = vmatprep.mubr.f32.mxu0 0.0
        %631 = vmatmul.mubr.f32.gmra.mrb[0].mxu0 %v495
        %v632 = vpop.f32.mrb[0].mxu0
        %v633 = vadd.f32 %v440, %v632
        %v634 = vpop.f32.mrb[0].mxu0
        %v635 = vadd.f32 %v444, %v634
        %636 = vmatprep.mubr.f32.mxu0 0.0
        %637 = vmatmul.mubr.f32.gmra.mrb[0].mxu0 %v498
        %v638 = vpop.f32.mrb[0].mxu0
        %v639 = vadd.f32 %v440, %v638
        %v640 = vpop.f32.mrb[0].mxu0
        %v641 = vadd.f32 %v444, %v640
        %642 = vmatprep.mubr.f32.mxu0 0.0
        %643 = vmatmul.mubr.f32.gmra.mrb[0].mxu0 %v501
        %v644 = vpop.f32.mrb[0].mxu0
        %v645 = vadd.f32 %v440, %v644
        %v646 = vpop.f32.mrb[0].mxu0
        %v647 = vadd.f32 %v444, %v646
        %648 = vmatprep.mubr.f32.mxu0 0.0
        %649 = vmatmul.mubr.f32.gmra.mrb[0].mxu0 %v504
        %v650 = vpop.f32.mrb[0].mxu0
        %v651 = vadd.f32 %v440, %v650
        %v652 = vpop.f32.mrb[0].mxu0
        %v653 = vadd.f32 %v444, %v652
        %654 = vmatprep.mubr.f32.mxu0 0.0
        %655 = vmatmul.mubr.f32.gmra.mrb[0].mxu0 %v507
        %v656 = vpop.f32.mrb[0].mxu0
        %v657 = vadd.f32 %v440, %v656
        %v658 = vpop.f32.mrb[0].mxu0
        %v659 = vadd.f32 %v444, %v658
        %660 = vmatprep.mubr.f32.mxu0 0.0
        %661 = vmatmul.mubr.f32.gmra.mrb[0].mxu0 %v510
        %v662 = vpop.f32.mrb[0].mxu0
        %v663 = vadd.f32 %v440, %v662
        %v664 = vpop.f32.mrb[0].mxu0
        %v665 = vadd.f32 %v444, %v664
        %666 = vmatprep.mubr.f32.mxu0 0.0
        %667 = vmatmul.mubr.f32.gmra.mrb[0].mxu0 %v513
        %v668 = vpop.f32.mrb[0].mxu0
        %v669 = vadd.f32 %v440, %v668
        %v670 = vpop.f32.mrb[0].mxu0
        %v671 = vadd.f32 %v444, %v670
        %672 = vmatprep.mubr.f32.mxu0 0.0
        %673 = vmatmul.mubr.f32.gmra.mrb[0].mxu0 %v516
        %v674 = vpop.f32.mrb[0].mxu0
        %v675 = vadd.f32 %v440, %v674
        %v676 = vpop.f32.mrb[0].mxu0
        %v677 = vadd.f32 %v444, %v676
        %678 = vdwg.mxu0
        %679 = vmatprep.subr.mxu0 %v408
        %680 = vmatpush1.msra.mxu0 %v407
        %681 = vmatprep.subr.mxu0 %v416
        %682 = vmatpush1.msra.mxu0 %v415
        %683 = vmatprep.subr.mxu0 %v424
        %684 = vmatpush1.msra.mxu0 %v423
        %685 = vmatprep.subr.mxu0 %v432
        %686 = vmatpush1.msra.mxu0 %v431
        %687 = vmatprep.subr.mxu0 0.0
        %688 = vmatpush1.msra.mxu0 0.0
        %689 = vmatprep.subr.mxu0 0.0
        %690 = vmatpush1.msra.mxu0 0.0
        %691 = vmatprep.subr.mxu0 0.0
        %692 = vmatpush1.msra.mxu0 0.0
        %693 = vmatprep.subr.mxu0 0.0
        %694 = vmatpush1.msra.mxu0 0.0
        %695 = vmatprep.subr.mxu0 0.0
        %696 = vmatpush1.msra.mxu0 0.0
        %697 = vmatprep.subr.mxu0 0.0
        %698 = vmatpush1.msra.mxu0 0.0
        %699 = vmatprep.subr.mxu0 0.0
        %700 = vmatpush1.msra.mxu0 0.0
        %701 = vmatprep.subr.mxu0 0.0
        %702 = vmatpush1.msra.mxu0 0.0
        %703 = vmatprep.subr.mxu0 0.0
        %704 = vmatpush1.msra.mxu0 0.0
        %705 = vmatprep.subr.mxu0 0.0
        %706 = vmatpush1.msra.mxu0 0.0
        %707 = vmatprep.subr.mxu0 0.0
        %708 = vmatpush1.msra.mxu0 0.0
        %709 = vmatprep.subr.mxu0 0.0
        %710 = vmatpush1.msra.mxu0 0.0
        %711 = vmatprep.subr.mxu0 0.0
        %712 = vmatpush1.msra.mxu0 0.0
        %713 = vmatprep.subr.mxu0 0.0
        %714 = vmatpush1.msra.mxu0 0.0
        %715 = vmatprep.subr.mxu0 0.0
        %716 = vmatpush1.msra.mxu0 0.0
        %717 = vmatprep.subr.mxu0 0.0
        %718 = vmatpush1.msra.mxu0 0.0
        %719 = vmatprep.subr.mxu0 0.0
        %720 = vmatpush1.msra.mxu0 0.0
        %721 = vmatprep.subr.mxu0 0.0
        %722 = vmatpush1.msra.mxu0 0.0
        %723 = vmatprep.subr.mxu0 0.0
        %724 = vmatpush1.msra.mxu0 0.0
        %725 = vmatprep.subr.mxu0 0.0
        %726 = vmatpush1.msra.mxu0 0.0
        %727 = vmatprep.subr.mxu0 0.0
        %728 = vmatpush1.msra.mxu0 0.0
        %729 = vmatprep.subr.mxu0 0.0
        %730 = vmatpush1.msra.mxu0 0.0
        %731 = vmatprep.subr.mxu0 0.0
        %732 = vmatpush1.msra.mxu0 0.0
        %733 = vmatprep.subr.mxu0 0.0
        %734 = vmatpush1.msra.mxu0 0.0
        %735 = vmatprep.subr.mxu0 0.0
        %736 = vmatpush1.msra.mxu0 0.0
        %737 = vmatprep.subr.mxu0 0.0
        %738 = vmatpush1.msra.mxu0 0.0
        %739 = vmatprep.subr.mxu0 0.0
        %740 = vmatpush1.msra.mxu0 0.0
        %741 = vmatprep.subr.mxu0 0.0
        %742 = vmatpush1.msra.mxu0 0.0
        %743 = vmatprep.mubr.f32.mxu0 0.0
        %744 = vmatmul.mubr.f32.gmra.mrb[0].mxu0 %v471
        %v745 = vpop.f32.mrb[0].mxu0
        %v746 = vadd.f32 %v448, %v745
        %v747 = vpop.f32.mrb[0].mxu0
        %v748 = vadd.f32 %v452, %v747
        %749 = vmatprep.mubr.f32.mxu0 0.0
        %750 = vmatmul.mubr.f32.gmra.mrb[0].mxu0 %v474
        %v751 = vpop.f32.mrb[0].mxu0
        %v752 = vadd.f32 %v448, %v751
        %v753 = vpop.f32.mrb[0].mxu0
        %v754 = vadd.f32 %v452, %v753
        %755 = vmatprep.mubr.f32.mxu0 0.0
        %756 = vmatmul.mubr.f32.gmra.mrb[0].mxu0 %v477
        %v757 = vpop.f32.mrb[0].mxu0
        %v758 = vadd.f32 %v448, %v757
        %v759 = vpop.f32.mrb[0].mxu0
        %v760 = vadd.f32 %v452, %v759
        %761 = vmatprep.mubr.f32.mxu0 0.0
        %762 = vmatmul.mubr.f32.gmra.mrb[0].mxu0 %v480
        %v763 = vpop.f32.mrb[0].mxu0
        %v764 = vadd.f32 %v448, %v763
        %v765 = vpop.f32.mrb[0].mxu0
        %v766 = vadd.f32 %v452, %v765
        %767 = vmatprep.mubr.f32.mxu0 0.0
        %768 = vmatmul.mubr.f32.gmra.mrb[0].mxu0 %v483
        %v769 = vpop.f32.mrb[0].mxu0
        %v770 = vadd.f32 %v448, %v769
        %v771 = vpop.f32.mrb[0].mxu0
        %v772 = vadd.f32 %v452, %v771
        %773 = vmatprep.mubr.f32.mxu0 0.0
        %774 = vmatmul.mubr.f32.gmra.mrb[0].mxu0 %v486
        %v775 = vpop.f32.mrb[0].mxu0
        %v776 = vadd.f32 %v448, %v775
        %v777 = vpop.f32.mrb[0].mxu0
        %v778 = vadd.f32 %v452, %v777
        %779 = vmatprep.mubr.f32.mxu0 0.0
        %780 = vmatmul.mubr.f32.gmra.mrb[0].mxu0 %v489
        %v781 = vpop.f32.mrb[0].mxu0
        %v782 = vadd.f32 %v448, %v781
        %v783 = vpop.f32.mrb[0].mxu0
        %v784 = vadd.f32 %v452, %v783
        %785 = vmatprep.mubr.f32.mxu0 0.0
        %786 = vmatmul.mubr.f32.gmra.mrb[0].mxu0 %v492
        %v787 = vpop.f32.mrb[0].mxu0
        %v788 = vadd.f32 %v448, %v787
        %v789 = vpop.f32.mrb[0].mxu0
        %v790 = vadd.f32 %v452, %v789
        %791 = vmatprep.mubr.f32.mxu0 0.0
        %792 = vmatmul.mubr.f32.gmra.mrb[0].mxu0 %v495
        %v793 = vpop.f32.mrb[0].mxu0
        %v794 = vadd.f32 %v448, %v793
        %v795 = vpop.f32.mrb[0].mxu0
        %v796 = vadd.f32 %v452, %v795
        %797 = vmatprep.mubr.f32.mxu0 0.0
        %798 = vmatmul.mubr.f32.gmra.mrb[0].mxu0 %v498
        %v799 = vpop.f32.mrb[0].mxu0
        %v800 = vadd.f32 %v448, %v799
        %v801 = vpop.f32.mrb[0].mxu0
        %v802 = vadd.f32 %v452, %v801
        %803 = vmatprep.mubr.f32.mxu0 0.0
        %804 = vmatmul.mubr.f32.gmra.mrb[0].mxu0 %v501
        %v805 = vpop.f32.mrb[0].mxu0
        %v806 = vadd.f32 %v448, %v805
        %v807 = vpop.f32.mrb[0].mxu0
        %v808 = vadd.f32 %v452, %v807
        %809 = vmatprep.mubr.f32.mxu0 0.0
        %810 = vmatmul.mubr.f32.gmra.mrb[0].mxu0 %v504
        %v811 = vpop.f32.mrb[0].mxu0
        %v812 = vadd.f32 %v448, %v811
        %v813 = vpop.f32.mrb[0].mxu0
        %v814 = vadd.f32 %v452, %v813
        %815 = vmatprep.mubr.f32.mxu0 0.0
        %816 = vmatmul.mubr.f32.gmra.mrb[0].mxu0 %v507
        %v817 = vpop.f32.mrb[0].mxu0
        %v818 = vadd.f32 %v448, %v817
        %v819 = vpop.f32.mrb[0].mxu0
        %v820 = vadd.f32 %v452, %v819
        %821 = vmatprep.mubr.f32.mxu0 0.0
        %822 = vmatmul.mubr.f32.gmra.mrb[0].mxu0 %v510
        %v823 = vpop.f32.mrb[0].mxu0
        %v824 = vadd.f32 %v448, %v823
        %v825 = vpop.f32.mrb[0].mxu0
        %v826 = vadd.f32 %v452, %v825
        %827 = vmatprep.mubr.f32.mxu0 0.0
        %828 = vmatmul.mubr.f32.gmra.mrb[0].mxu0 %v513
        %v829 = vpop.f32.mrb[0].mxu0
        %v830 = vadd.f32 %v448, %v829
        %v831 = vpop.f32.mrb[0].mxu0
        %v832 = vadd.f32 %v452, %v831
        %833 = vmatprep.mubr.f32.mxu0 0.0
        %834 = vmatmul.mubr.f32.gmra.mrb[0].mxu0 %v516
        %v835 = vpop.f32.mrb[0].mxu0
        %v836 = vadd.f32 %v448, %v835
        %v837 = vpop.f32.mrb[0].mxu0
        %v838 = vadd.f32 %v452, %v837
        %839 = vdwg.mxu0
        %840 = vmatprep.subr.mxu0 %v410
        %841 = vmatpush1.msra.mxu0 %v409
        %842 = vmatprep.subr.mxu0 %v418
        %843 = vmatpush1.msra.mxu0 %v417
        %844 = vmatprep.subr.mxu0 %v426
        %845 = vmatpush1.msra.mxu0 %v425
        %846 = vmatprep.subr.mxu0 %v434
        %847 = vmatpush1.msra.mxu0 %v433
        %848 = vmatprep.subr.mxu0 0.0
        %849 = vmatpush1.msra.mxu0 0.0
        %850 = vmatprep.subr.mxu0 0.0
        %851 = vmatpush1.msra.mxu0 0.0
        %852 = vmatprep.subr.mxu0 0.0
        %853 = vmatpush1.msra.mxu0 0.0
        %854 = vmatprep.subr.mxu0 0.0
        %855 = vmatpush1.msra.mxu0 0.0
        %856 = vmatprep.subr.mxu0 0.0
        %857 = vmatpush1.msra.mxu0 0.0
        %858 = vmatprep.subr.mxu0 0.0
        %859 = vmatpush1.msra.mxu0 0.0
        %860 = vmatprep.subr.mxu0 0.0
        %861 = vmatpush1.msra.mxu0 0.0
        %862 = vmatprep.subr.mxu0 0.0
        %863 = vmatpush1.msra.mxu0 0.0
        %864 = vmatprep.subr.mxu0 0.0
        %865 = vmatpush1.msra.mxu0 0.0
        %866 = vmatprep.subr.mxu0 0.0
        %867 = vmatpush1.msra.mxu0 0.0
        %868 = vmatprep.subr.mxu0 0.0
        %869 = vmatpush1.msra.mxu0 0.0
        %870 = vmatprep.subr.mxu0 0.0
        %871 = vmatpush1.msra.mxu0 0.0
        %872 = vmatprep.subr.mxu0 0.0
        %873 = vmatpush1.msra.mxu0 0.0
        %874 = vmatprep.subr.mxu0 0.0
        %875 = vmatpush1.msra.mxu0 0.0
        %876 = vmatprep.subr.mxu0 0.0
        %877 = vmatpush1.msra.mxu0 0.0
        %878 = vmatprep.subr.mxu0 0.0
        %879 = vmatpush1.msra.mxu0 0.0
        %880 = vmatprep.subr.mxu0 0.0
        %881 = vmatpush1.msra.mxu0 0.0
        %882 = vmatprep.subr.mxu0 0.0
        %883 = vmatpush1.msra.mxu0 0.0
        %884 = vmatprep.subr.mxu0 0.0
        %885 = vmatpush1.msra.mxu0 0.0
        %886 = vmatprep.subr.mxu0 0.0
        %887 = vmatpush1.msra.mxu0 0.0
        %888 = vmatprep.subr.mxu0 0.0
        %889 = vmatpush1.msra.mxu0 0.0
        %890 = vmatprep.subr.mxu0 0.0
        %891 = vmatpush1.msra.mxu0 0.0
        %892 = vmatprep.subr.mxu0 0.0
        %893 = vmatpush1.msra.mxu0 0.0
        %894 = vmatprep.subr.mxu0 0.0
        %895 = vmatpush1.msra.mxu0 0.0
        %896 = vmatprep.subr.mxu0 0.0
        %897 = vmatpush1.msra.mxu0 0.0
        %898 = vmatprep.subr.mxu0 0.0
        %899 = vmatpush1.msra.mxu0 0.0
        %900 = vmatprep.subr.mxu0 0.0
        %901 = vmatpush1.msra.mxu0 0.0
        %902 = vmatprep.subr.mxu0 0.0
        %903 = vmatpush1.msra.mxu0 0.0
        %904 = vmatprep.mubr.f32.mxu0 0.0
        %905 = vmatmul.mubr.f32.gmra.mrb[0].mxu0 %v471
        %v906 = vpop.f32.mrb[0].mxu0
        %v907 = vadd.f32 %v456, %v906
        %v908 = vpop.f32.mrb[0].mxu0
        %v909 = vadd.f32 %v460, %v908
        %910 = vmatprep.mubr.f32.mxu0 0.0
        %911 = vmatmul.mubr.f32.gmra.mrb[0].mxu0 %v474
        %v912 = vpop.f32.mrb[0].mxu0
        %v913 = vadd.f32 %v456, %v912
        %v914 = vpop.f32.mrb[0].mxu0
        %v915 = vadd.f32 %v460, %v914
        %916 = vmatprep.mubr.f32.mxu0 0.0
        %917 = vmatmul.mubr.f32.gmra.mrb[0].mxu0 %v477
        %v918 = vpop.f32.mrb[0].mxu0
        %v919 = vadd.f32 %v456, %v918
        %v920 = vpop.f32.mrb[0].mxu0
        %v921 = vadd.f32 %v460, %v920
        %922 = vmatprep.mubr.f32.mxu0 0.0
        %923 = vmatmul.mubr.f32.gmra.mrb[0].mxu0 %v480
        %v924 = vpop.f32.mrb[0].mxu0
        %v925 = vadd.f32 %v456, %v924
        %v926 = vpop.f32.mrb[0].mxu0
        %v927 = vadd.f32 %v460, %v926
        %928 = vmatprep.mubr.f32.mxu0 0.0
        %929 = vmatmul.mubr.f32.gmra.mrb[0].mxu0 %v483
        %v930 = vpop.f32.mrb[0].mxu0
        %v931 = vadd.f32 %v456, %v930
        %v932 = vpop.f32.mrb[0].mxu0
        %v933 = vadd.f32 %v460, %v932
        %934 = vmatprep.mubr.f32.mxu0 0.0
        %935 = vmatmul.mubr.f32.gmra.mrb[0].mxu0 %v486
        %v936 = vpop.f32.mrb[0].mxu0
        %v937 = vadd.f32 %v456, %v936
        %v938 = vpop.f32.mrb[0].mxu0
        %v939 = vadd.f32 %v460, %v938
        %940 = vmatprep.mubr.f32.mxu0 0.0
        %941 = vmatmul.mubr.f32.gmra.mrb[0].mxu0 %v489
        %v942 = vpop.f32.mrb[0].mxu0
        %v943 = vadd.f32 %v456, %v942
        %v944 = vpop.f32.mrb[0].mxu0
        %v945 = vadd.f32 %v460, %v944
        %946 = vmatprep.mubr.f32.mxu0 0.0
        %947 = vmatmul.mubr.f32.gmra.mrb[0].mxu0 %v492
        %v948 = vpop.f32.mrb[0].mxu0
        %v949 = vadd.f32 %v456, %v948
        %v950 = vpop.f32.mrb[0].mxu0
        %v951 = vadd.f32 %v460, %v950
        %952 = vmatprep.mubr.f32.mxu0 0.0
        %953 = vmatmul.mubr.f32.gmra.mrb[0].mxu0 %v495
        %v954 = vpop.f32.mrb[0].mxu0
        %v955 = vadd.f32 %v456, %v954
        %v956 = vpop.f32.mrb[0].mxu0
        %v957 = vadd.f32 %v460, %v956
        %958 = vmatprep.mubr.f32.mxu0 0.0
        %959 = vmatmul.mubr.f32.gmra.mrb[0].mxu0 %v498
        %v960 = vpop.f32.mrb[0].mxu0
        %v961 = vadd.f32 %v456, %v960
        %v962 = vpop.f32.mrb[0].mxu0
        %v963 = vadd.f32 %v460, %v962
        %964 = vmatprep.mubr.f32.mxu0 0.0
        %965 = vmatmul.mubr.f32.gmra.mrb[0].mxu0 %v501
        %v966 = vpop.f32.mrb[0].mxu0
        %v967 = vadd.f32 %v456, %v966
        %v968 = vpop.f32.mrb[0].mxu0
        %v969 = vadd.f32 %v460, %v968
        %970 = vmatprep.mubr.f32.mxu0 0.0
        %971 = vmatmul.mubr.f32.gmra.mrb[0].mxu0 %v504
        %v972 = vpop.f32.mrb[0].mxu0
        %v973 = vadd.f32 %v456, %v972
        %v974 = vpop.f32.mrb[0].mxu0
        %v975 = vadd.f32 %v460, %v974
        %976 = vmatprep.mubr.f32.mxu0 0.0
        %977 = vmatmul.mubr.f32.gmra.mrb[0].mxu0 %v507
        %v978 = vpop.f32.mrb[0].mxu0
        %v979 = vadd.f32 %v456, %v978
        %v980 = vpop.f32.mrb[0].mxu0
        %v981 = vadd.f32 %v460, %v980
        %982 = vmatprep.mubr.f32.mxu0 0.0
        %983 = vmatmul.mubr.f32.gmra.mrb[0].mxu0 %v510
        %v984 = vpop.f32.mrb[0].mxu0
        %v985 = vadd.f32 %v456, %v984
        %v986 = vpop.f32.mrb[0].mxu0
        %v987 = vadd.f32 %v460, %v986
        %988 = vmatprep.mubr.f32.mxu0 0.0
        %989 = vmatmul.mubr.f32.gmra.mrb[0].mxu0 %v513
        %v990 = vpop.f32.mrb[0].mxu0
        %v991 = vadd.f32 %v456, %v990
        %v992 = vpop.f32.mrb[0].mxu0
        %v993 = vadd.f32 %v460, %v992
        %994 = vmatprep.mubr.f32.mxu0 0.0
        %995 = vmatmul.mubr.f32.gmra.mrb[0].mxu0 %v516
        %v996 = vpop.f32.mrb[0].mxu0
        %v997 = vadd.f32 %v456, %v996
        %v998 = vpop.f32.mrb[0].mxu0
        %v999 = vadd.f32 %v460, %v998
        %1000 = vdwg.mxu0
        %1001 = vmatprep.subr.mxu0 %v412
        %1002 = vmatpush1.msra.mxu0 %v411
        %1003 = vmatprep.subr.mxu0 %v420
        %1004 = vmatpush1.msra.mxu0 %v419
        %1005 = vmatprep.subr.mxu0 %v428
        %1006 = vmatpush1.msra.mxu0 %v427
        %1007 = vmatprep.subr.mxu0 %v436
        %1008 = vmatpush1.msra.mxu0 %v435
        %1009 = vmatprep.subr.mxu0 0.0
        %1010 = vmatpush1.msra.mxu0 0.0
        %1011 = vmatprep.subr.mxu0 0.0
        %1012 = vmatpush1.msra.mxu0 0.0
        %1013 = vmatprep.subr.mxu0 0.0
        %1014 = vmatpush1.msra.mxu0 0.0
        %1015 = vmatprep.subr.mxu0 0.0
        %1016 = vmatpush1.msra.mxu0 0.0
        %1017 = vmatprep.subr.mxu0 0.0
        %1018 = vmatpush1.msra.mxu0 0.0
        %1019 = vmatprep.subr.mxu0 0.0
        %1020 = vmatpush1.msra.mxu0 0.0
        %1021 = vmatprep.subr.mxu0 0.0
        %1022 = vmatpush1.msra.mxu0 0.0
        %1023 = vmatprep.subr.mxu0 0.0
        %1024 = vmatpush1.msra.mxu0 0.0
        %1025 = vmatprep.subr.mxu0 0.0
        %1026 = vmatpush1.msra.mxu0 0.0
        %1027 = vmatprep.subr.mxu0 0.0
        %1028 = vmatpush1.msra.mxu0 0.0
        %1029 = vmatprep.subr.mxu0 0.0
        %1030 = vmatpush1.msra.mxu0 0.0
        %1031 = vmatprep.subr.mxu0 0.0
        %1032 = vmatpush1.msra.mxu0 0.0
        %1033 = vmatprep.subr.mxu0 0.0
        %1034 = vmatpush1.msra.mxu0 0.0
        %1035 = vmatprep.subr.mxu0 0.0
        %1036 = vmatpush1.msra.mxu0 0.0
        %1037 = vmatprep.subr.mxu0 0.0
        %1038 = vmatpush1.msra.mxu0 0.0
        %1039 = vmatprep.subr.mxu0 0.0
        %1040 = vmatpush1.msra.mxu0 0.0
        %1041 = vmatprep.subr.mxu0 0.0
        %1042 = vmatpush1.msra.mxu0 0.0
        %1043 = vmatprep.subr.mxu0 0.0
        %1044 = vmatpush1.msra.mxu0 0.0
        %1045 = vmatprep.subr.mxu0 0.0
        %1046 = vmatpush1.msra.mxu0 0.0
        %1047 = vmatprep.subr.mxu0 0.0
        %1048 = vmatpush1.msra.mxu0 0.0
        %1049 = vmatprep.subr.mxu0 0.0
        %1050 = vmatpush1.msra.mxu0 0.0
        %1051 = vmatprep.subr.mxu0 0.0
        %1052 = vmatpush1.msra.mxu0 0.0
        %1053 = vmatprep.subr.mxu0 0.0
        %1054 = vmatpush1.msra.mxu0 0.0
        %1055 = vmatprep.subr.mxu0 0.0
        %1056 = vmatpush1.msra.mxu0 0.0
        %1057 = vmatprep.subr.mxu0 0.0
        %1058 = vmatpush1.msra.mxu0 0.0
        %1059 = vmatprep.subr.mxu0 0.0
        %1060 = vmatpush1.msra.mxu0 0.0
        %1061 = vmatprep.subr.mxu0 0.0
        %1062 = vmatpush1.msra.mxu0 0.0
        %1063 = vmatprep.subr.mxu0 0.0
        %1064 = vmatpush1.msra.mxu0 0.0
        %1065 = vmatprep.mubr.f32.mxu0 0.0
        %1066 = vmatmul.mubr.f32.gmra.mrb[0].mxu0 %v471
        %v1067 = vpop.f32.mrb[0].mxu0
        %v1068 = vadd.f32 %v464, %v1067
        %v1069 = vpop.f32.mrb[0].mxu0
        %v1070 = vadd.f32 %v468, %v1069
        %1071 = vmatprep.mubr.f32.mxu0 0.0
        %1072 = vmatmul.mubr.f32.gmra.mrb[0].mxu0 %v474
        %v1073 = vpop.f32.mrb[0].mxu0
        %v1074 = vadd.f32 %v464, %v1073
        %v1075 = vpop.f32.mrb[0].mxu0
        %v1076 = vadd.f32 %v468, %v1075
        %1077 = vmatprep.mubr.f32.mxu0 0.0
        %1078 = vmatmul.mubr.f32.gmra.mrb[0].mxu0 %v477
        %v1079 = vpop.f32.mrb[0].mxu0
        %v1080 = vadd.f32 %v464, %v1079
        %v1081 = vpop.f32.mrb[0].mxu0
        %v1082 = vadd.f32 %v468, %v1081
        %1083 = vmatprep.mubr.f32.mxu0 0.0
        %1084 = vmatmul.mubr.f32.gmra.mrb[0].mxu0 %v480
        %v1085 = vpop.f32.mrb[0].mxu0
        %v1086 = vadd.f32 %v464, %v1085
        %v1087 = vpop.f32.mrb[0].mxu0
        %v1088 = vadd.f32 %v468, %v1087
        %1089 = vmatprep.mubr.f32.mxu0 0.0
        %1090 = vmatmul.mubr.f32.gmra.mrb[0].mxu0 %v483
        %v1091 = vpop.f32.mrb[0].mxu0
        %v1092 = vadd.f32 %v464, %v1091
        %v1093 = vpop.f32.mrb[0].mxu0
        %v1094 = vadd.f32 %v468, %v1093
        %1095 = vmatprep.mubr.f32.mxu0 0.0
        %1096 = vmatmul.mubr.f32.gmra.mrb[0].mxu0 %v486
        %v1097 = vpop.f32.mrb[0].mxu0
        %v1098 = vadd.f32 %v464, %v1097
        %v1099 = vpop.f32.mrb[0].mxu0
        %v1100 = vadd.f32 %v468, %v1099
        %1101 = vmatprep.mubr.f32.mxu0 0.0
        %1102 = vmatmul.mubr.f32.gmra.mrb[0].mxu0 %v489
        %v1103 = vpop.f32.mrb[0].mxu0
        %v1104 = vadd.f32 %v464, %v1103
        %v1105 = vpop.f32.mrb[0].mxu0
        %v1106 = vadd.f32 %v468, %v1105
        %1107 = vmatprep.mubr.f32.mxu0 0.0
        %1108 = vmatmul.mubr.f32.gmra.mrb[0].mxu0 %v492
        %v1109 = vpop.f32.mrb[0].mxu0
        %v1110 = vadd.f32 %v464, %v1109
        %v1111 = vpop.f32.mrb[0].mxu0
        %v1112 = vadd.f32 %v468, %v1111
        %1113 = vmatprep.mubr.f32.mxu0 0.0
        %1114 = vmatmul.mubr.f32.gmra.mrb[0].mxu0 %v495
        %v1115 = vpop.f32.mrb[0].mxu0
        %v1116 = vadd.f32 %v464, %v1115
        %v1117 = vpop.f32.mrb[0].mxu0
        %v1118 = vadd.f32 %v468, %v1117
        %1119 = vmatprep.mubr.f32.mxu0 0.0
        %1120 = vmatmul.mubr.f32.gmra.mrb[0].mxu0 %v498
        %v1121 = vpop.f32.mrb[0].mxu0
        %v1122 = vadd.f32 %v464, %v1121
        %v1123 = vpop.f32.mrb[0].mxu0
        %v1124 = vadd.f32 %v468, %v1123
        %1125 = vmatprep.mubr.f32.mxu0 0.0
        %1126 = vmatmul.mubr.f32.gmra.mrb[0].mxu0 %v501
        %v1127 = vpop.f32.mrb[0].mxu0
        %v1128 = vadd.f32 %v464, %v1127
        %v1129 = vpop.f32.mrb[0].mxu0
        %v1130 = vadd.f32 %v468, %v1129
        %1131 = vmatprep.mubr.f32.mxu0 0.0
        %1132 = vmatmul.mubr.f32.gmra.mrb[0].mxu0 %v504
        %v1133 = vpop.f32.mrb[0].mxu0
        %v1134 = vadd.f32 %v464, %v1133
        %v1135 = vpop.f32.mrb[0].mxu0
        %v1136 = vadd.f32 %v468, %v1135
        %1137 = vmatprep.mubr.f32.mxu0 0.0
        %1138 = vmatmul.mubr.f32.gmra.mrb[0].mxu0 %v507
        %v1139 = vpop.f32.mrb[0].mxu0
        %v1140 = vadd.f32 %v464, %v1139
        %v1141 = vpop.f32.mrb[0].mxu0
        %v1142 = vadd.f32 %v468, %v1141
        %1143 = vmatprep.mubr.f32.mxu0 0.0
        %1144 = vmatmul.mubr.f32.gmra.mrb[0].mxu0 %v510
        %v1145 = vpop.f32.mrb[0].mxu0
        %v1146 = vadd.f32 %v464, %v1145
        %v1147 = vpop.f32.mrb[0].mxu0
        %v1148 = vadd.f32 %v468, %v1147
        %1149 = vmatprep.mubr.f32.mxu0 0.0
        %1150 = vmatmul.mubr.f32.gmra.mrb[0].mxu0 %v513
        %v1151 = vpop.f32.mrb[0].mxu0
        %v1152 = vadd.f32 %v464, %v1151
        %v1153 = vpop.f32.mrb[0].mxu0
        %v1154 = vadd.f32 %v468, %v1153
        %1155 = vmatprep.mubr.f32.mxu0 0.0
        %1156 = vmatmul.mubr.f32.gmra.mrb[0].mxu0 %v516
        %v1157 = vpop.f32.mrb[0].mxu0
        %v1158 = vadd.f32 %v464, %v1157
        %v1159 = vpop.f32.mrb[0].mxu0
        %v1160 = vadd.f32 %v468, %v1159
        %1161 = vdwg.mxu0
        %vm1162 = vcmp.eq.s32.totalorder %v381, 0
        %vm1163 = vcmp.eq.s32.totalorder %v382, 0
        %vm1164 = vcmp.eq.s32.totalorder %v383, 0
        %vm1165 = vcmp.eq.s32.totalorder %v384, 0
        %vm1166 = vcmp.eq.s32.totalorder %v385, 0
        %vm1167 = vcmp.eq.s32.totalorder %v386, 0
        %vm1168 = vcmp.eq.s32.totalorder %v387, 0
        %vm1169 = vcmp.eq.s32.totalorder %v388, 0
        %vm1170 = vcmp.eq.s32.totalorder %v389, 0
        %vm1171 = vcmp.eq.s32.totalorder %v390, 0
        %vm1172 = vcmp.eq.s32.totalorder %v391, 0
        %vm1173 = vcmp.eq.s32.totalorder %v392, 0
        %vm1174 = vcmp.eq.s32.totalorder %v393, 0
        %vm1175 = vcmp.eq.s32.totalorder %v394, 0
        %vm1176 = vcmp.eq.s32.totalorder %v395, 0
        %vm1177 = vcmp.eq.s32.totalorder %v396, 0
        %v1178 = vsel %vm1162, 1, 0
        %v1179 = vsel %vm1163, 1, 0
        %v1180 = vsel %vm1164, 1, 0
        %v1181 = vsel %vm1165, 1, 0
        %v1182 = vsel %vm1166, 1, 0
        %v1183 = vsel %vm1167, 1, 0
        %v1184 = vsel %vm1168, 1, 0
        %v1185 = vsel %vm1169, 1, 0
        %v1186 = vsel %vm1170, 1, 0
        %v1187 = vsel %vm1171, 1, 0
        %v1188 = vsel %vm1172, 1, 0
        %v1189 = vsel %vm1173, 1, 0
        %v1190 = vsel %vm1174, 1, 0
        %v1191 = vsel %vm1175, 1, 0
        %v1192 = vsel %vm1176, 1, 0
        %v1193 = vsel %vm1177, 1, 0
        %1194 = vset.pattern.permute.xlu0 31
        %1195 = vperm.xlu0 %1194, %v1178
        %v1196 = vpop.permute.xlu0 %1195
        %1197 = vset.pattern.permute.xlu0 31
        %1198 = vperm.xlu0 %1197, %v1179
        %v1199 = vpop.permute.xlu0 %1198
        %1200 = vset.pattern.permute.xlu0 31
        %1201 = vperm.xlu0 %1200, %v1180
        %v1202 = vpop.permute.xlu0 %1201
        %1203 = vset.pattern.permute.xlu0 31
        %1204 = vperm.xlu0 %1203, %v1181
        %v1205 = vpop.permute.xlu0 %1204
        %1206 = vset.pattern.permute.xlu0 31
        %1207 = vperm.xlu0 %1206, %v1182
        %v1208 = vpop.permute.xlu0 %1207
        %1209 = vset.pattern.permute.xlu0 31
        %1210 = vperm.xlu0 %1209, %v1183
        %v1211 = vpop.permute.xlu0 %1210
        %1212 = vset.pattern.permute.xlu0 31
        %1213 = vperm.xlu0 %1212, %v1184
        %v1214 = vpop.permute.xlu0 %1213
        %1215 = vset.pattern.permute.xlu0 31
        %1216 = vperm.xlu0 %1215, %v1185
        %v1217 = vpop.permute.xlu0 %1216
        %1218 = vset.pattern.permute.xlu0 31
        %1219 = vperm.xlu0 %1218, %v1186
        %v1220 = vpop.permute.xlu0 %1219
        %1221 = vset.pattern.permute.xlu0 31
        %1222 = vperm.xlu0 %1221, %v1187
        %v1223 = vpop.permute.xlu0 %1222
        %1224 = vset.pattern.permute.xlu0 31
        %1225 = vperm.xlu0 %1224, %v1188
        %v1226 = vpop.permute.xlu0 %1225
        %1227 = vset.pattern.permute.xlu0 31
        %1228 = vperm.xlu0 %1227, %v1189
        %v1229 = vpop.permute.xlu0 %1228
        %1230 = vset.pattern.permute.xlu0 31
        %1231 = vperm.xlu0 %1230, %v1190
        %v1232 = vpop.permute.xlu0 %1231
        %1233 = vset.pattern.permute.xlu0 31
        %1234 = vperm.xlu0 %1233, %v1191
        %v1235 = vpop.permute.xlu0 %1234
        %1236 = vset.pattern.permute.xlu0 31
        %1237 = vperm.xlu0 %1236, %v1192
        %v1238 = vpop.permute.xlu0 %1237
        %1239 = vset.pattern.permute.xlu0 31
        %1240 = vperm.xlu0 %1239, %v1193
        %v1241 = vpop.permute.xlu0 %1240
        %vm1242 = vcmp.eq.s32.totalorder %v1196, 1
        %vm1243 = vcmp.eq.s32.totalorder %v1199, 1
        %vm1244 = vcmp.eq.s32.totalorder %v1202, 1
        %vm1245 = vcmp.eq.s32.totalorder %v1205, 1
        %vm1246 = vcmp.eq.s32.totalorder %v1208, 1
        %vm1247 = vcmp.eq.s32.totalorder %v1211, 1
        %vm1248 = vcmp.eq.s32.totalorder %v1214, 1
        %vm1249 = vcmp.eq.s32.totalorder %v1217, 1
        %vm1250 = vcmp.eq.s32.totalorder %v1220, 1
        %vm1251 = vcmp.eq.s32.totalorder %v1223, 1
        %vm1252 = vcmp.eq.s32.totalorder %v1226, 1
        %vm1253 = vcmp.eq.s32.totalorder %v1229, 1
        %vm1254 = vcmp.eq.s32.totalorder %v1232, 1
        %vm1255 = vcmp.eq.s32.totalorder %v1235, 1
        %vm1256 = vcmp.eq.s32.totalorder %v1238, 1
        %vm1257 = vcmp.eq.s32.totalorder %v1241, 1
        %v1258 = vsel %vm1242, %v585, 0.0
        %v1259 = vsel %vm1242, %v587, 0.0
        %v1260 = vsel %vm1242, %v746, 0.0
        %v1261 = vsel %vm1242, %v748, 0.0
        %v1262 = vsel %vm1242, %v907, 0.0
        %v1263 = vsel %vm1242, %v909, 0.0
        %v1264 = vsel %vm1242, %v1068, 0.0
        %v1265 = vsel %vm1242, %v1070, 0.0
        %v1266 = vsel %vm1243, %v591, 0.0
        %v1267 = vsel %vm1243, %v593, 0.0
        %v1268 = vsel %vm1243, %v752, 0.0
        %v1269 = vsel %vm1243, %v754, 0.0
        %v1270 = vsel %vm1243, %v913, 0.0
        %v1271 = vsel %vm1243, %v915, 0.0
        %v1272 = vsel %vm1243, %v1074, 0.0
        %v1273 = vsel %vm1243, %v1076, 0.0
        %v1274 = vsel %vm1244, %v597, 0.0
        %v1275 = vsel %vm1244, %v599, 0.0
        %v1276 = vsel %vm1244, %v758, 0.0
        %v1277 = vsel %vm1244, %v760, 0.0
        %v1278 = vsel %vm1244, %v919, 0.0
        %v1279 = vsel %vm1244, %v921, 0.0
        %v1280 = vsel %vm1244, %v1080, 0.0
        %v1281 = vsel %vm1244, %v1082, 0.0
        %v1282 = vsel %vm1245, %v603, 0.0
        %v1283 = vsel %vm1245, %v605, 0.0
        %v1284 = vsel %vm1245, %v764, 0.0
        %v1285 = vsel %vm1245, %v766, 0.0
        %v1286 = vsel %vm1245, %v925, 0.0
        %v1287 = vsel %vm1245, %v927, 0.0
        %v1288 = vsel %vm1245, %v1086, 0.0
        %v1289 = vsel %vm1245, %v1088, 0.0
        %v1290 = vsel %vm1246, %v609, 0.0
        %v1291 = vsel %vm1246, %v611, 0.0
        %v1292 = vsel %vm1246, %v770, 0.0
        %v1293 = vsel %vm1246, %v772, 0.0
        %v1294 = vsel %vm1246, %v931, 0.0
        %v1295 = vsel %vm1246, %v933, 0.0
        %v1296 = vsel %vm1246, %v1092, 0.0
        %v1297 = vsel %vm1246, %v1094, 0.0
        %v1298 = vsel %vm1247, %v615, 0.0
        %v1299 = vsel %vm1247, %v617, 0.0
        %v1300 = vsel %vm1247, %v776, 0.0
        %v1301 = vsel %vm1247, %v778, 0.0
        %v1302 = vsel %vm1247, %v937, 0.0
        %v1303 = vsel %vm1247, %v939, 0.0
        %v1304 = vsel %vm1247, %v1098, 0.0
        %v1305 = vsel %vm1247, %v1100, 0.0
        %v1306 = vsel %vm1248, %v621, 0.0
        %v1307 = vsel %vm1248, %v623, 0.0
        %v1308 = vsel %vm1248, %v782, 0.0
        %v1309 = vsel %vm1248, %v784, 0.0
        %v1310 = vsel %vm1248, %v943, 0.0
        %v1311 = vsel %vm1248, %v945, 0.0
        %v1312 = vsel %vm1248, %v1104, 0.0
        %v1313 = vsel %vm1248, %v1106, 0.0
        %v1314 = vsel %vm1249, %v627, 0.0
        %v1315 = vsel %vm1249, %v629, 0.0
        %v1316 = vsel %vm1249, %v788, 0.0
        %v1317 = vsel %vm1249, %v790, 0.0
        %v1318 = vsel %vm1249, %v949, 0.0
        %v1319 = vsel %vm1249, %v951, 0.0
        %v1320 = vsel %vm1249, %v1110, 0.0
        %v1321 = vsel %vm1249, %v1112, 0.0
        %v1322 = vsel %vm1250, %v633, 0.0
        %v1323 = vsel %vm1250, %v635, 0.0
        %v1324 = vsel %vm1250, %v794, 0.0
        %v1325 = vsel %vm1250, %v796, 0.0
        %v1326 = vsel %vm1250, %v955, 0.0
        %v1327 = vsel %vm1250, %v957, 0.0
        %v1328 = vsel %vm1250, %v1116, 0.0
        %v1329 = vsel %vm1250, %v1118, 0.0
        %v1330 = vsel %vm1251, %v639, 0.0
        %v1331 = vsel %vm1251, %v641, 0.0
        %v1332 = vsel %vm1251, %v800, 0.0
        %v1333 = vsel %vm1251, %v802, 0.0
        %v1334 = vsel %vm1251, %v961, 0.0
        %v1335 = vsel %vm1251, %v963, 0.0
        %v1336 = vsel %vm1251, %v1122, 0.0
        %v1337 = vsel %vm1251, %v1124, 0.0
        %v1338 = vsel %vm1252, %v645, 0.0
        %v1339 = vsel %vm1252, %v647, 0.0
        %v1340 = vsel %vm1252, %v806, 0.0
        %v1341 = vsel %vm1252, %v808, 0.0
        %v1342 = vsel %vm1252, %v967, 0.0
        %v1343 = vsel %vm1252, %v969, 0.0
        %v1344 = vsel %vm1252, %v1128, 0.0
        %v1345 = vsel %vm1252, %v1130, 0.0
        %v1346 = vsel %vm1253, %v651, 0.0
        %v1347 = vsel %vm1253, %v653, 0.0
        %v1348 = vsel %vm1253, %v812, 0.0
        %v1349 = vsel %vm1253, %v814, 0.0
        %v1350 = vsel %vm1253, %v973, 0.0
        %v1351 = vsel %vm1253, %v975, 0.0
        %v1352 = vsel %vm1253, %v1134, 0.0
        %v1353 = vsel %vm1253, %v1136, 0.0
        %v1354 = vsel %vm1254, %v657, 0.0
        %v1355 = vsel %vm1254, %v659, 0.0
        %v1356 = vsel %vm1254, %v818, 0.0
        %v1357 = vsel %vm1254, %v820, 0.0
        %v1358 = vsel %vm1254, %v979, 0.0
        %v1359 = vsel %vm1254, %v981, 0.0
        %v1360 = vsel %vm1254, %v1140, 0.0
        %v1361 = vsel %vm1254, %v1142, 0.0
        %v1362 = vsel %vm1255, %v663, 0.0
        %v1363 = vsel %vm1255, %v665, 0.0
        %v1364 = vsel %vm1255, %v824, 0.0
        %v1365 = vsel %vm1255, %v826, 0.0
        %v1366 = vsel %vm1255, %v985, 0.0
        %v1367 = vsel %vm1255, %v987, 0.0
        %v1368 = vsel %vm1255, %v1146, 0.0
        %v1369 = vsel %vm1255, %v1148, 0.0
        %v1370 = vsel %vm1256, %v669, 0.0
        %v1371 = vsel %vm1256, %v671, 0.0
        %v1372 = vsel %vm1256, %v830, 0.0
        %v1373 = vsel %vm1256, %v832, 0.0
        %v1374 = vsel %vm1256, %v991, 0.0
        %v1375 = vsel %vm1256, %v993, 0.0
        %v1376 = vsel %vm1256, %v1152, 0.0
        %v1377 = vsel %vm1256, %v1154, 0.0
        %v1378 = vsel %vm1257, %v675, 0.0
        %v1379 = vsel %vm1257, %v677, 0.0
        %v1380 = vsel %vm1257, %v836, 0.0
        %v1381 = vsel %vm1257, %v838, 0.0
        %v1382 = vsel %vm1257, %v997, 0.0
        %v1383 = vsel %vm1257, %v999, 0.0
        %v1384 = vsel %vm1257, %v1158, 0.0
        %v1385 = vsel %vm1257, %v1160, 0.0
        %s1386 = scalar_lea.vmem [#allocation2], 256
        %v1387 = vld [vmem:[%s1386] sm:$0xff]
        %v1388 = vld [vmem:[%s1386 + $0x8] sm:$0xff]
        %v1389 = vld [vmem:[%s1386 + $0x10] sm:$0xff]
        %v1390 = vld [vmem:[%s1386 + $0x18] sm:$0xff]
        %v1391 = vld [vmem:[%s1386 + $0x20] sm:$0xff]
        %v1392 = vld [vmem:[%s1386 + $0x28] sm:$0xff]
        %v1393 = vld [vmem:[%s1386 + $0x30] sm:$0xff]
        %v1394 = vld [vmem:[%s1386 + $0x38] sm:$0xff]
        %v1395 = vld [vmem:[%s1386 + $0x40] sm:$0xff]
        %v1396 = vld [vmem:[%s1386 + $0x48] sm:$0xff]
        %v1397 = vld [vmem:[%s1386 + $0x50] sm:$0xff]
        %v1398 = vld [vmem:[%s1386 + $0x58] sm:$0xff]
        %v1399 = vld [vmem:[%s1386 + $0x60] sm:$0xff]
        %v1400 = vld [vmem:[%s1386 + $0x68] sm:$0xff]
        %v1401 = vld [vmem:[%s1386 + $0x70] sm:$0xff]
        %v1402 = vld [vmem:[%s1386 + $0x78] sm:$0xff]
        %v1403 = vld [vmem:[%s1386 + $0x80] sm:$0xff]
        %v1404 = vld [vmem:[%s1386 + $0x88] sm:$0xff]
        %v1405 = vld [vmem:[%s1386 + $0x90] sm:$0xff]
        %v1406 = vld [vmem:[%s1386 + $0x98] sm:$0xff]
        %v1407 = vld [vmem:[%s1386 + $0xa0] sm:$0xff]
        %v1408 = vld [vmem:[%s1386 + $0xa8] sm:$0xff]
        %v1409 = vld [vmem:[%s1386 + $0xb0] sm:$0xff]
        %v1410 = vld [vmem:[%s1386 + $0xb8] sm:$0xff]
        %v1411 = vld [vmem:[%s1386 + $0xc0] sm:$0xff]
        %v1412 = vld [vmem:[%s1386 + $0xc8] sm:$0xff]
        %v1413 = vld [vmem:[%s1386 + $0xd0] sm:$0xff]
        %v1414 = vld [vmem:[%s1386 + $0xd8] sm:$0xff]
        %v1415 = vld [vmem:[%s1386 + $0xe0] sm:$0xff]
        %v1416 = vld [vmem:[%s1386 + $0xe8] sm:$0xff]
        %v1417 = vld [vmem:[%s1386 + $0xf0] sm:$0xff]
        %v1418 = vld [vmem:[%s1386 + $0xf8] sm:$0xff]
        %v1419 = vlaneseq
        %v1420 = vshrl.u32 %v1419, 7
        %v1421 = vsub.s32 1, %v1420
        %v1422 = vrot.slane %v397, %v1421
        %v1423 = vlaneseq
        %v1424 = vshrl.u32 %v1423, 7
        %v1425 = vsub.s32 1, %v1424
        %v1426 = vrot.slane %v398, %v1425
        %v1427 = vlaneseq
        %v1428 = vshrl.u32 %v1427, 7
        %v1429 = vsub.s32 1, %v1428
        %v1430 = vrot.slane %v399, %v1429
        %v1431 = vlaneseq
        %v1432 = vshrl.u32 %v1431, 7
        %v1433 = vsub.s32 1, %v1432
        %v1434 = vrot.slane %v400, %v1433
        %v1435 = vlaneseq
        %v1436 = vshrl.u32 %v1435, 7
        %v1437 = vsub.s32 1, %v1436
        %v1438 = vrot.slane %v401, %v1437
        %v1439 = vlaneseq
        %v1440 = vshrl.u32 %v1439, 7
        %v1441 = vsub.s32 1, %v1440
        %v1442 = vrot.slane %v402, %v1441
        %v1443 = vlaneseq
        %v1444 = vshrl.u32 %v1443, 7
        %v1445 = vsub.s32 1, %v1444
        %v1446 = vrot.slane %v403, %v1445
        %v1447 = vlaneseq
        %v1448 = vshrl.u32 %v1447, 7
        %v1449 = vsub.s32 1, %v1448
        %v1450 = vrot.slane %v404, %v1449
        %1451 = vmatprep.subr.mxu0 %v1388
        %1452 = vmatpush1.msra.mxu0 %v1387
        %1453 = vmatprep.subr.mxu0 %v1396
        %1454 = vmatpush1.msra.mxu0 %v1395
        %1455 = vmatprep.subr.mxu0 %v1404
        %1456 = vmatpush1.msra.mxu0 %v1403
        %1457 = vmatprep.subr.mxu0 %v1412
        %1458 = vmatpush1.msra.mxu0 %v1411
        %1459 = vmatprep.subr.mxu0 0.0
        %1460 = vmatpush1.msra.mxu0 0.0
        %1461 = vmatprep.subr.mxu0 0.0
        %1462 = vmatpush1.msra.mxu0 0.0
        %1463 = vmatprep.subr.mxu0 0.0
        %1464 = vmatpush1.msra.mxu0 0.0
        %1465 = vmatprep.subr.mxu0 0.0
        %1466 = vmatpush1.msra.mxu0 0.0
        %1467 = vmatprep.subr.mxu0 0.0
        %1468 = vmatpush1.msra.mxu0 0.0
        %1469 = vmatprep.subr.mxu0 0.0
        %1470 = vmatpush1.msra.mxu0 0.0
        %1471 = vmatprep.subr.mxu0 0.0
        %1472 = vmatpush1.msra.mxu0 0.0
        %1473 = vmatprep.subr.mxu0 0.0
        %1474 = vmatpush1.msra.mxu0 0.0
        %1475 = vmatprep.subr.mxu0 0.0
        %1476 = vmatpush1.msra.mxu0 0.0
        %1477 = vmatprep.subr.mxu0 0.0
        %1478 = vmatpush1.msra.mxu0 0.0
        %1479 = vmatprep.subr.mxu0 0.0
        %1480 = vmatpush1.msra.mxu0 0.0
        %1481 = vmatprep.subr.mxu0 0.0
        %1482 = vmatpush1.msra.mxu0 0.0
        %1483 = vmatprep.subr.mxu0 0.0
        %1484 = vmatpush1.msra.mxu0 0.0
        %1485 = vmatprep.subr.mxu0 0.0
        %1486 = vmatpush1.msra.mxu0 0.0
        %1487 = vmatprep.subr.mxu0 0.0
        %1488 = vmatpush1.msra.mxu0 0.0
        %1489 = vmatprep.subr.mxu0 0.0
        %1490 = vmatpush1.msra.mxu0 0.0
        %1491 = vmatprep.subr.mxu0 0.0
        %1492 = vmatpush1.msra.mxu0 0.0
        %1493 = vmatprep.subr.mxu0 0.0
        %1494 = vmatpush1.msra.mxu0 0.0
        %1495 = vmatprep.subr.mxu0 0.0
        %1496 = vmatpush1.msra.mxu0 0.0
        %1497 = vmatprep.subr.mxu0 0.0
        %1498 = vmatpush1.msra.mxu0 0.0
        %1499 = vmatprep.subr.mxu0 0.0
        %1500 = vmatpush1.msra.mxu0 0.0
        %1501 = vmatprep.subr.mxu0 0.0
        %1502 = vmatpush1.msra.mxu0 0.0
        %1503 = vmatprep.subr.mxu0 0.0
        %1504 = vmatpush1.msra.mxu0 0.0
        %1505 = vmatprep.subr.mxu0 0.0
        %1506 = vmatpush1.msra.mxu0 0.0
        %1507 = vmatprep.subr.mxu0 0.0
        %1508 = vmatpush1.msra.mxu0 0.0
        %1509 = vmatprep.subr.mxu0 0.0
        %1510 = vmatpush1.msra.mxu0 0.0
        %1511 = vmatprep.subr.mxu0 0.0
        %1512 = vmatpush1.msra.mxu0 0.0
        %1513 = vmatprep.subr.mxu0 0.0
        %1514 = vmatpush1.msra.mxu0 0.0
        %1515 = vmatprep.mubr.f32.mxu0 0.0
        %1516 = vmatmul.mubr.f32.gmra.mrb[0].mxu0 %v471
        %v1517 = vpop.f32.mrb[0].mxu0
        %v1518 = vadd.f32 %v1422, %v1517
        %v1519 = vpop.f32.mrb[0].mxu0
        %v1520 = vadd.f32 %v1426, %v1519
        %1521 = vmatprep.mubr.f32.mxu0 0.0
        %1522 = vmatmul.mubr.f32.gmra.mrb[0].mxu0 %v474
        %v1523 = vpop.f32.mrb[0].mxu0
        %v1524 = vadd.f32 %v1422, %v1523
        %v1525 = vpop.f32.mrb[0].mxu0
        %v1526 = vadd.f32 %v1426, %v1525
        %1527 = vmatprep.mubr.f32.mxu0 0.0
        %1528 = vmatmul.mubr.f32.gmra.mrb[0].mxu0 %v477
        %v1529 = vpop.f32.mrb[0].mxu0
        %v1530 = vadd.f32 %v1422, %v1529
        %v1531 = vpop.f32.mrb[0].mxu0
        %v1532 = vadd.f32 %v1426, %v1531
        %1533 = vmatprep.mubr.f32.mxu0 0.0
        %1534 = vmatmul.mubr.f32.gmra.mrb[0].mxu0 %v480
        %v1535 = vpop.f32.mrb[0].mxu0
        %v1536 = vadd.f32 %v1422, %v1535
        %v1537 = vpop.f32.mrb[0].mxu0
        %v1538 = vadd.f32 %v1426, %v1537
        %1539 = vmatprep.mubr.f32.mxu0 0.0
        %1540 = vmatmul.mubr.f32.gmra.mrb[0].mxu0 %v483
        %v1541 = vpop.f32.mrb[0].mxu0
        %v1542 = vadd.f32 %v1422, %v1541
        %v1543 = vpop.f32.mrb[0].mxu0
        %v1544 = vadd.f32 %v1426, %v1543
        %1545 = vmatprep.mubr.f32.mxu0 0.0
        %1546 = vmatmul.mubr.f32.gmra.mrb[0].mxu0 %v486
        %v1547 = vpop.f32.mrb[0].mxu0
        %v1548 = vadd.f32 %v1422, %v1547
        %v1549 = vpop.f32.mrb[0].mxu0
        %v1550 = vadd.f32 %v1426, %v1549
        %1551 = vmatprep.mubr.f32.mxu0 0.0
        %1552 = vmatmul.mubr.f32.gmra.mrb[0].mxu0 %v489
        %v1553 = vpop.f32.mrb[0].mxu0
        %v1554 = vadd.f32 %v1422, %v1553
        %v1555 = vpop.f32.mrb[0].mxu0
        %v1556 = vadd.f32 %v1426, %v1555
        %1557 = vmatprep.mubr.f32.mxu0 0.0
        %1558 = vmatmul.mubr.f32.gmra.mrb[0].mxu0 %v492
        %v1559 = vpop.f32.mrb[0].mxu0
        %v1560 = vadd.f32 %v1422, %v1559
        %v1561 = vpop.f32.mrb[0].mxu0
        %v1562 = vadd.f32 %v1426, %v1561
        %1563 = vmatprep.mubr.f32.mxu0 0.0
        %1564 = vmatmul.mubr.f32.gmra.mrb[0].mxu0 %v495
        %v1565 = vpop.f32.mrb[0].mxu0
        %v1566 = vadd.f32 %v1422, %v1565
        %v1567 = vpop.f32.mrb[0].mxu0
        %v1568 = vadd.f32 %v1426, %v1567
        %1569 = vmatprep.mubr.f32.mxu0 0.0
        %1570 = vmatmul.mubr.f32.gmra.mrb[0].mxu0 %v498
        %v1571 = vpop.f32.mrb[0].mxu0
        %v1572 = vadd.f32 %v1422, %v1571
        %v1573 = vpop.f32.mrb[0].mxu0
        %v1574 = vadd.f32 %v1426, %v1573
        %1575 = vmatprep.mubr.f32.mxu0 0.0
        %1576 = vmatmul.mubr.f32.gmra.mrb[0].mxu0 %v501
        %v1577 = vpop.f32.mrb[0].mxu0
        %v1578 = vadd.f32 %v1422, %v1577
        %v1579 = vpop.f32.mrb[0].mxu0
        %v1580 = vadd.f32 %v1426, %v1579
        %1581 = vmatprep.mubr.f32.mxu0 0.0
        %1582 = vmatmul.mubr.f32.gmra.mrb[0].mxu0 %v504
        %v1583 = vpop.f32.mrb[0].mxu0
        %v1584 = vadd.f32 %v1422, %v1583
        %v1585 = vpop.f32.mrb[0].mxu0
        %v1586 = vadd.f32 %v1426, %v1585
        %1587 = vmatprep.mubr.f32.mxu0 0.0
        %1588 = vmatmul.mubr.f32.gmra.mrb[0].mxu0 %v507
        %v1589 = vpop.f32.mrb[0].mxu0
        %v1590 = vadd.f32 %v1422, %v1589
        %v1591 = vpop.f32.mrb[0].mxu0
        %v1592 = vadd.f32 %v1426, %v1591
        %1593 = vmatprep.mubr.f32.mxu0 0.0
        %1594 = vmatmul.mubr.f32.gmra.mrb[0].mxu0 %v510
        %v1595 = vpop.f32.mrb[0].mxu0
        %v1596 = vadd.f32 %v1422, %v1595
        %v1597 = vpop.f32.mrb[0].mxu0
        %v1598 = vadd.f32 %v1426, %v1597
        %1599 = vmatprep.mubr.f32.mxu0 0.0
        %1600 = vmatmul.mubr.f32.gmra.mrb[0].mxu0 %v513
        %v1601 = vpop.f32.mrb[0].mxu0
        %v1602 = vadd.f32 %v1422, %v1601
        %v1603 = vpop.f32.mrb[0].mxu0
        %v1604 = vadd.f32 %v1426, %v1603
        %1605 = vmatprep.mubr.f32.mxu0 0.0
        %1606 = vmatmul.mubr.f32.gmra.mrb[0].mxu0 %v516
        %v1607 = vpop.f32.mrb[0].mxu0
        %v1608 = vadd.f32 %v1422, %v1607
        %v1609 = vpop.f32.mrb[0].mxu0
        %v1610 = vadd.f32 %v1426, %v1609
        %1611 = vdwg.mxu0
        %1612 = vmatprep.subr.mxu0 %v1390
        %1613 = vmatpush1.msra.mxu0 %v1389
        %1614 = vmatprep.subr.mxu0 %v1398
        %1615 = vmatpush1.msra.mxu0 %v1397
        %1616 = vmatprep.subr.mxu0 %v1406
        %1617 = vmatpush1.msra.mxu0 %v1405
        %1618 = vmatprep.subr.mxu0 %v1414
        %1619 = vmatpush1.msra.mxu0 %v1413
        %1620 = vmatprep.subr.mxu0 0.0
        %1621 = vmatpush1.msra.mxu0 0.0
        %1622 = vmatprep.subr.mxu0 0.0
        %1623 = vmatpush1.msra.mxu0 0.0
        %1624 = vmatprep.subr.mxu0 0.0
        %1625 = vmatpush1.msra.mxu0 0.0
        %1626 = vmatprep.subr.mxu0 0.0
        %1627 = vmatpush1.msra.mxu0 0.0
        %1628 = vmatprep.subr.mxu0 0.0
        %1629 = vmatpush1.msra.mxu0 0.0
        %1630 = vmatprep.subr.mxu0 0.0
        %1631 = vmatpush1.msra.mxu0 0.0
        %1632 = vmatprep.subr.mxu0 0.0
        %1633 = vmatpush1.msra.mxu0 0.0
        %1634 = vmatprep.subr.mxu0 0.0
        %1635 = vmatpush1.msra.mxu0 0.0
        %1636 = vmatprep.subr.mxu0 0.0
        %1637 = vmatpush1.msra.mxu0 0.0
        %1638 = vmatprep.subr.mxu0 0.0
        %1639 = vmatpush1.msra.mxu0 0.0
        %1640 = vmatprep.subr.mxu0 0.0
        %1641 = vmatpush1.msra.mxu0 0.0
        %1642 = vmatprep.subr.mxu0 0.0
        %1643 = vmatpush1.msra.mxu0 0.0
        %1644 = vmatprep.subr.mxu0 0.0
        %1645 = vmatpush1.msra.mxu0 0.0
        %1646 = vmatprep.subr.mxu0 0.0
        %1647 = vmatpush1.msra.mxu0 0.0
        %1648 = vmatprep.subr.mxu0 0.0
        %1649 = vmatpush1.msra.mxu0 0.0
        %1650 = vmatprep.subr.mxu0 0.0
        %1651 = vmatpush1.msra.mxu0 0.0
        %1652 = vmatprep.subr.mxu0 0.0
        %1653 = vmatpush1.msra.mxu0 0.0
        %1654 = vmatprep.subr.mxu0 0.0
        %1655 = vmatpush1.msra.mxu0 0.0
        %1656 = vmatprep.subr.mxu0 0.0
        %1657 = vmatpush1.msra.mxu0 0.0
        %1658 = vmatprep.subr.mxu0 0.0
        %1659 = vmatpush1.msra.mxu0 0.0
        %1660 = vmatprep.subr.mxu0 0.0
        %1661 = vmatpush1.msra.mxu0 0.0
        %1662 = vmatprep.subr.mxu0 0.0
        %1663 = vmatpush1.msra.mxu0 0.0
        %1664 = vmatprep.subr.mxu0 0.0
        %1665 = vmatpush1.msra.mxu0 0.0
        %1666 = vmatprep.subr.mxu0 0.0
        %1667 = vmatpush1.msra.mxu0 0.0
        %1668 = vmatprep.subr.mxu0 0.0
        %1669 = vmatpush1.msra.mxu0 0.0
        %1670 = vmatprep.subr.mxu0 0.0
        %1671 = vmatpush1.msra.mxu0 0.0
        %1672 = vmatprep.subr.mxu0 0.0
        %1673 = vmatpush1.msra.mxu0 0.0
        %1674 = vmatprep.subr.mxu0 0.0
        %1675 = vmatpush1.msra.mxu0 0.0
        %1676 = vmatprep.mubr.f32.mxu0 0.0
        %1677 = vmatmul.mubr.f32.gmra.mrb[0].mxu0 %v471
        %v1678 = vpop.f32.mrb[0].mxu0
        %v1679 = vadd.f32 %v1430, %v1678
        %v1680 = vpop.f32.mrb[0].mxu0
        %v1681 = vadd.f32 %v1434, %v1680
        %1682 = vmatprep.mubr.f32.mxu0 0.0
        %1683 = vmatmul.mubr.f32.gmra.mrb[0].mxu0 %v474
        %v1684 = vpop.f32.mrb[0].mxu0
        %v1685 = vadd.f32 %v1430, %v1684
        %v1686 = vpop.f32.mrb[0].mxu0
        %v1687 = vadd.f32 %v1434, %v1686
        %1688 = vmatprep.mubr.f32.mxu0 0.0
        %1689 = vmatmul.mubr.f32.gmra.mrb[0].mxu0 %v477
        %v1690 = vpop.f32.mrb[0].mxu0
        %v1691 = vadd.f32 %v1430, %v1690
        %v1692 = vpop.f32.mrb[0].mxu0
        %v1693 = vadd.f32 %v1434, %v1692
        %1694 = vmatprep.mubr.f32.mxu0 0.0
        %1695 = vmatmul.mubr.f32.gmra.mrb[0].mxu0 %v480
        %v1696 = vpop.f32.mrb[0].mxu0
        %v1697 = vadd.f32 %v1430, %v1696
        %v1698 = vpop.f32.mrb[0].mxu0
        %v1699 = vadd.f32 %v1434, %v1698
        %1700 = vmatprep.mubr.f32.mxu0 0.0
        %1701 = vmatmul.mubr.f32.gmra.mrb[0].mxu0 %v483
        %v1702 = vpop.f32.mrb[0].mxu0
        %v1703 = vadd.f32 %v1430, %v1702
        %v1704 = vpop.f32.mrb[0].mxu0
        %v1705 = vadd.f32 %v1434, %v1704
        %1706 = vmatprep.mubr.f32.mxu0 0.0
        %1707 = vmatmul.mubr.f32.gmra.mrb[0].mxu0 %v486
        %v1708 = vpop.f32.mrb[0].mxu0
        %v1709 = vadd.f32 %v1430, %v1708
        %v1710 = vpop.f32.mrb[0].mxu0
        %v1711 = vadd.f32 %v1434, %v1710
        %1712 = vmatprep.mubr.f32.mxu0 0.0
        %1713 = vmatmul.mubr.f32.gmra.mrb[0].mxu0 %v489
        %v1714 = vpop.f32.mrb[0].mxu0
        %v1715 = vadd.f32 %v1430, %v1714
        %v1716 = vpop.f32.mrb[0].mxu0
        %v1717 = vadd.f32 %v1434, %v1716
        %1718 = vmatprep.mubr.f32.mxu0 0.0
        %1719 = vmatmul.mubr.f32.gmra.mrb[0].mxu0 %v492
        %v1720 = vpop.f32.mrb[0].mxu0
        %v1721 = vadd.f32 %v1430, %v1720
        %v1722 = vpop.f32.mrb[0].mxu0
        %v1723 = vadd.f32 %v1434, %v1722
        %1724 = vmatprep.mubr.f32.mxu0 0.0
        %1725 = vmatmul.mubr.f32.gmra.mrb[0].mxu0 %v495
        %v1726 = vpop.f32.mrb[0].mxu0
        %v1727 = vadd.f32 %v1430, %v1726
        %v1728 = vpop.f32.mrb[0].mxu0
        %v1729 = vadd.f32 %v1434, %v1728
        %1730 = vmatprep.mubr.f32.mxu0 0.0
        %1731 = vmatmul.mubr.f32.gmra.mrb[0].mxu0 %v498
        %v1732 = vpop.f32.mrb[0].mxu0
        %v1733 = vadd.f32 %v1430, %v1732
        %v1734 = vpop.f32.mrb[0].mxu0
        %v1735 = vadd.f32 %v1434, %v1734
        %1736 = vmatprep.mubr.f32.mxu0 0.0
        %1737 = vmatmul.mubr.f32.gmra.mrb[0].mxu0 %v501
        %v1738 = vpop.f32.mrb[0].mxu0
        %v1739 = vadd.f32 %v1430, %v1738
        %v1740 = vpop.f32.mrb[0].mxu0
        %v1741 = vadd.f32 %v1434, %v1740
        %1742 = vmatprep.mubr.f32.mxu0 0.0
        %1743 = vmatmul.mubr.f32.gmra.mrb[0].mxu0 %v504
        %v1744 = vpop.f32.mrb[0].mxu0
        %v1745 = vadd.f32 %v1430, %v1744
        %v1746 = vpop.f32.mrb[0].mxu0
        %v1747 = vadd.f32 %v1434, %v1746
        %1748 = vmatprep.mubr.f32.mxu0 0.0
        %1749 = vmatmul.mubr.f32.gmra.mrb[0].mxu0 %v507
        %v1750 = vpop.f32.mrb[0].mxu0
        %v1751 = vadd.f32 %v1430, %v1750
        %v1752 = vpop.f32.mrb[0].mxu0
        %v1753 = vadd.f32 %v1434, %v1752
        %1754 = vmatprep.mubr.f32.mxu0 0.0
        %1755 = vmatmul.mubr.f32.gmra.mrb[0].mxu0 %v510
        %v1756 = vpop.f32.mrb[0].mxu0
        %v1757 = vadd.f32 %v1430, %v1756
        %v1758 = vpop.f32.mrb[0].mxu0
        %v1759 = vadd.f32 %v1434, %v1758
        %1760 = vmatprep.mubr.f32.mxu0 0.0
        %1761 = vmatmul.mubr.f32.gmra.mrb[0].mxu0 %v513
        %v1762 = vpop.f32.mrb[0].mxu0
        %v1763 = vadd.f32 %v1430, %v1762
        %v1764 = vpop.f32.mrb[0].mxu0
        %v1765 = vadd.f32 %v1434, %v1764
        %1766 = vmatprep.mubr.f32.mxu0 0.0
        %1767 = vmatmul.mubr.f32.gmra.mrb[0].mxu0 %v516
        %v1768 = vpop.f32.mrb[0].mxu0
        %v1769 = vadd.f32 %v1430, %v1768
        %v1770 = vpop.f32.mrb[0].mxu0
        %v1771 = vadd.f32 %v1434, %v1770
        %1772 = vdwg.mxu0
        %1773 = vmatprep.subr.mxu0 %v1392
        %1774 = vmatpush1.msra.mxu0 %v1391
        %1775 = vmatprep.subr.mxu0 %v1400
        %1776 = vmatpush1.msra.mxu0 %v1399
        %1777 = vmatprep.subr.mxu0 %v1408
        %1778 = vmatpush1.msra.mxu0 %v1407
        %1779 = vmatprep.subr.mxu0 %v1416
        %1780 = vmatpush1.msra.mxu0 %v1415
        %1781 = vmatprep.subr.mxu0 0.0
        %1782 = vmatpush1.msra.mxu0 0.0
        %1783 = vmatprep.subr.mxu0 0.0
        %1784 = vmatpush1.msra.mxu0 0.0
        %1785 = vmatprep.subr.mxu0 0.0
        %1786 = vmatpush1.msra.mxu0 0.0
        %1787 = vmatprep.subr.mxu0 0.0
        %1788 = vmatpush1.msra.mxu0 0.0
        %1789 = vmatprep.subr.mxu0 0.0
        %1790 = vmatpush1.msra.mxu0 0.0
        %1791 = vmatprep.subr.mxu0 0.0
        %1792 = vmatpush1.msra.mxu0 0.0
        %1793 = vmatprep.subr.mxu0 0.0
        %1794 = vmatpush1.msra.mxu0 0.0
        %1795 = vmatprep.subr.mxu0 0.0
        %1796 = vmatpush1.msra.mxu0 0.0
        %1797 = vmatprep.subr.mxu0 0.0
        %1798 = vmatpush1.msra.mxu0 0.0
        %1799 = vmatprep.subr.mxu0 0.0
        %1800 = vmatpush1.msra.mxu0 0.0
        %1801 = vmatprep.subr.mxu0 0.0
        %1802 = vmatpush1.msra.mxu0 0.0
        %1803 = vmatprep.subr.mxu0 0.0
        %1804 = vmatpush1.msra.mxu0 0.0
        %1805 = vmatprep.subr.mxu0 0.0
        %1806 = vmatpush1.msra.mxu0 0.0
        %1807 = vmatprep.subr.mxu0 0.0
        %1808 = vmatpush1.msra.mxu0 0.0
        %1809 = vmatprep.subr.mxu0 0.0
        %1810 = vmatpush1.msra.mxu0 0.0
        %1811 = vmatprep.subr.mxu0 0.0
        %1812 = vmatpush1.msra.mxu0 0.0
        %1813 = vmatprep.subr.mxu0 0.0
        %1814 = vmatpush1.msra.mxu0 0.0
        %1815 = vmatprep.subr.mxu0 0.0
        %1816 = vmatpush1.msra.mxu0 0.0
        %1817 = vmatprep.subr.mxu0 0.0
        %1818 = vmatpush1.msra.mxu0 0.0
        %1819 = vmatprep.subr.mxu0 0.0
        %1820 = vmatpush1.msra.mxu0 0.0
        %1821 = vmatprep.subr.mxu0 0.0
        %1822 = vmatpush1.msra.mxu0 0.0
        %1823 = vmatprep.subr.mxu0 0.0
        %1824 = vmatpush1.msra.mxu0 0.0
        %1825 = vmatprep.subr.mxu0 0.0
        %1826 = vmatpush1.msra.mxu0 0.0
        %1827 = vmatprep.subr.mxu0 0.0
        %1828 = vmatpush1.msra.mxu0 0.0
        %1829 = vmatprep.subr.mxu0 0.0
        %1830 = vmatpush1.msra.mxu0 0.0
        %1831 = vmatprep.subr.mxu0 0.0
        %1832 = vmatpush1.msra.mxu0 0.0
        %1833 = vmatprep.subr.mxu0 0.0
        %1834 = vmatpush1.msra.mxu0 0.0
        %1835 = vmatprep.subr.mxu0 0.0
        %1836 = vmatpush1.msra.mxu0 0.0
        %1837 = vmatprep.mubr.f32.mxu0 0.0
        %1838 = vmatmul.mubr.f32.gmra.mrb[0].mxu0 %v471
        %v1839 = vpop.f32.mrb[0].mxu0
        %v1840 = vadd.f32 %v1438, %v1839
        %v1841 = vpop.f32.mrb[0].mxu0
        %v1842 = vadd.f32 %v1442, %v1841
        %1843 = vmatprep.mubr.f32.mxu0 0.0
        %1844 = vmatmul.mubr.f32.gmra.mrb[0].mxu0 %v474
        %v1845 = vpop.f32.mrb[0].mxu0
        %v1846 = vadd.f32 %v1438, %v1845
        %v1847 = vpop.f32.mrb[0].mxu0
        %v1848 = vadd.f32 %v1442, %v1847
        %1849 = vmatprep.mubr.f32.mxu0 0.0
        %1850 = vmatmul.mubr.f32.gmra.mrb[0].mxu0 %v477
        %v1851 = vpop.f32.mrb[0].mxu0
        %v1852 = vadd.f32 %v1438, %v1851
        %v1853 = vpop.f32.mrb[0].mxu0
        %v1854 = vadd.f32 %v1442, %v1853
        %1855 = vmatprep.mubr.f32.mxu0 0.0
        %1856 = vmatmul.mubr.f32.gmra.mrb[0].mxu0 %v480
        %v1857 = vpop.f32.mrb[0].mxu0
        %v1858 = vadd.f32 %v1438, %v1857
        %v1859 = vpop.f32.mrb[0].mxu0
        %v1860 = vadd.f32 %v1442, %v1859
        %1861 = vmatprep.mubr.f32.mxu0 0.0
        %1862 = vmatmul.mubr.f32.gmra.mrb[0].mxu0 %v483
        %v1863 = vpop.f32.mrb[0].mxu0
        %v1864 = vadd.f32 %v1438, %v1863
        %v1865 = vpop.f32.mrb[0].mxu0
        %v1866 = vadd.f32 %v1442, %v1865
        %1867 = vmatprep.mubr.f32.mxu0 0.0
        %1868 = vmatmul.mubr.f32.gmra.mrb[0].mxu0 %v486
        %v1869 = vpop.f32.mrb[0].mxu0
        %v1870 = vadd.f32 %v1438, %v1869
        %v1871 = vpop.f32.mrb[0].mxu0
        %v1872 = vadd.f32 %v1442, %v1871
        %1873 = vmatprep.mubr.f32.mxu0 0.0
        %1874 = vmatmul.mubr.f32.gmra.mrb[0].mxu0 %v489
        %v1875 = vpop.f32.mrb[0].mxu0
        %v1876 = vadd.f32 %v1438, %v1875
        %v1877 = vpop.f32.mrb[0].mxu0
        %v1878 = vadd.f32 %v1442, %v1877
        %1879 = vmatprep.mubr.f32.mxu0 0.0
        %1880 = vmatmul.mubr.f32.gmra.mrb[0].mxu0 %v492
        %v1881 = vpop.f32.mrb[0].mxu0
        %v1882 = vadd.f32 %v1438, %v1881
        %v1883 = vpop.f32.mrb[0].mxu0
        %v1884 = vadd.f32 %v1442, %v1883
        %1885 = vmatprep.mubr.f32.mxu0 0.0
        %1886 = vmatmul.mubr.f32.gmra.mrb[0].mxu0 %v495
        %v1887 = vpop.f32.mrb[0].mxu0
        %v1888 = vadd.f32 %v1438, %v1887
        %v1889 = vpop.f32.mrb[0].mxu0
        %v1890 = vadd.f32 %v1442, %v1889
        %1891 = vmatprep.mubr.f32.mxu0 0.0
        %1892 = vmatmul.mubr.f32.gmra.mrb[0].mxu0 %v498
        %v1893 = vpop.f32.mrb[0].mxu0
        %v1894 = vadd.f32 %v1438, %v1893
        %v1895 = vpop.f32.mrb[0].mxu0
        %v1896 = vadd.f32 %v1442, %v1895
        %1897 = vmatprep.mubr.f32.mxu0 0.0
        %1898 = vmatmul.mubr.f32.gmra.mrb[0].mxu0 %v501
        %v1899 = vpop.f32.mrb[0].mxu0
        %v1900 = vadd.f32 %v1438, %v1899
        %v1901 = vpop.f32.mrb[0].mxu0
        %v1902 = vadd.f32 %v1442, %v1901
        %1903 = vmatprep.mubr.f32.mxu0 0.0
        %1904 = vmatmul.mubr.f32.gmra.mrb[0].mxu0 %v504
        %v1905 = vpop.f32.mrb[0].mxu0
        %v1906 = vadd.f32 %v1438, %v1905
        %v1907 = vpop.f32.mrb[0].mxu0
        %v1908 = vadd.f32 %v1442, %v1907
        %1909 = vmatprep.mubr.f32.mxu0 0.0
        %1910 = vmatmul.mubr.f32.gmra.mrb[0].mxu0 %v507
        %v1911 = vpop.f32.mrb[0].mxu0
        %v1912 = vadd.f32 %v1438, %v1911
        %v1913 = vpop.f32.mrb[0].mxu0
        %v1914 = vadd.f32 %v1442, %v1913
        %1915 = vmatprep.mubr.f32.mxu0 0.0
        %1916 = vmatmul.mubr.f32.gmra.mrb[0].mxu0 %v510
        %v1917 = vpop.f32.mrb[0].mxu0
        %v1918 = vadd.f32 %v1438, %v1917
        %v1919 = vpop.f32.mrb[0].mxu0
        %v1920 = vadd.f32 %v1442, %v1919
        %1921 = vmatprep.mubr.f32.mxu0 0.0
        %1922 = vmatmul.mubr.f32.gmra.mrb[0].mxu0 %v513
        %v1923 = vpop.f32.mrb[0].mxu0
        %v1924 = vadd.f32 %v1438, %v1923
        %v1925 = vpop.f32.mrb[0].mxu0
        %v1926 = vadd.f32 %v1442, %v1925
        %1927 = vmatprep.mubr.f32.mxu0 0.0
        %1928 = vmatmul.mubr.f32.gmra.mrb[0].mxu0 %v516
        %v1929 = vpop.f32.mrb[0].mxu0
        %v1930 = vadd.f32 %v1438, %v1929
        %v1931 = vpop.f32.mrb[0].mxu0
        %v1932 = vadd.f32 %v1442, %v1931
        %1933 = vdwg.mxu0
        %1934 = vmatprep.subr.mxu0 %v1394
        %1935 = vmatpush1.msra.mxu0 %v1393
        %1936 = vmatprep.subr.mxu0 %v1402
        %1937 = vmatpush1.msra.mxu0 %v1401
        %1938 = vmatprep.subr.mxu0 %v1410
        %1939 = vmatpush1.msra.mxu0 %v1409
        %1940 = vmatprep.subr.mxu0 %v1418
        %1941 = vmatpush1.msra.mxu0 %v1417
        %1942 = vmatprep.subr.mxu0 0.0
        %1943 = vmatpush1.msra.mxu0 0.0
        %1944 = vmatprep.subr.mxu0 0.0
        %1945 = vmatpush1.msra.mxu0 0.0
        %1946 = vmatprep.subr.mxu0 0.0
        %1947 = vmatpush1.msra.mxu0 0.0
        %1948 = vmatprep.subr.mxu0 0.0
        %1949 = vmatpush1.msra.mxu0 0.0
        %1950 = vmatprep.subr.mxu0 0.0
        %1951 = vmatpush1.msra.mxu0 0.0
        %1952 = vmatprep.subr.mxu0 0.0
        %1953 = vmatpush1.msra.mxu0 0.0
        %1954 = vmatprep.subr.mxu0 0.0
        %1955 = vmatpush1.msra.mxu0 0.0
        %1956 = vmatprep.subr.mxu0 0.0
        %1957 = vmatpush1.msra.mxu0 0.0
        %1958 = vmatprep.subr.mxu0 0.0
        %1959 = vmatpush1.msra.mxu0 0.0
        %1960 = vmatprep.subr.mxu0 0.0
        %1961 = vmatpush1.msra.mxu0 0.0
        %1962 = vmatprep.subr.mxu0 0.0
        %1963 = vmatpush1.msra.mxu0 0.0
        %1964 = vmatprep.subr.mxu0 0.0
        %1965 = vmatpush1.msra.mxu0 0.0
        %1966 = vmatprep.subr.mxu0 0.0
        %1967 = vmatpush1.msra.mxu0 0.0
        %1968 = vmatprep.subr.mxu0 0.0
        %1969 = vmatpush1.msra.mxu0 0.0
        %1970 = vmatprep.subr.mxu0 0.0
        %1971 = vmatpush1.msra.mxu0 0.0
        %1972 = vmatprep.subr.mxu0 0.0
        %1973 = vmatpush1.msra.mxu0 0.0
        %1974 = vmatprep.subr.mxu0 0.0
        %1975 = vmatpush1.msra.mxu0 0.0
        %1976 = vmatprep.subr.mxu0 0.0
        %1977 = vmatpush1.msra.mxu0 0.0
        %1978 = vmatprep.subr.mxu0 0.0
        %1979 = vmatpush1.msra.mxu0 0.0
        %1980 = vmatprep.subr.mxu0 0.0
        %1981 = vmatpush1.msra.mxu0 0.0
        %1982 = vmatprep.subr.mxu0 0.0
        %1983 = vmatpush1.msra.mxu0 0.0
        %1984 = vmatprep.subr.mxu0 0.0
        %1985 = vmatpush1.msra.mxu0 0.0
        %1986 = vmatprep.subr.mxu0 0.0
        %1987 = vmatpush1.msra.mxu0 0.0
        %1988 = vmatprep.subr.mxu0 0.0
        %1989 = vmatpush1.msra.mxu0 0.0
        %1990 = vmatprep.subr.mxu0 0.0
        %1991 = vmatpush1.msra.mxu0 0.0
        %1992 = vmatprep.subr.mxu0 0.0
        %1993 = vmatpush1.msra.mxu0 0.0
        %1994 = vmatprep.subr.mxu0 0.0
        %1995 = vmatpush1.msra.mxu0 0.0
        %1996 = vmatprep.subr.mxu0 0.0
        %1997 = vmatpush1.msra.mxu0 0.0
        %1998 = vmatprep.mubr.f32.mxu0 0.0
        %1999 = vmatmul.mubr.f32.gmra.mrb[0].mxu0 %v471
        %v2000 = vpop.f32.mrb[0].mxu0
        %v2001 = vadd.f32 %v1446, %v2000
        %v2002 = vpop.f32.mrb[0].mxu0
        %v2003 = vadd.f32 %v1450, %v2002
        %2004 = vmatprep.mubr.f32.mxu0 0.0
        %2005 = vmatmul.mubr.f32.gmra.mrb[0].mxu0 %v474
        %v2006 = vpop.f32.mrb[0].mxu0
        %v2007 = vadd.f32 %v1446, %v2006
        %v2008 = vpop.f32.mrb[0].mxu0
        %v2009 = vadd.f32 %v1450, %v2008
        %2010 = vmatprep.mubr.f32.mxu0 0.0
        %2011 = vmatmul.mubr.f32.gmra.mrb[0].mxu0 %v477
        %v2012 = vpop.f32.mrb[0].mxu0
        %v2013 = vadd.f32 %v1446, %v2012
        %v2014 = vpop.f32.mrb[0].mxu0
        %v2015 = vadd.f32 %v1450, %v2014
        %2016 = vmatprep.mubr.f32.mxu0 0.0
        %2017 = vmatmul.mubr.f32.gmra.mrb[0].mxu0 %v480
        %v2018 = vpop.f32.mrb[0].mxu0
        %v2019 = vadd.f32 %v1446, %v2018
        %v2020 = vpop.f32.mrb[0].mxu0
        %v2021 = vadd.f32 %v1450, %v2020
        %2022 = vmatprep.mubr.f32.mxu0 0.0
        %2023 = vmatmul.mubr.f32.gmra.mrb[0].mxu0 %v483
        %v2024 = vpop.f32.mrb[0].mxu0
        %v2025 = vadd.f32 %v1446, %v2024
        %v2026 = vpop.f32.mrb[0].mxu0
        %v2027 = vadd.f32 %v1450, %v2026
        %2028 = vmatprep.mubr.f32.mxu0 0.0
        %2029 = vmatmul.mubr.f32.gmra.mrb[0].mxu0 %v486
        %v2030 = vpop.f32.mrb[0].mxu0
        %v2031 = vadd.f32 %v1446, %v2030
        %v2032 = vpop.f32.mrb[0].mxu0
        %v2033 = vadd.f32 %v1450, %v2032
        %2034 = vmatprep.mubr.f32.mxu0 0.0
        %2035 = vmatmul.mubr.f32.gmra.mrb[0].mxu0 %v489
        %v2036 = vpop.f32.mrb[0].mxu0
        %v2037 = vadd.f32 %v1446, %v2036
        %v2038 = vpop.f32.mrb[0].mxu0
        %v2039 = vadd.f32 %v1450, %v2038
        %2040 = vmatprep.mubr.f32.mxu0 0.0
        %2041 = vmatmul.mubr.f32.gmra.mrb[0].mxu0 %v492
        %v2042 = vpop.f32.mrb[0].mxu0
        %v2043 = vadd.f32 %v1446, %v2042
        %v2044 = vpop.f32.mrb[0].mxu0
        %v2045 = vadd.f32 %v1450, %v2044
        %2046 = vmatprep.mubr.f32.mxu0 0.0
        %2047 = vmatmul.mubr.f32.gmra.mrb[0].mxu0 %v495
        %v2048 = vpop.f32.mrb[0].mxu0
        %v2049 = vadd.f32 %v1446, %v2048
        %v2050 = vpop.f32.mrb[0].mxu0
        %v2051 = vadd.f32 %v1450, %v2050
        %2052 = vmatprep.mubr.f32.mxu0 0.0
        %2053 = vmatmul.mubr.f32.gmra.mrb[0].mxu0 %v498
        %v2054 = vpop.f32.mrb[0].mxu0
        %v2055 = vadd.f32 %v1446, %v2054
        %v2056 = vpop.f32.mrb[0].mxu0
        %v2057 = vadd.f32 %v1450, %v2056
        %2058 = vmatprep.mubr.f32.mxu0 0.0
        %2059 = vmatmul.mubr.f32.gmra.mrb[0].mxu0 %v501
        %v2060 = vpop.f32.mrb[0].mxu0
        %v2061 = vadd.f32 %v1446, %v2060
        %v2062 = vpop.f32.mrb[0].mxu0
        %v2063 = vadd.f32 %v1450, %v2062
        %2064 = vmatprep.mubr.f32.mxu0 0.0
        %2065 = vmatmul.mubr.f32.gmra.mrb[0].mxu0 %v504
        %v2066 = vpop.f32.mrb[0].mxu0
        %v2067 = vadd.f32 %v1446, %v2066
        %v2068 = vpop.f32.mrb[0].mxu0
        %v2069 = vadd.f32 %v1450, %v2068
        %2070 = vmatprep.mubr.f32.mxu0 0.0
        %2071 = vmatmul.mubr.f32.gmra.mrb[0].mxu0 %v507
        %v2072 = vpop.f32.mrb[0].mxu0
        %v2073 = vadd.f32 %v1446, %v2072
        %v2074 = vpop.f32.mrb[0].mxu0
        %v2075 = vadd.f32 %v1450, %v2074
        %2076 = vmatprep.mubr.f32.mxu0 0.0
        %2077 = vmatmul.mubr.f32.gmra.mrb[0].mxu0 %v510
        %v2078 = vpop.f32.mrb[0].mxu0
        %v2079 = vadd.f32 %v1446, %v2078
        %v2080 = vpop.f32.mrb[0].mxu0
        %v2081 = vadd.f32 %v1450, %v2080
        %2082 = vmatprep.mubr.f32.mxu0 0.0
        %2083 = vmatmul.mubr.f32.gmra.mrb[0].mxu0 %v513
        %v2084 = vpop.f32.mrb[0].mxu0
        %v2085 = vadd.f32 %v1446, %v2084
        %v2086 = vpop.f32.mrb[0].mxu0
        %v2087 = vadd.f32 %v1450, %v2086
        %2088 = vmatprep.mubr.f32.mxu0 0.0
        %2089 = vmatmul.mubr.f32.gmra.mrb[0].mxu0 %v516
        %v2090 = vpop.f32.mrb[0].mxu0
        %v2091 = vadd.f32 %v1446, %v2090
        %v2092 = vpop.f32.mrb[0].mxu0
        %v2093 = vadd.f32 %v1450, %v2092
        %2094 = vdwg.mxu0
        %vm2095 = vcmp.eq.s32.totalorder %v381, 1
        %vm2096 = vcmp.eq.s32.totalorder %v382, 1
        %vm2097 = vcmp.eq.s32.totalorder %v383, 1
        %vm2098 = vcmp.eq.s32.totalorder %v384, 1
        %vm2099 = vcmp.eq.s32.totalorder %v385, 1
        %vm2100 = vcmp.eq.s32.totalorder %v386, 1
        %vm2101 = vcmp.eq.s32.totalorder %v387, 1
        %vm2102 = vcmp.eq.s32.totalorder %v388, 1
        %vm2103 = vcmp.eq.s32.totalorder %v389, 1
        %vm2104 = vcmp.eq.s32.totalorder %v390, 1
        %vm2105 = vcmp.eq.s32.totalorder %v391, 1
        %vm2106 = vcmp.eq.s32.totalorder %v392, 1
        %vm2107 = vcmp.eq.s32.totalorder %v393, 1
        %vm2108 = vcmp.eq.s32.totalorder %v394, 1
        %vm2109 = vcmp.eq.s32.totalorder %v395, 1
        %vm2110 = vcmp.eq.s32.totalorder %v396, 1
        %v2111 = vsel %vm2095, 1, 0
        %v2112 = vsel %vm2096, 1, 0
        %v2113 = vsel %vm2097, 1, 0
        %v2114 = vsel %vm2098, 1, 0
        %v2115 = vsel %vm2099, 1, 0
        %v2116 = vsel %vm2100, 1, 0
        %v2117 = vsel %vm2101, 1, 0
        %v2118 = vsel %vm2102, 1, 0
        %v2119 = vsel %vm2103, 1, 0
        %v2120 = vsel %vm2104, 1, 0
        %v2121 = vsel %vm2105, 1, 0
        %v2122 = vsel %vm2106, 1, 0
        %v2123 = vsel %vm2107, 1, 0
        %v2124 = vsel %vm2108, 1, 0
        %v2125 = vsel %vm2109, 1, 0
        %v2126 = vsel %vm2110, 1, 0
        %2127 = vset.pattern.permute.xlu0 31
        %2128 = vperm.xlu0 %2127, %v2111
        %v2129 = vpop.permute.xlu0 %2128
        %2130 = vset.pattern.permute.xlu0 31
        %2131 = vperm.xlu0 %2130, %v2112
        %v2132 = vpop.permute.xlu0 %2131
        %2133 = vset.pattern.permute.xlu0 31
        %2134 = vperm.xlu0 %2133, %v2113
        %v2135 = vpop.permute.xlu0 %2134
        %2136 = vset.pattern.permute.xlu0 31
        %2137 = vperm.xlu0 %2136, %v2114
        %v2138 = vpop.permute.xlu0 %2137
        %2139 = vset.pattern.permute.xlu0 31
        %2140 = vperm.xlu0 %2139, %v2115
        %v2141 = vpop.permute.xlu0 %2140
        %2142 = vset.pattern.permute.xlu0 31
        %2143 = vperm.xlu0 %2142, %v2116
        %v2144 = vpop.permute.xlu0 %2143
        %2145 = vset.pattern.permute.xlu0 31
        %2146 = vperm.xlu0 %2145, %v2117
        %v2147 = vpop.permute.xlu0 %2146
        %2148 = vset.pattern.permute.xlu0 31
        %2149 = vperm.xlu0 %2148, %v2118
        %v2150 = vpop.permute.xlu0 %2149
        %2151 = vset.pattern.permute.xlu0 31
        %2152 = vperm.xlu0 %2151, %v2119
        %v2153 = vpop.permute.xlu0 %2152
        %2154 = vset.pattern.permute.xlu0 31
        %2155 = vperm.xlu0 %2154, %v2120
        %v2156 = vpop.permute.xlu0 %2155
        %2157 = vset.pattern.permute.xlu0 31
        %2158 = vperm.xlu0 %2157, %v2121
        %v2159 = vpop.permute.xlu0 %2158
        %2160 = vset.pattern.permute.xlu0 31
        %2161 = vperm.xlu0 %2160, %v2122
        %v2162 = vpop.permute.xlu0 %2161
        %2163 = vset.pattern.permute.xlu0 31
        %2164 = vperm.xlu0 %2163, %v2123
        %v2165 = vpop.permute.xlu0 %2164
        %2166 = vset.pattern.permute.xlu0 31
        %2167 = vperm.xlu0 %2166, %v2124
        %v2168 = vpop.permute.xlu0 %2167
        %2169 = vset.pattern.permute.xlu0 31
        %2170 = vperm.xlu0 %2169, %v2125
        %v2171 = vpop.permute.xlu0 %2170
        %2172 = vset.pattern.permute.xlu0 31
        %2173 = vperm.xlu0 %2172, %v2126
        %v2174 = vpop.permute.xlu0 %2173
        %vm2175 = vcmp.eq.s32.totalorder %v2129, 1
        %vm2176 = vcmp.eq.s32.totalorder %v2132, 1
        %vm2177 = vcmp.eq.s32.totalorder %v2135, 1
        %vm2178 = vcmp.eq.s32.totalorder %v2138, 1
        %vm2179 = vcmp.eq.s32.totalorder %v2141, 1
        %vm2180 = vcmp.eq.s32.totalorder %v2144, 1
        %vm2181 = vcmp.eq.s32.totalorder %v2147, 1
        %vm2182 = vcmp.eq.s32.totalorder %v2150, 1
        %vm2183 = vcmp.eq.s32.totalorder %v2153, 1
        %vm2184 = vcmp.eq.s32.totalorder %v2156, 1
        %vm2185 = vcmp.eq.s32.totalorder %v2159, 1
        %vm2186 = vcmp.eq.s32.totalorder %v2162, 1
        %vm2187 = vcmp.eq.s32.totalorder %v2165, 1
        %vm2188 = vcmp.eq.s32.totalorder %v2168, 1
        %vm2189 = vcmp.eq.s32.totalorder %v2171, 1
        %vm2190 = vcmp.eq.s32.totalorder %v2174, 1
        %v2191 = vsel %vm2175, %v1518, %v1258
        %v2192 = vsel %vm2175, %v1520, %v1259
        %v2193 = vsel %vm2175, %v1679, %v1260
        %v2194 = vsel %vm2175, %v1681, %v1261
        %v2195 = vsel %vm2175, %v1840, %v1262
        %v2196 = vsel %vm2175, %v1842, %v1263
        %v2197 = vsel %vm2175, %v2001, %v1264
        %v2198 = vsel %vm2175, %v2003, %v1265
        %v2199 = vsel %vm2176, %v1524, %v1266
        %v2200 = vsel %vm2176, %v1526, %v1267
        %v2201 = vsel %vm2176, %v1685, %v1268
        %v2202 = vsel %vm2176, %v1687, %v1269
        %v2203 = vsel %vm2176, %v1846, %v1270
        %v2204 = vsel %vm2176, %v1848, %v1271
        %v2205 = vsel %vm2176, %v2007, %v1272
        %v2206 = vsel %vm2176, %v2009, %v1273
        %v2207 = vsel %vm2177, %v1530, %v1274
        %v2208 = vsel %vm2177, %v1532, %v1275
        %v2209 = vsel %vm2177, %v1691, %v1276
        %v2210 = vsel %vm2177, %v1693, %v1277
        %v2211 = vsel %vm2177, %v1852, %v1278
        %v2212 = vsel %vm2177, %v1854, %v1279
        %v2213 = vsel %vm2177, %v2013, %v1280
        %v2214 = vsel %vm2177, %v2015, %v1281
        %v2215 = vsel %vm2178, %v1536, %v1282
        %v2216 = vsel %vm2178, %v1538, %v1283
        %v2217 = vsel %vm2178, %v1697, %v1284
        %v2218 = vsel %vm2178, %v1699, %v1285
        %v2219 = vsel %vm2178, %v1858, %v1286
        %v2220 = vsel %vm2178, %v1860, %v1287
        %v2221 = vsel %vm2178, %v2019, %v1288
        %v2222 = vsel %vm2178, %v2021, %v1289
        %v2223 = vsel %vm2179, %v1542, %v1290
        %v2224 = vsel %vm2179, %v1544, %v1291
        %v2225 = vsel %vm2179, %v1703, %v1292
        %v2226 = vsel %vm2179, %v1705, %v1293
        %v2227 = vsel %vm2179, %v1864, %v1294
        %v2228 = vsel %vm2179, %v1866, %v1295
        %v2229 = vsel %vm2179, %v2025, %v1296
        %v2230 = vsel %vm2179, %v2027, %v1297
        %v2231 = vsel %vm2180, %v1548, %v1298
        %v2232 = vsel %vm2180, %v1550, %v1299
        %v2233 = vsel %vm2180, %v1709, %v1300
        %v2234 = vsel %vm2180, %v1711, %v1301
        %v2235 = vsel %vm2180, %v1870, %v1302
        %v2236 = vsel %vm2180, %v1872, %v1303
        %v2237 = vsel %vm2180, %v2031, %v1304
        %v2238 = vsel %vm2180, %v2033, %v1305
        %v2239 = vsel %vm2181, %v1554, %v1306
        %v2240 = vsel %vm2181, %v1556, %v1307
        %v2241 = vsel %vm2181, %v1715, %v1308
        %v2242 = vsel %vm2181, %v1717, %v1309
        %v2243 = vsel %vm2181, %v1876, %v1310
        %v2244 = vsel %vm2181, %v1878, %v1311
        %v2245 = vsel %vm2181, %v2037, %v1312
        %v2246 = vsel %vm2181, %v2039, %v1313
        %v2247 = vsel %vm2182, %v1560, %v1314
        %v2248 = vsel %vm2182, %v1562, %v1315
        %v2249 = vsel %vm2182, %v1721, %v1316
        %v2250 = vsel %vm2182, %v1723, %v1317
        %v2251 = vsel %vm2182, %v1882, %v1318
        %v2252 = vsel %vm2182, %v1884, %v1319
        %v2253 = vsel %vm2182, %v2043, %v1320
        %v2254 = vsel %vm2182, %v2045, %v1321
        %v2255 = vsel %vm2183, %v1566, %v1322
        %v2256 = vsel %vm2183, %v1568, %v1323
        %v2257 = vsel %vm2183, %v1727, %v1324
        %v2258 = vsel %vm2183, %v1729, %v1325
        %v2259 = vsel %vm2183, %v1888, %v1326
        %v2260 = vsel %vm2183, %v1890, %v1327
        %v2261 = vsel %vm2183, %v2049, %v1328
        %v2262 = vsel %vm2183, %v2051, %v1329
        %v2263 = vsel %vm2184, %v1572, %v1330
        %v2264 = vsel %vm2184, %v1574, %v1331
        %v2265 = vsel %vm2184, %v1733, %v1332
        %v2266 = vsel %vm2184, %v1735, %v1333
        %v2267 = vsel %vm2184, %v1894, %v1334
        %v2268 = vsel %vm2184, %v1896, %v1335
        %v2269 = vsel %vm2184, %v2055, %v1336
        %v2270 = vsel %vm2184, %v2057, %v1337
        %v2271 = vsel %vm2185, %v1578, %v1338
        %v2272 = vsel %vm2185, %v1580, %v1339
        %v2273 = vsel %vm2185, %v1739, %v1340
        %v2274 = vsel %vm2185, %v1741, %v1341
        %v2275 = vsel %vm2185, %v1900, %v1342
        %v2276 = vsel %vm2185, %v1902, %v1343
        %v2277 = vsel %vm2185, %v2061, %v1344
        %v2278 = vsel %vm2185, %v2063, %v1345
        %v2279 = vsel %vm2186, %v1584, %v1346
        %v2280 = vsel %vm2186, %v1586, %v1347
        %v2281 = vsel %vm2186, %v1745, %v1348
        %v2282 = vsel %vm2186, %v1747, %v1349
        %v2283 = vsel %vm2186, %v1906, %v1350
        %v2284 = vsel %vm2186, %v1908, %v1351
        %v2285 = vsel %vm2186, %v2067, %v1352
        %v2286 = vsel %vm2186, %v2069, %v1353
        %v2287 = vsel %vm2187, %v1590, %v1354
        %v2288 = vsel %vm2187, %v1592, %v1355
        %v2289 = vsel %vm2187, %v1751, %v1356
        %v2290 = vsel %vm2187, %v1753, %v1357
        %v2291 = vsel %vm2187, %v1912, %v1358
        %v2292 = vsel %vm2187, %v1914, %v1359
        %v2293 = vsel %vm2187, %v2073, %v1360
        %v2294 = vsel %vm2187, %v2075, %v1361
        %v2295 = vsel %vm2188, %v1596, %v1362
        %v2296 = vsel %vm2188, %v1598, %v1363
        %v2297 = vsel %vm2188, %v1757, %v1364
        %v2298 = vsel %vm2188, %v1759, %v1365
        %v2299 = vsel %vm2188, %v1918, %v1366
        %v2300 = vsel %vm2188, %v1920, %v1367
        %v2301 = vsel %vm2188, %v2079, %v1368
        %v2302 = vsel %vm2188, %v2081, %v1369
        %v2303 = vsel %vm2189, %v1602, %v1370
        %v2304 = vsel %vm2189, %v1604, %v1371
        %v2305 = vsel %vm2189, %v1763, %v1372
        %v2306 = vsel %vm2189, %v1765, %v1373
        %v2307 = vsel %vm2189, %v1924, %v1374
        %v2308 = vsel %vm2189, %v1926, %v1375
        %v2309 = vsel %vm2189, %v2085, %v1376
        %v2310 = vsel %vm2189, %v2087, %v1377
        %v2311 = vsel %vm2190, %v1608, %v1378
        %v2312 = vsel %vm2190, %v1610, %v1379
        %v2313 = vsel %vm2190, %v1769, %v1380
        %v2314 = vsel %vm2190, %v1771, %v1381
        %v2315 = vsel %vm2190, %v1930, %v1382
        %v2316 = vsel %vm2190, %v1932, %v1383
        %v2317 = vsel %vm2190, %v2091, %v1384
        %v2318 = vsel %vm2190, %v2093, %v1385
        %s2319 = scalar_lea.vmem [#allocation2], 512
        %v2320 = vld [vmem:[%s2319] sm:$0xff]
        %v2321 = vld [vmem:[%s2319 + $0x8] sm:$0xff]
        %v2322 = vld [vmem:[%s2319 + $0x10] sm:$0xff]
        %v2323 = vld [vmem:[%s2319 + $0x18] sm:$0xff]
        %v2324 = vld [vmem:[%s2319 + $0x20] sm:$0xff]
        %v2325 = vld [vmem:[%s2319 + $0x28] sm:$0xff]
        %v2326 = vld [vmem:[%s2319 + $0x30] sm:$0xff]
        %v2327 = vld [vmem:[%s2319 + $0x38] sm:$0xff]
        %v2328 = vld [vmem:[%s2319 + $0x40] sm:$0xff]
        %v2329 = vld [vmem:[%s2319 + $0x48] sm:$0xff]
        %v2330 = vld [vmem:[%s2319 + $0x50] sm:$0xff]
        %v2331 = vld [vmem:[%s2319 + $0x58] sm:$0xff]
        %v2332 = vld [vmem:[%s2319 + $0x60] sm:$0xff]
        %v2333 = vld [vmem:[%s2319 + $0x68] sm:$0xff]
        %v2334 = vld [vmem:[%s2319 + $0x70] sm:$0xff]
        %v2335 = vld [vmem:[%s2319 + $0x78] sm:$0xff]
        %v2336 = vld [vmem:[%s2319 + $0x80] sm:$0xff]
        %v2337 = vld [vmem:[%s2319 + $0x88] sm:$0xff]
        %v2338 = vld [vmem:[%s2319 + $0x90] sm:$0xff]
        %v2339 = vld [vmem:[%s2319 + $0x98] sm:$0xff]
        %v2340 = vld [vmem:[%s2319 + $0xa0] sm:$0xff]
        %v2341 = vld [vmem:[%s2319 + $0xa8] sm:$0xff]
        %v2342 = vld [vmem:[%s2319 + $0xb0] sm:$0xff]
        %v2343 = vld [vmem:[%s2319 + $0xb8] sm:$0xff]
        %v2344 = vld [vmem:[%s2319 + $0xc0] sm:$0xff]
        %v2345 = vld [vmem:[%s2319 + $0xc8] sm:$0xff]
        %v2346 = vld [vmem:[%s2319 + $0xd0] sm:$0xff]
        %v2347 = vld [vmem:[%s2319 + $0xd8] sm:$0xff]
        %v2348 = vld [vmem:[%s2319 + $0xe0] sm:$0xff]
        %v2349 = vld [vmem:[%s2319 + $0xe8] sm:$0xff]
        %v2350 = vld [vmem:[%s2319 + $0xf0] sm:$0xff]
        %v2351 = vld [vmem:[%s2319 + $0xf8] sm:$0xff]
        %v2352 = vlaneseq
        %v2353 = vshrl.u32 %v2352, 7
        %v2354 = vsub.s32 2, %v2353
        %v2355 = vrot.slane %v397, %v2354
        %v2356 = vlaneseq
        %v2357 = vshrl.u32 %v2356, 7
        %v2358 = vsub.s32 2, %v2357
        %v2359 = vrot.slane %v398, %v2358
        %v2360 = vlaneseq
        %v2361 = vshrl.u32 %v2360, 7
        %v2362 = vsub.s32 2, %v2361
        %v2363 = vrot.slane %v399, %v2362
        %v2364 = vlaneseq
        %v2365 = vshrl.u32 %v2364, 7
        %v2366 = vsub.s32 2, %v2365
        %v2367 = vrot.slane %v400, %v2366
        %v2368 = vlaneseq
        %v2369 = vshrl.u32 %v2368, 7
        %v2370 = vsub.s32 2, %v2369
        %v2371 = vrot.slane %v401, %v2370
        %v2372 = vlaneseq
        %v2373 = vshrl.u32 %v2372, 7
        %v2374 = vsub.s32 2, %v2373
        %v2375 = vrot.slane %v402, %v2374
        %v2376 = vlaneseq
        %v2377 = vshrl.u32 %v2376, 7
        %v2378 = vsub.s32 2, %v2377
        %v2379 = vrot.slane %v403, %v2378
        %v2380 = vlaneseq
        %v2381 = vshrl.u32 %v2380, 7
        %v2382 = vsub.s32 2, %v2381
        %v2383 = vrot.slane %v404, %v2382
        %2384 = vmatprep.subr.mxu0 %v2321
        %2385 = vmatpush1.msra.mxu0 %v2320
        %2386 = vmatprep.subr.mxu0 %v2329
        %2387 = vmatpush1.msra.mxu0 %v2328
        %2388 = vmatprep.subr.mxu0 %v2337
        %2389 = vmatpush1.msra.mxu0 %v2336
        %2390 = vmatprep.subr.mxu0 %v2345
        %2391 = vmatpush1.msra.mxu0 %v2344
        %2392 = vmatprep.subr.mxu0 0.0
        %2393 = vmatpush1.msra.mxu0 0.0
        %2394 = vmatprep.subr.mxu0 0.0
        %2395 = vmatpush1.msra.mxu0 0.0
        %2396 = vmatprep.subr.mxu0 0.0
        %2397 = vmatpush1.msra.mxu0 0.0
        %2398 = vmatprep.subr.mxu0 0.0
        %2399 = vmatpush1.msra.mxu0 0.0
        %2400 = vmatprep.subr.mxu0 0.0
        %2401 = vmatpush1.msra.mxu0 0.0
        %2402 = vmatprep.subr.mxu0 0.0
        %2403 = vmatpush1.msra.mxu0 0.0
        %2404 = vmatprep.subr.mxu0 0.0
        %2405 = vmatpush1.msra.mxu0 0.0
        %2406 = vmatprep.subr.mxu0 0.0
        %2407 = vmatpush1.msra.mxu0 0.0
        %2408 = vmatprep.subr.mxu0 0.0
        %2409 = vmatpush1.msra.mxu0 0.0
        %2410 = vmatprep.subr.mxu0 0.0
        %2411 = vmatpush1.msra.mxu0 0.0
        %2412 = vmatprep.subr.mxu0 0.0
        %2413 = vmatpush1.msra.mxu0 0.0
        %2414 = vmatprep.subr.mxu0 0.0
        %2415 = vmatpush1.msra.mxu0 0.0
        %2416 = vmatprep.subr.mxu0 0.0
        %2417 = vmatpush1.msra.mxu0 0.0
        %2418 = vmatprep.subr.mxu0 0.0
        %2419 = vmatpush1.msra.mxu0 0.0
        %2420 = vmatprep.subr.mxu0 0.0
        %2421 = vmatpush1.msra.mxu0 0.0
        %2422 = vmatprep.subr.mxu0 0.0
        %2423 = vmatpush1.msra.mxu0 0.0
        %2424 = vmatprep.subr.mxu0 0.0
        %2425 = vmatpush1.msra.mxu0 0.0
        %2426 = vmatprep.subr.mxu0 0.0
        %2427 = vmatpush1.msra.mxu0 0.0
        %2428 = vmatprep.subr.mxu0 0.0
        %2429 = vmatpush1.msra.mxu0 0.0
        %2430 = vmatprep.subr.mxu0 0.0
        %2431 = vmatpush1.msra.mxu0 0.0
        %2432 = vmatprep.subr.mxu0 0.0
        %2433 = vmatpush1.msra.mxu0 0.0
        %2434 = vmatprep.subr.mxu0 0.0
        %2435 = vmatpush1.msra.mxu0 0.0
        %2436 = vmatprep.subr.mxu0 0.0
        %2437 = vmatpush1.msra.mxu0 0.0
        %2438 = vmatprep.subr.mxu0 0.0
        %2439 = vmatpush1.msra.mxu0 0.0
        %2440 = vmatprep.subr.mxu0 0.0
        %2441 = vmatpush1.msra.mxu0 0.0
        %2442 = vmatprep.subr.mxu0 0.0
        %2443 = vmatpush1.msra.mxu0 0.0
        %2444 = vmatprep.subr.mxu0 0.0
        %2445 = vmatpush1.msra.mxu0 0.0
        %2446 = vmatprep.subr.mxu0 0.0
        %2447 = vmatpush1.msra.mxu0 0.0
        %2448 = vmatprep.mubr.f32.mxu0 0.0
        %2449 = vmatmul.mubr.f32.gmra.mrb[0].mxu0 %v471
        %v2450 = vpop.f32.mrb[0].mxu0
        %v2451 = vadd.f32 %v2355, %v2450
        %v2452 = vpop.f32.mrb[0].mxu0
        %v2453 = vadd.f32 %v2359, %v2452
        %2454 = vmatprep.mubr.f32.mxu0 0.0
        %2455 = vmatmul.mubr.f32.gmra.mrb[0].mxu0 %v474
        %v2456 = vpop.f32.mrb[0].mxu0
        %v2457 = vadd.f32 %v2355, %v2456
        %v2458 = vpop.f32.mrb[0].mxu0
        %v2459 = vadd.f32 %v2359, %v2458
        %2460 = vmatprep.mubr.f32.mxu0 0.0
        %2461 = vmatmul.mubr.f32.gmra.mrb[0].mxu0 %v477
        %v2462 = vpop.f32.mrb[0].mxu0
        %v2463 = vadd.f32 %v2355, %v2462
        %v2464 = vpop.f32.mrb[0].mxu0
        %v2465 = vadd.f32 %v2359, %v2464
        %2466 = vmatprep.mubr.f32.mxu0 0.0
        %2467 = vmatmul.mubr.f32.gmra.mrb[0].mxu0 %v480
        %v2468 = vpop.f32.mrb[0].mxu0
        %v2469 = vadd.f32 %v2355, %v2468
        %v2470 = vpop.f32.mrb[0].mxu0
        %v2471 = vadd.f32 %v2359, %v2470
        %2472 = vmatprep.mubr.f32.mxu0 0.0
        %2473 = vmatmul.mubr.f32.gmra.mrb[0].mxu0 %v483
        %v2474 = vpop.f32.mrb[0].mxu0
        %v2475 = vadd.f32 %v2355, %v2474
        %v2476 = vpop.f32.mrb[0].mxu0
        %v2477 = vadd.f32 %v2359, %v2476
        %2478 = vmatprep.mubr.f32.mxu0 0.0
        %2479 = vmatmul.mubr.f32.gmra.mrb[0].mxu0 %v486
        %v2480 = vpop.f32.mrb[0].mxu0
        %v2481 = vadd.f32 %v2355, %v2480
        %v2482 = vpop.f32.mrb[0].mxu0
        %v2483 = vadd.f32 %v2359, %v2482
        %2484 = vmatprep.mubr.f32.mxu0 0.0
        %2485 = vmatmul.mubr.f32.gmra.mrb[0].mxu0 %v489
        %v2486 = vpop.f32.mrb[0].mxu0
        %v2487 = vadd.f32 %v2355, %v2486
        %v2488 = vpop.f32.mrb[0].mxu0
        %v2489 = vadd.f32 %v2359, %v2488
        %2490 = vmatprep.mubr.f32.mxu0 0.0
        %2491 = vmatmul.mubr.f32.gmra.mrb[0].mxu0 %v492
        %v2492 = vpop.f32.mrb[0].mxu0
        %v2493 = vadd.f32 %v2355, %v2492
        %v2494 = vpop.f32.mrb[0].mxu0
        %v2495 = vadd.f32 %v2359, %v2494
        %2496 = vmatprep.mubr.f32.mxu0 0.0
        %2497 = vmatmul.mubr.f32.gmra.mrb[0].mxu0 %v495
        %v2498 = vpop.f32.mrb[0].mxu0
        %v2499 = vadd.f32 %v2355, %v2498
        %v2500 = vpop.f32.mrb[0].mxu0
        %v2501 = vadd.f32 %v2359, %v2500
        %2502 = vmatprep.mubr.f32.mxu0 0.0
        %2503 = vmatmul.mubr.f32.gmra.mrb[0].mxu0 %v498
        %v2504 = vpop.f32.mrb[0].mxu0
        %v2505 = vadd.f32 %v2355, %v2504
        %v2506 = vpop.f32.mrb[0].mxu0
        %v2507 = vadd.f32 %v2359, %v2506
        %2508 = vmatprep.mubr.f32.mxu0 0.0
        %2509 = vmatmul.mubr.f32.gmra.mrb[0].mxu0 %v501
        %v2510 = vpop.f32.mrb[0].mxu0
        %v2511 = vadd.f32 %v2355, %v2510
        %v2512 = vpop.f32.mrb[0].mxu0
        %v2513 = vadd.f32 %v2359, %v2512
        %2514 = vmatprep.mubr.f32.mxu0 0.0
        %2515 = vmatmul.mubr.f32.gmra.mrb[0].mxu0 %v504
        %v2516 = vpop.f32.mrb[0].mxu0
        %v2517 = vadd.f32 %v2355, %v2516
        %v2518 = vpop.f32.mrb[0].mxu0
        %v2519 = vadd.f32 %v2359, %v2518
        %2520 = vmatprep.mubr.f32.mxu0 0.0
        %2521 = vmatmul.mubr.f32.gmra.mrb[0].mxu0 %v507
        %v2522 = vpop.f32.mrb[0].mxu0
        %v2523 = vadd.f32 %v2355, %v2522
        %v2524 = vpop.f32.mrb[0].mxu0
        %v2525 = vadd.f32 %v2359, %v2524
        %2526 = vmatprep.mubr.f32.mxu0 0.0
        %2527 = vmatmul.mubr.f32.gmra.mrb[0].mxu0 %v510
        %v2528 = vpop.f32.mrb[0].mxu0
        %v2529 = vadd.f32 %v2355, %v2528
        %v2530 = vpop.f32.mrb[0].mxu0
        %v2531 = vadd.f32 %v2359, %v2530
        %2532 = vmatprep.mubr.f32.mxu0 0.0
        %2533 = vmatmul.mubr.f32.gmra.mrb[0].mxu0 %v513
        %v2534 = vpop.f32.mrb[0].mxu0
        %v2535 = vadd.f32 %v2355, %v2534
        %v2536 = vpop.f32.mrb[0].mxu0
        %v2537 = vadd.f32 %v2359, %v2536
        %2538 = vmatprep.mubr.f32.mxu0 0.0
        %2539 = vmatmul.mubr.f32.gmra.mrb[0].mxu0 %v516
        %v2540 = vpop.f32.mrb[0].mxu0
        %v2541 = vadd.f32 %v2355, %v2540
        %v2542 = vpop.f32.mrb[0].mxu0
        %v2543 = vadd.f32 %v2359, %v2542
        %2544 = vdwg.mxu0
        %2545 = vmatprep.subr.mxu0 %v2323
        %2546 = vmatpush1.msra.mxu0 %v2322
        %2547 = vmatprep.subr.mxu0 %v2331
        %2548 = vmatpush1.msra.mxu0 %v2330
        %2549 = vmatprep.subr.mxu0 %v2339
        %2550 = vmatpush1.msra.mxu0 %v2338
        %2551 = vmatprep.subr.mxu0 %v2347
        %2552 = vmatpush1.msra.mxu0 %v2346
        %2553 = vmatprep.subr.mxu0 0.0
        %2554 = vmatpush1.msra.mxu0 0.0
        %2555 = vmatprep.subr.mxu0 0.0
        %2556 = vmatpush1.msra.mxu0 0.0
        %2557 = vmatprep.subr.mxu0 0.0
        %2558 = vmatpush1.msra.mxu0 0.0
        %2559 = vmatprep.subr.mxu0 0.0
        %2560 = vmatpush1.msra.mxu0 0.0
        %2561 = vmatprep.subr.mxu0 0.0
        %2562 = vmatpush1.msra.mxu0 0.0
        %2563 = vmatprep.subr.mxu0 0.0
        %2564 = vmatpush1.msra.mxu0 0.0
        %2565 = vmatprep.subr.mxu0 0.0
        %2566 = vmatpush1.msra.mxu0 0.0
        %2567 = vmatprep.subr.mxu0 0.0
        %2568 = vmatpush1.msra.mxu0 0.0
        %2569 = vmatprep.subr.mxu0 0.0
        %2570 = vmatpush1.msra.mxu0 0.0
        %2571 = vmatprep.subr.mxu0 0.0
        %2572 = vmatpush1.msra.mxu0 0.0
        %2573 = vmatprep.subr.mxu0 0.0
        %2574 = vmatpush1.msra.mxu0 0.0
        %2575 = vmatprep.subr.mxu0 0.0
        %2576 = vmatpush1.msra.mxu0 0.0
        %2577 = vmatprep.subr.mxu0 0.0
        %2578 = vmatpush1.msra.mxu0 0.0
        %2579 = vmatprep.subr.mxu0 0.0
        %2580 = vmatpush1.msra.mxu0 0.0
        %2581 = vmatprep.subr.mxu0 0.0
        %2582 = vmatpush1.msra.mxu0 0.0
        %2583 = vmatprep.subr.mxu0 0.0
        %2584 = vmatpush1.msra.mxu0 0.0
        %2585 = vmatprep.subr.mxu0 0.0
        %2586 = vmatpush1.msra.mxu0 0.0
        %2587 = vmatprep.subr.mxu0 0.0
        %2588 = vmatpush1.msra.mxu0 0.0
        %2589 = vmatprep.subr.mxu0 0.0
        %2590 = vmatpush1.msra.mxu0 0.0
        %2591 = vmatprep.subr.mxu0 0.0
        %2592 = vmatpush1.msra.mxu0 0.0
        %2593 = vmatprep.subr.mxu0 0.0
        %2594 = vmatpush1.msra.mxu0 0.0
        %2595 = vmatprep.subr.mxu0 0.0
        %2596 = vmatpush1.msra.mxu0 0.0
        %2597 = vmatprep.subr.mxu0 0.0
        %2598 = vmatpush1.msra.mxu0 0.0
        %2599 = vmatprep.subr.mxu0 0.0
        %2600 = vmatpush1.msra.mxu0 0.0
        %2601 = vmatprep.subr.mxu0 0.0
        %2602 = vmatpush1.msra.mxu0 0.0
        %2603 = vmatprep.subr.mxu0 0.0
        %2604 = vmatpush1.msra.mxu0 0.0
        %2605 = vmatprep.subr.mxu0 0.0
        %2606 = vmatpush1.msra.mxu0 0.0
        %2607 = vmatprep.subr.mxu0 0.0
        %2608 = vmatpush1.msra.mxu0 0.0
        %2609 = vmatprep.mubr.f32.mxu0 0.0
        %2610 = vmatmul.mubr.f32.gmra.mrb[0].mxu0 %v471
        %v2611 = vpop.f32.mrb[0].mxu0
        %v2612 = vadd.f32 %v2363, %v2611
        %v2613 = vpop.f32.mrb[0].mxu0
        %v2614 = vadd.f32 %v2367, %v2613
        %2615 = vmatprep.mubr.f32.mxu0 0.0
        %2616 = vmatmul.mubr.f32.gmra.mrb[0].mxu0 %v474
        %v2617 = vpop.f32.mrb[0].mxu0
        %v2618 = vadd.f32 %v2363, %v2617
        %v2619 = vpop.f32.mrb[0].mxu0
        %v2620 = vadd.f32 %v2367, %v2619
        %2621 = vmatprep.mubr.f32.mxu0 0.0
        %2622 = vmatmul.mubr.f32.gmra.mrb[0].mxu0 %v477
        %v2623 = vpop.f32.mrb[0].mxu0
        %v2624 = vadd.f32 %v2363, %v2623
        %v2625 = vpop.f32.mrb[0].mxu0
        %v2626 = vadd.f32 %v2367, %v2625
        %2627 = vmatprep.mubr.f32.mxu0 0.0
        %2628 = vmatmul.mubr.f32.gmra.mrb[0].mxu0 %v480
        %v2629 = vpop.f32.mrb[0].mxu0
        %v2630 = vadd.f32 %v2363, %v2629
        %v2631 = vpop.f32.mrb[0].mxu0
        %v2632 = vadd.f32 %v2367, %v2631
        %2633 = vmatprep.mubr.f32.mxu0 0.0
        %2634 = vmatmul.mubr.f32.gmra.mrb[0].mxu0 %v483
        %v2635 = vpop.f32.mrb[0].mxu0
        %v2636 = vadd.f32 %v2363, %v2635
        %v2637 = vpop.f32.mrb[0].mxu0
        %v2638 = vadd.f32 %v2367, %v2637
        %2639 = vmatprep.mubr.f32.mxu0 0.0
        %2640 = vmatmul.mubr.f32.gmra.mrb[0].mxu0 %v486
        %v2641 = vpop.f32.mrb[0].mxu0
        %v2642 = vadd.f32 %v2363, %v2641
        %v2643 = vpop.f32.mrb[0].mxu0
        %v2644 = vadd.f32 %v2367, %v2643
        %2645 = vmatprep.mubr.f32.mxu0 0.0
        %2646 = vmatmul.mubr.f32.gmra.mrb[0].mxu0 %v489
        %v2647 = vpop.f32.mrb[0].mxu0
        %v2648 = vadd.f32 %v2363, %v2647
        %v2649 = vpop.f32.mrb[0].mxu0
        %v2650 = vadd.f32 %v2367, %v2649
        %2651 = vmatprep.mubr.f32.mxu0 0.0
        %2652 = vmatmul.mubr.f32.gmra.mrb[0].mxu0 %v492
        %v2653 = vpop.f32.mrb[0].mxu0
        %v2654 = vadd.f32 %v2363, %v2653
        %v2655 = vpop.f32.mrb[0].mxu0
        %v2656 = vadd.f32 %v2367, %v2655
        %2657 = vmatprep.mubr.f32.mxu0 0.0
        %2658 = vmatmul.mubr.f32.gmra.mrb[0].mxu0 %v495
        %v2659 = vpop.f32.mrb[0].mxu0
        %v2660 = vadd.f32 %v2363, %v2659
        %v2661 = vpop.f32.mrb[0].mxu0
        %v2662 = vadd.f32 %v2367, %v2661
        %2663 = vmatprep.mubr.f32.mxu0 0.0
        %2664 = vmatmul.mubr.f32.gmra.mrb[0].mxu0 %v498
        %v2665 = vpop.f32.mrb[0].mxu0
        %v2666 = vadd.f32 %v2363, %v2665
        %v2667 = vpop.f32.mrb[0].mxu0
        %v2668 = vadd.f32 %v2367, %v2667
        %2669 = vmatprep.mubr.f32.mxu0 0.0
        %2670 = vmatmul.mubr.f32.gmra.mrb[0].mxu0 %v501
        %v2671 = vpop.f32.mrb[0].mxu0
        %v2672 = vadd.f32 %v2363, %v2671
        %v2673 = vpop.f32.mrb[0].mxu0
        %v2674 = vadd.f32 %v2367, %v2673
        %2675 = vmatprep.mubr.f32.mxu0 0.0
        %2676 = vmatmul.mubr.f32.gmra.mrb[0].mxu0 %v504
        %v2677 = vpop.f32.mrb[0].mxu0
        %v2678 = vadd.f32 %v2363, %v2677
        %v2679 = vpop.f32.mrb[0].mxu0
        %v2680 = vadd.f32 %v2367, %v2679
        %2681 = vmatprep.mubr.f32.mxu0 0.0
        %2682 = vmatmul.mubr.f32.gmra.mrb[0].mxu0 %v507
        %v2683 = vpop.f32.mrb[0].mxu0
        %v2684 = vadd.f32 %v2363, %v2683
        %v2685 = vpop.f32.mrb[0].mxu0
        %v2686 = vadd.f32 %v2367, %v2685
        %2687 = vmatprep.mubr.f32.mxu0 0.0
        %2688 = vmatmul.mubr.f32.gmra.mrb[0].mxu0 %v510
        %v2689 = vpop.f32.mrb[0].mxu0
        %v2690 = vadd.f32 %v2363, %v2689
        %v2691 = vpop.f32.mrb[0].mxu0
        %v2692 = vadd.f32 %v2367, %v2691
        %2693 = vmatprep.mubr.f32.mxu0 0.0
        %2694 = vmatmul.mubr.f32.gmra.mrb[0].mxu0 %v513
        %v2695 = vpop.f32.mrb[0].mxu0
        %v2696 = vadd.f32 %v2363, %v2695
        %v2697 = vpop.f32.mrb[0].mxu0
        %v2698 = vadd.f32 %v2367, %v2697
        %2699 = vmatprep.mubr.f32.mxu0 0.0
        %2700 = vmatmul.mubr.f32.gmra.mrb[0].mxu0 %v516
        %v2701 = vpop.f32.mrb[0].mxu0
        %v2702 = vadd.f32 %v2363, %v2701
        %v2703 = vpop.f32.mrb[0].mxu0
        %v2704 = vadd.f32 %v2367, %v2703
        %2705 = vdwg.mxu0
        %2706 = vmatprep.subr.mxu0 %v2325
        %2707 = vmatpush1.msra.mxu0 %v2324
        %2708 = vmatprep.subr.mxu0 %v2333
        %2709 = vmatpush1.msra.mxu0 %v2332
        %2710 = vmatprep.subr.mxu0 %v2341
        %2711 = vmatpush1.msra.mxu0 %v2340
        %2712 = vmatprep.subr.mxu0 %v2349
        %2713 = vmatpush1.msra.mxu0 %v2348
        %2714 = vmatprep.subr.mxu0 0.0
        %2715 = vmatpush1.msra.mxu0 0.0
        %2716 = vmatprep.subr.mxu0 0.0
        %2717 = vmatpush1.msra.mxu0 0.0
        %2718 = vmatprep.subr.mxu0 0.0
        %2719 = vmatpush1.msra.mxu0 0.0
        %2720 = vmatprep.subr.mxu0 0.0
        %2721 = vmatpush1.msra.mxu0 0.0
        %2722 = vmatprep.subr.mxu0 0.0
        %2723 = vmatpush1.msra.mxu0 0.0
        %2724 = vmatprep.subr.mxu0 0.0
        %2725 = vmatpush1.msra.mxu0 0.0
        %2726 = vmatprep.subr.mxu0 0.0
        %2727 = vmatpush1.msra.mxu0 0.0
        %2728 = vmatprep.subr.mxu0 0.0
        %2729 = vmatpush1.msra.mxu0 0.0
        %2730 = vmatprep.subr.mxu0 0.0
        %2731 = vmatpush1.msra.mxu0 0.0
        %2732 = vmatprep.subr.mxu0 0.0
        %2733 = vmatpush1.msra.mxu0 0.0
        %2734 = vmatprep.subr.mxu0 0.0
        %2735 = vmatpush1.msra.mxu0 0.0
        %2736 = vmatprep.subr.mxu0 0.0
        %2737 = vmatpush1.msra.mxu0 0.0
        %2738 = vmatprep.subr.mxu0 0.0
        %2739 = vmatpush1.msra.mxu0 0.0
        %2740 = vmatprep.subr.mxu0 0.0
        %2741 = vmatpush1.msra.mxu0 0.0
        %2742 = vmatprep.subr.mxu0 0.0
        %2743 = vmatpush1.msra.mxu0 0.0
        %2744 = vmatprep.subr.mxu0 0.0
        %2745 = vmatpush1.msra.mxu0 0.0
        %2746 = vmatprep.subr.mxu0 0.0
        %2747 = vmatpush1.msra.mxu0 0.0
        %2748 = vmatprep.subr.mxu0 0.0
        %2749 = vmatpush1.msra.mxu0 0.0
        %2750 = vmatprep.subr.mxu0 0.0
        %2751 = vmatpush1.msra.mxu0 0.0
        %2752 = vmatprep.subr.mxu0 0.0
        %2753 = vmatpush1.msra.mxu0 0.0
        %2754 = vmatprep.subr.mxu0 0.0
        %2755 = vmatpush1.msra.mxu0 0.0
        %2756 = vmatprep.subr.mxu0 0.0
        %2757 = vmatpush1.msra.mxu0 0.0
        %2758 = vmatprep.subr.mxu0 0.0
        %2759 = vmatpush1.msra.mxu0 0.0
        %2760 = vmatprep.subr.mxu0 0.0
        %2761 = vmatpush1.msra.mxu0 0.0
        %2762 = vmatprep.subr.mxu0 0.0
        %2763 = vmatpush1.msra.mxu0 0.0
        %2764 = vmatprep.subr.mxu0 0.0
        %2765 = vmatpush1.msra.mxu0 0.0
        %2766 = vmatprep.subr.mxu0 0.0
        %2767 = vmatpush1.msra.mxu0 0.0
        %2768 = vmatprep.subr.mxu0 0.0
        %2769 = vmatpush1.msra.mxu0 0.0
        %2770 = vmatprep.mubr.f32.mxu0 0.0
        %2771 = vmatmul.mubr.f32.gmra.mrb[0].mxu0 %v471
        %v2772 = vpop.f32.mrb[0].mxu0
        %v2773 = vadd.f32 %v2371, %v2772
        %v2774 = vpop.f32.mrb[0].mxu0
        %v2775 = vadd.f32 %v2375, %v2774
        %2776 = vmatprep.mubr.f32.mxu0 0.0
        %2777 = vmatmul.mubr.f32.gmra.mrb[0].mxu0 %v474
        %v2778 = vpop.f32.mrb[0].mxu0
        %v2779 = vadd.f32 %v2371, %v2778
        %v2780 = vpop.f32.mrb[0].mxu0
        %v2781 = vadd.f32 %v2375, %v2780
        %2782 = vmatprep.mubr.f32.mxu0 0.0
        %2783 = vmatmul.mubr.f32.gmra.mrb[0].mxu0 %v477
        %v2784 = vpop.f32.mrb[0].mxu0
        %v2785 = vadd.f32 %v2371, %v2784
        %v2786 = vpop.f32.mrb[0].mxu0
        %v2787 = vadd.f32 %v2375, %v2786
        %2788 = vmatprep.mubr.f32.mxu0 0.0
        %2789 = vmatmul.mubr.f32.gmra.mrb[0].mxu0 %v480
        %v2790 = vpop.f32.mrb[0].mxu0
        %v2791 = vadd.f32 %v2371, %v2790
        %v2792 = vpop.f32.mrb[0].mxu0
        %v2793 = vadd.f32 %v2375, %v2792
        %2794 = vmatprep.mubr.f32.mxu0 0.0
        %2795 = vmatmul.mubr.f32.gmra.mrb[0].mxu0 %v483
        %v2796 = vpop.f32.mrb[0].mxu0
        %v2797 = vadd.f32 %v2371, %v2796
        %v2798 = vpop.f32.mrb[0].mxu0
        %v2799 = vadd.f32 %v2375, %v2798
        %2800 = vmatprep.mubr.f32.mxu0 0.0
        %2801 = vmatmul.mubr.f32.gmra.mrb[0].mxu0 %v486
        %v2802 = vpop.f32.mrb[0].mxu0
        %v2803 = vadd.f32 %v2371, %v2802
        %v2804 = vpop.f32.mrb[0].mxu0
        %v2805 = vadd.f32 %v2375, %v2804
        %2806 = vmatprep.mubr.f32.mxu0 0.0
        %2807 = vmatmul.mubr.f32.gmra.mrb[0].mxu0 %v489
        %v2808 = vpop.f32.mrb[0].mxu0
        %v2809 = vadd.f32 %v2371, %v2808
        %v2810 = vpop.f32.mrb[0].mxu0
        %v2811 = vadd.f32 %v2375, %v2810
        %2812 = vmatprep.mubr.f32.mxu0 0.0
        %2813 = vmatmul.mubr.f32.gmra.mrb[0].mxu0 %v492
        %v2814 = vpop.f32.mrb[0].mxu0
        %v2815 = vadd.f32 %v2371, %v2814
        %v2816 = vpop.f32.mrb[0].mxu0
        %v2817 = vadd.f32 %v2375, %v2816
        %2818 = vmatprep.mubr.f32.mxu0 0.0
        %2819 = vmatmul.mubr.f32.gmra.mrb[0].mxu0 %v495
        %v2820 = vpop.f32.mrb[0].mxu0
        %v2821 = vadd.f32 %v2371, %v2820
        %v2822 = vpop.f32.mrb[0].mxu0
        %v2823 = vadd.f32 %v2375, %v2822
        %2824 = vmatprep.mubr.f32.mxu0 0.0
        %2825 = vmatmul.mubr.f32.gmra.mrb[0].mxu0 %v498
        %v2826 = vpop.f32.mrb[0].mxu0
        %v2827 = vadd.f32 %v2371, %v2826
        %v2828 = vpop.f32.mrb[0].mxu0
        %v2829 = vadd.f32 %v2375, %v2828
        %2830 = vmatprep.mubr.f32.mxu0 0.0
        %2831 = vmatmul.mubr.f32.gmra.mrb[0].mxu0 %v501
        %v2832 = vpop.f32.mrb[0].mxu0
        %v2833 = vadd.f32 %v2371, %v2832
        %v2834 = vpop.f32.mrb[0].mxu0
        %v2835 = vadd.f32 %v2375, %v2834
        %2836 = vmatprep.mubr.f32.mxu0 0.0
        %2837 = vmatmul.mubr.f32.gmra.mrb[0].mxu0 %v504
        %v2838 = vpop.f32.mrb[0].mxu0
        %v2839 = vadd.f32 %v2371, %v2838
        %v2840 = vpop.f32.mrb[0].mxu0
        %v2841 = vadd.f32 %v2375, %v2840
        %2842 = vmatprep.mubr.f32.mxu0 0.0
        %2843 = vmatmul.mubr.f32.gmra.mrb[0].mxu0 %v507
        %v2844 = vpop.f32.mrb[0].mxu0
        %v2845 = vadd.f32 %v2371, %v2844
        %v2846 = vpop.f32.mrb[0].mxu0
        %v2847 = vadd.f32 %v2375, %v2846
        %2848 = vmatprep.mubr.f32.mxu0 0.0
        %2849 = vmatmul.mubr.f32.gmra.mrb[0].mxu0 %v510
        %v2850 = vpop.f32.mrb[0].mxu0
        %v2851 = vadd.f32 %v2371, %v2850
        %v2852 = vpop.f32.mrb[0].mxu0
        %v2853 = vadd.f32 %v2375, %v2852
        %2854 = vmatprep.mubr.f32.mxu0 0.0
        %2855 = vmatmul.mubr.f32.gmra.mrb[0].mxu0 %v513
        %v2856 = vpop.f32.mrb[0].mxu0
        %v2857 = vadd.f32 %v2371, %v2856
        %v2858 = vpop.f32.mrb[0].mxu0
        %v2859 = vadd.f32 %v2375, %v2858
        %2860 = vmatprep.mubr.f32.mxu0 0.0
        %2861 = vmatmul.mubr.f32.gmra.mrb[0].mxu0 %v516
        %v2862 = vpop.f32.mrb[0].mxu0
        %v2863 = vadd.f32 %v2371, %v2862
        %v2864 = vpop.f32.mrb[0].mxu0
        %v2865 = vadd.f32 %v2375, %v2864
        %2866 = vdwg.mxu0
        %2867 = vmatprep.subr.mxu0 %v2327
        %2868 = vmatpush1.msra.mxu0 %v2326
        %2869 = vmatprep.subr.mxu0 %v2335
        %2870 = vmatpush1.msra.mxu0 %v2334
        %2871 = vmatprep.subr.mxu0 %v2343
        %2872 = vmatpush1.msra.mxu0 %v2342
        %2873 = vmatprep.subr.mxu0 %v2351
        %2874 = vmatpush1.msra.mxu0 %v2350
        %2875 = vmatprep.subr.mxu0 0.0
        %2876 = vmatpush1.msra.mxu0 0.0
        %2877 = vmatprep.subr.mxu0 0.0
        %2878 = vmatpush1.msra.mxu0 0.0
        %2879 = vmatprep.subr.mxu0 0.0
        %2880 = vmatpush1.msra.mxu0 0.0
        %2881 = vmatprep.subr.mxu0 0.0
        %2882 = vmatpush1.msra.mxu0 0.0
        %2883 = vmatprep.subr.mxu0 0.0
        %2884 = vmatpush1.msra.mxu0 0.0
        %2885 = vmatprep.subr.mxu0 0.0
        %2886 = vmatpush1.msra.mxu0 0.0
        %2887 = vmatprep.subr.mxu0 0.0
        %2888 = vmatpush1.msra.mxu0 0.0
        %2889 = vmatprep.subr.mxu0 0.0
        %2890 = vmatpush1.msra.mxu0 0.0
        %2891 = vmatprep.subr.mxu0 0.0
        %2892 = vmatpush1.msra.mxu0 0.0
        %2893 = vmatprep.subr.mxu0 0.0
        %2894 = vmatpush1.msra.mxu0 0.0
        %2895 = vmatprep.subr.mxu0 0.0
        %2896 = vmatpush1.msra.mxu0 0.0
        %2897 = vmatprep.subr.mxu0 0.0
        %2898 = vmatpush1.msra.mxu0 0.0
        %2899 = vmatprep.subr.mxu0 0.0
        %2900 = vmatpush1.msra.mxu0 0.0
        %2901 = vmatprep.subr.mxu0 0.0
        %2902 = vmatpush1.msra.mxu0 0.0
        %2903 = vmatprep.subr.mxu0 0.0
        %2904 = vmatpush1.msra.mxu0 0.0
        %2905 = vmatprep.subr.mxu0 0.0
        %2906 = vmatpush1.msra.mxu0 0.0
        %2907 = vmatprep.subr.mxu0 0.0
        %2908 = vmatpush1.msra.mxu0 0.0
        %2909 = vmatprep.subr.mxu0 0.0
        %2910 = vmatpush1.msra.mxu0 0.0
        %2911 = vmatprep.subr.mxu0 0.0
        %2912 = vmatpush1.msra.mxu0 0.0
        %2913 = vmatprep.subr.mxu0 0.0
        %2914 = vmatpush1.msra.mxu0 0.0
        %2915 = vmatprep.subr.mxu0 0.0
        %2916 = vmatpush1.msra.mxu0 0.0
        %2917 = vmatprep.subr.mxu0 0.0
        %2918 = vmatpush1.msra.mxu0 0.0
        %2919 = vmatprep.subr.mxu0 0.0
        %2920 = vmatpush1.msra.mxu0 0.0
        %2921 = vmatprep.subr.mxu0 0.0
        %2922 = vmatpush1.msra.mxu0 0.0
        %2923 = vmatprep.subr.mxu0 0.0
        %2924 = vmatpush1.msra.mxu0 0.0
        %2925 = vmatprep.subr.mxu0 0.0
        %2926 = vmatpush1.msra.mxu0 0.0
        %2927 = vmatprep.subr.mxu0 0.0
        %2928 = vmatpush1.msra.mxu0 0.0
        %2929 = vmatprep.subr.mxu0 0.0
        %2930 = vmatpush1.msra.mxu0 0.0
        %2931 = vmatprep.mubr.f32.mxu0 0.0
        %2932 = vmatmul.mubr.f32.gmra.mrb[0].mxu0 %v471
        %v2933 = vpop.f32.mrb[0].mxu0
        %v2934 = vadd.f32 %v2379, %v2933
        %v2935 = vpop.f32.mrb[0].mxu0
        %v2936 = vadd.f32 %v2383, %v2935
        %2937 = vmatprep.mubr.f32.mxu0 0.0
        %2938 = vmatmul.mubr.f32.gmra.mrb[0].mxu0 %v474
        %v2939 = vpop.f32.mrb[0].mxu0
        %v2940 = vadd.f32 %v2379, %v2939
        %v2941 = vpop.f32.mrb[0].mxu0
        %v2942 = vadd.f32 %v2383, %v2941
        %2943 = vmatprep.mubr.f32.mxu0 0.0
        %2944 = vmatmul.mubr.f32.gmra.mrb[0].mxu0 %v477
        %v2945 = vpop.f32.mrb[0].mxu0
        %v2946 = vadd.f32 %v2379, %v2945
        %v2947 = vpop.f32.mrb[0].mxu0
        %v2948 = vadd.f32 %v2383, %v2947
        %2949 = vmatprep.mubr.f32.mxu0 0.0
        %2950 = vmatmul.mubr.f32.gmra.mrb[0].mxu0 %v480
        %v2951 = vpop.f32.mrb[0].mxu0
        %v2952 = vadd.f32 %v2379, %v2951
        %v2953 = vpop.f32.mrb[0].mxu0
        %v2954 = vadd.f32 %v2383, %v2953
        %2955 = vmatprep.mubr.f32.mxu0 0.0
        %2956 = vmatmul.mubr.f32.gmra.mrb[0].mxu0 %v483
        %v2957 = vpop.f32.mrb[0].mxu0
        %v2958 = vadd.f32 %v2379, %v2957
        %v2959 = vpop.f32.mrb[0].mxu0
        %v2960 = vadd.f32 %v2383, %v2959
        %2961 = vmatprep.mubr.f32.mxu0 0.0
        %2962 = vmatmul.mubr.f32.gmra.mrb[0].mxu0 %v486
        %v2963 = vpop.f32.mrb[0].mxu0
        %v2964 = vadd.f32 %v2379, %v2963
        %v2965 = vpop.f32.mrb[0].mxu0
        %v2966 = vadd.f32 %v2383, %v2965
        %2967 = vmatprep.mubr.f32.mxu0 0.0
        %2968 = vmatmul.mubr.f32.gmra.mrb[0].mxu0 %v489
        %v2969 = vpop.f32.mrb[0].mxu0
        %v2970 = vadd.f32 %v2379, %v2969
        %v2971 = vpop.f32.mrb[0].mxu0
        %v2972 = vadd.f32 %v2383, %v2971
        %2973 = vmatprep.mubr.f32.mxu0 0.0
        %2974 = vmatmul.mubr.f32.gmra.mrb[0].mxu0 %v492
        %v2975 = vpop.f32.mrb[0].mxu0
        %v2976 = vadd.f32 %v2379, %v2975
        %v2977 = vpop.f32.mrb[0].mxu0
        %v2978 = vadd.f32 %v2383, %v2977
        %2979 = vmatprep.mubr.f32.mxu0 0.0
        %2980 = vmatmul.mubr.f32.gmra.mrb[0].mxu0 %v495
        %v2981 = vpop.f32.mrb[0].mxu0
        %v2982 = vadd.f32 %v2379, %v2981
        %v2983 = vpop.f32.mrb[0].mxu0
        %v2984 = vadd.f32 %v2383, %v2983
        %2985 = vmatprep.mubr.f32.mxu0 0.0
        %2986 = vmatmul.mubr.f32.gmra.mrb[0].mxu0 %v498
        %v2987 = vpop.f32.mrb[0].mxu0
        %v2988 = vadd.f32 %v2379, %v2987
        %v2989 = vpop.f32.mrb[0].mxu0
        %v2990 = vadd.f32 %v2383, %v2989
        %2991 = vmatprep.mubr.f32.mxu0 0.0
        %2992 = vmatmul.mubr.f32.gmra.mrb[0].mxu0 %v501
        %v2993 = vpop.f32.mrb[0].mxu0
        %v2994 = vadd.f32 %v2379, %v2993
        %v2995 = vpop.f32.mrb[0].mxu0
        %v2996 = vadd.f32 %v2383, %v2995
        %2997 = vmatprep.mubr.f32.mxu0 0.0
        %2998 = vmatmul.mubr.f32.gmra.mrb[0].mxu0 %v504
        %v2999 = vpop.f32.mrb[0].mxu0
        %v3000 = vadd.f32 %v2379, %v2999
        %v3001 = vpop.f32.mrb[0].mxu0
        %v3002 = vadd.f32 %v2383, %v3001
        %3003 = vmatprep.mubr.f32.mxu0 0.0
        %3004 = vmatmul.mubr.f32.gmra.mrb[0].mxu0 %v507
        %v3005 = vpop.f32.mrb[0].mxu0
        %v3006 = vadd.f32 %v2379, %v3005
        %v3007 = vpop.f32.mrb[0].mxu0
        %v3008 = vadd.f32 %v2383, %v3007
        %3009 = vmatprep.mubr.f32.mxu0 0.0
        %3010 = vmatmul.mubr.f32.gmra.mrb[0].mxu0 %v510
        %v3011 = vpop.f32.mrb[0].mxu0
        %v3012 = vadd.f32 %v2379, %v3011
        %v3013 = vpop.f32.mrb[0].mxu0
        %v3014 = vadd.f32 %v2383, %v3013
        %3015 = vmatprep.mubr.f32.mxu0 0.0
        %3016 = vmatmul.mubr.f32.gmra.mrb[0].mxu0 %v513
        %v3017 = vpop.f32.mrb[0].mxu0
        %v3018 = vadd.f32 %v2379, %v3017
        %v3019 = vpop.f32.mrb[0].mxu0
        %v3020 = vadd.f32 %v2383, %v3019
        %3021 = vmatprep.mubr.f32.mxu0 0.0
        %3022 = vmatmul.mubr.f32.gmra.mrb[0].mxu0 %v516
        %v3023 = vpop.f32.mrb[0].mxu0
        %v3024 = vadd.f32 %v2379, %v3023
        %v3025 = vpop.f32.mrb[0].mxu0
        %v3026 = vadd.f32 %v2383, %v3025
        %3027 = vdwg.mxu0
        %vm3028 = vcmp.eq.s32.totalorder %v381, 2
        %vm3029 = vcmp.eq.s32.totalorder %v382, 2
        %vm3030 = vcmp.eq.s32.totalorder %v383, 2
        %vm3031 = vcmp.eq.s32.totalorder %v384, 2
        %vm3032 = vcmp.eq.s32.totalorder %v385, 2
        %vm3033 = vcmp.eq.s32.totalorder %v386, 2
        %vm3034 = vcmp.eq.s32.totalorder %v387, 2
        %vm3035 = vcmp.eq.s32.totalorder %v388, 2
        %vm3036 = vcmp.eq.s32.totalorder %v389, 2
        %vm3037 = vcmp.eq.s32.totalorder %v390, 2
        %vm3038 = vcmp.eq.s32.totalorder %v391, 2
        %vm3039 = vcmp.eq.s32.totalorder %v392, 2
        %vm3040 = vcmp.eq.s32.totalorder %v393, 2
        %vm3041 = vcmp.eq.s32.totalorder %v394, 2
        %vm3042 = vcmp.eq.s32.totalorder %v395, 2
        %vm3043 = vcmp.eq.s32.totalorder %v396, 2
        %v3044 = vsel %vm3028, 1, 0
        %v3045 = vsel %vm3029, 1, 0
        %v3046 = vsel %vm3030, 1, 0
        %v3047 = vsel %vm3031, 1, 0
        %v3048 = vsel %vm3032, 1, 0
        %v3049 = vsel %vm3033, 1, 0
        %v3050 = vsel %vm3034, 1, 0
        %v3051 = vsel %vm3035, 1, 0
        %v3052 = vsel %vm3036, 1, 0
        %v3053 = vsel %vm3037, 1, 0
        %v3054 = vsel %vm3038, 1, 0
        %v3055 = vsel %vm3039, 1, 0
        %v3056 = vsel %vm3040, 1, 0
        %v3057 = vsel %vm3041, 1, 0
        %v3058 = vsel %vm3042, 1, 0
        %v3059 = vsel %vm3043, 1, 0
        %3060 = vset.pattern.permute.xlu0 31
        %3061 = vperm.xlu0 %3060, %v3044
        %v3062 = vpop.permute.xlu0 %3061
        %3063 = vset.pattern.permute.xlu0 31
        %3064 = vperm.xlu0 %3063, %v3045
        %v3065 = vpop.permute.xlu0 %3064
        %3066 = vset.pattern.permute.xlu0 31
        %3067 = vperm.xlu0 %3066, %v3046
        %v3068 = vpop.permute.xlu0 %3067
        %3069 = vset.pattern.permute.xlu0 31
        %3070 = vperm.xlu0 %3069, %v3047
        %v3071 = vpop.permute.xlu0 %3070
        %3072 = vset.pattern.permute.xlu0 31
        %3073 = vperm.xlu0 %3072, %v3048
        %v3074 = vpop.permute.xlu0 %3073
        %3075 = vset.pattern.permute.xlu0 31
        %3076 = vperm.xlu0 %3075, %v3049
        %v3077 = vpop.permute.xlu0 %3076
        %3078 = vset.pattern.permute.xlu0 31
        %3079 = vperm.xlu0 %3078, %v3050
        %v3080 = vpop.permute.xlu0 %3079
        %3081 = vset.pattern.permute.xlu0 31
        %3082 = vperm.xlu0 %3081, %v3051
        %v3083 = vpop.permute.xlu0 %3082
        %3084 = vset.pattern.permute.xlu0 31
        %3085 = vperm.xlu0 %3084, %v3052
        %v3086 = vpop.permute.xlu0 %3085
        %3087 = vset.pattern.permute.xlu0 31
        %3088 = vperm.xlu0 %3087, %v3053
        %v3089 = vpop.permute.xlu0 %3088
        %3090 = vset.pattern.permute.xlu0 31
        %3091 = vperm.xlu0 %3090, %v3054
        %v3092 = vpop.permute.xlu0 %3091
        %3093 = vset.pattern.permute.xlu0 31
        %3094 = vperm.xlu0 %3093, %v3055
        %v3095 = vpop.permute.xlu0 %3094
        %3096 = vset.pattern.permute.xlu0 31
        %3097 = vperm.xlu0 %3096, %v3056
        %v3098 = vpop.permute.xlu0 %3097
        %3099 = vset.pattern.permute.xlu0 31
        %3100 = vperm.xlu0 %3099, %v3057
        %v3101 = vpop.permute.xlu0 %3100
        %3102 = vset.pattern.permute.xlu0 31
        %3103 = vperm.xlu0 %3102, %v3058
        %v3104 = vpop.permute.xlu0 %3103
        %3105 = vset.pattern.permute.xlu0 31
        %3106 = vperm.xlu0 %3105, %v3059
        %v3107 = vpop.permute.xlu0 %3106
        %vm3108 = vcmp.eq.s32.totalorder %v3062, 1
        %vm3109 = vcmp.eq.s32.totalorder %v3065, 1
        %vm3110 = vcmp.eq.s32.totalorder %v3068, 1
        %vm3111 = vcmp.eq.s32.totalorder %v3071, 1
        %vm3112 = vcmp.eq.s32.totalorder %v3074, 1
        %vm3113 = vcmp.eq.s32.totalorder %v3077, 1
        %vm3114 = vcmp.eq.s32.totalorder %v3080, 1
        %vm3115 = vcmp.eq.s32.totalorder %v3083, 1
        %vm3116 = vcmp.eq.s32.totalorder %v3086, 1
        %vm3117 = vcmp.eq.s32.totalorder %v3089, 1
        %vm3118 = vcmp.eq.s32.totalorder %v3092, 1
        %vm3119 = vcmp.eq.s32.totalorder %v3095, 1
        %vm3120 = vcmp.eq.s32.totalorder %v3098, 1
        %vm3121 = vcmp.eq.s32.totalorder %v3101, 1
        %vm3122 = vcmp.eq.s32.totalorder %v3104, 1
        %vm3123 = vcmp.eq.s32.totalorder %v3107, 1
        %v3124 = vsel %vm3108, %v2451, %v2191
        %v3125 = vsel %vm3108, %v2453, %v2192
        %v3126 = vsel %vm3108, %v2612, %v2193
        %v3127 = vsel %vm3108, %v2614, %v2194
        %v3128 = vsel %vm3108, %v2773, %v2195
        %v3129 = vsel %vm3108, %v2775, %v2196
        %v3130 = vsel %vm3108, %v2934, %v2197
        %v3131 = vsel %vm3108, %v2936, %v2198
        %v3132 = vsel %vm3109, %v2457, %v2199
        %v3133 = vsel %vm3109, %v2459, %v2200
        %v3134 = vsel %vm3109, %v2618, %v2201
        %v3135 = vsel %vm3109, %v2620, %v2202
        %v3136 = vsel %vm3109, %v2779, %v2203
        %v3137 = vsel %vm3109, %v2781, %v2204
        %v3138 = vsel %vm3109, %v2940, %v2205
        %v3139 = vsel %vm3109, %v2942, %v2206
        %v3140 = vsel %vm3110, %v2463, %v2207
        %v3141 = vsel %vm3110, %v2465, %v2208
        %v3142 = vsel %vm3110, %v2624, %v2209
        %v3143 = vsel %vm3110, %v2626, %v2210
        %v3144 = vsel %vm3110, %v2785, %v2211
        %v3145 = vsel %vm3110, %v2787, %v2212
        %v3146 = vsel %vm3110, %v2946, %v2213
        %v3147 = vsel %vm3110, %v2948, %v2214
        %v3148 = vsel %vm3111, %v2469, %v2215
        %v3149 = vsel %vm3111, %v2471, %v2216
        %v3150 = vsel %vm3111, %v2630, %v2217
        %v3151 = vsel %vm3111, %v2632, %v2218
        %v3152 = vsel %vm3111, %v2791, %v2219
        %v3153 = vsel %vm3111, %v2793, %v2220
        %v3154 = vsel %vm3111, %v2952, %v2221
        %v3155 = vsel %vm3111, %v2954, %v2222
        %v3156 = vsel %vm3112, %v2475, %v2223
        %v3157 = vsel %vm3112, %v2477, %v2224
        %v3158 = vsel %vm3112, %v2636, %v2225
        %v3159 = vsel %vm3112, %v2638, %v2226
        %v3160 = vsel %vm3112, %v2797, %v2227
        %v3161 = vsel %vm3112, %v2799, %v2228
        %v3162 = vsel %vm3112, %v2958, %v2229
        %v3163 = vsel %vm3112, %v2960, %v2230
        %v3164 = vsel %vm3113, %v2481, %v2231
        %v3165 = vsel %vm3113, %v2483, %v2232
        %v3166 = vsel %vm3113, %v2642, %v2233
        %v3167 = vsel %vm3113, %v2644, %v2234
        %v3168 = vsel %vm3113, %v2803, %v2235
        %v3169 = vsel %vm3113, %v2805, %v2236
        %v3170 = vsel %vm3113, %v2964, %v2237
        %v3171 = vsel %vm3113, %v2966, %v2238
        %v3172 = vsel %vm3114, %v2487, %v2239
        %v3173 = vsel %vm3114, %v2489, %v2240
        %v3174 = vsel %vm3114, %v2648, %v2241
        %v3175 = vsel %vm3114, %v2650, %v2242
        %v3176 = vsel %vm3114, %v2809, %v2243
        %v3177 = vsel %vm3114, %v2811, %v2244
        %v3178 = vsel %vm3114, %v2970, %v2245
        %v3179 = vsel %vm3114, %v2972, %v2246
        %v3180 = vsel %vm3115, %v2493, %v2247
        %v3181 = vsel %vm3115, %v2495, %v2248
        %v3182 = vsel %vm3115, %v2654, %v2249
        %v3183 = vsel %vm3115, %v2656, %v2250
        %v3184 = vsel %vm3115, %v2815, %v2251
        %v3185 = vsel %vm3115, %v2817, %v2252
        %v3186 = vsel %vm3115, %v2976, %v2253
        %v3187 = vsel %vm3115, %v2978, %v2254
        %v3188 = vsel %vm3116, %v2499, %v2255
        %v3189 = vsel %vm3116, %v2501, %v2256
        %v3190 = vsel %vm3116, %v2660, %v2257
        %v3191 = vsel %vm3116, %v2662, %v2258
        %v3192 = vsel %vm3116, %v2821, %v2259
        %v3193 = vsel %vm3116, %v2823, %v2260
        %v3194 = vsel %vm3116, %v2982, %v2261
        %v3195 = vsel %vm3116, %v2984, %v2262
        %v3196 = vsel %vm3117, %v2505, %v2263
        %v3197 = vsel %vm3117, %v2507, %v2264
        %v3198 = vsel %vm3117, %v2666, %v2265
        %v3199 = vsel %vm3117, %v2668, %v2266
        %v3200 = vsel %vm3117, %v2827, %v2267
        %v3201 = vsel %vm3117, %v2829, %v2268
        %v3202 = vsel %vm3117, %v2988, %v2269
        %v3203 = vsel %vm3117, %v2990, %v2270
        %v3204 = vsel %vm3118, %v2511, %v2271
        %v3205 = vsel %vm3118, %v2513, %v2272
        %v3206 = vsel %vm3118, %v2672, %v2273
        %v3207 = vsel %vm3118, %v2674, %v2274
        %v3208 = vsel %vm3118, %v2833, %v2275
        %v3209 = vsel %vm3118, %v2835, %v2276
        %v3210 = vsel %vm3118, %v2994, %v2277
        %v3211 = vsel %vm3118, %v2996, %v2278
        %v3212 = vsel %vm3119, %v2517, %v2279
        %v3213 = vsel %vm3119, %v2519, %v2280
        %v3214 = vsel %vm3119, %v2678, %v2281
        %v3215 = vsel %vm3119, %v2680, %v2282
        %v3216 = vsel %vm3119, %v2839, %v2283
        %v3217 = vsel %vm3119, %v2841, %v2284
        %v3218 = vsel %vm3119, %v3000, %v2285
        %v3219 = vsel %vm3119, %v3002, %v2286
        %v3220 = vsel %vm3120, %v2523, %v2287
        %v3221 = vsel %vm3120, %v2525, %v2288
        %v3222 = vsel %vm3120, %v2684, %v2289
        %v3223 = vsel %vm3120, %v2686, %v2290
        %v3224 = vsel %vm3120, %v2845, %v2291
        %v3225 = vsel %vm3120, %v2847, %v2292
        %v3226 = vsel %vm3120, %v3006, %v2293
        %v3227 = vsel %vm3120, %v3008, %v2294
        %v3228 = vsel %vm3121, %v2529, %v2295
        %v3229 = vsel %vm3121, %v2531, %v2296
        %v3230 = vsel %vm3121, %v2690, %v2297
        %v3231 = vsel %vm3121, %v2692, %v2298
        %v3232 = vsel %vm3121, %v2851, %v2299
        %v3233 = vsel %vm3121, %v2853, %v2300
        %v3234 = vsel %vm3121, %v3012, %v2301
        %v3235 = vsel %vm3121, %v3014, %v2302
        %v3236 = vsel %vm3122, %v2535, %v2303
        %v3237 = vsel %vm3122, %v2537, %v2304
        %v3238 = vsel %vm3122, %v2696, %v2305
        %v3239 = vsel %vm3122, %v2698, %v2306
        %v3240 = vsel %vm3122, %v2857, %v2307
        %v3241 = vsel %vm3122, %v2859, %v2308
        %v3242 = vsel %vm3122, %v3018, %v2309
        %v3243 = vsel %vm3122, %v3020, %v2310
        %v3244 = vsel %vm3123, %v2541, %v2311
        %v3245 = vsel %vm3123, %v2543, %v2312
        %v3246 = vsel %vm3123, %v2702, %v2313
        %v3247 = vsel %vm3123, %v2704, %v2314
        %v3248 = vsel %vm3123, %v2863, %v2315
        %v3249 = vsel %vm3123, %v2865, %v2316
        %v3250 = vsel %vm3123, %v3024, %v2317
        %v3251 = vsel %vm3123, %v3026, %v2318
        %s3252 = scalar_lea.vmem [#allocation2], 768
        %v3253 = vld [vmem:[%s3252] sm:$0xff]
        %v3254 = vld [vmem:[%s3252 + $0x8] sm:$0xff]
        %v3255 = vld [vmem:[%s3252 + $0x10] sm:$0xff]
        %v3256 = vld [vmem:[%s3252 + $0x18] sm:$0xff]
        %v3257 = vld [vmem:[%s3252 + $0x20] sm:$0xff]
        %v3258 = vld [vmem:[%s3252 + $0x28] sm:$0xff]
        %v3259 = vld [vmem:[%s3252 + $0x30] sm:$0xff]
        %v3260 = vld [vmem:[%s3252 + $0x38] sm:$0xff]
        %v3261 = vld [vmem:[%s3252 + $0x40] sm:$0xff]
        %v3262 = vld [vmem:[%s3252 + $0x48] sm:$0xff]
        %v3263 = vld [vmem:[%s3252 + $0x50] sm:$0xff]
        %v3264 = vld [vmem:[%s3252 + $0x58] sm:$0xff]
        %v3265 = vld [vmem:[%s3252 + $0x60] sm:$0xff]
        %v3266 = vld [vmem:[%s3252 + $0x68] sm:$0xff]
        %v3267 = vld [vmem:[%s3252 + $0x70] sm:$0xff]
        %v3268 = vld [vmem:[%s3252 + $0x78] sm:$0xff]
        %v3269 = vld [vmem:[%s3252 + $0x80] sm:$0xff]
        %v3270 = vld [vmem:[%s3252 + $0x88] sm:$0xff]
        %v3271 = vld [vmem:[%s3252 + $0x90] sm:$0xff]
        %v3272 = vld [vmem:[%s3252 + $0x98] sm:$0xff]
        %v3273 = vld [vmem:[%s3252 + $0xa0] sm:$0xff]
        %v3274 = vld [vmem:[%s3252 + $0xa8] sm:$0xff]
        %v3275 = vld [vmem:[%s3252 + $0xb0] sm:$0xff]
        %v3276 = vld [vmem:[%s3252 + $0xb8] sm:$0xff]
        %v3277 = vld [vmem:[%s3252 + $0xc0] sm:$0xff]
        %v3278 = vld [vmem:[%s3252 + $0xc8] sm:$0xff]
        %v3279 = vld [vmem:[%s3252 + $0xd0] sm:$0xff]
        %v3280 = vld [vmem:[%s3252 + $0xd8] sm:$0xff]
        %v3281 = vld [vmem:[%s3252 + $0xe0] sm:$0xff]
        %v3282 = vld [vmem:[%s3252 + $0xe8] sm:$0xff]
        %v3283 = vld [vmem:[%s3252 + $0xf0] sm:$0xff]
        %v3284 = vld [vmem:[%s3252 + $0xf8] sm:$0xff]
        %v3285 = vlaneseq
        %v3286 = vshrl.u32 %v3285, 7
        %v3287 = vsub.s32 3, %v3286
        %v3288 = vrot.slane %v397, %v3287
        %v3289 = vlaneseq
        %v3290 = vshrl.u32 %v3289, 7
        %v3291 = vsub.s32 3, %v3290
        %v3292 = vrot.slane %v398, %v3291
        %v3293 = vlaneseq
        %v3294 = vshrl.u32 %v3293, 7
        %v3295 = vsub.s32 3, %v3294
        %v3296 = vrot.slane %v399, %v3295
        %v3297 = vlaneseq
        %v3298 = vshrl.u32 %v3297, 7
        %v3299 = vsub.s32 3, %v3298
        %v3300 = vrot.slane %v400, %v3299
        %v3301 = vlaneseq
        %v3302 = vshrl.u32 %v3301, 7
        %v3303 = vsub.s32 3, %v3302
        %v3304 = vrot.slane %v401, %v3303
        %v3305 = vlaneseq
        %v3306 = vshrl.u32 %v3305, 7
        %v3307 = vsub.s32 3, %v3306
        %v3308 = vrot.slane %v402, %v3307
        %v3309 = vlaneseq
        %v3310 = vshrl.u32 %v3309, 7
        %v3311 = vsub.s32 3, %v3310
        %v3312 = vrot.slane %v403, %v3311
        %v3313 = vlaneseq
        %v3314 = vshrl.u32 %v3313, 7
        %v3315 = vsub.s32 3, %v3314
        %v3316 = vrot.slane %v404, %v3315
        %3317 = vmatprep.subr.mxu0 %v3254
        %3318 = vmatpush1.msra.mxu0 %v3253
        %3319 = vmatprep.subr.mxu0 %v3262
        %3320 = vmatpush1.msra.mxu0 %v3261
        %3321 = vmatprep.subr.mxu0 %v3270
        %3322 = vmatpush1.msra.mxu0 %v3269
        %3323 = vmatprep.subr.mxu0 %v3278
        %3324 = vmatpush1.msra.mxu0 %v3277
        %3325 = vmatprep.subr.mxu0 0.0
        %3326 = vmatpush1.msra.mxu0 0.0
        %3327 = vmatprep.subr.mxu0 0.0
        %3328 = vmatpush1.msra.mxu0 0.0
        %3329 = vmatprep.subr.mxu0 0.0
        %3330 = vmatpush1.msra.mxu0 0.0
        %3331 = vmatprep.subr.mxu0 0.0
        %3332 = vmatpush1.msra.mxu0 0.0
        %3333 = vmatprep.subr.mxu0 0.0
        %3334 = vmatpush1.msra.mxu0 0.0
        %3335 = vmatprep.subr.mxu0 0.0
        %3336 = vmatpush1.msra.mxu0 0.0
        %3337 = vmatprep.subr.mxu0 0.0
        %3338 = vmatpush1.msra.mxu0 0.0
        %3339 = vmatprep.subr.mxu0 0.0
        %3340 = vmatpush1.msra.mxu0 0.0
        %3341 = vmatprep.subr.mxu0 0.0
        %3342 = vmatpush1.msra.mxu0 0.0
        %3343 = vmatprep.subr.mxu0 0.0
        %3344 = vmatpush1.msra.mxu0 0.0
        %3345 = vmatprep.subr.mxu0 0.0
        %3346 = vmatpush1.msra.mxu0 0.0
        %3347 = vmatprep.subr.mxu0 0.0
        %3348 = vmatpush1.msra.mxu0 0.0
        %3349 = vmatprep.subr.mxu0 0.0
        %3350 = vmatpush1.msra.mxu0 0.0
        %3351 = vmatprep.subr.mxu0 0.0
        %3352 = vmatpush1.msra.mxu0 0.0
        %3353 = vmatprep.subr.mxu0 0.0
        %3354 = vmatpush1.msra.mxu0 0.0
        %3355 = vmatprep.subr.mxu0 0.0
        %3356 = vmatpush1.msra.mxu0 0.0
        %3357 = vmatprep.subr.mxu0 0.0
        %3358 = vmatpush1.msra.mxu0 0.0
        %3359 = vmatprep.subr.mxu0 0.0
        %3360 = vmatpush1.msra.mxu0 0.0
        %3361 = vmatprep.subr.mxu0 0.0
        %3362 = vmatpush1.msra.mxu0 0.0
        %3363 = vmatprep.subr.mxu0 0.0
        %3364 = vmatpush1.msra.mxu0 0.0
        %3365 = vmatprep.subr.mxu0 0.0
        %3366 = vmatpush1.msra.mxu0 0.0
        %3367 = vmatprep.subr.mxu0 0.0
        %3368 = vmatpush1.msra.mxu0 0.0
        %3369 = vmatprep.subr.mxu0 0.0
        %3370 = vmatpush1.msra.mxu0 0.0
        %3371 = vmatprep.subr.mxu0 0.0
        %3372 = vmatpush1.msra.mxu0 0.0
        %3373 = vmatprep.subr.mxu0 0.0
        %3374 = vmatpush1.msra.mxu0 0.0
        %3375 = vmatprep.subr.mxu0 0.0
        %3376 = vmatpush1.msra.mxu0 0.0
        %3377 = vmatprep.subr.mxu0 0.0
        %3378 = vmatpush1.msra.mxu0 0.0
        %3379 = vmatprep.subr.mxu0 0.0
        %3380 = vmatpush1.msra.mxu0 0.0
        %3381 = vmatprep.mubr.f32.mxu0 0.0
        %3382 = vmatmul.mubr.f32.gmra.mrb[0].mxu0 %v471
        %v3383 = vpop.f32.mrb[0].mxu0
        %v3384 = vadd.f32 %v3288, %v3383
        %v3385 = vpop.f32.mrb[0].mxu0
        %v3386 = vadd.f32 %v3292, %v3385
        %3387 = vmatprep.mubr.f32.mxu0 0.0
        %3388 = vmatmul.mubr.f32.gmra.mrb[0].mxu0 %v474
        %v3389 = vpop.f32.mrb[0].mxu0
        %v3390 = vadd.f32 %v3288, %v3389
        %v3391 = vpop.f32.mrb[0].mxu0
        %v3392 = vadd.f32 %v3292, %v3391
        %3393 = vmatprep.mubr.f32.mxu0 0.0
        %3394 = vmatmul.mubr.f32.gmra.mrb[0].mxu0 %v477
        %v3395 = vpop.f32.mrb[0].mxu0
        %v3396 = vadd.f32 %v3288, %v3395
        %v3397 = vpop.f32.mrb[0].mxu0
        %v3398 = vadd.f32 %v3292, %v3397
        %3399 = vmatprep.mubr.f32.mxu0 0.0
        %3400 = vmatmul.mubr.f32.gmra.mrb[0].mxu0 %v480
        %v3401 = vpop.f32.mrb[0].mxu0
        %v3402 = vadd.f32 %v3288, %v3401
        %v3403 = vpop.f32.mrb[0].mxu0
        %v3404 = vadd.f32 %v3292, %v3403
        %3405 = vmatprep.mubr.f32.mxu0 0.0
        %3406 = vmatmul.mubr.f32.gmra.mrb[0].mxu0 %v483
        %v3407 = vpop.f32.mrb[0].mxu0
        %v3408 = vadd.f32 %v3288, %v3407
        %v3409 = vpop.f32.mrb[0].mxu0
        %v3410 = vadd.f32 %v3292, %v3409
        %3411 = vmatprep.mubr.f32.mxu0 0.0
        %3412 = vmatmul.mubr.f32.gmra.mrb[0].mxu0 %v486
        %v3413 = vpop.f32.mrb[0].mxu0
        %v3414 = vadd.f32 %v3288, %v3413
        %v3415 = vpop.f32.mrb[0].mxu0
        %v3416 = vadd.f32 %v3292, %v3415
        %3417 = vmatprep.mubr.f32.mxu0 0.0
        %3418 = vmatmul.mubr.f32.gmra.mrb[0].mxu0 %v489
        %v3419 = vpop.f32.mrb[0].mxu0
        %v3420 = vadd.f32 %v3288, %v3419
        %v3421 = vpop.f32.mrb[0].mxu0
        %v3422 = vadd.f32 %v3292, %v3421
        %3423 = vmatprep.mubr.f32.mxu0 0.0
        %3424 = vmatmul.mubr.f32.gmra.mrb[0].mxu0 %v492
        %v3425 = vpop.f32.mrb[0].mxu0
        %v3426 = vadd.f32 %v3288, %v3425
        %v3427 = vpop.f32.mrb[0].mxu0
        %v3428 = vadd.f32 %v3292, %v3427
        %3429 = vmatprep.mubr.f32.mxu0 0.0
        %3430 = vmatmul.mubr.f32.gmra.mrb[0].mxu0 %v495
        %v3431 = vpop.f32.mrb[0].mxu0
        %v3432 = vadd.f32 %v3288, %v3431
        %v3433 = vpop.f32.mrb[0].mxu0
        %v3434 = vadd.f32 %v3292, %v3433
        %3435 = vmatprep.mubr.f32.mxu0 0.0
        %3436 = vmatmul.mubr.f32.gmra.mrb[0].mxu0 %v498
        %v3437 = vpop.f32.mrb[0].mxu0
        %v3438 = vadd.f32 %v3288, %v3437
        %v3439 = vpop.f32.mrb[0].mxu0
        %v3440 = vadd.f32 %v3292, %v3439
        %3441 = vmatprep.mubr.f32.mxu0 0.0
        %3442 = vmatmul.mubr.f32.gmra.mrb[0].mxu0 %v501
        %v3443 = vpop.f32.mrb[0].mxu0
        %v3444 = vadd.f32 %v3288, %v3443
        %v3445 = vpop.f32.mrb[0].mxu0
        %v3446 = vadd.f32 %v3292, %v3445
        %3447 = vmatprep.mubr.f32.mxu0 0.0
        %3448 = vmatmul.mubr.f32.gmra.mrb[0].mxu0 %v504
        %v3449 = vpop.f32.mrb[0].mxu0
        %v3450 = vadd.f32 %v3288, %v3449
        %v3451 = vpop.f32.mrb[0].mxu0
        %v3452 = vadd.f32 %v3292, %v3451
        %3453 = vmatprep.mubr.f32.mxu0 0.0
        %3454 = vmatmul.mubr.f32.gmra.mrb[0].mxu0 %v507
        %v3455 = vpop.f32.mrb[0].mxu0
        %v3456 = vadd.f32 %v3288, %v3455
        %v3457 = vpop.f32.mrb[0].mxu0
        %v3458 = vadd.f32 %v3292, %v3457
        %3459 = vmatprep.mubr.f32.mxu0 0.0
        %3460 = vmatmul.mubr.f32.gmra.mrb[0].mxu0 %v510
        %v3461 = vpop.f32.mrb[0].mxu0
        %v3462 = vadd.f32 %v3288, %v3461
        %v3463 = vpop.f32.mrb[0].mxu0
        %v3464 = vadd.f32 %v3292, %v3463
        %3465 = vmatprep.mubr.f32.mxu0 0.0
        %3466 = vmatmul.mubr.f32.gmra.mrb[0].mxu0 %v513
        %v3467 = vpop.f32.mrb[0].mxu0
        %v3468 = vadd.f32 %v3288, %v3467
        %v3469 = vpop.f32.mrb[0].mxu0
        %v3470 = vadd.f32 %v3292, %v3469
        %3471 = vmatprep.mubr.f32.mxu0 0.0
        %3472 = vmatmul.mubr.f32.gmra.mrb[0].mxu0 %v516
        %v3473 = vpop.f32.mrb[0].mxu0
        %v3474 = vadd.f32 %v3288, %v3473
        %v3475 = vpop.f32.mrb[0].mxu0
        %v3476 = vadd.f32 %v3292, %v3475
        %3477 = vdwg.mxu0
        %3478 = vmatprep.subr.mxu0 %v3256
        %3479 = vmatpush1.msra.mxu0 %v3255
        %3480 = vmatprep.subr.mxu0 %v3264
        %3481 = vmatpush1.msra.mxu0 %v3263
        %3482 = vmatprep.subr.mxu0 %v3272
        %3483 = vmatpush1.msra.mxu0 %v3271
        %3484 = vmatprep.subr.mxu0 %v3280
        %3485 = vmatpush1.msra.mxu0 %v3279
        %3486 = vmatprep.subr.mxu0 0.0
        %3487 = vmatpush1.msra.mxu0 0.0
        %3488 = vmatprep.subr.mxu0 0.0
        %3489 = vmatpush1.msra.mxu0 0.0
        %3490 = vmatprep.subr.mxu0 0.0
        %3491 = vmatpush1.msra.mxu0 0.0
        %3492 = vmatprep.subr.mxu0 0.0
        %3493 = vmatpush1.msra.mxu0 0.0
        %3494 = vmatprep.subr.mxu0 0.0
        %3495 = vmatpush1.msra.mxu0 0.0
        %3496 = vmatprep.subr.mxu0 0.0
        %3497 = vmatpush1.msra.mxu0 0.0
        %3498 = vmatprep.subr.mxu0 0.0
        %3499 = vmatpush1.msra.mxu0 0.0
        %3500 = vmatprep.subr.mxu0 0.0
        %3501 = vmatpush1.msra.mxu0 0.0
        %3502 = vmatprep.subr.mxu0 0.0
        %3503 = vmatpush1.msra.mxu0 0.0
        %3504 = vmatprep.subr.mxu0 0.0
        %3505 = vmatpush1.msra.mxu0 0.0
        %3506 = vmatprep.subr.mxu0 0.0
        %3507 = vmatpush1.msra.mxu0 0.0
        %3508 = vmatprep.subr.mxu0 0.0
        %3509 = vmatpush1.msra.mxu0 0.0
        %3510 = vmatprep.subr.mxu0 0.0
        %3511 = vmatpush1.msra.mxu0 0.0
        %3512 = vmatprep.subr.mxu0 0.0
        %3513 = vmatpush1.msra.mxu0 0.0
        %3514 = vmatprep.subr.mxu0 0.0
        %3515 = vmatpush1.msra.mxu0 0.0
        %3516 = vmatprep.subr.mxu0 0.0
        %3517 = vmatpush1.msra.mxu0 0.0
        %3518 = vmatprep.subr.mxu0 0.0
        %3519 = vmatpush1.msra.mxu0 0.0
        %3520 = vmatprep.subr.mxu0 0.0
        %3521 = vmatpush1.msra.mxu0 0.0
        %3522 = vmatprep.subr.mxu0 0.0
        %3523 = vmatpush1.msra.mxu0 0.0
        %3524 = vmatprep.subr.mxu0 0.0
        %3525 = vmatpush1.msra.mxu0 0.0
        %3526 = vmatprep.subr.mxu0 0.0
        %3527 = vmatpush1.msra.mxu0 0.0
        %3528 = vmatprep.subr.mxu0 0.0
        %3529 = vmatpush1.msra.mxu0 0.0
        %3530 = vmatprep.subr.mxu0 0.0
        %3531 = vmatpush1.msra.mxu0 0.0
        %3532 = vmatprep.subr.mxu0 0.0
        %3533 = vmatpush1.msra.mxu0 0.0
        %3534 = vmatprep.subr.mxu0 0.0
        %3535 = vmatpush1.msra.mxu0 0.0
        %3536 = vmatprep.subr.mxu0 0.0
        %3537 = vmatpush1.msra.mxu0 0.0
        %3538 = vmatprep.subr.mxu0 0.0
        %3539 = vmatpush1.msra.mxu0 0.0
        %3540 = vmatprep.subr.mxu0 0.0
        %3541 = vmatpush1.msra.mxu0 0.0
        %3542 = vmatprep.mubr.f32.mxu0 0.0
        %3543 = vmatmul.mubr.f32.gmra.mrb[0].mxu0 %v471
        %v3544 = vpop.f32.mrb[0].mxu0
        %v3545 = vadd.f32 %v3296, %v3544
        %v3546 = vpop.f32.mrb[0].mxu0
        %v3547 = vadd.f32 %v3300, %v3546
        %3548 = vmatprep.mubr.f32.mxu0 0.0
        %3549 = vmatmul.mubr.f32.gmra.mrb[0].mxu0 %v474
        %v3550 = vpop.f32.mrb[0].mxu0
        %v3551 = vadd.f32 %v3296, %v3550
        %v3552 = vpop.f32.mrb[0].mxu0
        %v3553 = vadd.f32 %v3300, %v3552
        %3554 = vmatprep.mubr.f32.mxu0 0.0
        %3555 = vmatmul.mubr.f32.gmra.mrb[0].mxu0 %v477
        %v3556 = vpop.f32.mrb[0].mxu0
        %v3557 = vadd.f32 %v3296, %v3556
        %v3558 = vpop.f32.mrb[0].mxu0
        %v3559 = vadd.f32 %v3300, %v3558
        %3560 = vmatprep.mubr.f32.mxu0 0.0
        %3561 = vmatmul.mubr.f32.gmra.mrb[0].mxu0 %v480
        %v3562 = vpop.f32.mrb[0].mxu0
        %v3563 = vadd.f32 %v3296, %v3562
        %v3564 = vpop.f32.mrb[0].mxu0
        %v3565 = vadd.f32 %v3300, %v3564
        %3566 = vmatprep.mubr.f32.mxu0 0.0
        %3567 = vmatmul.mubr.f32.gmra.mrb[0].mxu0 %v483
        %v3568 = vpop.f32.mrb[0].mxu0
        %v3569 = vadd.f32 %v3296, %v3568
        %v3570 = vpop.f32.mrb[0].mxu0
        %v3571 = vadd.f32 %v3300, %v3570
        %3572 = vmatprep.mubr.f32.mxu0 0.0
        %3573 = vmatmul.mubr.f32.gmra.mrb[0].mxu0 %v486
        %v3574 = vpop.f32.mrb[0].mxu0
        %v3575 = vadd.f32 %v3296, %v3574
        %v3576 = vpop.f32.mrb[0].mxu0
        %v3577 = vadd.f32 %v3300, %v3576
        %3578 = vmatprep.mubr.f32.mxu0 0.0
        %3579 = vmatmul.mubr.f32.gmra.mrb[0].mxu0 %v489
        %v3580 = vpop.f32.mrb[0].mxu0
        %v3581 = vadd.f32 %v3296, %v3580
        %v3582 = vpop.f32.mrb[0].mxu0
        %v3583 = vadd.f32 %v3300, %v3582
        %3584 = vmatprep.mubr.f32.mxu0 0.0
        %3585 = vmatmul.mubr.f32.gmra.mrb[0].mxu0 %v492
        %v3586 = vpop.f32.mrb[0].mxu0
        %v3587 = vadd.f32 %v3296, %v3586
        %v3588 = vpop.f32.mrb[0].mxu0
        %v3589 = vadd.f32 %v3300, %v3588
        %3590 = vmatprep.mubr.f32.mxu0 0.0
        %3591 = vmatmul.mubr.f32.gmra.mrb[0].mxu0 %v495
        %v3592 = vpop.f32.mrb[0].mxu0
        %v3593 = vadd.f32 %v3296, %v3592
        %v3594 = vpop.f32.mrb[0].mxu0
        %v3595 = vadd.f32 %v3300, %v3594
        %3596 = vmatprep.mubr.f32.mxu0 0.0
        %3597 = vmatmul.mubr.f32.gmra.mrb[0].mxu0 %v498
        %v3598 = vpop.f32.mrb[0].mxu0
        %v3599 = vadd.f32 %v3296, %v3598
        %v3600 = vpop.f32.mrb[0].mxu0
        %v3601 = vadd.f32 %v3300, %v3600
        %3602 = vmatprep.mubr.f32.mxu0 0.0
        %3603 = vmatmul.mubr.f32.gmra.mrb[0].mxu0 %v501
        %v3604 = vpop.f32.mrb[0].mxu0
        %v3605 = vadd.f32 %v3296, %v3604
        %v3606 = vpop.f32.mrb[0].mxu0
        %v3607 = vadd.f32 %v3300, %v3606
        %3608 = vmatprep.mubr.f32.mxu0 0.0
        %3609 = vmatmul.mubr.f32.gmra.mrb[0].mxu0 %v504
        %v3610 = vpop.f32.mrb[0].mxu0
        %v3611 = vadd.f32 %v3296, %v3610
        %v3612 = vpop.f32.mrb[0].mxu0
        %v3613 = vadd.f32 %v3300, %v3612
        %3614 = vmatprep.mubr.f32.mxu0 0.0
        %3615 = vmatmul.mubr.f32.gmra.mrb[0].mxu0 %v507
        %v3616 = vpop.f32.mrb[0].mxu0
        %v3617 = vadd.f32 %v3296, %v3616
        %v3618 = vpop.f32.mrb[0].mxu0
        %v3619 = vadd.f32 %v3300, %v3618
        %3620 = vmatprep.mubr.f32.mxu0 0.0
        %3621 = vmatmul.mubr.f32.gmra.mrb[0].mxu0 %v510
        %v3622 = vpop.f32.mrb[0].mxu0
        %v3623 = vadd.f32 %v3296, %v3622
        %v3624 = vpop.f32.mrb[0].mxu0
        %v3625 = vadd.f32 %v3300, %v3624
        %3626 = vmatprep.mubr.f32.mxu0 0.0
        %3627 = vmatmul.mubr.f32.gmra.mrb[0].mxu0 %v513
        %v3628 = vpop.f32.mrb[0].mxu0
        %v3629 = vadd.f32 %v3296, %v3628
        %v3630 = vpop.f32.mrb[0].mxu0
        %v3631 = vadd.f32 %v3300, %v3630
        %3632 = vmatprep.mubr.f32.mxu0 0.0
        %3633 = vmatmul.mubr.f32.gmra.mrb[0].mxu0 %v516
        %v3634 = vpop.f32.mrb[0].mxu0
        %v3635 = vadd.f32 %v3296, %v3634
        %v3636 = vpop.f32.mrb[0].mxu0
        %v3637 = vadd.f32 %v3300, %v3636
        %3638 = vdwg.mxu0
        %3639 = vmatprep.subr.mxu0 %v3258
        %3640 = vmatpush1.msra.mxu0 %v3257
        %3641 = vmatprep.subr.mxu0 %v3266
        %3642 = vmatpush1.msra.mxu0 %v3265
        %3643 = vmatprep.subr.mxu0 %v3274
        %3644 = vmatpush1.msra.mxu0 %v3273
        %3645 = vmatprep.subr.mxu0 %v3282
        %3646 = vmatpush1.msra.mxu0 %v3281
        %3647 = vmatprep.subr.mxu0 0.0
        %3648 = vmatpush1.msra.mxu0 0.0
        %3649 = vmatprep.subr.mxu0 0.0
        %3650 = vmatpush1.msra.mxu0 0.0
        %3651 = vmatprep.subr.mxu0 0.0
        %3652 = vmatpush1.msra.mxu0 0.0
        %3653 = vmatprep.subr.mxu0 0.0
        %3654 = vmatpush1.msra.mxu0 0.0
        %3655 = vmatprep.subr.mxu0 0.0
        %3656 = vmatpush1.msra.mxu0 0.0
        %3657 = vmatprep.subr.mxu0 0.0
        %3658 = vmatpush1.msra.mxu0 0.0
        %3659 = vmatprep.subr.mxu0 0.0
        %3660 = vmatpush1.msra.mxu0 0.0
        %3661 = vmatprep.subr.mxu0 0.0
        %3662 = vmatpush1.msra.mxu0 0.0
        %3663 = vmatprep.subr.mxu0 0.0
        %3664 = vmatpush1.msra.mxu0 0.0
        %3665 = vmatprep.subr.mxu0 0.0
        %3666 = vmatpush1.msra.mxu0 0.0
        %3667 = vmatprep.subr.mxu0 0.0
        %3668 = vmatpush1.msra.mxu0 0.0
        %3669 = vmatprep.subr.mxu0 0.0
        %3670 = vmatpush1.msra.mxu0 0.0
        %3671 = vmatprep.subr.mxu0 0.0
        %3672 = vmatpush1.msra.mxu0 0.0
        %3673 = vmatprep.subr.mxu0 0.0
        %3674 = vmatpush1.msra.mxu0 0.0
        %3675 = vmatprep.subr.mxu0 0.0
        %3676 = vmatpush1.msra.mxu0 0.0
        %3677 = vmatprep.subr.mxu0 0.0
        %3678 = vmatpush1.msra.mxu0 0.0
        %3679 = vmatprep.subr.mxu0 0.0
        %3680 = vmatpush1.msra.mxu0 0.0
        %3681 = vmatprep.subr.mxu0 0.0
        %3682 = vmatpush1.msra.mxu0 0.0
        %3683 = vmatprep.subr.mxu0 0.0
        %3684 = vmatpush1.msra.mxu0 0.0
        %3685 = vmatprep.subr.mxu0 0.0
        %3686 = vmatpush1.msra.mxu0 0.0
        %3687 = vmatprep.subr.mxu0 0.0
        %3688 = vmatpush1.msra.mxu0 0.0
        %3689 = vmatprep.subr.mxu0 0.0
        %3690 = vmatpush1.msra.mxu0 0.0
        %3691 = vmatprep.subr.mxu0 0.0
        %3692 = vmatpush1.msra.mxu0 0.0
        %3693 = vmatprep.subr.mxu0 0.0
        %3694 = vmatpush1.msra.mxu0 0.0
        %3695 = vmatprep.subr.mxu0 0.0
        %3696 = vmatpush1.msra.mxu0 0.0
        %3697 = vmatprep.subr.mxu0 0.0
        %3698 = vmatpush1.msra.mxu0 0.0
        %3699 = vmatprep.subr.mxu0 0.0
        %3700 = vmatpush1.msra.mxu0 0.0
        %3701 = vmatprep.subr.mxu0 0.0
        %3702 = vmatpush1.msra.mxu0 0.0
        %3703 = vmatprep.mubr.f32.mxu0 0.0
        %3704 = vmatmul.mubr.f32.gmra.mrb[0].mxu0 %v471
        %v3705 = vpop.f32.mrb[0].mxu0
        %v3706 = vadd.f32 %v3304, %v3705
        %v3707 = vpop.f32.mrb[0].mxu0
        %v3708 = vadd.f32 %v3308, %v3707
        %3709 = vmatprep.mubr.f32.mxu0 0.0
        %3710 = vmatmul.mubr.f32.gmra.mrb[0].mxu0 %v474
        %v3711 = vpop.f32.mrb[0].mxu0
        %v3712 = vadd.f32 %v3304, %v3711
        %v3713 = vpop.f32.mrb[0].mxu0
        %v3714 = vadd.f32 %v3308, %v3713
        %3715 = vmatprep.mubr.f32.mxu0 0.0
        %3716 = vmatmul.mubr.f32.gmra.mrb[0].mxu0 %v477
        %v3717 = vpop.f32.mrb[0].mxu0
        %v3718 = vadd.f32 %v3304, %v3717
        %v3719 = vpop.f32.mrb[0].mxu0
        %v3720 = vadd.f32 %v3308, %v3719
        %3721 = vmatprep.mubr.f32.mxu0 0.0
        %3722 = vmatmul.mubr.f32.gmra.mrb[0].mxu0 %v480
        %v3723 = vpop.f32.mrb[0].mxu0
        %v3724 = vadd.f32 %v3304, %v3723
        %v3725 = vpop.f32.mrb[0].mxu0
        %v3726 = vadd.f32 %v3308, %v3725
        %3727 = vmatprep.mubr.f32.mxu0 0.0
        %3728 = vmatmul.mubr.f32.gmra.mrb[0].mxu0 %v483
        %v3729 = vpop.f32.mrb[0].mxu0
        %v3730 = vadd.f32 %v3304, %v3729
        %v3731 = vpop.f32.mrb[0].mxu0
        %v3732 = vadd.f32 %v3308, %v3731
        %3733 = vmatprep.mubr.f32.mxu0 0.0
        %3734 = vmatmul.mubr.f32.gmra.mrb[0].mxu0 %v486
        %v3735 = vpop.f32.mrb[0].mxu0
        %v3736 = vadd.f32 %v3304, %v3735
        %v3737 = vpop.f32.mrb[0].mxu0
        %v3738 = vadd.f32 %v3308, %v3737
        %3739 = vmatprep.mubr.f32.mxu0 0.0
        %3740 = vmatmul.mubr.f32.gmra.mrb[0].mxu0 %v489
        %v3741 = vpop.f32.mrb[0].mxu0
        %v3742 = vadd.f32 %v3304, %v3741
        %v3743 = vpop.f32.mrb[0].mxu0
        %v3744 = vadd.f32 %v3308, %v3743
        %3745 = vmatprep.mubr.f32.mxu0 0.0
        %3746 = vmatmul.mubr.f32.gmra.mrb[0].mxu0 %v492
        %v3747 = vpop.f32.mrb[0].mxu0
        %v3748 = vadd.f32 %v3304, %v3747
        %v3749 = vpop.f32.mrb[0].mxu0
        %v3750 = vadd.f32 %v3308, %v3749
        %3751 = vmatprep.mubr.f32.mxu0 0.0
        %3752 = vmatmul.mubr.f32.gmra.mrb[0].mxu0 %v495
        %v3753 = vpop.f32.mrb[0].mxu0
        %v3754 = vadd.f32 %v3304, %v3753
        %v3755 = vpop.f32.mrb[0].mxu0
        %v3756 = vadd.f32 %v3308, %v3755
        %3757 = vmatprep.mubr.f32.mxu0 0.0
        %3758 = vmatmul.mubr.f32.gmra.mrb[0].mxu0 %v498
        %v3759 = vpop.f32.mrb[0].mxu0
        %v3760 = vadd.f32 %v3304, %v3759
        %v3761 = vpop.f32.mrb[0].mxu0
        %v3762 = vadd.f32 %v3308, %v3761
        %3763 = vmatprep.mubr.f32.mxu0 0.0
        %3764 = vmatmul.mubr.f32.gmra.mrb[0].mxu0 %v501
        %v3765 = vpop.f32.mrb[0].mxu0
        %v3766 = vadd.f32 %v3304, %v3765
        %v3767 = vpop.f32.mrb[0].mxu0
        %v3768 = vadd.f32 %v3308, %v3767
        %3769 = vmatprep.mubr.f32.mxu0 0.0
        %3770 = vmatmul.mubr.f32.gmra.mrb[0].mxu0 %v504
        %v3771 = vpop.f32.mrb[0].mxu0
        %v3772 = vadd.f32 %v3304, %v3771
        %v3773 = vpop.f32.mrb[0].mxu0
        %v3774 = vadd.f32 %v3308, %v3773
        %3775 = vmatprep.mubr.f32.mxu0 0.0
        %3776 = vmatmul.mubr.f32.gmra.mrb[0].mxu0 %v507
        %v3777 = vpop.f32.mrb[0].mxu0
        %v3778 = vadd.f32 %v3304, %v3777
        %v3779 = vpop.f32.mrb[0].mxu0
        %v3780 = vadd.f32 %v3308, %v3779
        %3781 = vmatprep.mubr.f32.mxu0 0.0
        %3782 = vmatmul.mubr.f32.gmra.mrb[0].mxu0 %v510
        %v3783 = vpop.f32.mrb[0].mxu0
        %v3784 = vadd.f32 %v3304, %v3783
        %v3785 = vpop.f32.mrb[0].mxu0
        %v3786 = vadd.f32 %v3308, %v3785
        %3787 = vmatprep.mubr.f32.mxu0 0.0
        %3788 = vmatmul.mubr.f32.gmra.mrb[0].mxu0 %v513
        %v3789 = vpop.f32.mrb[0].mxu0
        %v3790 = vadd.f32 %v3304, %v3789
        %v3791 = vpop.f32.mrb[0].mxu0
        %v3792 = vadd.f32 %v3308, %v3791
        %3793 = vmatprep.mubr.f32.mxu0 0.0
        %3794 = vmatmul.mubr.f32.gmra.mrb[0].mxu0 %v516
        %v3795 = vpop.f32.mrb[0].mxu0
        %v3796 = vadd.f32 %v3304, %v3795
        %v3797 = vpop.f32.mrb[0].mxu0
        %v3798 = vadd.f32 %v3308, %v3797
        %3799 = vdwg.mxu0
        %3800 = vmatprep.subr.mxu0 %v3260
        %3801 = vmatpush1.msra.mxu0 %v3259
        %3802 = vmatprep.subr.mxu0 %v3268
        %3803 = vmatpush1.msra.mxu0 %v3267
        %3804 = vmatprep.subr.mxu0 %v3276
        %3805 = vmatpush1.msra.mxu0 %v3275
        %3806 = vmatprep.subr.mxu0 %v3284
        %3807 = vmatpush1.msra.mxu0 %v3283
        %3808 = vmatprep.subr.mxu0 0.0
        %3809 = vmatpush1.msra.mxu0 0.0
        %3810 = vmatprep.subr.mxu0 0.0
        %3811 = vmatpush1.msra.mxu0 0.0
        %3812 = vmatprep.subr.mxu0 0.0
        %3813 = vmatpush1.msra.mxu0 0.0
        %3814 = vmatprep.subr.mxu0 0.0
        %3815 = vmatpush1.msra.mxu0 0.0
        %3816 = vmatprep.subr.mxu0 0.0
        %3817 = vmatpush1.msra.mxu0 0.0
        %3818 = vmatprep.subr.mxu0 0.0
        %3819 = vmatpush1.msra.mxu0 0.0
        %3820 = vmatprep.subr.mxu0 0.0
        %3821 = vmatpush1.msra.mxu0 0.0
        %3822 = vmatprep.subr.mxu0 0.0
        %3823 = vmatpush1.msra.mxu0 0.0
        %3824 = vmatprep.subr.mxu0 0.0
        %3825 = vmatpush1.msra.mxu0 0.0
        %3826 = vmatprep.subr.mxu0 0.0
        %3827 = vmatpush1.msra.mxu0 0.0
        %3828 = vmatprep.subr.mxu0 0.0
        %3829 = vmatpush1.msra.mxu0 0.0
        %3830 = vmatprep.subr.mxu0 0.0
        %3831 = vmatpush1.msra.mxu0 0.0
        %3832 = vmatprep.subr.mxu0 0.0
        %3833 = vmatpush1.msra.mxu0 0.0
        %3834 = vmatprep.subr.mxu0 0.0
        %3835 = vmatpush1.msra.mxu0 0.0
        %3836 = vmatprep.subr.mxu0 0.0
        %3837 = vmatpush1.msra.mxu0 0.0
        %3838 = vmatprep.subr.mxu0 0.0
        %3839 = vmatpush1.msra.mxu0 0.0
        %3840 = vmatprep.subr.mxu0 0.0
        %3841 = vmatpush1.msra.mxu0 0.0
        %3842 = vmatprep.subr.mxu0 0.0
        %3843 = vmatpush1.msra.mxu0 0.0
        %3844 = vmatprep.subr.mxu0 0.0
        %3845 = vmatpush1.msra.mxu0 0.0
        %3846 = vmatprep.subr.mxu0 0.0
        %3847 = vmatpush1.msra.mxu0 0.0
        %3848 = vmatprep.subr.mxu0 0.0
        %3849 = vmatpush1.msra.mxu0 0.0
        %3850 = vmatprep.subr.mxu0 0.0
        %3851 = vmatpush1.msra.mxu0 0.0
        %3852 = vmatprep.subr.mxu0 0.0
        %3853 = vmatpush1.msra.mxu0 0.0
        %3854 = vmatprep.subr.mxu0 0.0
        %3855 = vmatpush1.msra.mxu0 0.0
        %3856 = vmatprep.subr.mxu0 0.0
        %3857 = vmatpush1.msra.mxu0 0.0
        %3858 = vmatprep.subr.mxu0 0.0
        %3859 = vmatpush1.msra.mxu0 0.0
        %3860 = vmatprep.subr.mxu0 0.0
        %3861 = vmatpush1.msra.mxu0 0.0
        %3862 = vmatprep.subr.mxu0 0.0
        %3863 = vmatpush1.msra.mxu0 0.0
        %3864 = vmatprep.mubr.f32.mxu0 0.0
        %3865 = vmatmul.mubr.f32.gmra.mrb[0].mxu0 %v471
        %v3866 = vpop.f32.mrb[0].mxu0
        %v3867 = vadd.f32 %v3312, %v3866
        %v3868 = vpop.f32.mrb[0].mxu0
        %v3869 = vadd.f32 %v3316, %v3868
        %3870 = vmatprep.mubr.f32.mxu0 0.0
        %3871 = vmatmul.mubr.f32.gmra.mrb[0].mxu0 %v474
        %v3872 = vpop.f32.mrb[0].mxu0
        %v3873 = vadd.f32 %v3312, %v3872
        %v3874 = vpop.f32.mrb[0].mxu0
        %v3875 = vadd.f32 %v3316, %v3874
        %3876 = vmatprep.mubr.f32.mxu0 0.0
        %3877 = vmatmul.mubr.f32.gmra.mrb[0].mxu0 %v477
        %v3878 = vpop.f32.mrb[0].mxu0
        %v3879 = vadd.f32 %v3312, %v3878
        %v3880 = vpop.f32.mrb[0].mxu0
        %v3881 = vadd.f32 %v3316, %v3880
        %3882 = vmatprep.mubr.f32.mxu0 0.0
        %3883 = vmatmul.mubr.f32.gmra.mrb[0].mxu0 %v480
        %v3884 = vpop.f32.mrb[0].mxu0
        %v3885 = vadd.f32 %v3312, %v3884
        %v3886 = vpop.f32.mrb[0].mxu0
        %v3887 = vadd.f32 %v3316, %v3886
        %3888 = vmatprep.mubr.f32.mxu0 0.0
        %3889 = vmatmul.mubr.f32.gmra.mrb[0].mxu0 %v483
        %v3890 = vpop.f32.mrb[0].mxu0
        %v3891 = vadd.f32 %v3312, %v3890
        %v3892 = vpop.f32.mrb[0].mxu0
        %v3893 = vadd.f32 %v3316, %v3892
        %3894 = vmatprep.mubr.f32.mxu0 0.0
        %3895 = vmatmul.mubr.f32.gmra.mrb[0].mxu0 %v486
        %v3896 = vpop.f32.mrb[0].mxu0
        %v3897 = vadd.f32 %v3312, %v3896
        %v3898 = vpop.f32.mrb[0].mxu0
        %v3899 = vadd.f32 %v3316, %v3898
        %3900 = vmatprep.mubr.f32.mxu0 0.0
        %3901 = vmatmul.mubr.f32.gmra.mrb[0].mxu0 %v489
        %v3902 = vpop.f32.mrb[0].mxu0
        %v3903 = vadd.f32 %v3312, %v3902
        %v3904 = vpop.f32.mrb[0].mxu0
        %v3905 = vadd.f32 %v3316, %v3904
        %3906 = vmatprep.mubr.f32.mxu0 0.0
        %3907 = vmatmul.mubr.f32.gmra.mrb[0].mxu0 %v492
        %v3908 = vpop.f32.mrb[0].mxu0
        %v3909 = vadd.f32 %v3312, %v3908
        %v3910 = vpop.f32.mrb[0].mxu0
        %v3911 = vadd.f32 %v3316, %v3910
        %3912 = vmatprep.mubr.f32.mxu0 0.0
        %3913 = vmatmul.mubr.f32.gmra.mrb[0].mxu0 %v495
        %v3914 = vpop.f32.mrb[0].mxu0
        %v3915 = vadd.f32 %v3312, %v3914
        %v3916 = vpop.f32.mrb[0].mxu0
        %v3917 = vadd.f32 %v3316, %v3916
        %3918 = vmatprep.mubr.f32.mxu0 0.0
        %3919 = vmatmul.mubr.f32.gmra.mrb[0].mxu0 %v498
        %v3920 = vpop.f32.mrb[0].mxu0
        %v3921 = vadd.f32 %v3312, %v3920
        %v3922 = vpop.f32.mrb[0].mxu0
        %v3923 = vadd.f32 %v3316, %v3922
        %3924 = vmatprep.mubr.f32.mxu0 0.0
        %3925 = vmatmul.mubr.f32.gmra.mrb[0].mxu0 %v501
        %v3926 = vpop.f32.mrb[0].mxu0
        %v3927 = vadd.f32 %v3312, %v3926
        %v3928 = vpop.f32.mrb[0].mxu0
        %v3929 = vadd.f32 %v3316, %v3928
        %3930 = vmatprep.mubr.f32.mxu0 0.0
        %3931 = vmatmul.mubr.f32.gmra.mrb[0].mxu0 %v504
        %v3932 = vpop.f32.mrb[0].mxu0
        %v3933 = vadd.f32 %v3312, %v3932
        %v3934 = vpop.f32.mrb[0].mxu0
        %v3935 = vadd.f32 %v3316, %v3934
        %3936 = vmatprep.mubr.f32.mxu0 0.0
        %3937 = vmatmul.mubr.f32.gmra.mrb[0].mxu0 %v507
        %v3938 = vpop.f32.mrb[0].mxu0
        %v3939 = vadd.f32 %v3312, %v3938
        %v3940 = vpop.f32.mrb[0].mxu0
        %v3941 = vadd.f32 %v3316, %v3940
        %3942 = vmatprep.mubr.f32.mxu0 0.0
        %3943 = vmatmul.mubr.f32.gmra.mrb[0].mxu0 %v510
        %v3944 = vpop.f32.mrb[0].mxu0
        %v3945 = vadd.f32 %v3312, %v3944
        %v3946 = vpop.f32.mrb[0].mxu0
        %v3947 = vadd.f32 %v3316, %v3946
        %3948 = vmatprep.mubr.f32.mxu0 0.0
        %3949 = vmatmul.mubr.f32.gmra.mrb[0].mxu0 %v513
        %v3950 = vpop.f32.mrb[0].mxu0
        %v3951 = vadd.f32 %v3312, %v3950
        %v3952 = vpop.f32.mrb[0].mxu0
        %v3953 = vadd.f32 %v3316, %v3952
        %3954 = vmatprep.mubr.f32.mxu0 0.0
        %3955 = vmatmul.mubr.f32.gmra.mrb[0].mxu0 %v516
        %v3956 = vpop.f32.mrb[0].mxu0
        %v3957 = vadd.f32 %v3312, %v3956
        %v3958 = vpop.f32.mrb[0].mxu0
        %v3959 = vadd.f32 %v3316, %v3958
        %3960 = vdwg.mxu0
        %vm3961 = vcmp.eq.s32.totalorder %v381, 3
        %vm3962 = vcmp.eq.s32.totalorder %v382, 3
        %vm3963 = vcmp.eq.s32.totalorder %v383, 3
        %vm3964 = vcmp.eq.s32.totalorder %v384, 3
        %vm3965 = vcmp.eq.s32.totalorder %v385, 3
        %vm3966 = vcmp.eq.s32.totalorder %v386, 3
        %vm3967 = vcmp.eq.s32.totalorder %v387, 3
        %vm3968 = vcmp.eq.s32.totalorder %v388, 3
        %vm3969 = vcmp.eq.s32.totalorder %v389, 3
        %vm3970 = vcmp.eq.s32.totalorder %v390, 3
        %vm3971 = vcmp.eq.s32.totalorder %v391, 3
        %vm3972 = vcmp.eq.s32.totalorder %v392, 3
        %vm3973 = vcmp.eq.s32.totalorder %v393, 3
        %vm3974 = vcmp.eq.s32.totalorder %v394, 3
        %vm3975 = vcmp.eq.s32.totalorder %v395, 3
        %vm3976 = vcmp.eq.s32.totalorder %v396, 3
        %v3977 = vsel %vm3961, 1, 0
        %v3978 = vsel %vm3962, 1, 0
        %v3979 = vsel %vm3963, 1, 0
        %v3980 = vsel %vm3964, 1, 0
        %v3981 = vsel %vm3965, 1, 0
        %v3982 = vsel %vm3966, 1, 0
        %v3983 = vsel %vm3967, 1, 0
        %v3984 = vsel %vm3968, 1, 0
        %v3985 = vsel %vm3969, 1, 0
        %v3986 = vsel %vm3970, 1, 0
        %v3987 = vsel %vm3971, 1, 0
        %v3988 = vsel %vm3972, 1, 0
        %v3989 = vsel %vm3973, 1, 0
        %v3990 = vsel %vm3974, 1, 0
        %v3991 = vsel %vm3975, 1, 0
        %v3992 = vsel %vm3976, 1, 0
        %3993 = vset.pattern.permute.xlu0 31
        %3994 = vperm.xlu0 %3993, %v3977
        %v3995 = vpop.permute.xlu0 %3994
        %3996 = vset.pattern.permute.xlu0 31
        %3997 = vperm.xlu0 %3996, %v3978
        %v3998 = vpop.permute.xlu0 %3997
        %3999 = vset.pattern.permute.xlu0 31
        %4000 = vperm.xlu0 %3999, %v3979
        %v4001 = vpop.permute.xlu0 %4000
        %4002 = vset.pattern.permute.xlu0 31
        %4003 = vperm.xlu0 %4002, %v3980
        %v4004 = vpop.permute.xlu0 %4003
        %4005 = vset.pattern.permute.xlu0 31
        %4006 = vperm.xlu0 %4005, %v3981
        %v4007 = vpop.permute.xlu0 %4006
        %4008 = vset.pattern.permute.xlu0 31
        %4009 = vperm.xlu0 %4008, %v3982
        %v4010 = vpop.permute.xlu0 %4009
        %4011 = vset.pattern.permute.xlu0 31
        %4012 = vperm.xlu0 %4011, %v3983
        %v4013 = vpop.permute.xlu0 %4012
        %4014 = vset.pattern.permute.xlu0 31
        %4015 = vperm.xlu0 %4014, %v3984
        %v4016 = vpop.permute.xlu0 %4015
        %4017 = vset.pattern.permute.xlu0 31
        %4018 = vperm.xlu0 %4017, %v3985
        %v4019 = vpop.permute.xlu0 %4018
        %4020 = vset.pattern.permute.xlu0 31
        %4021 = vperm.xlu0 %4020, %v3986
        %v4022 = vpop.permute.xlu0 %4021
        %4023 = vset.pattern.permute.xlu0 31
        %4024 = vperm.xlu0 %4023, %v3987
        %v4025 = vpop.permute.xlu0 %4024
        %4026 = vset.pattern.permute.xlu0 31
        %4027 = vperm.xlu0 %4026, %v3988
        %v4028 = vpop.permute.xlu0 %4027
        %4029 = vset.pattern.permute.xlu0 31
        %4030 = vperm.xlu0 %4029, %v3989
        %v4031 = vpop.permute.xlu0 %4030
        %4032 = vset.pattern.permute.xlu0 31
        %4033 = vperm.xlu0 %4032, %v3990
        %v4034 = vpop.permute.xlu0 %4033
        %4035 = vset.pattern.permute.xlu0 31
        %4036 = vperm.xlu0 %4035, %v3991
        %v4037 = vpop.permute.xlu0 %4036
        %4038 = vset.pattern.permute.xlu0 31
        %4039 = vperm.xlu0 %4038, %v3992
        %v4040 = vpop.permute.xlu0 %4039
        %vm4041 = vcmp.eq.s32.totalorder %v3995, 1
        %vm4042 = vcmp.eq.s32.totalorder %v3998, 1
        %vm4043 = vcmp.eq.s32.totalorder %v4001, 1
        %vm4044 = vcmp.eq.s32.totalorder %v4004, 1
        %vm4045 = vcmp.eq.s32.totalorder %v4007, 1
        %vm4046 = vcmp.eq.s32.totalorder %v4010, 1
        %vm4047 = vcmp.eq.s32.totalorder %v4013, 1
        %vm4048 = vcmp.eq.s32.totalorder %v4016, 1
        %vm4049 = vcmp.eq.s32.totalorder %v4019, 1
        %vm4050 = vcmp.eq.s32.totalorder %v4022, 1
        %vm4051 = vcmp.eq.s32.totalorder %v4025, 1
        %vm4052 = vcmp.eq.s32.totalorder %v4028, 1
        %vm4053 = vcmp.eq.s32.totalorder %v4031, 1
        %vm4054 = vcmp.eq.s32.totalorder %v4034, 1
        %vm4055 = vcmp.eq.s32.totalorder %v4037, 1
        %vm4056 = vcmp.eq.s32.totalorder %v4040, 1
        %v4057 = vsel %vm4041, %v3384, %v3124
        %v4058 = vsel %vm4041, %v3386, %v3125
        %v4059 = vsel %vm4041, %v3545, %v3126
        %v4060 = vsel %vm4041, %v3547, %v3127
        %v4061 = vsel %vm4041, %v3706, %v3128
        %v4062 = vsel %vm4041, %v3708, %v3129
        %v4063 = vsel %vm4041, %v3867, %v3130
        %v4064 = vsel %vm4041, %v3869, %v3131
        %v4065 = vsel %vm4042, %v3390, %v3132
        %v4066 = vsel %vm4042, %v3392, %v3133
        %v4067 = vsel %vm4042, %v3551, %v3134
        %v4068 = vsel %vm4042, %v3553, %v3135
        %v4069 = vsel %vm4042, %v3712, %v3136
        %v4070 = vsel %vm4042, %v3714, %v3137
        %v4071 = vsel %vm4042, %v3873, %v3138
        %v4072 = vsel %vm4042, %v3875, %v3139
        %v4073 = vsel %vm4043, %v3396, %v3140
        %v4074 = vsel %vm4043, %v3398, %v3141
        %v4075 = vsel %vm4043, %v3557, %v3142
        %v4076 = vsel %vm4043, %v3559, %v3143
        %v4077 = vsel %vm4043, %v3718, %v3144
        %v4078 = vsel %vm4043, %v3720, %v3145
        %v4079 = vsel %vm4043, %v3879, %v3146
        %v4080 = vsel %vm4043, %v3881, %v3147
        %v4081 = vsel %vm4044, %v3402, %v3148
        %v4082 = vsel %vm4044, %v3404, %v3149
        %v4083 = vsel %vm4044, %v3563, %v3150
        %v4084 = vsel %vm4044, %v3565, %v3151
        %v4085 = vsel %vm4044, %v3724, %v3152
        %v4086 = vsel %vm4044, %v3726, %v3153
        %v4087 = vsel %vm4044, %v3885, %v3154
        %v4088 = vsel %vm4044, %v3887, %v3155
        %v4089 = vsel %vm4045, %v3408, %v3156
        %v4090 = vsel %vm4045, %v3410, %v3157
        %v4091 = vsel %vm4045, %v3569, %v3158
        %v4092 = vsel %vm4045, %v3571, %v3159
        %v4093 = vsel %vm4045, %v3730, %v3160
        %v4094 = vsel %vm4045, %v3732, %v3161
        %v4095 = vsel %vm4045, %v3891, %v3162
        %v4096 = vsel %vm4045, %v3893, %v3163
        %v4097 = vsel %vm4046, %v3414, %v3164
        %v4098 = vsel %vm4046, %v3416, %v3165
        %v4099 = vsel %vm4046, %v3575, %v3166
        %v4100 = vsel %vm4046, %v3577, %v3167
        %v4101 = vsel %vm4046, %v3736, %v3168
        %v4102 = vsel %vm4046, %v3738, %v3169
        %v4103 = vsel %vm4046, %v3897, %v3170
        %v4104 = vsel %vm4046, %v3899, %v3171
        %v4105 = vsel %vm4047, %v3420, %v3172
        %v4106 = vsel %vm4047, %v3422, %v3173
        %v4107 = vsel %vm4047, %v3581, %v3174
        %v4108 = vsel %vm4047, %v3583, %v3175
        %v4109 = vsel %vm4047, %v3742, %v3176
        %v4110 = vsel %vm4047, %v3744, %v3177
        %v4111 = vsel %vm4047, %v3903, %v3178
        %v4112 = vsel %vm4047, %v3905, %v3179
        %v4113 = vsel %vm4048, %v3426, %v3180
        %v4114 = vsel %vm4048, %v3428, %v3181
        %v4115 = vsel %vm4048, %v3587, %v3182
        %v4116 = vsel %vm4048, %v3589, %v3183
        %v4117 = vsel %vm4048, %v3748, %v3184
        %v4118 = vsel %vm4048, %v3750, %v3185
        %v4119 = vsel %vm4048, %v3909, %v3186
        %v4120 = vsel %vm4048, %v3911, %v3187
        %v4121 = vsel %vm4049, %v3432, %v3188
        %v4122 = vsel %vm4049, %v3434, %v3189
        %v4123 = vsel %vm4049, %v3593, %v3190
        %v4124 = vsel %vm4049, %v3595, %v3191
        %v4125 = vsel %vm4049, %v3754, %v3192
        %v4126 = vsel %vm4049, %v3756, %v3193
        %v4127 = vsel %vm4049, %v3915, %v3194
        %v4128 = vsel %vm4049, %v3917, %v3195
        %v4129 = vsel %vm4050, %v3438, %v3196
        %v4130 = vsel %vm4050, %v3440, %v3197
        %v4131 = vsel %vm4050, %v3599, %v3198
        %v4132 = vsel %vm4050, %v3601, %v3199
        %v4133 = vsel %vm4050, %v3760, %v3200
        %v4134 = vsel %vm4050, %v3762, %v3201
        %v4135 = vsel %vm4050, %v3921, %v3202
        %v4136 = vsel %vm4050, %v3923, %v3203
        %v4137 = vsel %vm4051, %v3444, %v3204
        %v4138 = vsel %vm4051, %v3446, %v3205
        %v4139 = vsel %vm4051, %v3605, %v3206
        %v4140 = vsel %vm4051, %v3607, %v3207
        %v4141 = vsel %vm4051, %v3766, %v3208
        %v4142 = vsel %vm4051, %v3768, %v3209
        %v4143 = vsel %vm4051, %v3927, %v3210
        %v4144 = vsel %vm4051, %v3929, %v3211
        %v4145 = vsel %vm4052, %v3450, %v3212
        %v4146 = vsel %vm4052, %v3452, %v3213
        %v4147 = vsel %vm4052, %v3611, %v3214
        %v4148 = vsel %vm4052, %v3613, %v3215
        %v4149 = vsel %vm4052, %v3772, %v3216
        %v4150 = vsel %vm4052, %v3774, %v3217
        %v4151 = vsel %vm4052, %v3933, %v3218
        %v4152 = vsel %vm4052, %v3935, %v3219
        %v4153 = vsel %vm4053, %v3456, %v3220
        %v4154 = vsel %vm4053, %v3458, %v3221
        %v4155 = vsel %vm4053, %v3617, %v3222
        %v4156 = vsel %vm4053, %v3619, %v3223
        %v4157 = vsel %vm4053, %v3778, %v3224
        %v4158 = vsel %vm4053, %v3780, %v3225
        %v4159 = vsel %vm4053, %v3939, %v3226
        %v4160 = vsel %vm4053, %v3941, %v3227
        %v4161 = vsel %vm4054, %v3462, %v3228
        %v4162 = vsel %vm4054, %v3464, %v3229
        %v4163 = vsel %vm4054, %v3623, %v3230
        %v4164 = vsel %vm4054, %v3625, %v3231
        %v4165 = vsel %vm4054, %v3784, %v3232
        %v4166 = vsel %vm4054, %v3786, %v3233
        %v4167 = vsel %vm4054, %v3945, %v3234
        %v4168 = vsel %vm4054, %v3947, %v3235
        %v4169 = vsel %vm4055, %v3468, %v3236
        %v4170 = vsel %vm4055, %v3470, %v3237
        %v4171 = vsel %vm4055, %v3629, %v3238
        %v4172 = vsel %vm4055, %v3631, %v3239
        %v4173 = vsel %vm4055, %v3790, %v3240
        %v4174 = vsel %vm4055, %v3792, %v3241
        %v4175 = vsel %vm4055, %v3951, %v3242
        %v4176 = vsel %vm4055, %v3953, %v3243
        %v4177 = vsel %vm4056, %v3474, %v3244
        %v4178 = vsel %vm4056, %v3476, %v3245
        %v4179 = vsel %vm4056, %v3635, %v3246
        %v4180 = vsel %vm4056, %v3637, %v3247
        %v4181 = vsel %vm4056, %v3796, %v3248
        %v4182 = vsel %vm4056, %v3798, %v3249
        %v4183 = vsel %vm4056, %v3957, %v3250
        %v4184 = vsel %vm4056, %v3959, %v3251
        %s4185 = scalar_lea.vmem [#allocation2], 1024
        %v4186 = vld [vmem:[%s4185] sm:$0xff]
        %v4187 = vld [vmem:[%s4185 + $0x8] sm:$0xff]
        %v4188 = vld [vmem:[%s4185 + $0x10] sm:$0xff]
        %v4189 = vld [vmem:[%s4185 + $0x18] sm:$0xff]
        %v4190 = vld [vmem:[%s4185 + $0x20] sm:$0xff]
        %v4191 = vld [vmem:[%s4185 + $0x28] sm:$0xff]
        %v4192 = vld [vmem:[%s4185 + $0x30] sm:$0xff]
        %v4193 = vld [vmem:[%s4185 + $0x38] sm:$0xff]
        %v4194 = vld [vmem:[%s4185 + $0x40] sm:$0xff]
        %v4195 = vld [vmem:[%s4185 + $0x48] sm:$0xff]
        %v4196 = vld [vmem:[%s4185 + $0x50] sm:$0xff]
        %v4197 = vld [vmem:[%s4185 + $0x58] sm:$0xff]
        %v4198 = vld [vmem:[%s4185 + $0x60] sm:$0xff]
        %v4199 = vld [vmem:[%s4185 + $0x68] sm:$0xff]
        %v4200 = vld [vmem:[%s4185 + $0x70] sm:$0xff]
        %v4201 = vld [vmem:[%s4185 + $0x78] sm:$0xff]
        %v4202 = vld [vmem:[%s4185 + $0x80] sm:$0xff]
        %v4203 = vld [vmem:[%s4185 + $0x88] sm:$0xff]
        %v4204 = vld [vmem:[%s4185 + $0x90] sm:$0xff]
        %v4205 = vld [vmem:[%s4185 + $0x98] sm:$0xff]
        %v4206 = vld [vmem:[%s4185 + $0xa0] sm:$0xff]
        %v4207 = vld [vmem:[%s4185 + $0xa8] sm:$0xff]
        %v4208 = vld [vmem:[%s4185 + $0xb0] sm:$0xff]
        %v4209 = vld [vmem:[%s4185 + $0xb8] sm:$0xff]
        %v4210 = vld [vmem:[%s4185 + $0xc0] sm:$0xff]
        %v4211 = vld [vmem:[%s4185 + $0xc8] sm:$0xff]
        %v4212 = vld [vmem:[%s4185 + $0xd0] sm:$0xff]
        %v4213 = vld [vmem:[%s4185 + $0xd8] sm:$0xff]
        %v4214 = vld [vmem:[%s4185 + $0xe0] sm:$0xff]
        %v4215 = vld [vmem:[%s4185 + $0xe8] sm:$0xff]
        %v4216 = vld [vmem:[%s4185 + $0xf0] sm:$0xff]
        %v4217 = vld [vmem:[%s4185 + $0xf8] sm:$0xff]
        %v4218 = vlaneseq
        %v4219 = vshrl.u32 %v4218, 7
        %v4220 = vsub.s32 4, %v4219
        %v4221 = vrot.slane %v397, %v4220
        %v4222 = vlaneseq
        %v4223 = vshrl.u32 %v4222, 7
        %v4224 = vsub.s32 4, %v4223
        %v4225 = vrot.slane %v398, %v4224
        %v4226 = vlaneseq
        %v4227 = vshrl.u32 %v4226, 7
        %v4228 = vsub.s32 4, %v4227
        %v4229 = vrot.slane %v399, %v4228
        %v4230 = vlaneseq
        %v4231 = vshrl.u32 %v4230, 7
        %v4232 = vsub.s32 4, %v4231
        %v4233 = vrot.slane %v400, %v4232
        %v4234 = vlaneseq
        %v4235 = vshrl.u32 %v4234, 7
        %v4236 = vsub.s32 4, %v4235
        %v4237 = vrot.slane %v401, %v4236
        %v4238 = vlaneseq
        %v4239 = vshrl.u32 %v4238, 7
        %v4240 = vsub.s32 4, %v4239
        %v4241 = vrot.slane %v402, %v4240
        %v4242 = vlaneseq
        %v4243 = vshrl.u32 %v4242, 7
        %v4244 = vsub.s32 4, %v4243
        %v4245 = vrot.slane %v403, %v4244
        %v4246 = vlaneseq
        %v4247 = vshrl.u32 %v4246, 7
        %v4248 = vsub.s32 4, %v4247
        %v4249 = vrot.slane %v404, %v4248
        %4250 = vmatprep.subr.mxu0 %v4187
        %4251 = vmatpush1.msra.mxu0 %v4186
        %4252 = vmatprep.subr.mxu0 %v4195
        %4253 = vmatpush1.msra.mxu0 %v4194
        %4254 = vmatprep.subr.mxu0 %v4203
        %4255 = vmatpush1.msra.mxu0 %v4202
        %4256 = vmatprep.subr.mxu0 %v4211
        %4257 = vmatpush1.msra.mxu0 %v4210
        %4258 = vmatprep.subr.mxu0 0.0
        %4259 = vmatpush1.msra.mxu0 0.0
        %4260 = vmatprep.subr.mxu0 0.0
        %4261 = vmatpush1.msra.mxu0 0.0
        %4262 = vmatprep.subr.mxu0 0.0
        %4263 = vmatpush1.msra.mxu0 0.0
        %4264 = vmatprep.subr.mxu0 0.0
        %4265 = vmatpush1.msra.mxu0 0.0
        %4266 = vmatprep.subr.mxu0 0.0
        %4267 = vmatpush1.msra.mxu0 0.0
        %4268 = vmatprep.subr.mxu0 0.0
        %4269 = vmatpush1.msra.mxu0 0.0
        %4270 = vmatprep.subr.mxu0 0.0
        %4271 = vmatpush1.msra.mxu0 0.0
        %4272 = vmatprep.subr.mxu0 0.0
        %4273 = vmatpush1.msra.mxu0 0.0
        %4274 = vmatprep.subr.mxu0 0.0
        %4275 = vmatpush1.msra.mxu0 0.0
        %4276 = vmatprep.subr.mxu0 0.0
        %4277 = vmatpush1.msra.mxu0 0.0
        %4278 = vmatprep.subr.mxu0 0.0
        %4279 = vmatpush1.msra.mxu0 0.0
        %4280 = vmatprep.subr.mxu0 0.0
        %4281 = vmatpush1.msra.mxu0 0.0
        %4282 = vmatprep.subr.mxu0 0.0
        %4283 = vmatpush1.msra.mxu0 0.0
        %4284 = vmatprep.subr.mxu0 0.0
        %4285 = vmatpush1.msra.mxu0 0.0
        %4286 = vmatprep.subr.mxu0 0.0
        %4287 = vmatpush1.msra.mxu0 0.0
        %4288 = vmatprep.subr.mxu0 0.0
        %4289 = vmatpush1.msra.mxu0 0.0
        %4290 = vmatprep.subr.mxu0 0.0
        %4291 = vmatpush1.msra.mxu0 0.0
        %4292 = vmatprep.subr.mxu0 0.0
        %4293 = vmatpush1.msra.mxu0 0.0
        %4294 = vmatprep.subr.mxu0 0.0
        %4295 = vmatpush1.msra.mxu0 0.0
        %4296 = vmatprep.subr.mxu0 0.0
        %4297 = vmatpush1.msra.mxu0 0.0
        %4298 = vmatprep.subr.mxu0 0.0
        %4299 = vmatpush1.msra.mxu0 0.0
        %4300 = vmatprep.subr.mxu0 0.0
        %4301 = vmatpush1.msra.mxu0 0.0
        %4302 = vmatprep.subr.mxu0 0.0
        %4303 = vmatpush1.msra.mxu0 0.0
        %4304 = vmatprep.subr.mxu0 0.0
        %4305 = vmatpush1.msra.mxu0 0.0
        %4306 = vmatprep.subr.mxu0 0.0
        %4307 = vmatpush1.msra.mxu0 0.0
        %4308 = vmatprep.subr.mxu0 0.0
        %4309 = vmatpush1.msra.mxu0 0.0
        %4310 = vmatprep.subr.mxu0 0.0
        %4311 = vmatpush1.msra.mxu0 0.0
        %4312 = vmatprep.subr.mxu0 0.0
        %4313 = vmatpush1.msra.mxu0 0.0
        %4314 = vmatprep.mubr.f32.mxu0 0.0
        %4315 = vmatmul.mubr.f32.gmra.mrb[0].mxu0 %v471
        %v4316 = vpop.f32.mrb[0].mxu0
        %v4317 = vadd.f32 %v4221, %v4316
        %v4318 = vpop.f32.mrb[0].mxu0
        %v4319 = vadd.f32 %v4225, %v4318
        %4320 = vmatprep.mubr.f32.mxu0 0.0
        %4321 = vmatmul.mubr.f32.gmra.mrb[0].mxu0 %v474
        %v4322 = vpop.f32.mrb[0].mxu0
        %v4323 = vadd.f32 %v4221, %v4322
        %v4324 = vpop.f32.mrb[0].mxu0
        %v4325 = vadd.f32 %v4225, %v4324
        %4326 = vmatprep.mubr.f32.mxu0 0.0
        %4327 = vmatmul.mubr.f32.gmra.mrb[0].mxu0 %v477
        %v4328 = vpop.f32.mrb[0].mxu0
        %v4329 = vadd.f32 %v4221, %v4328
        %v4330 = vpop.f32.mrb[0].mxu0
        %v4331 = vadd.f32 %v4225, %v4330
        %4332 = vmatprep.mubr.f32.mxu0 0.0
        %4333 = vmatmul.mubr.f32.gmra.mrb[0].mxu0 %v480
        %v4334 = vpop.f32.mrb[0].mxu0
        %v4335 = vadd.f32 %v4221, %v4334
        %v4336 = vpop.f32.mrb[0].mxu0
        %v4337 = vadd.f32 %v4225, %v4336
        %4338 = vmatprep.mubr.f32.mxu0 0.0
        %4339 = vmatmul.mubr.f32.gmra.mrb[0].mxu0 %v483
        %v4340 = vpop.f32.mrb[0].mxu0
        %v4341 = vadd.f32 %v4221, %v4340
        %v4342 = vpop.f32.mrb[0].mxu0
        %v4343 = vadd.f32 %v4225, %v4342
        %4344 = vmatprep.mubr.f32.mxu0 0.0
        %4345 = vmatmul.mubr.f32.gmra.mrb[0].mxu0 %v486
        %v4346 = vpop.f32.mrb[0].mxu0
        %v4347 = vadd.f32 %v4221, %v4346
        %v4348 = vpop.f32.mrb[0].mxu0
        %v4349 = vadd.f32 %v4225, %v4348
        %4350 = vmatprep.mubr.f32.mxu0 0.0
        %4351 = vmatmul.mubr.f32.gmra.mrb[0].mxu0 %v489
        %v4352 = vpop.f32.mrb[0].mxu0
        %v4353 = vadd.f32 %v4221, %v4352
        %v4354 = vpop.f32.mrb[0].mxu0
        %v4355 = vadd.f32 %v4225, %v4354
        %4356 = vmatprep.mubr.f32.mxu0 0.0
        %4357 = vmatmul.mubr.f32.gmra.mrb[0].mxu0 %v492
        %v4358 = vpop.f32.mrb[0].mxu0
        %v4359 = vadd.f32 %v4221, %v4358
        %v4360 = vpop.f32.mrb[0].mxu0
        %v4361 = vadd.f32 %v4225, %v4360
        %4362 = vmatprep.mubr.f32.mxu0 0.0
        %4363 = vmatmul.mubr.f32.gmra.mrb[0].mxu0 %v495
        %v4364 = vpop.f32.mrb[0].mxu0
        %v4365 = vadd.f32 %v4221, %v4364
        %v4366 = vpop.f32.mrb[0].mxu0
        %v4367 = vadd.f32 %v4225, %v4366
        %4368 = vmatprep.mubr.f32.mxu0 0.0
        %4369 = vmatmul.mubr.f32.gmra.mrb[0].mxu0 %v498
        %v4370 = vpop.f32.mrb[0].mxu0
        %v4371 = vadd.f32 %v4221, %v4370
        %v4372 = vpop.f32.mrb[0].mxu0
        %v4373 = vadd.f32 %v4225, %v4372
        %4374 = vmatprep.mubr.f32.mxu0 0.0
        %4375 = vmatmul.mubr.f32.gmra.mrb[0].mxu0 %v501
        %v4376 = vpop.f32.mrb[0].mxu0
        %v4377 = vadd.f32 %v4221, %v4376
        %v4378 = vpop.f32.mrb[0].mxu0
        %v4379 = vadd.f32 %v4225, %v4378
        %4380 = vmatprep.mubr.f32.mxu0 0.0
        %4381 = vmatmul.mubr.f32.gmra.mrb[0].mxu0 %v504
        %v4382 = vpop.f32.mrb[0].mxu0
        %v4383 = vadd.f32 %v4221, %v4382
        %v4384 = vpop.f32.mrb[0].mxu0
        %v4385 = vadd.f32 %v4225, %v4384
        %4386 = vmatprep.mubr.f32.mxu0 0.0
        %4387 = vmatmul.mubr.f32.gmra.mrb[0].mxu0 %v507
        %v4388 = vpop.f32.mrb[0].mxu0
        %v4389 = vadd.f32 %v4221, %v4388
        %v4390 = vpop.f32.mrb[0].mxu0
        %v4391 = vadd.f32 %v4225, %v4390
        %4392 = vmatprep.mubr.f32.mxu0 0.0
        %4393 = vmatmul.mubr.f32.gmra.mrb[0].mxu0 %v510
        %v4394 = vpop.f32.mrb[0].mxu0
        %v4395 = vadd.f32 %v4221, %v4394
        %v4396 = vpop.f32.mrb[0].mxu0
        %v4397 = vadd.f32 %v4225, %v4396
        %4398 = vmatprep.mubr.f32.mxu0 0.0
        %4399 = vmatmul.mubr.f32.gmra.mrb[0].mxu0 %v513
        %v4400 = vpop.f32.mrb[0].mxu0
        %v4401 = vadd.f32 %v4221, %v4400
        %v4402 = vpop.f32.mrb[0].mxu0
        %v4403 = vadd.f32 %v4225, %v4402
        %4404 = vmatprep.mubr.f32.mxu0 0.0
        %4405 = vmatmul.mubr.f32.gmra.mrb[0].mxu0 %v516
        %v4406 = vpop.f32.mrb[0].mxu0
        %v4407 = vadd.f32 %v4221, %v4406
        %v4408 = vpop.f32.mrb[0].mxu0
        %v4409 = vadd.f32 %v4225, %v4408
        %4410 = vdwg.mxu0
        %4411 = vmatprep.subr.mxu0 %v4189
        %4412 = vmatpush1.msra.mxu0 %v4188
        %4413 = vmatprep.subr.mxu0 %v4197
        %4414 = vmatpush1.msra.mxu0 %v4196
        %4415 = vmatprep.subr.mxu0 %v4205
        %4416 = vmatpush1.msra.mxu0 %v4204
        %4417 = vmatprep.subr.mxu0 %v4213
        %4418 = vmatpush1.msra.mxu0 %v4212
        %4419 = vmatprep.subr.mxu0 0.0
        %4420 = vmatpush1.msra.mxu0 0.0
        %4421 = vmatprep.subr.mxu0 0.0
        %4422 = vmatpush1.msra.mxu0 0.0
        %4423 = vmatprep.subr.mxu0 0.0
        %4424 = vmatpush1.msra.mxu0 0.0
        %4425 = vmatprep.subr.mxu0 0.0
        %4426 = vmatpush1.msra.mxu0 0.0
        %4427 = vmatprep.subr.mxu0 0.0
        %4428 = vmatpush1.msra.mxu0 0.0
        %4429 = vmatprep.subr.mxu0 0.0
        %4430 = vmatpush1.msra.mxu0 0.0
        %4431 = vmatprep.subr.mxu0 0.0
        %4432 = vmatpush1.msra.mxu0 0.0
        %4433 = vmatprep.subr.mxu0 0.0
        %4434 = vmatpush1.msra.mxu0 0.0
        %4435 = vmatprep.subr.mxu0 0.0
        %4436 = vmatpush1.msra.mxu0 0.0
        %4437 = vmatprep.subr.mxu0 0.0
        %4438 = vmatpush1.msra.mxu0 0.0
        %4439 = vmatprep.subr.mxu0 0.0
        %4440 = vmatpush1.msra.mxu0 0.0
        %4441 = vmatprep.subr.mxu0 0.0
        %4442 = vmatpush1.msra.mxu0 0.0
        %4443 = vmatprep.subr.mxu0 0.0
        %4444 = vmatpush1.msra.mxu0 0.0
        %4445 = vmatprep.subr.mxu0 0.0
        %4446 = vmatpush1.msra.mxu0 0.0
        %4447 = vmatprep.subr.mxu0 0.0
        %4448 = vmatpush1.msra.mxu0 0.0
        %4449 = vmatprep.subr.mxu0 0.0
        %4450 = vmatpush1.msra.mxu0 0.0
        %4451 = vmatprep.subr.mxu0 0.0
        %4452 = vmatpush1.msra.mxu0 0.0
        %4453 = vmatprep.subr.mxu0 0.0
        %4454 = vmatpush1.msra.mxu0 0.0
        %4455 = vmatprep.subr.mxu0 0.0
        %4456 = vmatpush1.msra.mxu0 0.0
        %4457 = vmatprep.subr.mxu0 0.0
        %4458 = vmatpush1.msra.mxu0 0.0
        %4459 = vmatprep.subr.mxu0 0.0
        %4460 = vmatpush1.msra.mxu0 0.0
        %4461 = vmatprep.subr.mxu0 0.0
        %4462 = vmatpush1.msra.mxu0 0.0
        %4463 = vmatprep.subr.mxu0 0.0
        %4464 = vmatpush1.msra.mxu0 0.0
        %4465 = vmatprep.subr.mxu0 0.0
        %4466 = vmatpush1.msra.mxu0 0.0
        %4467 = vmatprep.subr.mxu0 0.0
        %4468 = vmatpush1.msra.mxu0 0.0
        %4469 = vmatprep.subr.mxu0 0.0
        %4470 = vmatpush1.msra.mxu0 0.0
        %4471 = vmatprep.subr.mxu0 0.0
        %4472 = vmatpush1.msra.mxu0 0.0
        %4473 = vmatprep.subr.mxu0 0.0
        %4474 = vmatpush1.msra.mxu0 0.0
        %4475 = vmatprep.mubr.f32.mxu0 0.0
        %4476 = vmatmul.mubr.f32.gmra.mrb[0].mxu0 %v471
        %v4477 = vpop.f32.mrb[0].mxu0
        %v4478 = vadd.f32 %v4229, %v4477
        %v4479 = vpop.f32.mrb[0].mxu0
        %v4480 = vadd.f32 %v4233, %v4479
        %4481 = vmatprep.mubr.f32.mxu0 0.0
        %4482 = vmatmul.mubr.f32.gmra.mrb[0].mxu0 %v474
        %v4483 = vpop.f32.mrb[0].mxu0
        %v4484 = vadd.f32 %v4229, %v4483
        %v4485 = vpop.f32.mrb[0].mxu0
        %v4486 = vadd.f32 %v4233, %v4485
        %4487 = vmatprep.mubr.f32.mxu0 0.0
        %4488 = vmatmul.mubr.f32.gmra.mrb[0].mxu0 %v477
        %v4489 = vpop.f32.mrb[0].mxu0
        %v4490 = vadd.f32 %v4229, %v4489
        %v4491 = vpop.f32.mrb[0].mxu0
        %v4492 = vadd.f32 %v4233, %v4491
        %4493 = vmatprep.mubr.f32.mxu0 0.0
        %4494 = vmatmul.mubr.f32.gmra.mrb[0].mxu0 %v480
        %v4495 = vpop.f32.mrb[0].mxu0
        %v4496 = vadd.f32 %v4229, %v4495
        %v4497 = vpop.f32.mrb[0].mxu0
        %v4498 = vadd.f32 %v4233, %v4497
        %4499 = vmatprep.mubr.f32.mxu0 0.0
        %4500 = vmatmul.mubr.f32.gmra.mrb[0].mxu0 %v483
        %v4501 = vpop.f32.mrb[0].mxu0
        %v4502 = vadd.f32 %v4229, %v4501
        %v4503 = vpop.f32.mrb[0].mxu0
        %v4504 = vadd.f32 %v4233, %v4503
        %4505 = vmatprep.mubr.f32.mxu0 0.0
        %4506 = vmatmul.mubr.f32.gmra.mrb[0].mxu0 %v486
        %v4507 = vpop.f32.mrb[0].mxu0
        %v4508 = vadd.f32 %v4229, %v4507
        %v4509 = vpop.f32.mrb[0].mxu0
        %v4510 = vadd.f32 %v4233, %v4509
        %4511 = vmatprep.mubr.f32.mxu0 0.0
        %4512 = vmatmul.mubr.f32.gmra.mrb[0].mxu0 %v489
        %v4513 = vpop.f32.mrb[0].mxu0
        %v4514 = vadd.f32 %v4229, %v4513
        %v4515 = vpop.f32.mrb[0].mxu0
        %v4516 = vadd.f32 %v4233, %v4515
        %4517 = vmatprep.mubr.f32.mxu0 0.0
        %4518 = vmatmul.mubr.f32.gmra.mrb[0].mxu0 %v492
        %v4519 = vpop.f32.mrb[0].mxu0
        %v4520 = vadd.f32 %v4229, %v4519
        %v4521 = vpop.f32.mrb[0].mxu0
        %v4522 = vadd.f32 %v4233, %v4521
        %4523 = vmatprep.mubr.f32.mxu0 0.0
        %4524 = vmatmul.mubr.f32.gmra.mrb[0].mxu0 %v495
        %v4525 = vpop.f32.mrb[0].mxu0
        %v4526 = vadd.f32 %v4229, %v4525
        %v4527 = vpop.f32.mrb[0].mxu0
        %v4528 = vadd.f32 %v4233, %v4527
        %4529 = vmatprep.mubr.f32.mxu0 0.0
        %4530 = vmatmul.mubr.f32.gmra.mrb[0].mxu0 %v498
        %v4531 = vpop.f32.mrb[0].mxu0
        %v4532 = vadd.f32 %v4229, %v4531
        %v4533 = vpop.f32.mrb[0].mxu0
        %v4534 = vadd.f32 %v4233, %v4533
        %4535 = vmatprep.mubr.f32.mxu0 0.0
        %4536 = vmatmul.mubr.f32.gmra.mrb[0].mxu0 %v501
        %v4537 = vpop.f32.mrb[0].mxu0
        %v4538 = vadd.f32 %v4229, %v4537
        %v4539 = vpop.f32.mrb[0].mxu0
        %v4540 = vadd.f32 %v4233, %v4539
        %4541 = vmatprep.mubr.f32.mxu0 0.0
        %4542 = vmatmul.mubr.f32.gmra.mrb[0].mxu0 %v504
        %v4543 = vpop.f32.mrb[0].mxu0
        %v4544 = vadd.f32 %v4229, %v4543
        %v4545 = vpop.f32.mrb[0].mxu0
        %v4546 = vadd.f32 %v4233, %v4545
        %4547 = vmatprep.mubr.f32.mxu0 0.0
        %4548 = vmatmul.mubr.f32.gmra.mrb[0].mxu0 %v507
        %v4549 = vpop.f32.mrb[0].mxu0
        %v4550 = vadd.f32 %v4229, %v4549
        %v4551 = vpop.f32.mrb[0].mxu0
        %v4552 = vadd.f32 %v4233, %v4551
        %4553 = vmatprep.mubr.f32.mxu0 0.0
        %4554 = vmatmul.mubr.f32.gmra.mrb[0].mxu0 %v510
        %v4555 = vpop.f32.mrb[0].mxu0
        %v4556 = vadd.f32 %v4229, %v4555
        %v4557 = vpop.f32.mrb[0].mxu0
        %v4558 = vadd.f32 %v4233, %v4557
        %4559 = vmatprep.mubr.f32.mxu0 0.0
        %4560 = vmatmul.mubr.f32.gmra.mrb[0].mxu0 %v513
        %v4561 = vpop.f32.mrb[0].mxu0
        %v4562 = vadd.f32 %v4229, %v4561
        %v4563 = vpop.f32.mrb[0].mxu0
        %v4564 = vadd.f32 %v4233, %v4563
        %4565 = vmatprep.mubr.f32.mxu0 0.0
        %4566 = vmatmul.mubr.f32.gmra.mrb[0].mxu0 %v516
        %v4567 = vpop.f32.mrb[0].mxu0
        %v4568 = vadd.f32 %v4229, %v4567
        %v4569 = vpop.f32.mrb[0].mxu0
        %v4570 = vadd.f32 %v4233, %v4569
        %4571 = vdwg.mxu0
        %4572 = vmatprep.subr.mxu0 %v4191
        %4573 = vmatpush1.msra.mxu0 %v4190
        %4574 = vmatprep.subr.mxu0 %v4199
        %4575 = vmatpush1.msra.mxu0 %v4198
        %4576 = vmatprep.subr.mxu0 %v4207
        %4577 = vmatpush1.msra.mxu0 %v4206
        %4578 = vmatprep.subr.mxu0 %v4215
        %4579 = vmatpush1.msra.mxu0 %v4214
        %4580 = vmatprep.subr.mxu0 0.0
        %4581 = vmatpush1.msra.mxu0 0.0
        %4582 = vmatprep.subr.mxu0 0.0
        %4583 = vmatpush1.msra.mxu0 0.0
        %4584 = vmatprep.subr.mxu0 0.0
        %4585 = vmatpush1.msra.mxu0 0.0
        %4586 = vmatprep.subr.mxu0 0.0
        %4587 = vmatpush1.msra.mxu0 0.0
        %4588 = vmatprep.subr.mxu0 0.0
        %4589 = vmatpush1.msra.mxu0 0.0
        %4590 = vmatprep.subr.mxu0 0.0
        %4591 = vmatpush1.msra.mxu0 0.0
        %4592 = vmatprep.subr.mxu0 0.0
        %4593 = vmatpush1.msra.mxu0 0.0
        %4594 = vmatprep.subr.mxu0 0.0
        %4595 = vmatpush1.msra.mxu0 0.0
        %4596 = vmatprep.subr.mxu0 0.0
        %4597 = vmatpush1.msra.mxu0 0.0
        %4598 = vmatprep.subr.mxu0 0.0
        %4599 = vmatpush1.msra.mxu0 0.0
        %4600 = vmatprep.subr.mxu0 0.0
        %4601 = vmatpush1.msra.mxu0 0.0
        %4602 = vmatprep.subr.mxu0 0.0
        %4603 = vmatpush1.msra.mxu0 0.0
        %4604 = vmatprep.subr.mxu0 0.0
        %4605 = vmatpush1.msra.mxu0 0.0
        %4606 = vmatprep.subr.mxu0 0.0
        %4607 = vmatpush1.msra.mxu0 0.0
        %4608 = vmatprep.subr.mxu0 0.0
        %4609 = vmatpush1.msra.mxu0 0.0
        %4610 = vmatprep.subr.mxu0 0.0
        %4611 = vmatpush1.msra.mxu0 0.0
        %4612 = vmatprep.subr.mxu0 0.0
        %4613 = vmatpush1.msra.mxu0 0.0
        %4614 = vmatprep.subr.mxu0 0.0
        %4615 = vmatpush1.msra.mxu0 0.0
        %4616 = vmatprep.subr.mxu0 0.0
        %4617 = vmatpush1.msra.mxu0 0.0
        %4618 = vmatprep.subr.mxu0 0.0
        %4619 = vmatpush1.msra.mxu0 0.0
        %4620 = vmatprep.subr.mxu0 0.0
        %4621 = vmatpush1.msra.mxu0 0.0
        %4622 = vmatprep.subr.mxu0 0.0
        %4623 = vmatpush1.msra.mxu0 0.0
        %4624 = vmatprep.subr.mxu0 0.0
        %4625 = vmatpush1.msra.mxu0 0.0
        %4626 = vmatprep.subr.mxu0 0.0
        %4627 = vmatpush1.msra.mxu0 0.0
        %4628 = vmatprep.subr.mxu0 0.0
        %4629 = vmatpush1.msra.mxu0 0.0
        %4630 = vmatprep.subr.mxu0 0.0
        %4631 = vmatpush1.msra.mxu0 0.0
        %4632 = vmatprep.subr.mxu0 0.0
        %4633 = vmatpush1.msra.mxu0 0.0
        %4634 = vmatprep.subr.mxu0 0.0
        %4635 = vmatpush1.msra.mxu0 0.0
        %4636 = vmatprep.mubr.f32.mxu0 0.0
        %4637 = vmatmul.mubr.f32.gmra.mrb[0].mxu0 %v471
        %v4638 = vpop.f32.mrb[0].mxu0
        %v4639 = vadd.f32 %v4237, %v4638
        %v4640 = vpop.f32.mrb[0].mxu0
        %v4641 = vadd.f32 %v4241, %v4640
        %4642 = vmatprep.mubr.f32.mxu0 0.0
        %4643 = vmatmul.mubr.f32.gmra.mrb[0].mxu0 %v474
        %v4644 = vpop.f32.mrb[0].mxu0
        %v4645 = vadd.f32 %v4237, %v4644
        %v4646 = vpop.f32.mrb[0].mxu0
        %v4647 = vadd.f32 %v4241, %v4646
        %4648 = vmatprep.mubr.f32.mxu0 0.0
        %4649 = vmatmul.mubr.f32.gmra.mrb[0].mxu0 %v477
        %v4650 = vpop.f32.mrb[0].mxu0
        %v4651 = vadd.f32 %v4237, %v4650
        %v4652 = vpop.f32.mrb[0].mxu0
        %v4653 = vadd.f32 %v4241, %v4652
        %4654 = vmatprep.mubr.f32.mxu0 0.0
        %4655 = vmatmul.mubr.f32.gmra.mrb[0].mxu0 %v480
        %v4656 = vpop.f32.mrb[0].mxu0
        %v4657 = vadd.f32 %v4237, %v4656
        %v4658 = vpop.f32.mrb[0].mxu0
        %v4659 = vadd.f32 %v4241, %v4658
        %4660 = vmatprep.mubr.f32.mxu0 0.0
        %4661 = vmatmul.mubr.f32.gmra.mrb[0].mxu0 %v483
        %v4662 = vpop.f32.mrb[0].mxu0
        %v4663 = vadd.f32 %v4237, %v4662
        %v4664 = vpop.f32.mrb[0].mxu0
        %v4665 = vadd.f32 %v4241, %v4664
        %4666 = vmatprep.mubr.f32.mxu0 0.0
        %4667 = vmatmul.mubr.f32.gmra.mrb[0].mxu0 %v486
        %v4668 = vpop.f32.mrb[0].mxu0
        %v4669 = vadd.f32 %v4237, %v4668
        %v4670 = vpop.f32.mrb[0].mxu0
        %v4671 = vadd.f32 %v4241, %v4670
        %4672 = vmatprep.mubr.f32.mxu0 0.0
        %4673 = vmatmul.mubr.f32.gmra.mrb[0].mxu0 %v489
        %v4674 = vpop.f32.mrb[0].mxu0
        %v4675 = vadd.f32 %v4237, %v4674
        %v4676 = vpop.f32.mrb[0].mxu0
        %v4677 = vadd.f32 %v4241, %v4676
        %4678 = vmatprep.mubr.f32.mxu0 0.0
        %4679 = vmatmul.mubr.f32.gmra.mrb[0].mxu0 %v492
        %v4680 = vpop.f32.mrb[0].mxu0
        %v4681 = vadd.f32 %v4237, %v4680
        %v4682 = vpop.f32.mrb[0].mxu0
        %v4683 = vadd.f32 %v4241, %v4682
        %4684 = vmatprep.mubr.f32.mxu0 0.0
        %4685 = vmatmul.mubr.f32.gmra.mrb[0].mxu0 %v495
        %v4686 = vpop.f32.mrb[0].mxu0
        %v4687 = vadd.f32 %v4237, %v4686
        %v4688 = vpop.f32.mrb[0].mxu0
        %v4689 = vadd.f32 %v4241, %v4688
        %4690 = vmatprep.mubr.f32.mxu0 0.0
        %4691 = vmatmul.mubr.f32.gmra.mrb[0].mxu0 %v498
        %v4692 = vpop.f32.mrb[0].mxu0
        %v4693 = vadd.f32 %v4237, %v4692
        %v4694 = vpop.f32.mrb[0].mxu0
        %v4695 = vadd.f32 %v4241, %v4694
        %4696 = vmatprep.mubr.f32.mxu0 0.0
        %4697 = vmatmul.mubr.f32.gmra.mrb[0].mxu0 %v501
        %v4698 = vpop.f32.mrb[0].mxu0
        %v4699 = vadd.f32 %v4237, %v4698
        %v4700 = vpop.f32.mrb[0].mxu0
        %v4701 = vadd.f32 %v4241, %v4700
        %4702 = vmatprep.mubr.f32.mxu0 0.0
        %4703 = vmatmul.mubr.f32.gmra.mrb[0].mxu0 %v504
        %v4704 = vpop.f32.mrb[0].mxu0
        %v4705 = vadd.f32 %v4237, %v4704
        %v4706 = vpop.f32.mrb[0].mxu0
        %v4707 = vadd.f32 %v4241, %v4706
        %4708 = vmatprep.mubr.f32.mxu0 0.0
        %4709 = vmatmul.mubr.f32.gmra.mrb[0].mxu0 %v507
        %v4710 = vpop.f32.mrb[0].mxu0
        %v4711 = vadd.f32 %v4237, %v4710
        %v4712 = vpop.f32.mrb[0].mxu0
        %v4713 = vadd.f32 %v4241, %v4712
        %4714 = vmatprep.mubr.f32.mxu0 0.0
        %4715 = vmatmul.mubr.f32.gmra.mrb[0].mxu0 %v510
        %v4716 = vpop.f32.mrb[0].mxu0
        %v4717 = vadd.f32 %v4237, %v4716
        %v4718 = vpop.f32.mrb[0].mxu0
        %v4719 = vadd.f32 %v4241, %v4718
        %4720 = vmatprep.mubr.f32.mxu0 0.0
        %4721 = vmatmul.mubr.f32.gmra.mrb[0].mxu0 %v513
        %v4722 = vpop.f32.mrb[0].mxu0
        %v4723 = vadd.f32 %v4237, %v4722
        %v4724 = vpop.f32.mrb[0].mxu0
        %v4725 = vadd.f32 %v4241, %v4724
        %4726 = vmatprep.mubr.f32.mxu0 0.0
        %4727 = vmatmul.mubr.f32.gmra.mrb[0].mxu0 %v516
        %v4728 = vpop.f32.mrb[0].mxu0
        %v4729 = vadd.f32 %v4237, %v4728
        %v4730 = vpop.f32.mrb[0].mxu0
        %v4731 = vadd.f32 %v4241, %v4730
        %4732 = vdwg.mxu0
        %4733 = vmatprep.subr.mxu0 %v4193
        %4734 = vmatpush1.msra.mxu0 %v4192
        %4735 = vmatprep.subr.mxu0 %v4201
        %4736 = vmatpush1.msra.mxu0 %v4200
        %4737 = vmatprep.subr.mxu0 %v4209
        %4738 = vmatpush1.msra.mxu0 %v4208
        %4739 = vmatprep.subr.mxu0 %v4217
        %4740 = vmatpush1.msra.mxu0 %v4216
        %4741 = vmatprep.subr.mxu0 0.0
        %4742 = vmatpush1.msra.mxu0 0.0
        %4743 = vmatprep.subr.mxu0 0.0
        %4744 = vmatpush1.msra.mxu0 0.0
        %4745 = vmatprep.subr.mxu0 0.0
        %4746 = vmatpush1.msra.mxu0 0.0
        %4747 = vmatprep.subr.mxu0 0.0
        %4748 = vmatpush1.msra.mxu0 0.0
        %4749 = vmatprep.subr.mxu0 0.0
        %4750 = vmatpush1.msra.mxu0 0.0
        %4751 = vmatprep.subr.mxu0 0.0
        %4752 = vmatpush1.msra.mxu0 0.0
        %4753 = vmatprep.subr.mxu0 0.0
        %4754 = vmatpush1.msra.mxu0 0.0
        %4755 = vmatprep.subr.mxu0 0.0
        %4756 = vmatpush1.msra.mxu0 0.0
        %4757 = vmatprep.subr.mxu0 0.0
        %4758 = vmatpush1.msra.mxu0 0.0
        %4759 = vmatprep.subr.mxu0 0.0
        %4760 = vmatpush1.msra.mxu0 0.0
        %4761 = vmatprep.subr.mxu0 0.0
        %4762 = vmatpush1.msra.mxu0 0.0
        %4763 = vmatprep.subr.mxu0 0.0
        %4764 = vmatpush1.msra.mxu0 0.0
        %4765 = vmatprep.subr.mxu0 0.0
        %4766 = vmatpush1.msra.mxu0 0.0
        %4767 = vmatprep.subr.mxu0 0.0
        %4768 = vmatpush1.msra.mxu0 0.0
        %4769 = vmatprep.subr.mxu0 0.0
        %4770 = vmatpush1.msra.mxu0 0.0
        %4771 = vmatprep.subr.mxu0 0.0
        %4772 = vmatpush1.msra.mxu0 0.0
        %4773 = vmatprep.subr.mxu0 0.0
        %4774 = vmatpush1.msra.mxu0 0.0
        %4775 = vmatprep.subr.mxu0 0.0
        %4776 = vmatpush1.msra.mxu0 0.0
        %4777 = vmatprep.subr.mxu0 0.0
        %4778 = vmatpush1.msra.mxu0 0.0
        %4779 = vmatprep.subr.mxu0 0.0
        %4780 = vmatpush1.msra.mxu0 0.0
        %4781 = vmatprep.subr.mxu0 0.0
        %4782 = vmatpush1.msra.mxu0 0.0
        %4783 = vmatprep.subr.mxu0 0.0
        %4784 = vmatpush1.msra.mxu0 0.0
        %4785 = vmatprep.subr.mxu0 0.0
        %4786 = vmatpush1.msra.mxu0 0.0
        %4787 = vmatprep.subr.mxu0 0.0
        %4788 = vmatpush1.msra.mxu0 0.0
        %4789 = vmatprep.subr.mxu0 0.0
        %4790 = vmatpush1.msra.mxu0 0.0
        %4791 = vmatprep.subr.mxu0 0.0
        %4792 = vmatpush1.msra.mxu0 0.0
        %4793 = vmatprep.subr.mxu0 0.0
        %4794 = vmatpush1.msra.mxu0 0.0
        %4795 = vmatprep.subr.mxu0 0.0
        %4796 = vmatpush1.msra.mxu0 0.0
        %4797 = vmatprep.mubr.f32.mxu0 0.0
        %4798 = vmatmul.mubr.f32.gmra.mrb[0].mxu0 %v471
        %v4799 = vpop.f32.mrb[0].mxu0
        %v4800 = vadd.f32 %v4245, %v4799
        %v4801 = vpop.f32.mrb[0].mxu0
        %v4802 = vadd.f32 %v4249, %v4801
        %4803 = vmatprep.mubr.f32.mxu0 0.0
        %4804 = vmatmul.mubr.f32.gmra.mrb[0].mxu0 %v474
        %v4805 = vpop.f32.mrb[0].mxu0
        %v4806 = vadd.f32 %v4245, %v4805
        %v4807 = vpop.f32.mrb[0].mxu0
        %v4808 = vadd.f32 %v4249, %v4807
        %4809 = vmatprep.mubr.f32.mxu0 0.0
        %4810 = vmatmul.mubr.f32.gmra.mrb[0].mxu0 %v477
        %v4811 = vpop.f32.mrb[0].mxu0
        %v4812 = vadd.f32 %v4245, %v4811
        %v4813 = vpop.f32.mrb[0].mxu0
        %v4814 = vadd.f32 %v4249, %v4813
        %4815 = vmatprep.mubr.f32.mxu0 0.0
        %4816 = vmatmul.mubr.f32.gmra.mrb[0].mxu0 %v480
        %v4817 = vpop.f32.mrb[0].mxu0
        %v4818 = vadd.f32 %v4245, %v4817
        %v4819 = vpop.f32.mrb[0].mxu0
        %v4820 = vadd.f32 %v4249, %v4819
        %4821 = vmatprep.mubr.f32.mxu0 0.0
        %4822 = vmatmul.mubr.f32.gmra.mrb[0].mxu0 %v483
        %v4823 = vpop.f32.mrb[0].mxu0
        %v4824 = vadd.f32 %v4245, %v4823
        %v4825 = vpop.f32.mrb[0].mxu0
        %v4826 = vadd.f32 %v4249, %v4825
        %4827 = vmatprep.mubr.f32.mxu0 0.0
        %4828 = vmatmul.mubr.f32.gmra.mrb[0].mxu0 %v486
        %v4829 = vpop.f32.mrb[0].mxu0
        %v4830 = vadd.f32 %v4245, %v4829
        %v4831 = vpop.f32.mrb[0].mxu0
        %v4832 = vadd.f32 %v4249, %v4831
        %4833 = vmatprep.mubr.f32.mxu0 0.0
        %4834 = vmatmul.mubr.f32.gmra.mrb[0].mxu0 %v489
        %v4835 = vpop.f32.mrb[0].mxu0
        %v4836 = vadd.f32 %v4245, %v4835
        %v4837 = vpop.f32.mrb[0].mxu0
        %v4838 = vadd.f32 %v4249, %v4837
        %4839 = vmatprep.mubr.f32.mxu0 0.0
        %4840 = vmatmul.mubr.f32.gmra.mrb[0].mxu0 %v492
        %v4841 = vpop.f32.mrb[0].mxu0
        %v4842 = vadd.f32 %v4245, %v4841
        %v4843 = vpop.f32.mrb[0].mxu0
        %v4844 = vadd.f32 %v4249, %v4843
        %4845 = vmatprep.mubr.f32.mxu0 0.0
        %4846 = vmatmul.mubr.f32.gmra.mrb[0].mxu0 %v495
        %v4847 = vpop.f32.mrb[0].mxu0
        %v4848 = vadd.f32 %v4245, %v4847
        %v4849 = vpop.f32.mrb[0].mxu0
        %v4850 = vadd.f32 %v4249, %v4849
        %4851 = vmatprep.mubr.f32.mxu0 0.0
        %4852 = vmatmul.mubr.f32.gmra.mrb[0].mxu0 %v498
        %v4853 = vpop.f32.mrb[0].mxu0
        %v4854 = vadd.f32 %v4245, %v4853
        %v4855 = vpop.f32.mrb[0].mxu0
        %v4856 = vadd.f32 %v4249, %v4855
        %4857 = vmatprep.mubr.f32.mxu0 0.0
        %4858 = vmatmul.mubr.f32.gmra.mrb[0].mxu0 %v501
        %v4859 = vpop.f32.mrb[0].mxu0
        %v4860 = vadd.f32 %v4245, %v4859
        %v4861 = vpop.f32.mrb[0].mxu0
        %v4862 = vadd.f32 %v4249, %v4861
        %4863 = vmatprep.mubr.f32.mxu0 0.0
        %4864 = vmatmul.mubr.f32.gmra.mrb[0].mxu0 %v504
        %v4865 = vpop.f32.mrb[0].mxu0
        %v4866 = vadd.f32 %v4245, %v4865
        %v4867 = vpop.f32.mrb[0].mxu0
        %v4868 = vadd.f32 %v4249, %v4867
        %4869 = vmatprep.mubr.f32.mxu0 0.0
        %4870 = vmatmul.mubr.f32.gmra.mrb[0].mxu0 %v507
        %v4871 = vpop.f32.mrb[0].mxu0
        %v4872 = vadd.f32 %v4245, %v4871
        %v4873 = vpop.f32.mrb[0].mxu0
        %v4874 = vadd.f32 %v4249, %v4873
        %4875 = vmatprep.mubr.f32.mxu0 0.0
        %4876 = vmatmul.mubr.f32.gmra.mrb[0].mxu0 %v510
        %v4877 = vpop.f32.mrb[0].mxu0
        %v4878 = vadd.f32 %v4245, %v4877
        %v4879 = vpop.f32.mrb[0].mxu0
        %v4880 = vadd.f32 %v4249, %v4879
        %4881 = vmatprep.mubr.f32.mxu0 0.0
        %4882 = vmatmul.mubr.f32.gmra.mrb[0].mxu0 %v513
        %v4883 = vpop.f32.mrb[0].mxu0
        %v4884 = vadd.f32 %v4245, %v4883
        %v4885 = vpop.f32.mrb[0].mxu0
        %v4886 = vadd.f32 %v4249, %v4885
        %4887 = vmatprep.mubr.f32.mxu0 0.0
        %4888 = vmatmul.mubr.f32.gmra.mrb[0].mxu0 %v516
        %v4889 = vpop.f32.mrb[0].mxu0
        %v4890 = vadd.f32 %v4245, %v4889
        %v4891 = vpop.f32.mrb[0].mxu0
        %v4892 = vadd.f32 %v4249, %v4891
        %4893 = vdwg.mxu0
        %vm4894 = vcmp.eq.s32.totalorder %v381, 4
        %vm4895 = vcmp.eq.s32.totalorder %v382, 4
        %vm4896 = vcmp.eq.s32.totalorder %v383, 4
        %vm4897 = vcmp.eq.s32.totalorder %v384, 4
        %vm4898 = vcmp.eq.s32.totalorder %v385, 4
        %vm4899 = vcmp.eq.s32.totalorder %v386, 4
        %vm4900 = vcmp.eq.s32.totalorder %v387, 4
        %vm4901 = vcmp.eq.s32.totalorder %v388, 4
        %vm4902 = vcmp.eq.s32.totalorder %v389, 4
        %vm4903 = vcmp.eq.s32.totalorder %v390, 4
        %vm4904 = vcmp.eq.s32.totalorder %v391, 4
        %vm4905 = vcmp.eq.s32.totalorder %v392, 4
        %vm4906 = vcmp.eq.s32.totalorder %v393, 4
        %vm4907 = vcmp.eq.s32.totalorder %v394, 4
        %vm4908 = vcmp.eq.s32.totalorder %v395, 4
        %vm4909 = vcmp.eq.s32.totalorder %v396, 4
        %v4910 = vsel %vm4894, 1, 0
        %v4911 = vsel %vm4895, 1, 0
        %v4912 = vsel %vm4896, 1, 0
        %v4913 = vsel %vm4897, 1, 0
        %v4914 = vsel %vm4898, 1, 0
        %v4915 = vsel %vm4899, 1, 0
        %v4916 = vsel %vm4900, 1, 0
        %v4917 = vsel %vm4901, 1, 0
        %v4918 = vsel %vm4902, 1, 0
        %v4919 = vsel %vm4903, 1, 0
        %v4920 = vsel %vm4904, 1, 0
        %v4921 = vsel %vm4905, 1, 0
        %v4922 = vsel %vm4906, 1, 0
        %v4923 = vsel %vm4907, 1, 0
        %v4924 = vsel %vm4908, 1, 0
        %v4925 = vsel %vm4909, 1, 0
        %4926 = vset.pattern.permute.xlu0 31
        %4927 = vperm.xlu0 %4926, %v4910
        %v4928 = vpop.permute.xlu0 %4927
        %4929 = vset.pattern.permute.xlu0 31
        %4930 = vperm.xlu0 %4929, %v4911
        %v4931 = vpop.permute.xlu0 %4930
        %4932 = vset.pattern.permute.xlu0 31
        %4933 = vperm.xlu0 %4932, %v4912
        %v4934 = vpop.permute.xlu0 %4933
        %4935 = vset.pattern.permute.xlu0 31
        %4936 = vperm.xlu0 %4935, %v4913
        %v4937 = vpop.permute.xlu0 %4936
        %4938 = vset.pattern.permute.xlu0 31
        %4939 = vperm.xlu0 %4938, %v4914
        %v4940 = vpop.permute.xlu0 %4939
        %4941 = vset.pattern.permute.xlu0 31
        %4942 = vperm.xlu0 %4941, %v4915
        %v4943 = vpop.permute.xlu0 %4942
        %4944 = vset.pattern.permute.xlu0 31
        %4945 = vperm.xlu0 %4944, %v4916
        %v4946 = vpop.permute.xlu0 %4945
        %4947 = vset.pattern.permute.xlu0 31
        %4948 = vperm.xlu0 %4947, %v4917
        %v4949 = vpop.permute.xlu0 %4948
        %4950 = vset.pattern.permute.xlu0 31
        %4951 = vperm.xlu0 %4950, %v4918
        %v4952 = vpop.permute.xlu0 %4951
        %4953 = vset.pattern.permute.xlu0 31
        %4954 = vperm.xlu0 %4953, %v4919
        %v4955 = vpop.permute.xlu0 %4954
        %4956 = vset.pattern.permute.xlu0 31
        %4957 = vperm.xlu0 %4956, %v4920
        %v4958 = vpop.permute.xlu0 %4957
        %4959 = vset.pattern.permute.xlu0 31
        %4960 = vperm.xlu0 %4959, %v4921
        %v4961 = vpop.permute.xlu0 %4960
        %4962 = vset.pattern.permute.xlu0 31
        %4963 = vperm.xlu0 %4962, %v4922
        %v4964 = vpop.permute.xlu0 %4963
        %4965 = vset.pattern.permute.xlu0 31
        %4966 = vperm.xlu0 %4965, %v4923
        %v4967 = vpop.permute.xlu0 %4966
        %4968 = vset.pattern.permute.xlu0 31
        %4969 = vperm.xlu0 %4968, %v4924
        %v4970 = vpop.permute.xlu0 %4969
        %4971 = vset.pattern.permute.xlu0 31
        %4972 = vperm.xlu0 %4971, %v4925
        %v4973 = vpop.permute.xlu0 %4972
        %vm4974 = vcmp.eq.s32.totalorder %v4928, 1
        %vm4975 = vcmp.eq.s32.totalorder %v4931, 1
        %vm4976 = vcmp.eq.s32.totalorder %v4934, 1
        %vm4977 = vcmp.eq.s32.totalorder %v4937, 1
        %vm4978 = vcmp.eq.s32.totalorder %v4940, 1
        %vm4979 = vcmp.eq.s32.totalorder %v4943, 1
        %vm4980 = vcmp.eq.s32.totalorder %v4946, 1
        %vm4981 = vcmp.eq.s32.totalorder %v4949, 1
        %vm4982 = vcmp.eq.s32.totalorder %v4952, 1
        %vm4983 = vcmp.eq.s32.totalorder %v4955, 1
        %vm4984 = vcmp.eq.s32.totalorder %v4958, 1
        %vm4985 = vcmp.eq.s32.totalorder %v4961, 1
        %vm4986 = vcmp.eq.s32.totalorder %v4964, 1
        %vm4987 = vcmp.eq.s32.totalorder %v4967, 1
        %vm4988 = vcmp.eq.s32.totalorder %v4970, 1
        %vm4989 = vcmp.eq.s32.totalorder %v4973, 1
        %v4990 = vsel %vm4974, %v4317, %v4057
        %v4991 = vsel %vm4974, %v4319, %v4058
        %v4992 = vsel %vm4974, %v4478, %v4059
        %v4993 = vsel %vm4974, %v4480, %v4060
        %v4994 = vsel %vm4974, %v4639, %v4061
        %v4995 = vsel %vm4974, %v4641, %v4062
        %v4996 = vsel %vm4974, %v4800, %v4063
        %v4997 = vsel %vm4974, %v4802, %v4064
        %v4998 = vsel %vm4975, %v4323, %v4065
        %v4999 = vsel %vm4975, %v4325, %v4066
        %v5000 = vsel %vm4975, %v4484, %v4067
        %v5001 = vsel %vm4975, %v4486, %v4068
        %v5002 = vsel %vm4975, %v4645, %v4069
        %v5003 = vsel %vm4975, %v4647, %v4070
        %v5004 = vsel %vm4975, %v4806, %v4071
        %v5005 = vsel %vm4975, %v4808, %v4072
        %v5006 = vsel %vm4976, %v4329, %v4073
        %v5007 = vsel %vm4976, %v4331, %v4074
        %v5008 = vsel %vm4976, %v4490, %v4075
        %v5009 = vsel %vm4976, %v4492, %v4076
        %v5010 = vsel %vm4976, %v4651, %v4077
        %v5011 = vsel %vm4976, %v4653, %v4078
        %v5012 = vsel %vm4976, %v4812, %v4079
        %v5013 = vsel %vm4976, %v4814, %v4080
        %v5014 = vsel %vm4977, %v4335, %v4081
        %v5015 = vsel %vm4977, %v4337, %v4082
        %v5016 = vsel %vm4977, %v4496, %v4083
        %v5017 = vsel %vm4977, %v4498, %v4084
        %v5018 = vsel %vm4977, %v4657, %v4085
        %v5019 = vsel %vm4977, %v4659, %v4086
        %v5020 = vsel %vm4977, %v4818, %v4087
        %v5021 = vsel %vm4977, %v4820, %v4088
        %v5022 = vsel %vm4978, %v4341, %v4089
        %v5023 = vsel %vm4978, %v4343, %v4090
        %v5024 = vsel %vm4978, %v4502, %v4091
        %v5025 = vsel %vm4978, %v4504, %v4092
        %v5026 = vsel %vm4978, %v4663, %v4093
        %v5027 = vsel %vm4978, %v4665, %v4094
        %v5028 = vsel %vm4978, %v4824, %v4095
        %v5029 = vsel %vm4978, %v4826, %v4096
        %v5030 = vsel %vm4979, %v4347, %v4097
        %v5031 = vsel %vm4979, %v4349, %v4098
        %v5032 = vsel %vm4979, %v4508, %v4099
        %v5033 = vsel %vm4979, %v4510, %v4100
        %v5034 = vsel %vm4979, %v4669, %v4101
        %v5035 = vsel %vm4979, %v4671, %v4102
        %v5036 = vsel %vm4979, %v4830, %v4103
        %v5037 = vsel %vm4979, %v4832, %v4104
        %v5038 = vsel %vm4980, %v4353, %v4105
        %v5039 = vsel %vm4980, %v4355, %v4106
        %v5040 = vsel %vm4980, %v4514, %v4107
        %v5041 = vsel %vm4980, %v4516, %v4108
        %v5042 = vsel %vm4980, %v4675, %v4109
        %v5043 = vsel %vm4980, %v4677, %v4110
        %v5044 = vsel %vm4980, %v4836, %v4111
        %v5045 = vsel %vm4980, %v4838, %v4112
        %v5046 = vsel %vm4981, %v4359, %v4113
        %v5047 = vsel %vm4981, %v4361, %v4114
        %v5048 = vsel %vm4981, %v4520, %v4115
        %v5049 = vsel %vm4981, %v4522, %v4116
        %v5050 = vsel %vm4981, %v4681, %v4117
        %v5051 = vsel %vm4981, %v4683, %v4118
        %v5052 = vsel %vm4981, %v4842, %v4119
        %v5053 = vsel %vm4981, %v4844, %v4120
        %v5054 = vsel %vm4982, %v4365, %v4121
        %v5055 = vsel %vm4982, %v4367, %v4122
        %v5056 = vsel %vm4982, %v4526, %v4123
        %v5057 = vsel %vm4982, %v4528, %v4124
        %v5058 = vsel %vm4982, %v4687, %v4125
        %v5059 = vsel %vm4982, %v4689, %v4126
        %v5060 = vsel %vm4982, %v4848, %v4127
        %v5061 = vsel %vm4982, %v4850, %v4128
        %v5062 = vsel %vm4983, %v4371, %v4129
        %v5063 = vsel %vm4983, %v4373, %v4130
        %v5064 = vsel %vm4983, %v4532, %v4131
        %v5065 = vsel %vm4983, %v4534, %v4132
        %v5066 = vsel %vm4983, %v4693, %v4133
        %v5067 = vsel %vm4983, %v4695, %v4134
        %v5068 = vsel %vm4983, %v4854, %v4135
        %v5069 = vsel %vm4983, %v4856, %v4136
        %v5070 = vsel %vm4984, %v4377, %v4137
        %v5071 = vsel %vm4984, %v4379, %v4138
        %v5072 = vsel %vm4984, %v4538, %v4139
        %v5073 = vsel %vm4984, %v4540, %v4140
        %v5074 = vsel %vm4984, %v4699, %v4141
        %v5075 = vsel %vm4984, %v4701, %v4142
        %v5076 = vsel %vm4984, %v4860, %v4143
        %v5077 = vsel %vm4984, %v4862, %v4144
        %v5078 = vsel %vm4985, %v4383, %v4145
        %v5079 = vsel %vm4985, %v4385, %v4146
        %v5080 = vsel %vm4985, %v4544, %v4147
        %v5081 = vsel %vm4985, %v4546, %v4148
        %v5082 = vsel %vm4985, %v4705, %v4149
        %v5083 = vsel %vm4985, %v4707, %v4150
        %v5084 = vsel %vm4985, %v4866, %v4151
        %v5085 = vsel %vm4985, %v4868, %v4152
        %v5086 = vsel %vm4986, %v4389, %v4153
        %v5087 = vsel %vm4986, %v4391, %v4154
        %v5088 = vsel %vm4986, %v4550, %v4155
        %v5089 = vsel %vm4986, %v4552, %v4156
        %v5090 = vsel %vm4986, %v4711, %v4157
        %v5091 = vsel %vm4986, %v4713, %v4158
        %v5092 = vsel %vm4986, %v4872, %v4159
        %v5093 = vsel %vm4986, %v4874, %v4160
        %v5094 = vsel %vm4987, %v4395, %v4161
        %v5095 = vsel %vm4987, %v4397, %v4162
        %v5096 = vsel %vm4987, %v4556, %v4163
        %v5097 = vsel %vm4987, %v4558, %v4164
        %v5098 = vsel %vm4987, %v4717, %v4165
        %v5099 = vsel %vm4987, %v4719, %v4166
        %v5100 = vsel %vm4987, %v4878, %v4167
        %v5101 = vsel %vm4987, %v4880, %v4168
        %v5102 = vsel %vm4988, %v4401, %v4169
        %v5103 = vsel %vm4988, %v4403, %v4170
        %v5104 = vsel %vm4988, %v4562, %v4171
        %v5105 = vsel %vm4988, %v4564, %v4172
        %v5106 = vsel %vm4988, %v4723, %v4173
        %v5107 = vsel %vm4988, %v4725, %v4174
        %v5108 = vsel %vm4988, %v4884, %v4175
        %v5109 = vsel %vm4988, %v4886, %v4176
        %v5110 = vsel %vm4989, %v4407, %v4177
        %v5111 = vsel %vm4989, %v4409, %v4178
        %v5112 = vsel %vm4989, %v4568, %v4179
        %v5113 = vsel %vm4989, %v4570, %v4180
        %v5114 = vsel %vm4989, %v4729, %v4181
        %v5115 = vsel %vm4989, %v4731, %v4182
        %v5116 = vsel %vm4989, %v4890, %v4183
        %v5117 = vsel %vm4989, %v4892, %v4184
        %v5118 = vcombine.low %v4990, %v4992
        %v5119 = vcombine.high %v4990, %v4992
        %v5121 = vunpack.c.l.s4 1983009808
        %v5122 = vunpack.c.0.s8 %v5121
        %v5123 = vlaneseq
        %v5124 = vshrl.u32 %v5123, 7
        %v5125 = vsub.s32 %v5122, %v5124
        %v5126 = vrot.slane %v5118, %v5125
        %v5128 = vunpack.c.l.s4 1983009808
        %v5129 = vunpack.c.0.s8 %v5128
        %v5130 = vlaneseq
        %v5131 = vshrl.u32 %v5130, 7
        %v5132 = vsub.s32 %v5129, %v5131
        %v5133 = vrot.slane %v5119, %v5132
        %v5134 = vcombine.low %v4991, %v4993
        %v5135 = vcombine.high %v4991, %v4993
        %v5137 = vunpack.c.l.s4 1983009808
        %v5138 = vunpack.c.0.s8 %v5137
        %v5139 = vlaneseq
        %v5140 = vshrl.u32 %v5139, 7
        %v5141 = vsub.s32 %v5138, %v5140
        %v5142 = vrot.slane %v5134, %v5141
        %v5144 = vunpack.c.l.s4 1983009808
        %v5145 = vunpack.c.0.s8 %v5144
        %v5146 = vlaneseq
        %v5147 = vshrl.u32 %v5146, 7
        %v5148 = vsub.s32 %v5145, %v5147
        %v5149 = vrot.slane %v5135, %v5148
        %v5150 = vcombine.low %v4994, %v4996
        %v5151 = vcombine.high %v4994, %v4996
        %v5153 = vunpack.c.l.s4 1983009808
        %v5154 = vunpack.c.0.s8 %v5153
        %v5155 = vlaneseq
        %v5156 = vshrl.u32 %v5155, 7
        %v5157 = vsub.s32 %v5154, %v5156
        %v5158 = vrot.slane %v5150, %v5157
        %v5160 = vunpack.c.l.s4 1983009808
        %v5161 = vunpack.c.0.s8 %v5160
        %v5162 = vlaneseq
        %v5163 = vshrl.u32 %v5162, 7
        %v5164 = vsub.s32 %v5161, %v5163
        %v5165 = vrot.slane %v5151, %v5164
        %v5166 = vcombine.low %v4995, %v4997
        %v5167 = vcombine.high %v4995, %v4997
        %v5169 = vunpack.c.l.s4 1983009808
        %v5170 = vunpack.c.0.s8 %v5169
        %v5171 = vlaneseq
        %v5172 = vshrl.u32 %v5171, 7
        %v5173 = vsub.s32 %v5170, %v5172
        %v5174 = vrot.slane %v5166, %v5173
        %v5176 = vunpack.c.l.s4 1983009808
        %v5177 = vunpack.c.0.s8 %v5176
        %v5178 = vlaneseq
        %v5179 = vshrl.u32 %v5178, 7
        %v5180 = vsub.s32 %v5177, %v5179
        %v5181 = vrot.slane %v5167, %v5180
        %v5182 = vcombine.low %v5126, %v5142
        %v5183 = vcombine.high %v5126, %v5142
        %v5185 = vunpack.c.l.s4 1934713408
        %v5186 = vunpack.c.0.s8 %v5185
        %v5187 = vlaneseq
        %v5188 = vshrl.u32 %v5187, 7
        %v5189 = vsub.s32 %v5186, %v5188
        %v5190 = vrot.slane %v5182, %v5189
        %v5192 = vunpack.c.l.s4 1934713408
        %v5193 = vunpack.c.0.s8 %v5192
        %v5194 = vlaneseq
        %v5195 = vshrl.u32 %v5194, 7
        %v5196 = vsub.s32 %v5193, %v5195
        %v5197 = vrot.slane %v5183, %v5196
        %v5198 = vcombine.low %v5133, %v5149
        %v5199 = vcombine.high %v5133, %v5149
        %v5201 = vunpack.c.l.s4 1934713408
        %v5202 = vunpack.c.0.s8 %v5201
        %v5203 = vlaneseq
        %v5204 = vshrl.u32 %v5203, 7
        %v5205 = vsub.s32 %v5202, %v5204
        %v5206 = vrot.slane %v5198, %v5205
        %v5208 = vunpack.c.l.s4 1934713408
        %v5209 = vunpack.c.0.s8 %v5208
        %v5210 = vlaneseq
        %v5211 = vshrl.u32 %v5210, 7
        %v5212 = vsub.s32 %v5209, %v5211
        %v5213 = vrot.slane %v5199, %v5212
        %v5214 = vcombine.low %v5158, %v5174
        %v5215 = vcombine.high %v5158, %v5174
        %v5217 = vunpack.c.l.s4 1934713408
        %v5218 = vunpack.c.0.s8 %v5217
        %v5219 = vlaneseq
        %v5220 = vshrl.u32 %v5219, 7
        %v5221 = vsub.s32 %v5218, %v5220
        %v5222 = vrot.slane %v5214, %v5221
        %v5224 = vunpack.c.l.s4 1934713408
        %v5225 = vunpack.c.0.s8 %v5224
        %v5226 = vlaneseq
        %v5227 = vshrl.u32 %v5226, 7
        %v5228 = vsub.s32 %v5225, %v5227
        %v5229 = vrot.slane %v5215, %v5228
        %v5230 = vcombine.low %v5165, %v5181
        %v5231 = vcombine.high %v5165, %v5181
        %v5233 = vunpack.c.l.s4 1934713408
        %v5234 = vunpack.c.0.s8 %v5233
        %v5235 = vlaneseq
        %v5236 = vshrl.u32 %v5235, 7
        %v5237 = vsub.s32 %v5234, %v5236
        %v5238 = vrot.slane %v5230, %v5237
        %v5240 = vunpack.c.l.s4 1934713408
        %v5241 = vunpack.c.0.s8 %v5240
        %v5242 = vlaneseq
        %v5243 = vshrl.u32 %v5242, 7
        %v5244 = vsub.s32 %v5241, %v5243
        %v5245 = vrot.slane %v5231, %v5244
        %v5246 = vcombine.low %v5190, %v5222
        %v5247 = vcombine.high %v5190, %v5222
        %v5248 = vcombine.low %v5197, %v5229
        %v5249 = vcombine.high %v5197, %v5229
        %v5250 = vcombine.low %v5206, %v5238
        %v5251 = vcombine.high %v5206, %v5238
        %v5252 = vcombine.low %v5213, %v5245
        %v5253 = vcombine.high %v5213, %v5245
        %v5254 = vcombine.low %v4998, %v5000
        %v5255 = vcombine.high %v4998, %v5000
        %v5257 = vunpack.c.l.s4 1983009808
        %v5258 = vunpack.c.0.s8 %v5257
        %v5259 = vlaneseq
        %v5260 = vshrl.u32 %v5259, 7
        %v5261 = vsub.s32 %v5258, %v5260
        %v5262 = vrot.slane %v5254, %v5261
        %v5264 = vunpack.c.l.s4 1983009808
        %v5265 = vunpack.c.0.s8 %v5264
        %v5266 = vlaneseq
        %v5267 = vshrl.u32 %v5266, 7
        %v5268 = vsub.s32 %v5265, %v5267
        %v5269 = vrot.slane %v5255, %v5268
        %v5270 = vcombine.low %v4999, %v5001
        %v5271 = vcombine.high %v4999, %v5001
        %v5273 = vunpack.c.l.s4 1983009808
        %v5274 = vunpack.c.0.s8 %v5273
        %v5275 = vlaneseq
        %v5276 = vshrl.u32 %v5275, 7
        %v5277 = vsub.s32 %v5274, %v5276
        %v5278 = vrot.slane %v5270, %v5277
        %v5280 = vunpack.c.l.s4 1983009808
        %v5281 = vunpack.c.0.s8 %v5280
        %v5282 = vlaneseq
        %v5283 = vshrl.u32 %v5282, 7
        %v5284 = vsub.s32 %v5281, %v5283
        %v5285 = vrot.slane %v5271, %v5284
        %v5286 = vcombine.low %v5002, %v5004
        %v5287 = vcombine.high %v5002, %v5004
        %v5289 = vunpack.c.l.s4 1983009808
        %v5290 = vunpack.c.0.s8 %v5289
        %v5291 = vlaneseq
        %v5292 = vshrl.u32 %v5291, 7
        %v5293 = vsub.s32 %v5290, %v5292
        %v5294 = vrot.slane %v5286, %v5293
        %v5296 = vunpack.c.l.s4 1983009808
        %v5297 = vunpack.c.0.s8 %v5296
        %v5298 = vlaneseq
        %v5299 = vshrl.u32 %v5298, 7
        %v5300 = vsub.s32 %v5297, %v5299
        %v5301 = vrot.slane %v5287, %v5300
        %v5302 = vcombine.low %v5003, %v5005
        %v5303 = vcombine.high %v5003, %v5005
        %v5305 = vunpack.c.l.s4 1983009808
        %v5306 = vunpack.c.0.s8 %v5305
        %v5307 = vlaneseq
        %v5308 = vshrl.u32 %v5307, 7
        %v5309 = vsub.s32 %v5306, %v5308
        %v5310 = vrot.slane %v5302, %v5309
        %v5312 = vunpack.c.l.s4 1983009808
        %v5313 = vunpack.c.0.s8 %v5312
        %v5314 = vlaneseq
        %v5315 = vshrl.u32 %v5314, 7
        %v5316 = vsub.s32 %v5313, %v5315
        %v5317 = vrot.slane %v5303, %v5316
        %v5318 = vcombine.low %v5262, %v5278
        %v5319 = vcombine.high %v5262, %v5278
        %v5321 = vunpack.c.l.s4 1934713408
        %v5322 = vunpack.c.0.s8 %v5321
        %v5323 = vlaneseq
        %v5324 = vshrl.u32 %v5323, 7
        %v5325 = vsub.s32 %v5322, %v5324
        %v5326 = vrot.slane %v5318, %v5325
        %v5328 = vunpack.c.l.s4 1934713408
        %v5329 = vunpack.c.0.s8 %v5328
        %v5330 = vlaneseq
        %v5331 = vshrl.u32 %v5330, 7
        %v5332 = vsub.s32 %v5329, %v5331
        %v5333 = vrot.slane %v5319, %v5332
        %v5334 = vcombine.low %v5269, %v5285
        %v5335 = vcombine.high %v5269, %v5285
        %v5337 = vunpack.c.l.s4 1934713408
        %v5338 = vunpack.c.0.s8 %v5337
        %v5339 = vlaneseq
        %v5340 = vshrl.u32 %v5339, 7
        %v5341 = vsub.s32 %v5338, %v5340
        %v5342 = vrot.slane %v5334, %v5341
        %v5344 = vunpack.c.l.s4 1934713408
        %v5345 = vunpack.c.0.s8 %v5344
        %v5346 = vlaneseq
        %v5347 = vshrl.u32 %v5346, 7
        %v5348 = vsub.s32 %v5345, %v5347
        %v5349 = vrot.slane %v5335, %v5348
        %v5350 = vcombine.low %v5294, %v5310
        %v5351 = vcombine.high %v5294, %v5310
        %v5353 = vunpack.c.l.s4 1934713408
        %v5354 = vunpack.c.0.s8 %v5353
        %v5355 = vlaneseq
        %v5356 = vshrl.u32 %v5355, 7
        %v5357 = vsub.s32 %v5354, %v5356
        %v5358 = vrot.slane %v5350, %v5357
        %v5360 = vunpack.c.l.s4 1934713408
        %v5361 = vunpack.c.0.s8 %v5360
        %v5362 = vlaneseq
        %v5363 = vshrl.u32 %v5362, 7
        %v5364 = vsub.s32 %v5361, %v5363
        %v5365 = vrot.slane %v5351, %v5364
        %v5366 = vcombine.low %v5301, %v5317
        %v5367 = vcombine.high %v5301, %v5317
        %v5369 = vunpack.c.l.s4 1934713408
        %v5370 = vunpack.c.0.s8 %v5369
        %v5371 = vlaneseq
        %v5372 = vshrl.u32 %v5371, 7
        %v5373 = vsub.s32 %v5370, %v5372
        %v5374 = vrot.slane %v5366, %v5373
        %v5376 = vunpack.c.l.s4 1934713408
        %v5377 = vunpack.c.0.s8 %v5376
        %v5378 = vlaneseq
        %v5379 = vshrl.u32 %v5378, 7
        %v5380 = vsub.s32 %v5377, %v5379
        %v5381 = vrot.slane %v5367, %v5380
        %v5382 = vcombine.low %v5326, %v5358
        %v5383 = vcombine.high %v5326, %v5358
        %v5384 = vcombine.low %v5333, %v5365
        %v5385 = vcombine.high %v5333, %v5365
        %v5386 = vcombine.low %v5342, %v5374
        %v5387 = vcombine.high %v5342, %v5374
        %v5388 = vcombine.low %v5349, %v5381
        %v5389 = vcombine.high %v5349, %v5381
        %v5390 = vcombine.low %v5006, %v5008
        %v5391 = vcombine.high %v5006, %v5008
        %v5393 = vunpack.c.l.s4 1983009808
        %v5394 = vunpack.c.0.s8 %v5393
        %v5395 = vlaneseq
        %v5396 = vshrl.u32 %v5395, 7
        %v5397 = vsub.s32 %v5394, %v5396
        %v5398 = vrot.slane %v5390, %v5397
        %v5400 = vunpack.c.l.s4 1983009808
        %v5401 = vunpack.c.0.s8 %v5400
        %v5402 = vlaneseq
        %v5403 = vshrl.u32 %v5402, 7
        %v5404 = vsub.s32 %v5401, %v5403
        %v5405 = vrot.slane %v5391, %v5404
        %v5406 = vcombine.low %v5007, %v5009
        %v5407 = vcombine.high %v5007, %v5009
        %v5409 = vunpack.c.l.s4 1983009808
        %v5410 = vunpack.c.0.s8 %v5409
        %v5411 = vlaneseq
        %v5412 = vshrl.u32 %v5411, 7
        %v5413 = vsub.s32 %v5410, %v5412
        %v5414 = vrot.slane %v5406, %v5413
        %v5416 = vunpack.c.l.s4 1983009808
        %v5417 = vunpack.c.0.s8 %v5416
        %v5418 = vlaneseq
        %v5419 = vshrl.u32 %v5418, 7
        %v5420 = vsub.s32 %v5417, %v5419
        %v5421 = vrot.slane %v5407, %v5420
        %v5422 = vcombine.low %v5010, %v5012
        %v5423 = vcombine.high %v5010, %v5012
        %v5425 = vunpack.c.l.s4 1983009808
        %v5426 = vunpack.c.0.s8 %v5425
        %v5427 = vlaneseq
        %v5428 = vshrl.u32 %v5427, 7
        %v5429 = vsub.s32 %v5426, %v5428
        %v5430 = vrot.slane %v5422, %v5429
        %v5432 = vunpack.c.l.s4 1983009808
        %v5433 = vunpack.c.0.s8 %v5432
        %v5434 = vlaneseq
        %v5435 = vshrl.u32 %v5434, 7
        %v5436 = vsub.s32 %v5433, %v5435
        %v5437 = vrot.slane %v5423, %v5436
        %v5438 = vcombine.low %v5011, %v5013
        %v5439 = vcombine.high %v5011, %v5013
        %v5441 = vunpack.c.l.s4 1983009808
        %v5442 = vunpack.c.0.s8 %v5441
        %v5443 = vlaneseq
        %v5444 = vshrl.u32 %v5443, 7
        %v5445 = vsub.s32 %v5442, %v5444
        %v5446 = vrot.slane %v5438, %v5445
        %v5448 = vunpack.c.l.s4 1983009808
        %v5449 = vunpack.c.0.s8 %v5448
        %v5450 = vlaneseq
        %v5451 = vshrl.u32 %v5450, 7
        %v5452 = vsub.s32 %v5449, %v5451
        %v5453 = vrot.slane %v5439, %v5452
        %v5454 = vcombine.low %v5398, %v5414
        %v5455 = vcombine.high %v5398, %v5414
        %v5457 = vunpack.c.l.s4 1934713408
        %v5458 = vunpack.c.0.s8 %v5457
        %v5459 = vlaneseq
        %v5460 = vshrl.u32 %v5459, 7
        %v5461 = vsub.s32 %v5458, %v5460
        %v5462 = vrot.slane %v5454, %v5461
        %v5464 = vunpack.c.l.s4 1934713408
        %v5465 = vunpack.c.0.s8 %v5464
        %v5466 = vlaneseq
        %v5467 = vshrl.u32 %v5466, 7
        %v5468 = vsub.s32 %v5465, %v5467
        %v5469 = vrot.slane %v5455, %v5468
        %v5470 = vcombine.low %v5405, %v5421
        %v5471 = vcombine.high %v5405, %v5421
        %v5473 = vunpack.c.l.s4 1934713408
        %v5474 = vunpack.c.0.s8 %v5473
        %v5475 = vlaneseq
        %v5476 = vshrl.u32 %v5475, 7
        %v5477 = vsub.s32 %v5474, %v5476
        %v5478 = vrot.slane %v5470, %v5477
        %v5480 = vunpack.c.l.s4 1934713408
        %v5481 = vunpack.c.0.s8 %v5480
        %v5482 = vlaneseq
        %v5483 = vshrl.u32 %v5482, 7
        %v5484 = vsub.s32 %v5481, %v5483
        %v5485 = vrot.slane %v5471, %v5484
        %v5486 = vcombine.low %v5430, %v5446
        %v5487 = vcombine.high %v5430, %v5446
        %v5489 = vunpack.c.l.s4 1934713408
        %v5490 = vunpack.c.0.s8 %v5489
        %v5491 = vlaneseq
        %v5492 = vshrl.u32 %v5491, 7
        %v5493 = vsub.s32 %v5490, %v5492
        %v5494 = vrot.slane %v5486, %v5493
        %v5496 = vunpack.c.l.s4 1934713408
        %v5497 = vunpack.c.0.s8 %v5496
        %v5498 = vlaneseq
        %v5499 = vshrl.u32 %v5498, 7
        %v5500 = vsub.s32 %v5497, %v5499
        %v5501 = vrot.slane %v5487, %v5500
        %v5502 = vcombine.low %v5437, %v5453
        %v5503 = vcombine.high %v5437, %v5453
        %v5505 = vunpack.c.l.s4 1934713408
        %v5506 = vunpack.c.0.s8 %v5505
        %v5507 = vlaneseq
        %v5508 = vshrl.u32 %v5507, 7
        %v5509 = vsub.s32 %v5506, %v5508
        %v5510 = vrot.slane %v5502, %v5509
        %v5512 = vunpack.c.l.s4 1934713408
        %v5513 = vunpack.c.0.s8 %v5512
        %v5514 = vlaneseq
        %v5515 = vshrl.u32 %v5514, 7
        %v5516 = vsub.s32 %v5513, %v5515
        %v5517 = vrot.slane %v5503, %v5516
        %v5518 = vcombine.low %v5462, %v5494
        %v5519 = vcombine.high %v5462, %v5494
        %v5520 = vcombine.low %v5469, %v5501
        %v5521 = vcombine.high %v5469, %v5501
        %v5522 = vcombine.low %v5478, %v5510
        %v5523 = vcombine.high %v5478, %v5510
        %v5524 = vcombine.low %v5485, %v5517
        %v5525 = vcombine.high %v5485, %v5517
        %v5526 = vcombine.low %v5014, %v5016
        %v5527 = vcombine.high %v5014, %v5016
        %v5529 = vunpack.c.l.s4 1983009808
        %v5530 = vunpack.c.0.s8 %v5529
        %v5531 = vlaneseq
        %v5532 = vshrl.u32 %v5531, 7
        %v5533 = vsub.s32 %v5530, %v5532
        %v5534 = vrot.slane %v5526, %v5533
        %v5536 = vunpack.c.l.s4 1983009808
        %v5537 = vunpack.c.0.s8 %v5536
        %v5538 = vlaneseq
        %v5539 = vshrl.u32 %v5538, 7
        %v5540 = vsub.s32 %v5537, %v5539
        %v5541 = vrot.slane %v5527, %v5540
        %v5542 = vcombine.low %v5015, %v5017
        %v5543 = vcombine.high %v5015, %v5017
        %v5545 = vunpack.c.l.s4 1983009808
        %v5546 = vunpack.c.0.s8 %v5545
        %v5547 = vlaneseq
        %v5548 = vshrl.u32 %v5547, 7
        %v5549 = vsub.s32 %v5546, %v5548
        %v5550 = vrot.slane %v5542, %v5549
        %v5552 = vunpack.c.l.s4 1983009808
        %v5553 = vunpack.c.0.s8 %v5552
        %v5554 = vlaneseq
        %v5555 = vshrl.u32 %v5554, 7
        %v5556 = vsub.s32 %v5553, %v5555
        %v5557 = vrot.slane %v5543, %v5556
        %v5558 = vcombine.low %v5018, %v5020
        %v5559 = vcombine.high %v5018, %v5020
        %v5561 = vunpack.c.l.s4 1983009808
        %v5562 = vunpack.c.0.s8 %v5561
        %v5563 = vlaneseq
        %v5564 = vshrl.u32 %v5563, 7
        %v5565 = vsub.s32 %v5562, %v5564
        %v5566 = vrot.slane %v5558, %v5565
        %v5568 = vunpack.c.l.s4 1983009808
        %v5569 = vunpack.c.0.s8 %v5568
        %v5570 = vlaneseq
        %v5571 = vshrl.u32 %v5570, 7
        %v5572 = vsub.s32 %v5569, %v5571
        %v5573 = vrot.slane %v5559, %v5572
        %v5574 = vcombine.low %v5019, %v5021
        %v5575 = vcombine.high %v5019, %v5021
        %v5577 = vunpack.c.l.s4 1983009808
        %v5578 = vunpack.c.0.s8 %v5577
        %v5579 = vlaneseq
        %v5580 = vshrl.u32 %v5579, 7
        %v5581 = vsub.s32 %v5578, %v5580
        %v5582 = vrot.slane %v5574, %v5581
        %v5584 = vunpack.c.l.s4 1983009808
        %v5585 = vunpack.c.0.s8 %v5584
        %v5586 = vlaneseq
        %v5587 = vshrl.u32 %v5586, 7
        %v5588 = vsub.s32 %v5585, %v5587
        %v5589 = vrot.slane %v5575, %v5588
        %v5590 = vcombine.low %v5534, %v5550
        %v5591 = vcombine.high %v5534, %v5550
        %v5593 = vunpack.c.l.s4 1934713408
        %v5594 = vunpack.c.0.s8 %v5593
        %v5595 = vlaneseq
        %v5596 = vshrl.u32 %v5595, 7
        %v5597 = vsub.s32 %v5594, %v5596
        %v5598 = vrot.slane %v5590, %v5597
        %v5600 = vunpack.c.l.s4 1934713408
        %v5601 = vunpack.c.0.s8 %v5600
        %v5602 = vlaneseq
        %v5603 = vshrl.u32 %v5602, 7
        %v5604 = vsub.s32 %v5601, %v5603
        %v5605 = vrot.slane %v5591, %v5604
        %v5606 = vcombine.low %v5541, %v5557
        %v5607 = vcombine.high %v5541, %v5557
        %v5609 = vunpack.c.l.s4 1934713408
        %v5610 = vunpack.c.0.s8 %v5609
        %v5611 = vlaneseq
        %v5612 = vshrl.u32 %v5611, 7
        %v5613 = vsub.s32 %v5610, %v5612
        %v5614 = vrot.slane %v5606, %v5613
        %v5616 = vunpack.c.l.s4 1934713408
        %v5617 = vunpack.c.0.s8 %v5616
        %v5618 = vlaneseq
        %v5619 = vshrl.u32 %v5618, 7
        %v5620 = vsub.s32 %v5617, %v5619
        %v5621 = vrot.slane %v5607, %v5620
        %v5622 = vcombine.low %v5566, %v5582
        %v5623 = vcombine.high %v5566, %v5582
        %v5625 = vunpack.c.l.s4 1934713408
        %v5626 = vunpack.c.0.s8 %v5625
        %v5627 = vlaneseq
        %v5628 = vshrl.u32 %v5627, 7
        %v5629 = vsub.s32 %v5626, %v5628
        %v5630 = vrot.slane %v5622, %v5629
        %v5632 = vunpack.c.l.s4 1934713408
        %v5633 = vunpack.c.0.s8 %v5632
        %v5634 = vlaneseq
        %v5635 = vshrl.u32 %v5634, 7
        %v5636 = vsub.s32 %v5633, %v5635
        %v5637 = vrot.slane %v5623, %v5636
        %v5638 = vcombine.low %v5573, %v5589
        %v5639 = vcombine.high %v5573, %v5589
        %v5641 = vunpack.c.l.s4 1934713408
        %v5642 = vunpack.c.0.s8 %v5641
        %v5643 = vlaneseq
        %v5644 = vshrl.u32 %v5643, 7
        %v5645 = vsub.s32 %v5642, %v5644
        %v5646 = vrot.slane %v5638, %v5645
        %v5648 = vunpack.c.l.s4 1934713408
        %v5649 = vunpack.c.0.s8 %v5648
        %v5650 = vlaneseq
        %v5651 = vshrl.u32 %v5650, 7
        %v5652 = vsub.s32 %v5649, %v5651
        %v5653 = vrot.slane %v5639, %v5652
        %v5654 = vcombine.low %v5598, %v5630
        %v5655 = vcombine.high %v5598, %v5630
        %v5656 = vcombine.low %v5605, %v5637
        %v5657 = vcombine.high %v5605, %v5637
        %v5658 = vcombine.low %v5614, %v5646
        %v5659 = vcombine.high %v5614, %v5646
        %v5660 = vcombine.low %v5621, %v5653
        %v5661 = vcombine.high %v5621, %v5653
        %v5662 = vcombine.low %v5022, %v5024
        %v5663 = vcombine.high %v5022, %v5024
        %v5665 = vunpack.c.l.s4 1983009808
        %v5666 = vunpack.c.0.s8 %v5665
        %v5667 = vlaneseq
        %v5668 = vshrl.u32 %v5667, 7
        %v5669 = vsub.s32 %v5666, %v5668
        %v5670 = vrot.slane %v5662, %v5669
        %v5672 = vunpack.c.l.s4 1983009808
        %v5673 = vunpack.c.0.s8 %v5672
        %v5674 = vlaneseq
        %v5675 = vshrl.u32 %v5674, 7
        %v5676 = vsub.s32 %v5673, %v5675
        %v5677 = vrot.slane %v5663, %v5676
        %v5678 = vcombine.low %v5023, %v5025
        %v5679 = vcombine.high %v5023, %v5025
        %v5681 = vunpack.c.l.s4 1983009808
        %v5682 = vunpack.c.0.s8 %v5681
        %v5683 = vlaneseq
        %v5684 = vshrl.u32 %v5683, 7
        %v5685 = vsub.s32 %v5682, %v5684
        %v5686 = vrot.slane %v5678, %v5685
        %v5688 = vunpack.c.l.s4 1983009808
        %v5689 = vunpack.c.0.s8 %v5688
        %v5690 = vlaneseq
        %v5691 = vshrl.u32 %v5690, 7
        %v5692 = vsub.s32 %v5689, %v5691
        %v5693 = vrot.slane %v5679, %v5692
        %v5694 = vcombine.low %v5026, %v5028
        %v5695 = vcombine.high %v5026, %v5028
        %v5697 = vunpack.c.l.s4 1983009808
        %v5698 = vunpack.c.0.s8 %v5697
        %v5699 = vlaneseq
        %v5700 = vshrl.u32 %v5699, 7
        %v5701 = vsub.s32 %v5698, %v5700
        %v5702 = vrot.slane %v5694, %v5701
        %v5704 = vunpack.c.l.s4 1983009808
        %v5705 = vunpack.c.0.s8 %v5704
        %v5706 = vlaneseq
        %v5707 = vshrl.u32 %v5706, 7
        %v5708 = vsub.s32 %v5705, %v5707
        %v5709 = vrot.slane %v5695, %v5708
        %v5710 = vcombine.low %v5027, %v5029
        %v5711 = vcombine.high %v5027, %v5029
        %v5713 = vunpack.c.l.s4 1983009808
        %v5714 = vunpack.c.0.s8 %v5713
        %v5715 = vlaneseq
        %v5716 = vshrl.u32 %v5715, 7
        %v5717 = vsub.s32 %v5714, %v5716
        %v5718 = vrot.slane %v5710, %v5717
        %v5720 = vunpack.c.l.s4 1983009808
        %v5721 = vunpack.c.0.s8 %v5720
        %v5722 = vlaneseq
        %v5723 = vshrl.u32 %v5722, 7
        %v5724 = vsub.s32 %v5721, %v5723
        %v5725 = vrot.slane %v5711, %v5724
        %v5726 = vcombine.low %v5670, %v5686
        %v5727 = vcombine.high %v5670, %v5686
        %v5729 = vunpack.c.l.s4 1934713408
        %v5730 = vunpack.c.0.s8 %v5729
        %v5731 = vlaneseq
        %v5732 = vshrl.u32 %v5731, 7
        %v5733 = vsub.s32 %v5730, %v5732
        %v5734 = vrot.slane %v5726, %v5733
        %v5736 = vunpack.c.l.s4 1934713408
        %v5737 = vunpack.c.0.s8 %v5736
        %v5738 = vlaneseq
        %v5739 = vshrl.u32 %v5738, 7
        %v5740 = vsub.s32 %v5737, %v5739
        %v5741 = vrot.slane %v5727, %v5740
        %v5742 = vcombine.low %v5677, %v5693
        %v5743 = vcombine.high %v5677, %v5693
        %v5745 = vunpack.c.l.s4 1934713408
        %v5746 = vunpack.c.0.s8 %v5745
        %v5747 = vlaneseq
        %v5748 = vshrl.u32 %v5747, 7
        %v5749 = vsub.s32 %v5746, %v5748
        %v5750 = vrot.slane %v5742, %v5749
        %v5752 = vunpack.c.l.s4 1934713408
        %v5753 = vunpack.c.0.s8 %v5752
        %v5754 = vlaneseq
        %v5755 = vshrl.u32 %v5754, 7
        %v5756 = vsub.s32 %v5753, %v5755
        %v5757 = vrot.slane %v5743, %v5756
        %v5758 = vcombine.low %v5702, %v5718
        %v5759 = vcombine.high %v5702, %v5718
        %v5761 = vunpack.c.l.s4 1934713408
        %v5762 = vunpack.c.0.s8 %v5761
        %v5763 = vlaneseq
        %v5764 = vshrl.u32 %v5763, 7
        %v5765 = vsub.s32 %v5762, %v5764
        %v5766 = vrot.slane %v5758, %v5765
        %v5768 = vunpack.c.l.s4 1934713408
        %v5769 = vunpack.c.0.s8 %v5768
        %v5770 = vlaneseq
        %v5771 = vshrl.u32 %v5770, 7
        %v5772 = vsub.s32 %v5769, %v5771
        %v5773 = vrot.slane %v5759, %v5772
        %v5774 = vcombine.low %v5709, %v5725
        %v5775 = vcombine.high %v5709, %v5725
        %v5777 = vunpack.c.l.s4 1934713408
        %v5778 = vunpack.c.0.s8 %v5777
        %v5779 = vlaneseq
        %v5780 = vshrl.u32 %v5779, 7
        %v5781 = vsub.s32 %v5778, %v5780
        %v5782 = vrot.slane %v5774, %v5781
        %v5784 = vunpack.c.l.s4 1934713408
        %v5785 = vunpack.c.0.s8 %v5784
        %v5786 = vlaneseq
        %v5787 = vshrl.u32 %v5786, 7
        %v5788 = vsub.s32 %v5785, %v5787
        %v5789 = vrot.slane %v5775, %v5788
        %v5790 = vcombine.low %v5734, %v5766
        %v5791 = vcombine.high %v5734, %v5766
        %v5792 = vcombine.low %v5741, %v5773
        %v5793 = vcombine.high %v5741, %v5773
        %v5794 = vcombine.low %v5750, %v5782
        %v5795 = vcombine.high %v5750, %v5782
        %v5796 = vcombine.low %v5757, %v5789
        %v5797 = vcombine.high %v5757, %v5789
        %v5798 = vcombine.low %v5030, %v5032
        %v5799 = vcombine.high %v5030, %v5032
        %v5801 = vunpack.c.l.s4 1983009808
        %v5802 = vunpack.c.0.s8 %v5801
        %v5803 = vlaneseq
        %v5804 = vshrl.u32 %v5803, 7
        %v5805 = vsub.s32 %v5802, %v5804
        %v5806 = vrot.slane %v5798, %v5805
        %v5808 = vunpack.c.l.s4 1983009808
        %v5809 = vunpack.c.0.s8 %v5808
        %v5810 = vlaneseq
        %v5811 = vshrl.u32 %v5810, 7
        %v5812 = vsub.s32 %v5809, %v5811
        %v5813 = vrot.slane %v5799, %v5812
        %v5814 = vcombine.low %v5031, %v5033
        %v5815 = vcombine.high %v5031, %v5033
        %v5817 = vunpack.c.l.s4 1983009808
        %v5818 = vunpack.c.0.s8 %v5817
        %v5819 = vlaneseq
        %v5820 = vshrl.u32 %v5819, 7
        %v5821 = vsub.s32 %v5818, %v5820
        %v5822 = vrot.slane %v5814, %v5821
        %v5824 = vunpack.c.l.s4 1983009808
        %v5825 = vunpack.c.0.s8 %v5824
        %v5826 = vlaneseq
        %v5827 = vshrl.u32 %v5826, 7
        %v5828 = vsub.s32 %v5825, %v5827
        %v5829 = vrot.slane %v5815, %v5828
        %v5830 = vcombine.low %v5034, %v5036
        %v5831 = vcombine.high %v5034, %v5036
        %v5833 = vunpack.c.l.s4 1983009808
        %v5834 = vunpack.c.0.s8 %v5833
        %v5835 = vlaneseq
        %v5836 = vshrl.u32 %v5835, 7
        %v5837 = vsub.s32 %v5834, %v5836
        %v5838 = vrot.slane %v5830, %v5837
        %v5840 = vunpack.c.l.s4 1983009808
        %v5841 = vunpack.c.0.s8 %v5840
        %v5842 = vlaneseq
        %v5843 = vshrl.u32 %v5842, 7
        %v5844 = vsub.s32 %v5841, %v5843
        %v5845 = vrot.slane %v5831, %v5844
        %v5846 = vcombine.low %v5035, %v5037
        %v5847 = vcombine.high %v5035, %v5037
        %v5849 = vunpack.c.l.s4 1983009808
        %v5850 = vunpack.c.0.s8 %v5849
        %v5851 = vlaneseq
        %v5852 = vshrl.u32 %v5851, 7
        %v5853 = vsub.s32 %v5850, %v5852
        %v5854 = vrot.slane %v5846, %v5853
        %v5856 = vunpack.c.l.s4 1983009808
        %v5857 = vunpack.c.0.s8 %v5856
        %v5858 = vlaneseq
        %v5859 = vshrl.u32 %v5858, 7
        %v5860 = vsub.s32 %v5857, %v5859
        %v5861 = vrot.slane %v5847, %v5860
        %v5862 = vcombine.low %v5806, %v5822
        %v5863 = vcombine.high %v5806, %v5822
        %v5865 = vunpack.c.l.s4 1934713408
        %v5866 = vunpack.c.0.s8 %v5865
        %v5867 = vlaneseq
        %v5868 = vshrl.u32 %v5867, 7
        %v5869 = vsub.s32 %v5866, %v5868
        %v5870 = vrot.slane %v5862, %v5869
        %v5872 = vunpack.c.l.s4 1934713408
        %v5873 = vunpack.c.0.s8 %v5872
        %v5874 = vlaneseq
        %v5875 = vshrl.u32 %v5874, 7
        %v5876 = vsub.s32 %v5873, %v5875
        %v5877 = vrot.slane %v5863, %v5876
        %v5878 = vcombine.low %v5813, %v5829
        %v5879 = vcombine.high %v5813, %v5829
        %v5881 = vunpack.c.l.s4 1934713408
        %v5882 = vunpack.c.0.s8 %v5881
        %v5883 = vlaneseq
        %v5884 = vshrl.u32 %v5883, 7
        %v5885 = vsub.s32 %v5882, %v5884
        %v5886 = vrot.slane %v5878, %v5885
        %v5888 = vunpack.c.l.s4 1934713408
        %v5889 = vunpack.c.0.s8 %v5888
        %v5890 = vlaneseq
        %v5891 = vshrl.u32 %v5890, 7
        %v5892 = vsub.s32 %v5889, %v5891
        %v5893 = vrot.slane %v5879, %v5892
        %v5894 = vcombine.low %v5838, %v5854
        %v5895 = vcombine.high %v5838, %v5854
        %v5897 = vunpack.c.l.s4 1934713408
        %v5898 = vunpack.c.0.s8 %v5897
        %v5899 = vlaneseq
        %v5900 = vshrl.u32 %v5899, 7
        %v5901 = vsub.s32 %v5898, %v5900
        %v5902 = vrot.slane %v5894, %v5901
        %v5904 = vunpack.c.l.s4 1934713408
        %v5905 = vunpack.c.0.s8 %v5904
        %v5906 = vlaneseq
        %v5907 = vshrl.u32 %v5906, 7
        %v5908 = vsub.s32 %v5905, %v5907
        %v5909 = vrot.slane %v5895, %v5908
        %v5910 = vcombine.low %v5845, %v5861
        %v5911 = vcombine.high %v5845, %v5861
        %v5913 = vunpack.c.l.s4 1934713408
        %v5914 = vunpack.c.0.s8 %v5913
        %v5915 = vlaneseq
        %v5916 = vshrl.u32 %v5915, 7
        %v5917 = vsub.s32 %v5914, %v5916
        %v5918 = vrot.slane %v5910, %v5917
        %v5920 = vunpack.c.l.s4 1934713408
        %v5921 = vunpack.c.0.s8 %v5920
        %v5922 = vlaneseq
        %v5923 = vshrl.u32 %v5922, 7
        %v5924 = vsub.s32 %v5921, %v5923
        %v5925 = vrot.slane %v5911, %v5924
        %v5926 = vcombine.low %v5870, %v5902
        %v5927 = vcombine.high %v5870, %v5902
        %v5928 = vcombine.low %v5877, %v5909
        %v5929 = vcombine.high %v5877, %v5909
        %v5930 = vcombine.low %v5886, %v5918
        %v5931 = vcombine.high %v5886, %v5918
        %v5932 = vcombine.low %v5893, %v5925
        %v5933 = vcombine.high %v5893, %v5925
        %v5934 = vcombine.low %v5038, %v5040
        %v5935 = vcombine.high %v5038, %v5040
        %v5937 = vunpack.c.l.s4 1983009808
        %v5938 = vunpack.c.0.s8 %v5937
        %v5939 = vlaneseq
        %v5940 = vshrl.u32 %v5939, 7
        %v5941 = vsub.s32 %v5938, %v5940
        %v5942 = vrot.slane %v5934, %v5941
        %v5944 = vunpack.c.l.s4 1983009808
        %v5945 = vunpack.c.0.s8 %v5944
        %v5946 = vlaneseq
        %v5947 = vshrl.u32 %v5946, 7
        %v5948 = vsub.s32 %v5945, %v5947
        %v5949 = vrot.slane %v5935, %v5948
        %v5950 = vcombine.low %v5039, %v5041
        %v5951 = vcombine.high %v5039, %v5041
        %v5953 = vunpack.c.l.s4 1983009808
        %v5954 = vunpack.c.0.s8 %v5953
        %v5955 = vlaneseq
        %v5956 = vshrl.u32 %v5955, 7
        %v5957 = vsub.s32 %v5954, %v5956
        %v5958 = vrot.slane %v5950, %v5957
        %v5960 = vunpack.c.l.s4 1983009808
        %v5961 = vunpack.c.0.s8 %v5960
        %v5962 = vlaneseq
        %v5963 = vshrl.u32 %v5962, 7
        %v5964 = vsub.s32 %v5961, %v5963
        %v5965 = vrot.slane %v5951, %v5964
        %v5966 = vcombine.low %v5042, %v5044
        %v5967 = vcombine.high %v5042, %v5044
        %v5969 = vunpack.c.l.s4 1983009808
        %v5970 = vunpack.c.0.s8 %v5969
        %v5971 = vlaneseq
        %v5972 = vshrl.u32 %v5971, 7
        %v5973 = vsub.s32 %v5970, %v5972
        %v5974 = vrot.slane %v5966, %v5973
        %v5976 = vunpack.c.l.s4 1983009808
        %v5977 = vunpack.c.0.s8 %v5976
        %v5978 = vlaneseq
        %v5979 = vshrl.u32 %v5978, 7
        %v5980 = vsub.s32 %v5977, %v5979
        %v5981 = vrot.slane %v5967, %v5980
        %v5982 = vcombine.low %v5043, %v5045
        %v5983 = vcombine.high %v5043, %v5045
        %v5985 = vunpack.c.l.s4 1983009808
        %v5986 = vunpack.c.0.s8 %v5985
        %v5987 = vlaneseq
        %v5988 = vshrl.u32 %v5987, 7
        %v5989 = vsub.s32 %v5986, %v5988
        %v5990 = vrot.slane %v5982, %v5989
        %v5992 = vunpack.c.l.s4 1983009808
        %v5993 = vunpack.c.0.s8 %v5992
        %v5994 = vlaneseq
        %v5995 = vshrl.u32 %v5994, 7
        %v5996 = vsub.s32 %v5993, %v5995
        %v5997 = vrot.slane %v5983, %v5996
        %v5998 = vcombine.low %v5942, %v5958
        %v5999 = vcombine.high %v5942, %v5958
        %v6001 = vunpack.c.l.s4 1934713408
        %v6002 = vunpack.c.0.s8 %v6001
        %v6003 = vlaneseq
        %v6004 = vshrl.u32 %v6003, 7
        %v6005 = vsub.s32 %v6002, %v6004
        %v6006 = vrot.slane %v5998, %v6005
        %v6008 = vunpack.c.l.s4 1934713408
        %v6009 = vunpack.c.0.s8 %v6008
        %v6010 = vlaneseq
        %v6011 = vshrl.u32 %v6010, 7
        %v6012 = vsub.s32 %v6009, %v6011
        %v6013 = vrot.slane %v5999, %v6012
        %v6014 = vcombine.low %v5949, %v5965
        %v6015 = vcombine.high %v5949, %v5965
        %v6017 = vunpack.c.l.s4 1934713408
        %v6018 = vunpack.c.0.s8 %v6017
        %v6019 = vlaneseq
        %v6020 = vshrl.u32 %v6019, 7
        %v6021 = vsub.s32 %v6018, %v6020
        %v6022 = vrot.slane %v6014, %v6021
        %v6024 = vunpack.c.l.s4 1934713408
        %v6025 = vunpack.c.0.s8 %v6024
        %v6026 = vlaneseq
        %v6027 = vshrl.u32 %v6026, 7
        %v6028 = vsub.s32 %v6025, %v6027
        %v6029 = vrot.slane %v6015, %v6028
        %v6030 = vcombine.low %v5974, %v5990
        %v6031 = vcombine.high %v5974, %v5990
        %v6033 = vunpack.c.l.s4 1934713408
        %v6034 = vunpack.c.0.s8 %v6033
        %v6035 = vlaneseq
        %v6036 = vshrl.u32 %v6035, 7
        %v6037 = vsub.s32 %v6034, %v6036
        %v6038 = vrot.slane %v6030, %v6037
        %v6040 = vunpack.c.l.s4 1934713408
        %v6041 = vunpack.c.0.s8 %v6040
        %v6042 = vlaneseq
        %v6043 = vshrl.u32 %v6042, 7
        %v6044 = vsub.s32 %v6041, %v6043
        %v6045 = vrot.slane %v6031, %v6044
        %v6046 = vcombine.low %v5981, %v5997
        %v6047 = vcombine.high %v5981, %v5997
        %v6049 = vunpack.c.l.s4 1934713408
        %v6050 = vunpack.c.0.s8 %v6049
        %v6051 = vlaneseq
        %v6052 = vshrl.u32 %v6051, 7
        %v6053 = vsub.s32 %v6050, %v6052
        %v6054 = vrot.slane %v6046, %v6053
        %v6056 = vunpack.c.l.s4 1934713408
        %v6057 = vunpack.c.0.s8 %v6056
        %v6058 = vlaneseq
        %v6059 = vshrl.u32 %v6058, 7
        %v6060 = vsub.s32 %v6057, %v6059
        %v6061 = vrot.slane %v6047, %v6060
        %v6062 = vcombine.low %v6006, %v6038
        %v6063 = vcombine.high %v6006, %v6038
        %v6064 = vcombine.low %v6013, %v6045
        %v6065 = vcombine.high %v6013, %v6045
        %v6066 = vcombine.low %v6022, %v6054
        %v6067 = vcombine.high %v6022, %v6054
        %v6068 = vcombine.low %v6029, %v6061
        %v6069 = vcombine.high %v6029, %v6061
        %v6070 = vcombine.low %v5046, %v5048
        %v6071 = vcombine.high %v5046, %v5048
        %v6073 = vunpack.c.l.s4 1983009808
        %v6074 = vunpack.c.0.s8 %v6073
        %v6075 = vlaneseq
        %v6076 = vshrl.u32 %v6075, 7
        %v6077 = vsub.s32 %v6074, %v6076
        %v6078 = vrot.slane %v6070, %v6077
        %v6080 = vunpack.c.l.s4 1983009808
        %v6081 = vunpack.c.0.s8 %v6080
        %v6082 = vlaneseq
        %v6083 = vshrl.u32 %v6082, 7
        %v6084 = vsub.s32 %v6081, %v6083
        %v6085 = vrot.slane %v6071, %v6084
        %v6086 = vcombine.low %v5047, %v5049
        %v6087 = vcombine.high %v5047, %v5049
        %v6089 = vunpack.c.l.s4 1983009808
        %v6090 = vunpack.c.0.s8 %v6089
        %v6091 = vlaneseq
        %v6092 = vshrl.u32 %v6091, 7
        %v6093 = vsub.s32 %v6090, %v6092
        %v6094 = vrot.slane %v6086, %v6093
        %v6096 = vunpack.c.l.s4 1983009808
        %v6097 = vunpack.c.0.s8 %v6096
        %v6098 = vlaneseq
        %v6099 = vshrl.u32 %v6098, 7
        %v6100 = vsub.s32 %v6097, %v6099
        %v6101 = vrot.slane %v6087, %v6100
        %v6102 = vcombine.low %v5050, %v5052
        %v6103 = vcombine.high %v5050, %v5052
        %v6105 = vunpack.c.l.s4 1983009808
        %v6106 = vunpack.c.0.s8 %v6105
        %v6107 = vlaneseq
        %v6108 = vshrl.u32 %v6107, 7
        %v6109 = vsub.s32 %v6106, %v6108
        %v6110 = vrot.slane %v6102, %v6109
        %v6112 = vunpack.c.l.s4 1983009808
        %v6113 = vunpack.c.0.s8 %v6112
        %v6114 = vlaneseq
        %v6115 = vshrl.u32 %v6114, 7
        %v6116 = vsub.s32 %v6113, %v6115
        %v6117 = vrot.slane %v6103, %v6116
        %v6118 = vcombine.low %v5051, %v5053
        %v6119 = vcombine.high %v5051, %v5053
        %v6121 = vunpack.c.l.s4 1983009808
        %v6122 = vunpack.c.0.s8 %v6121
        %v6123 = vlaneseq
        %v6124 = vshrl.u32 %v6123, 7
        %v6125 = vsub.s32 %v6122, %v6124
        %v6126 = vrot.slane %v6118, %v6125
        %v6128 = vunpack.c.l.s4 1983009808
        %v6129 = vunpack.c.0.s8 %v6128
        %v6130 = vlaneseq
        %v6131 = vshrl.u32 %v6130, 7
        %v6132 = vsub.s32 %v6129, %v6131
        %v6133 = vrot.slane %v6119, %v6132
        %v6134 = vcombine.low %v6078, %v6094
        %v6135 = vcombine.high %v6078, %v6094
        %v6137 = vunpack.c.l.s4 1934713408
        %v6138 = vunpack.c.0.s8 %v6137
        %v6139 = vlaneseq
        %v6140 = vshrl.u32 %v6139, 7
        %v6141 = vsub.s32 %v6138, %v6140
        %v6142 = vrot.slane %v6134, %v6141
        %v6144 = vunpack.c.l.s4 1934713408
        %v6145 = vunpack.c.0.s8 %v6144
        %v6146 = vlaneseq
        %v6147 = vshrl.u32 %v6146, 7
        %v6148 = vsub.s32 %v6145, %v6147
        %v6149 = vrot.slane %v6135, %v6148
        %v6150 = vcombine.low %v6085, %v6101
        %v6151 = vcombine.high %v6085, %v6101
        %v6153 = vunpack.c.l.s4 1934713408
        %v6154 = vunpack.c.0.s8 %v6153
        %v6155 = vlaneseq
        %v6156 = vshrl.u32 %v6155, 7
        %v6157 = vsub.s32 %v6154, %v6156
        %v6158 = vrot.slane %v6150, %v6157
        %v6160 = vunpack.c.l.s4 1934713408
        %v6161 = vunpack.c.0.s8 %v6160
        %v6162 = vlaneseq
        %v6163 = vshrl.u32 %v6162, 7
        %v6164 = vsub.s32 %v6161, %v6163
        %v6165 = vrot.slane %v6151, %v6164
        %v6166 = vcombine.low %v6110, %v6126
        %v6167 = vcombine.high %v6110, %v6126
        %v6169 = vunpack.c.l.s4 1934713408
        %v6170 = vunpack.c.0.s8 %v6169
        %v6171 = vlaneseq
        %v6172 = vshrl.u32 %v6171, 7
        %v6173 = vsub.s32 %v6170, %v6172
        %v6174 = vrot.slane %v6166, %v6173
        %v6176 = vunpack.c.l.s4 1934713408
        %v6177 = vunpack.c.0.s8 %v6176
        %v6178 = vlaneseq
        %v6179 = vshrl.u32 %v6178, 7
        %v6180 = vsub.s32 %v6177, %v6179
        %v6181 = vrot.slane %v6167, %v6180
        %v6182 = vcombine.low %v6117, %v6133
        %v6183 = vcombine.high %v6117, %v6133
        %v6185 = vunpack.c.l.s4 1934713408
        %v6186 = vunpack.c.0.s8 %v6185
        %v6187 = vlaneseq
        %v6188 = vshrl.u32 %v6187, 7
        %v6189 = vsub.s32 %v6186, %v6188
        %v6190 = vrot.slane %v6182, %v6189
        %v6192 = vunpack.c.l.s4 1934713408
        %v6193 = vunpack.c.0.s8 %v6192
        %v6194 = vlaneseq
        %v6195 = vshrl.u32 %v6194, 7
        %v6196 = vsub.s32 %v6193, %v6195
        %v6197 = vrot.slane %v6183, %v6196
        %v6198 = vcombine.low %v6142, %v6174
        %v6199 = vcombine.high %v6142, %v6174
        %v6200 = vcombine.low %v6149, %v6181
        %v6201 = vcombine.high %v6149, %v6181
        %v6202 = vcombine.low %v6158, %v6190
        %v6203 = vcombine.high %v6158, %v6190
        %v6204 = vcombine.low %v6165, %v6197
        %v6205 = vcombine.high %v6165, %v6197
        %v6206 = vcombine.low %v5054, %v5056
        %v6207 = vcombine.high %v5054, %v5056
        %v6209 = vunpack.c.l.s4 1983009808
        %v6210 = vunpack.c.0.s8 %v6209
        %v6211 = vlaneseq
        %v6212 = vshrl.u32 %v6211, 7
        %v6213 = vsub.s32 %v6210, %v6212
        %v6214 = vrot.slane %v6206, %v6213
        %v6216 = vunpack.c.l.s4 1983009808
        %v6217 = vunpack.c.0.s8 %v6216
        %v6218 = vlaneseq
        %v6219 = vshrl.u32 %v6218, 7
        %v6220 = vsub.s32 %v6217, %v6219
        %v6221 = vrot.slane %v6207, %v6220
        %v6222 = vcombine.low %v5055, %v5057
        %v6223 = vcombine.high %v5055, %v5057
        %v6225 = vunpack.c.l.s4 1983009808
        %v6226 = vunpack.c.0.s8 %v6225
        %v6227 = vlaneseq
        %v6228 = vshrl.u32 %v6227, 7
        %v6229 = vsub.s32 %v6226, %v6228
        %v6230 = vrot.slane %v6222, %v6229
        %v6232 = vunpack.c.l.s4 1983009808
        %v6233 = vunpack.c.0.s8 %v6232
        %v6234 = vlaneseq
        %v6235 = vshrl.u32 %v6234, 7
        %v6236 = vsub.s32 %v6233, %v6235
        %v6237 = vrot.slane %v6223, %v6236
        %v6238 = vcombine.low %v5058, %v5060
        %v6239 = vcombine.high %v5058, %v5060
        %v6241 = vunpack.c.l.s4 1983009808
        %v6242 = vunpack.c.0.s8 %v6241
        %v6243 = vlaneseq
        %v6244 = vshrl.u32 %v6243, 7
        %v6245 = vsub.s32 %v6242, %v6244
        %v6246 = vrot.slane %v6238, %v6245
        %v6248 = vunpack.c.l.s4 1983009808
        %v6249 = vunpack.c.0.s8 %v6248
        %v6250 = vlaneseq
        %v6251 = vshrl.u32 %v6250, 7
        %v6252 = vsub.s32 %v6249, %v6251
        %v6253 = vrot.slane %v6239, %v6252
        %v6254 = vcombine.low %v5059, %v5061
        %v6255 = vcombine.high %v5059, %v5061
        %v6257 = vunpack.c.l.s4 1983009808
        %v6258 = vunpack.c.0.s8 %v6257
        %v6259 = vlaneseq
        %v6260 = vshrl.u32 %v6259, 7
        %v6261 = vsub.s32 %v6258, %v6260
        %v6262 = vrot.slane %v6254, %v6261
        %v6264 = vunpack.c.l.s4 1983009808
        %v6265 = vunpack.c.0.s8 %v6264
        %v6266 = vlaneseq
        %v6267 = vshrl.u32 %v6266, 7
        %v6268 = vsub.s32 %v6265, %v6267
        %v6269 = vrot.slane %v6255, %v6268
        %v6270 = vcombine.low %v6214, %v6230
        %v6271 = vcombine.high %v6214, %v6230
        %v6273 = vunpack.c.l.s4 1934713408
        %v6274 = vunpack.c.0.s8 %v6273
        %v6275 = vlaneseq
        %v6276 = vshrl.u32 %v6275, 7
        %v6277 = vsub.s32 %v6274, %v6276
        %v6278 = vrot.slane %v6270, %v6277
        %v6280 = vunpack.c.l.s4 1934713408
        %v6281 = vunpack.c.0.s8 %v6280
        %v6282 = vlaneseq
        %v6283 = vshrl.u32 %v6282, 7
        %v6284 = vsub.s32 %v6281, %v6283
        %v6285 = vrot.slane %v6271, %v6284
        %v6286 = vcombine.low %v6221, %v6237
        %v6287 = vcombine.high %v6221, %v6237
        %v6289 = vunpack.c.l.s4 1934713408
        %v6290 = vunpack.c.0.s8 %v6289
        %v6291 = vlaneseq
        %v6292 = vshrl.u32 %v6291, 7
        %v6293 = vsub.s32 %v6290, %v6292
        %v6294 = vrot.slane %v6286, %v6293
        %v6296 = vunpack.c.l.s4 1934713408
        %v6297 = vunpack.c.0.s8 %v6296
        %v6298 = vlaneseq
        %v6299 = vshrl.u32 %v6298, 7
        %v6300 = vsub.s32 %v6297, %v6299
        %v6301 = vrot.slane %v6287, %v6300
        %v6302 = vcombine.low %v6246, %v6262
        %v6303 = vcombine.high %v6246, %v6262
        %v6305 = vunpack.c.l.s4 1934713408
        %v6306 = vunpack.c.0.s8 %v6305
        %v6307 = vlaneseq
        %v6308 = vshrl.u32 %v6307, 7
        %v6309 = vsub.s32 %v6306, %v6308
        %v6310 = vrot.slane %v6302, %v6309
        %v6312 = vunpack.c.l.s4 1934713408
        %v6313 = vunpack.c.0.s8 %v6312
        %v6314 = vlaneseq
        %v6315 = vshrl.u32 %v6314, 7
        %v6316 = vsub.s32 %v6313, %v6315
        %v6317 = vrot.slane %v6303, %v6316
        %v6318 = vcombine.low %v6253, %v6269
        %v6319 = vcombine.high %v6253, %v6269
        %v6321 = vunpack.c.l.s4 1934713408
        %v6322 = vunpack.c.0.s8 %v6321
        %v6323 = vlaneseq
        %v6324 = vshrl.u32 %v6323, 7
        %v6325 = vsub.s32 %v6322, %v6324
        %v6326 = vrot.slane %v6318, %v6325
        %v6328 = vunpack.c.l.s4 1934713408
        %v6329 = vunpack.c.0.s8 %v6328
        %v6330 = vlaneseq
        %v6331 = vshrl.u32 %v6330, 7
        %v6332 = vsub.s32 %v6329, %v6331
        %v6333 = vrot.slane %v6319, %v6332
        %v6334 = vcombine.low %v6278, %v6310
        %v6335 = vcombine.high %v6278, %v6310
        %v6336 = vcombine.low %v6285, %v6317
        %v6337 = vcombine.high %v6285, %v6317
        %v6338 = vcombine.low %v6294, %v6326
        %v6339 = vcombine.high %v6294, %v6326
        %v6340 = vcombine.low %v6301, %v6333
        %v6341 = vcombine.high %v6301, %v6333
        %v6342 = vcombine.low %v5062, %v5064
        %v6343 = vcombine.high %v5062, %v5064
        %v6345 = vunpack.c.l.s4 1983009808
        %v6346 = vunpack.c.0.s8 %v6345
        %v6347 = vlaneseq
        %v6348 = vshrl.u32 %v6347, 7
        %v6349 = vsub.s32 %v6346, %v6348
        %v6350 = vrot.slane %v6342, %v6349
        %v6352 = vunpack.c.l.s4 1983009808
        %v6353 = vunpack.c.0.s8 %v6352
        %v6354 = vlaneseq
        %v6355 = vshrl.u32 %v6354, 7
        %v6356 = vsub.s32 %v6353, %v6355
        %v6357 = vrot.slane %v6343, %v6356
        %v6358 = vcombine.low %v5063, %v5065
        %v6359 = vcombine.high %v5063, %v5065
        %v6361 = vunpack.c.l.s4 1983009808
        %v6362 = vunpack.c.0.s8 %v6361
        %v6363 = vlaneseq
        %v6364 = vshrl.u32 %v6363, 7
        %v6365 = vsub.s32 %v6362, %v6364
        %v6366 = vrot.slane %v6358, %v6365
        %v6368 = vunpack.c.l.s4 1983009808
        %v6369 = vunpack.c.0.s8 %v6368
        %v6370 = vlaneseq
        %v6371 = vshrl.u32 %v6370, 7
        %v6372 = vsub.s32 %v6369, %v6371
        %v6373 = vrot.slane %v6359, %v6372
        %v6374 = vcombine.low %v5066, %v5068
        %v6375 = vcombine.high %v5066, %v5068
        %v6377 = vunpack.c.l.s4 1983009808
        %v6378 = vunpack.c.0.s8 %v6377
        %v6379 = vlaneseq
        %v6380 = vshrl.u32 %v6379, 7
        %v6381 = vsub.s32 %v6378, %v6380
        %v6382 = vrot.slane %v6374, %v6381
        %v6384 = vunpack.c.l.s4 1983009808
        %v6385 = vunpack.c.0.s8 %v6384
        %v6386 = vlaneseq
        %v6387 = vshrl.u32 %v6386, 7
        %v6388 = vsub.s32 %v6385, %v6387
        %v6389 = vrot.slane %v6375, %v6388
        %v6390 = vcombine.low %v5067, %v5069
        %v6391 = vcombine.high %v5067, %v5069
        %v6393 = vunpack.c.l.s4 1983009808
        %v6394 = vunpack.c.0.s8 %v6393
        %v6395 = vlaneseq
        %v6396 = vshrl.u32 %v6395, 7
        %v6397 = vsub.s32 %v6394, %v6396
        %v6398 = vrot.slane %v6390, %v6397
        %v6400 = vunpack.c.l.s4 1983009808
        %v6401 = vunpack.c.0.s8 %v6400
        %v6402 = vlaneseq
        %v6403 = vshrl.u32 %v6402, 7
        %v6404 = vsub.s32 %v6401, %v6403
        %v6405 = vrot.slane %v6391, %v6404
        %v6406 = vcombine.low %v6350, %v6366
        %v6407 = vcombine.high %v6350, %v6366
        %v6409 = vunpack.c.l.s4 1934713408
        %v6410 = vunpack.c.0.s8 %v6409
        %v6411 = vlaneseq
        %v6412 = vshrl.u32 %v6411, 7
        %v6413 = vsub.s32 %v6410, %v6412
        %v6414 = vrot.slane %v6406, %v6413
        %v6416 = vunpack.c.l.s4 1934713408
        %v6417 = vunpack.c.0.s8 %v6416
        %v6418 = vlaneseq
        %v6419 = vshrl.u32 %v6418, 7
        %v6420 = vsub.s32 %v6417, %v6419
        %v6421 = vrot.slane %v6407, %v6420
        %v6422 = vcombine.low %v6357, %v6373
        %v6423 = vcombine.high %v6357, %v6373
        %v6425 = vunpack.c.l.s4 1934713408
        %v6426 = vunpack.c.0.s8 %v6425
        %v6427 = vlaneseq
        %v6428 = vshrl.u32 %v6427, 7
        %v6429 = vsub.s32 %v6426, %v6428
        %v6430 = vrot.slane %v6422, %v6429
        %v6432 = vunpack.c.l.s4 1934713408
        %v6433 = vunpack.c.0.s8 %v6432
        %v6434 = vlaneseq
        %v6435 = vshrl.u32 %v6434, 7
        %v6436 = vsub.s32 %v6433, %v6435
        %v6437 = vrot.slane %v6423, %v6436
        %v6438 = vcombine.low %v6382, %v6398
        %v6439 = vcombine.high %v6382, %v6398
        %v6441 = vunpack.c.l.s4 1934713408
        %v6442 = vunpack.c.0.s8 %v6441
        %v6443 = vlaneseq
        %v6444 = vshrl.u32 %v6443, 7
        %v6445 = vsub.s32 %v6442, %v6444
        %v6446 = vrot.slane %v6438, %v6445
        %v6448 = vunpack.c.l.s4 1934713408
        %v6449 = vunpack.c.0.s8 %v6448
        %v6450 = vlaneseq
        %v6451 = vshrl.u32 %v6450, 7
        %v6452 = vsub.s32 %v6449, %v6451
        %v6453 = vrot.slane %v6439, %v6452
        %v6454 = vcombine.low %v6389, %v6405
        %v6455 = vcombine.high %v6389, %v6405
        %v6457 = vunpack.c.l.s4 1934713408
        %v6458 = vunpack.c.0.s8 %v6457
        %v6459 = vlaneseq
        %v6460 = vshrl.u32 %v6459, 7
        %v6461 = vsub.s32 %v6458, %v6460
        %v6462 = vrot.slane %v6454, %v6461
        %v6464 = vunpack.c.l.s4 1934713408
        %v6465 = vunpack.c.0.s8 %v6464
        %v6466 = vlaneseq
        %v6467 = vshrl.u32 %v6466, 7
        %v6468 = vsub.s32 %v6465, %v6467
        %v6469 = vrot.slane %v6455, %v6468
        %v6470 = vcombine.low %v6414, %v6446
        %v6471 = vcombine.high %v6414, %v6446
        %v6472 = vcombine.low %v6421, %v6453
        %v6473 = vcombine.high %v6421, %v6453
        %v6474 = vcombine.low %v6430, %v6462
        %v6475 = vcombine.high %v6430, %v6462
        %v6476 = vcombine.low %v6437, %v6469
        %v6477 = vcombine.high %v6437, %v6469
        %v6478 = vcombine.low %v5070, %v5072
        %v6479 = vcombine.high %v5070, %v5072
        %v6481 = vunpack.c.l.s4 1983009808
        %v6482 = vunpack.c.0.s8 %v6481
        %v6483 = vlaneseq
        %v6484 = vshrl.u32 %v6483, 7
        %v6485 = vsub.s32 %v6482, %v6484
        %v6486 = vrot.slane %v6478, %v6485
        %v6488 = vunpack.c.l.s4 1983009808
        %v6489 = vunpack.c.0.s8 %v6488
        %v6490 = vlaneseq
        %v6491 = vshrl.u32 %v6490, 7
        %v6492 = vsub.s32 %v6489, %v6491
        %v6493 = vrot.slane %v6479, %v6492
        %v6494 = vcombine.low %v5071, %v5073
        %v6495 = vcombine.high %v5071, %v5073
        %v6497 = vunpack.c.l.s4 1983009808
        %v6498 = vunpack.c.0.s8 %v6497
        %v6499 = vlaneseq
        %v6500 = vshrl.u32 %v6499, 7
        %v6501 = vsub.s32 %v6498, %v6500
        %v6502 = vrot.slane %v6494, %v6501
        %v6504 = vunpack.c.l.s4 1983009808
        %v6505 = vunpack.c.0.s8 %v6504
        %v6506 = vlaneseq
        %v6507 = vshrl.u32 %v6506, 7
        %v6508 = vsub.s32 %v6505, %v6507
        %v6509 = vrot.slane %v6495, %v6508
        %v6510 = vcombine.low %v5074, %v5076
        %v6511 = vcombine.high %v5074, %v5076
        %v6513 = vunpack.c.l.s4 1983009808
        %v6514 = vunpack.c.0.s8 %v6513
        %v6515 = vlaneseq
        %v6516 = vshrl.u32 %v6515, 7
        %v6517 = vsub.s32 %v6514, %v6516
        %v6518 = vrot.slane %v6510, %v6517
        %v6520 = vunpack.c.l.s4 1983009808
        %v6521 = vunpack.c.0.s8 %v6520
        %v6522 = vlaneseq
        %v6523 = vshrl.u32 %v6522, 7
        %v6524 = vsub.s32 %v6521, %v6523
        %v6525 = vrot.slane %v6511, %v6524
        %v6526 = vcombine.low %v5075, %v5077
        %v6527 = vcombine.high %v5075, %v5077
        %v6529 = vunpack.c.l.s4 1983009808
        %v6530 = vunpack.c.0.s8 %v6529
        %v6531 = vlaneseq
        %v6532 = vshrl.u32 %v6531, 7
        %v6533 = vsub.s32 %v6530, %v6532
        %v6534 = vrot.slane %v6526, %v6533
        %v6536 = vunpack.c.l.s4 1983009808
        %v6537 = vunpack.c.0.s8 %v6536
        %v6538 = vlaneseq
        %v6539 = vshrl.u32 %v6538, 7
        %v6540 = vsub.s32 %v6537, %v6539
        %v6541 = vrot.slane %v6527, %v6540
        %v6542 = vcombine.low %v6486, %v6502
        %v6543 = vcombine.high %v6486, %v6502
        %v6545 = vunpack.c.l.s4 1934713408
        %v6546 = vunpack.c.0.s8 %v6545
        %v6547 = vlaneseq
        %v6548 = vshrl.u32 %v6547, 7
        %v6549 = vsub.s32 %v6546, %v6548
        %v6550 = vrot.slane %v6542, %v6549
        %v6552 = vunpack.c.l.s4 1934713408
        %v6553 = vunpack.c.0.s8 %v6552
        %v6554 = vlaneseq
        %v6555 = vshrl.u32 %v6554, 7
        %v6556 = vsub.s32 %v6553, %v6555
        %v6557 = vrot.slane %v6543, %v6556
        %v6558 = vcombine.low %v6493, %v6509
        %v6559 = vcombine.high %v6493, %v6509
        %v6561 = vunpack.c.l.s4 1934713408
        %v6562 = vunpack.c.0.s8 %v6561
        %v6563 = vlaneseq
        %v6564 = vshrl.u32 %v6563, 7
        %v6565 = vsub.s32 %v6562, %v6564
        %v6566 = vrot.slane %v6558, %v6565
        %v6568 = vunpack.c.l.s4 1934713408
        %v6569 = vunpack.c.0.s8 %v6568
        %v6570 = vlaneseq
        %v6571 = vshrl.u32 %v6570, 7
        %v6572 = vsub.s32 %v6569, %v6571
        %v6573 = vrot.slane %v6559, %v6572
        %v6574 = vcombine.low %v6518, %v6534
        %v6575 = vcombine.high %v6518, %v6534
        %v6577 = vunpack.c.l.s4 1934713408
        %v6578 = vunpack.c.0.s8 %v6577
        %v6579 = vlaneseq
        %v6580 = vshrl.u32 %v6579, 7
        %v6581 = vsub.s32 %v6578, %v6580
        %v6582 = vrot.slane %v6574, %v6581
        %v6584 = vunpack.c.l.s4 1934713408
        %v6585 = vunpack.c.0.s8 %v6584
        %v6586 = vlaneseq
        %v6587 = vshrl.u32 %v6586, 7
        %v6588 = vsub.s32 %v6585, %v6587
        %v6589 = vrot.slane %v6575, %v6588
        %v6590 = vcombine.low %v6525, %v6541
        %v6591 = vcombine.high %v6525, %v6541
        %v6593 = vunpack.c.l.s4 1934713408
        %v6594 = vunpack.c.0.s8 %v6593
        %v6595 = vlaneseq
        %v6596 = vshrl.u32 %v6595, 7
        %v6597 = vsub.s32 %v6594, %v6596
        %v6598 = vrot.slane %v6590, %v6597
        %v6600 = vunpack.c.l.s4 1934713408
        %v6601 = vunpack.c.0.s8 %v6600
        %v6602 = vlaneseq
        %v6603 = vshrl.u32 %v6602, 7
        %v6604 = vsub.s32 %v6601, %v6603
        %v6605 = vrot.slane %v6591, %v6604
        %v6606 = vcombine.low %v6550, %v6582
        %v6607 = vcombine.high %v6550, %v6582
        %v6608 = vcombine.low %v6557, %v6589
        %v6609 = vcombine.high %v6557, %v6589
        %v6610 = vcombine.low %v6566, %v6598
        %v6611 = vcombine.high %v6566, %v6598
        %v6612 = vcombine.low %v6573, %v6605
        %v6613 = vcombine.high %v6573, %v6605
        %v6614 = vcombine.low %v5078, %v5080
        %v6615 = vcombine.high %v5078, %v5080
        %v6617 = vunpack.c.l.s4 1983009808
        %v6618 = vunpack.c.0.s8 %v6617
        %v6619 = vlaneseq
        %v6620 = vshrl.u32 %v6619, 7
        %v6621 = vsub.s32 %v6618, %v6620
        %v6622 = vrot.slane %v6614, %v6621
        %v6624 = vunpack.c.l.s4 1983009808
        %v6625 = vunpack.c.0.s8 %v6624
        %v6626 = vlaneseq
        %v6627 = vshrl.u32 %v6626, 7
        %v6628 = vsub.s32 %v6625, %v6627
        %v6629 = vrot.slane %v6615, %v6628
        %v6630 = vcombine.low %v5079, %v5081
        %v6631 = vcombine.high %v5079, %v5081
        %v6633 = vunpack.c.l.s4 1983009808
        %v6634 = vunpack.c.0.s8 %v6633
        %v6635 = vlaneseq
        %v6636 = vshrl.u32 %v6635, 7
        %v6637 = vsub.s32 %v6634, %v6636
        %v6638 = vrot.slane %v6630, %v6637
        %v6640 = vunpack.c.l.s4 1983009808
        %v6641 = vunpack.c.0.s8 %v6640
        %v6642 = vlaneseq
        %v6643 = vshrl.u32 %v6642, 7
        %v6644 = vsub.s32 %v6641, %v6643
        %v6645 = vrot.slane %v6631, %v6644
        %v6646 = vcombine.low %v5082, %v5084
        %v6647 = vcombine.high %v5082, %v5084
        %v6649 = vunpack.c.l.s4 1983009808
        %v6650 = vunpack.c.0.s8 %v6649
        %v6651 = vlaneseq
        %v6652 = vshrl.u32 %v6651, 7
        %v6653 = vsub.s32 %v6650, %v6652
        %v6654 = vrot.slane %v6646, %v6653
        %v6656 = vunpack.c.l.s4 1983009808
        %v6657 = vunpack.c.0.s8 %v6656
        %v6658 = vlaneseq
        %v6659 = vshrl.u32 %v6658, 7
        %v6660 = vsub.s32 %v6657, %v6659
        %v6661 = vrot.slane %v6647, %v6660
        %v6662 = vcombine.low %v5083, %v5085
        %v6663 = vcombine.high %v5083, %v5085
        %v6665 = vunpack.c.l.s4 1983009808
        %v6666 = vunpack.c.0.s8 %v6665
        %v6667 = vlaneseq
        %v6668 = vshrl.u32 %v6667, 7
        %v6669 = vsub.s32 %v6666, %v6668
        %v6670 = vrot.slane %v6662, %v6669
        %v6672 = vunpack.c.l.s4 1983009808
        %v6673 = vunpack.c.0.s8 %v6672
        %v6674 = vlaneseq
        %v6675 = vshrl.u32 %v6674, 7
        %v6676 = vsub.s32 %v6673, %v6675
        %v6677 = vrot.slane %v6663, %v6676
        %v6678 = vcombine.low %v6622, %v6638
        %v6679 = vcombine.high %v6622, %v6638
        %v6681 = vunpack.c.l.s4 1934713408
        %v6682 = vunpack.c.0.s8 %v6681
        %v6683 = vlaneseq
        %v6684 = vshrl.u32 %v6683, 7
        %v6685 = vsub.s32 %v6682, %v6684
        %v6686 = vrot.slane %v6678, %v6685
        %v6688 = vunpack.c.l.s4 1934713408
        %v6689 = vunpack.c.0.s8 %v6688
        %v6690 = vlaneseq
        %v6691 = vshrl.u32 %v6690, 7
        %v6692 = vsub.s32 %v6689, %v6691
        %v6693 = vrot.slane %v6679, %v6692
        %v6694 = vcombine.low %v6629, %v6645
        %v6695 = vcombine.high %v6629, %v6645
        %v6697 = vunpack.c.l.s4 1934713408
        %v6698 = vunpack.c.0.s8 %v6697
        %v6699 = vlaneseq
        %v6700 = vshrl.u32 %v6699, 7
        %v6701 = vsub.s32 %v6698, %v6700
        %v6702 = vrot.slane %v6694, %v6701
        %v6704 = vunpack.c.l.s4 1934713408
        %v6705 = vunpack.c.0.s8 %v6704
        %v6706 = vlaneseq
        %v6707 = vshrl.u32 %v6706, 7
        %v6708 = vsub.s32 %v6705, %v6707
        %v6709 = vrot.slane %v6695, %v6708
        %v6710 = vcombine.low %v6654, %v6670
        %v6711 = vcombine.high %v6654, %v6670
        %v6713 = vunpack.c.l.s4 1934713408
        %v6714 = vunpack.c.0.s8 %v6713
        %v6715 = vlaneseq
        %v6716 = vshrl.u32 %v6715, 7
        %v6717 = vsub.s32 %v6714, %v6716
        %v6718 = vrot.slane %v6710, %v6717
        %v6720 = vunpack.c.l.s4 1934713408
        %v6721 = vunpack.c.0.s8 %v6720
        %v6722 = vlaneseq
        %v6723 = vshrl.u32 %v6722, 7
        %v6724 = vsub.s32 %v6721, %v6723
        %v6725 = vrot.slane %v6711, %v6724
        %v6726 = vcombine.low %v6661, %v6677
        %v6727 = vcombine.high %v6661, %v6677
        %v6729 = vunpack.c.l.s4 1934713408
        %v6730 = vunpack.c.0.s8 %v6729
        %v6731 = vlaneseq
        %v6732 = vshrl.u32 %v6731, 7
        %v6733 = vsub.s32 %v6730, %v6732
        %v6734 = vrot.slane %v6726, %v6733
        %v6736 = vunpack.c.l.s4 1934713408
        %v6737 = vunpack.c.0.s8 %v6736
        %v6738 = vlaneseq
        %v6739 = vshrl.u32 %v6738, 7
        %v6740 = vsub.s32 %v6737, %v6739
        %v6741 = vrot.slane %v6727, %v6740
        %v6742 = vcombine.low %v6686, %v6718
        %v6743 = vcombine.high %v6686, %v6718
        %v6744 = vcombine.low %v6693, %v6725
        %v6745 = vcombine.high %v6693, %v6725
        %v6746 = vcombine.low %v6702, %v6734
        %v6747 = vcombine.high %v6702, %v6734
        %v6748 = vcombine.low %v6709, %v6741
        %v6749 = vcombine.high %v6709, %v6741
        %v6750 = vcombine.low %v5086, %v5088
        %v6751 = vcombine.high %v5086, %v5088
        %v6753 = vunpack.c.l.s4 1983009808
        %v6754 = vunpack.c.0.s8 %v6753
        %v6755 = vlaneseq
        %v6756 = vshrl.u32 %v6755, 7
        %v6757 = vsub.s32 %v6754, %v6756
        %v6758 = vrot.slane %v6750, %v6757
        %v6760 = vunpack.c.l.s4 1983009808
        %v6761 = vunpack.c.0.s8 %v6760
        %v6762 = vlaneseq
        %v6763 = vshrl.u32 %v6762, 7
        %v6764 = vsub.s32 %v6761, %v6763
        %v6765 = vrot.slane %v6751, %v6764
        %v6766 = vcombine.low %v5087, %v5089
        %v6767 = vcombine.high %v5087, %v5089
        %v6769 = vunpack.c.l.s4 1983009808
        %v6770 = vunpack.c.0.s8 %v6769
        %v6771 = vlaneseq
        %v6772 = vshrl.u32 %v6771, 7
        %v6773 = vsub.s32 %v6770, %v6772
        %v6774 = vrot.slane %v6766, %v6773
        %v6776 = vunpack.c.l.s4 1983009808
        %v6777 = vunpack.c.0.s8 %v6776
        %v6778 = vlaneseq
        %v6779 = vshrl.u32 %v6778, 7
        %v6780 = vsub.s32 %v6777, %v6779
        %v6781 = vrot.slane %v6767, %v6780
        %v6782 = vcombine.low %v5090, %v5092
        %v6783 = vcombine.high %v5090, %v5092
        %v6785 = vunpack.c.l.s4 1983009808
        %v6786 = vunpack.c.0.s8 %v6785
        %v6787 = vlaneseq
        %v6788 = vshrl.u32 %v6787, 7
        %v6789 = vsub.s32 %v6786, %v6788
        %v6790 = vrot.slane %v6782, %v6789
        %v6792 = vunpack.c.l.s4 1983009808
        %v6793 = vunpack.c.0.s8 %v6792
        %v6794 = vlaneseq
        %v6795 = vshrl.u32 %v6794, 7
        %v6796 = vsub.s32 %v6793, %v6795
        %v6797 = vrot.slane %v6783, %v6796
        %v6798 = vcombine.low %v5091, %v5093
        %v6799 = vcombine.high %v5091, %v5093
        %v6801 = vunpack.c.l.s4 1983009808
        %v6802 = vunpack.c.0.s8 %v6801
        %v6803 = vlaneseq
        %v6804 = vshrl.u32 %v6803, 7
        %v6805 = vsub.s32 %v6802, %v6804
        %v6806 = vrot.slane %v6798, %v6805
        %v6808 = vunpack.c.l.s4 1983009808
        %v6809 = vunpack.c.0.s8 %v6808
        %v6810 = vlaneseq
        %v6811 = vshrl.u32 %v6810, 7
        %v6812 = vsub.s32 %v6809, %v6811
        %v6813 = vrot.slane %v6799, %v6812
        %v6814 = vcombine.low %v6758, %v6774
        %v6815 = vcombine.high %v6758, %v6774
        %v6817 = vunpack.c.l.s4 1934713408
        %v6818 = vunpack.c.0.s8 %v6817
        %v6819 = vlaneseq
        %v6820 = vshrl.u32 %v6819, 7
        %v6821 = vsub.s32 %v6818, %v6820
        %v6822 = vrot.slane %v6814, %v6821
        %v6824 = vunpack.c.l.s4 1934713408
        %v6825 = vunpack.c.0.s8 %v6824
        %v6826 = vlaneseq
        %v6827 = vshrl.u32 %v6826, 7
        %v6828 = vsub.s32 %v6825, %v6827
        %v6829 = vrot.slane %v6815, %v6828
        %v6830 = vcombine.low %v6765, %v6781
        %v6831 = vcombine.high %v6765, %v6781
        %v6833 = vunpack.c.l.s4 1934713408
        %v6834 = vunpack.c.0.s8 %v6833
        %v6835 = vlaneseq
        %v6836 = vshrl.u32 %v6835, 7
        %v6837 = vsub.s32 %v6834, %v6836
        %v6838 = vrot.slane %v6830, %v6837
        %v6840 = vunpack.c.l.s4 1934713408
        %v6841 = vunpack.c.0.s8 %v6840
        %v6842 = vlaneseq
        %v6843 = vshrl.u32 %v6842, 7
        %v6844 = vsub.s32 %v6841, %v6843
        %v6845 = vrot.slane %v6831, %v6844
        %v6846 = vcombine.low %v6790, %v6806
        %v6847 = vcombine.high %v6790, %v6806
        %v6849 = vunpack.c.l.s4 1934713408
        %v6850 = vunpack.c.0.s8 %v6849
        %v6851 = vlaneseq
        %v6852 = vshrl.u32 %v6851, 7
        %v6853 = vsub.s32 %v6850, %v6852
        %v6854 = vrot.slane %v6846, %v6853
        %v6856 = vunpack.c.l.s4 1934713408
        %v6857 = vunpack.c.0.s8 %v6856
        %v6858 = vlaneseq
        %v6859 = vshrl.u32 %v6858, 7
        %v6860 = vsub.s32 %v6857, %v6859
        %v6861 = vrot.slane %v6847, %v6860
        %v6862 = vcombine.low %v6797, %v6813
        %v6863 = vcombine.high %v6797, %v6813
        %v6865 = vunpack.c.l.s4 1934713408
        %v6866 = vunpack.c.0.s8 %v6865
        %v6867 = vlaneseq
        %v6868 = vshrl.u32 %v6867, 7
        %v6869 = vsub.s32 %v6866, %v6868
        %v6870 = vrot.slane %v6862, %v6869
        %v6872 = vunpack.c.l.s4 1934713408
        %v6873 = vunpack.c.0.s8 %v6872
        %v6874 = vlaneseq
        %v6875 = vshrl.u32 %v6874, 7
        %v6876 = vsub.s32 %v6873, %v6875
        %v6877 = vrot.slane %v6863, %v6876
        %v6878 = vcombine.low %v6822, %v6854
        %v6879 = vcombine.high %v6822, %v6854
        %v6880 = vcombine.low %v6829, %v6861
        %v6881 = vcombine.high %v6829, %v6861
        %v6882 = vcombine.low %v6838, %v6870
        %v6883 = vcombine.high %v6838, %v6870
        %v6884 = vcombine.low %v6845, %v6877
        %v6885 = vcombine.high %v6845, %v6877
        %v6886 = vcombine.low %v5094, %v5096
        %v6887 = vcombine.high %v5094, %v5096
        %v6889 = vunpack.c.l.s4 1983009808
        %v6890 = vunpack.c.0.s8 %v6889
        %v6891 = vlaneseq
        %v6892 = vshrl.u32 %v6891, 7
        %v6893 = vsub.s32 %v6890, %v6892
        %v6894 = vrot.slane %v6886, %v6893
        %v6896 = vunpack.c.l.s4 1983009808
        %v6897 = vunpack.c.0.s8 %v6896
        %v6898 = vlaneseq
        %v6899 = vshrl.u32 %v6898, 7
        %v6900 = vsub.s32 %v6897, %v6899
        %v6901 = vrot.slane %v6887, %v6900
        %v6902 = vcombine.low %v5095, %v5097
        %v6903 = vcombine.high %v5095, %v5097
        %v6905 = vunpack.c.l.s4 1983009808
        %v6906 = vunpack.c.0.s8 %v6905
        %v6907 = vlaneseq
        %v6908 = vshrl.u32 %v6907, 7
        %v6909 = vsub.s32 %v6906, %v6908
        %v6910 = vrot.slane %v6902, %v6909
        %v6912 = vunpack.c.l.s4 1983009808
        %v6913 = vunpack.c.0.s8 %v6912
        %v6914 = vlaneseq
        %v6915 = vshrl.u32 %v6914, 7
        %v6916 = vsub.s32 %v6913, %v6915
        %v6917 = vrot.slane %v6903, %v6916
        %v6918 = vcombine.low %v5098, %v5100
        %v6919 = vcombine.high %v5098, %v5100
        %v6921 = vunpack.c.l.s4 1983009808
        %v6922 = vunpack.c.0.s8 %v6921
        %v6923 = vlaneseq
        %v6924 = vshrl.u32 %v6923, 7
        %v6925 = vsub.s32 %v6922, %v6924
        %v6926 = vrot.slane %v6918, %v6925
        %v6928 = vunpack.c.l.s4 1983009808
        %v6929 = vunpack.c.0.s8 %v6928
        %v6930 = vlaneseq
        %v6931 = vshrl.u32 %v6930, 7
        %v6932 = vsub.s32 %v6929, %v6931
        %v6933 = vrot.slane %v6919, %v6932
        %v6934 = vcombine.low %v5099, %v5101
        %v6935 = vcombine.high %v5099, %v5101
        %v6937 = vunpack.c.l.s4 1983009808
        %v6938 = vunpack.c.0.s8 %v6937
        %v6939 = vlaneseq
        %v6940 = vshrl.u32 %v6939, 7
        %v6941 = vsub.s32 %v6938, %v6940
        %v6942 = vrot.slane %v6934, %v6941
        %v6944 = vunpack.c.l.s4 1983009808
        %v6945 = vunpack.c.0.s8 %v6944
        %v6946 = vlaneseq
        %v6947 = vshrl.u32 %v6946, 7
        %v6948 = vsub.s32 %v6945, %v6947
        %v6949 = vrot.slane %v6935, %v6948
        %v6950 = vcombine.low %v6894, %v6910
        %v6951 = vcombine.high %v6894, %v6910
        %v6953 = vunpack.c.l.s4 1934713408
        %v6954 = vunpack.c.0.s8 %v6953
        %v6955 = vlaneseq
        %v6956 = vshrl.u32 %v6955, 7
        %v6957 = vsub.s32 %v6954, %v6956
        %v6958 = vrot.slane %v6950, %v6957
        %v6960 = vunpack.c.l.s4 1934713408
        %v6961 = vunpack.c.0.s8 %v6960
        %v6962 = vlaneseq
        %v6963 = vshrl.u32 %v6962, 7
        %v6964 = vsub.s32 %v6961, %v6963
        %v6965 = vrot.slane %v6951, %v6964
        %v6966 = vcombine.low %v6901, %v6917
        %v6967 = vcombine.high %v6901, %v6917
        %v6969 = vunpack.c.l.s4 1934713408
        %v6970 = vunpack.c.0.s8 %v6969
        %v6971 = vlaneseq
        %v6972 = vshrl.u32 %v6971, 7
        %v6973 = vsub.s32 %v6970, %v6972
        %v6974 = vrot.slane %v6966, %v6973
        %v6976 = vunpack.c.l.s4 1934713408
        %v6977 = vunpack.c.0.s8 %v6976
        %v6978 = vlaneseq
        %v6979 = vshrl.u32 %v6978, 7
        %v6980 = vsub.s32 %v6977, %v6979
        %v6981 = vrot.slane %v6967, %v6980
        %v6982 = vcombine.low %v6926, %v6942
        %v6983 = vcombine.high %v6926, %v6942
        %v6985 = vunpack.c.l.s4 1934713408
        %v6986 = vunpack.c.0.s8 %v6985
        %v6987 = vlaneseq
        %v6988 = vshrl.u32 %v6987, 7
        %v6989 = vsub.s32 %v6986, %v6988
        %v6990 = vrot.slane %v6982, %v6989
        %v6992 = vunpack.c.l.s4 1934713408
        %v6993 = vunpack.c.0.s8 %v6992
        %v6994 = vlaneseq
        %v6995 = vshrl.u32 %v6994, 7
        %v6996 = vsub.s32 %v6993, %v6995
        %v6997 = vrot.slane %v6983, %v6996
        %v6998 = vcombine.low %v6933, %v6949
        %v6999 = vcombine.high %v6933, %v6949
        %v7001 = vunpack.c.l.s4 1934713408
        %v7002 = vunpack.c.0.s8 %v7001
        %v7003 = vlaneseq
        %v7004 = vshrl.u32 %v7003, 7
        %v7005 = vsub.s32 %v7002, %v7004
        %v7006 = vrot.slane %v6998, %v7005
        %v7008 = vunpack.c.l.s4 1934713408
        %v7009 = vunpack.c.0.s8 %v7008
        %v7010 = vlaneseq
        %v7011 = vshrl.u32 %v7010, 7
        %v7012 = vsub.s32 %v7009, %v7011
        %v7013 = vrot.slane %v6999, %v7012
        %v7014 = vcombine.low %v6958, %v6990
        %v7015 = vcombine.high %v6958, %v6990
        %v7016 = vcombine.low %v6965, %v6997
        %v7017 = vcombine.high %v6965, %v6997
        %v7018 = vcombine.low %v6974, %v7006
        %v7019 = vcombine.high %v6974, %v7006
        %v7020 = vcombine.low %v6981, %v7013
        %v7021 = vcombine.high %v6981, %v7013
        %v7022 = vcombine.low %v5102, %v5104
        %v7023 = vcombine.high %v5102, %v5104
        %v7025 = vunpack.c.l.s4 1983009808
        %v7026 = vunpack.c.0.s8 %v7025
        %v7027 = vlaneseq
        %v7028 = vshrl.u32 %v7027, 7
        %v7029 = vsub.s32 %v7026, %v7028
        %v7030 = vrot.slane %v7022, %v7029
        %v7032 = vunpack.c.l.s4 1983009808
        %v7033 = vunpack.c.0.s8 %v7032
        %v7034 = vlaneseq
        %v7035 = vshrl.u32 %v7034, 7
        %v7036 = vsub.s32 %v7033, %v7035
        %v7037 = vrot.slane %v7023, %v7036
        %v7038 = vcombine.low %v5103, %v5105
        %v7039 = vcombine.high %v5103, %v5105
        %v7041 = vunpack.c.l.s4 1983009808
        %v7042 = vunpack.c.0.s8 %v7041
        %v7043 = vlaneseq
        %v7044 = vshrl.u32 %v7043, 7
        %v7045 = vsub.s32 %v7042, %v7044
        %v7046 = vrot.slane %v7038, %v7045
        %v7048 = vunpack.c.l.s4 1983009808
        %v7049 = vunpack.c.0.s8 %v7048
        %v7050 = vlaneseq
        %v7051 = vshrl.u32 %v7050, 7
        %v7052 = vsub.s32 %v7049, %v7051
        %v7053 = vrot.slane %v7039, %v7052
        %v7054 = vcombine.low %v5106, %v5108
        %v7055 = vcombine.high %v5106, %v5108
        %v7057 = vunpack.c.l.s4 1983009808
        %v7058 = vunpack.c.0.s8 %v7057
        %v7059 = vlaneseq
        %v7060 = vshrl.u32 %v7059, 7
        %v7061 = vsub.s32 %v7058, %v7060
        %v7062 = vrot.slane %v7054, %v7061
        %v7064 = vunpack.c.l.s4 1983009808
        %v7065 = vunpack.c.0.s8 %v7064
        %v7066 = vlaneseq
        %v7067 = vshrl.u32 %v7066, 7
        %v7068 = vsub.s32 %v7065, %v7067
        %v7069 = vrot.slane %v7055, %v7068
        %v7070 = vcombine.low %v5107, %v5109
        %v7071 = vcombine.high %v5107, %v5109
        %v7073 = vunpack.c.l.s4 1983009808
        %v7074 = vunpack.c.0.s8 %v7073
        %v7075 = vlaneseq
        %v7076 = vshrl.u32 %v7075, 7
        %v7077 = vsub.s32 %v7074, %v7076
        %v7078 = vrot.slane %v7070, %v7077
        %v7080 = vunpack.c.l.s4 1983009808
        %v7081 = vunpack.c.0.s8 %v7080
        %v7082 = vlaneseq
        %v7083 = vshrl.u32 %v7082, 7
        %v7084 = vsub.s32 %v7081, %v7083
        %v7085 = vrot.slane %v7071, %v7084
        %v7086 = vcombine.low %v7030, %v7046
        %v7087 = vcombine.high %v7030, %v7046
        %v7089 = vunpack.c.l.s4 1934713408
        %v7090 = vunpack.c.0.s8 %v7089
        %v7091 = vlaneseq
        %v7092 = vshrl.u32 %v7091, 7
        %v7093 = vsub.s32 %v7090, %v7092
        %v7094 = vrot.slane %v7086, %v7093
        %v7096 = vunpack.c.l.s4 1934713408
        %v7097 = vunpack.c.0.s8 %v7096
        %v7098 = vlaneseq
        %v7099 = vshrl.u32 %v7098, 7
        %v7100 = vsub.s32 %v7097, %v7099
        %v7101 = vrot.slane %v7087, %v7100
        %v7102 = vcombine.low %v7037, %v7053
        %v7103 = vcombine.high %v7037, %v7053
        %v7105 = vunpack.c.l.s4 1934713408
        %v7106 = vunpack.c.0.s8 %v7105
        %v7107 = vlaneseq
        %v7108 = vshrl.u32 %v7107, 7
        %v7109 = vsub.s32 %v7106, %v7108
        %v7110 = vrot.slane %v7102, %v7109
        %v7112 = vunpack.c.l.s4 1934713408
        %v7113 = vunpack.c.0.s8 %v7112
        %v7114 = vlaneseq
        %v7115 = vshrl.u32 %v7114, 7
        %v7116 = vsub.s32 %v7113, %v7115
        %v7117 = vrot.slane %v7103, %v7116
        %v7118 = vcombine.low %v7062, %v7078
        %v7119 = vcombine.high %v7062, %v7078
        %v7121 = vunpack.c.l.s4 1934713408
        %v7122 = vunpack.c.0.s8 %v7121
        %v7123 = vlaneseq
        %v7124 = vshrl.u32 %v7123, 7
        %v7125 = vsub.s32 %v7122, %v7124
        %v7126 = vrot.slane %v7118, %v7125
        %v7128 = vunpack.c.l.s4 1934713408
        %v7129 = vunpack.c.0.s8 %v7128
        %v7130 = vlaneseq
        %v7131 = vshrl.u32 %v7130, 7
        %v7132 = vsub.s32 %v7129, %v7131
        %v7133 = vrot.slane %v7119, %v7132
        %v7134 = vcombine.low %v7069, %v7085
        %v7135 = vcombine.high %v7069, %v7085
        %v7137 = vunpack.c.l.s4 1934713408
        %v7138 = vunpack.c.0.s8 %v7137
        %v7139 = vlaneseq
        %v7140 = vshrl.u32 %v7139, 7
        %v7141 = vsub.s32 %v7138, %v7140
        %v7142 = vrot.slane %v7134, %v7141
        %v7144 = vunpack.c.l.s4 1934713408
        %v7145 = vunpack.c.0.s8 %v7144
        %v7146 = vlaneseq
        %v7147 = vshrl.u32 %v7146, 7
        %v7148 = vsub.s32 %v7145, %v7147
        %v7149 = vrot.slane %v7135, %v7148
        %v7150 = vcombine.low %v7094, %v7126
        %v7151 = vcombine.high %v7094, %v7126
        %v7152 = vcombine.low %v7101, %v7133
        %v7153 = vcombine.high %v7101, %v7133
        %v7154 = vcombine.low %v7110, %v7142
        %v7155 = vcombine.high %v7110, %v7142
        %v7156 = vcombine.low %v7117, %v7149
        %v7157 = vcombine.high %v7117, %v7149
        %v7158 = vcombine.low %v5110, %v5112
        %v7159 = vcombine.high %v5110, %v5112
        %v7161 = vunpack.c.l.s4 1983009808
        %v7162 = vunpack.c.0.s8 %v7161
        %v7163 = vlaneseq
        %v7164 = vshrl.u32 %v7163, 7
        %v7165 = vsub.s32 %v7162, %v7164
        %v7166 = vrot.slane %v7158, %v7165
        %v7168 = vunpack.c.l.s4 1983009808
        %v7169 = vunpack.c.0.s8 %v7168
        %v7170 = vlaneseq
        %v7171 = vshrl.u32 %v7170, 7
        %v7172 = vsub.s32 %v7169, %v7171
        %v7173 = vrot.slane %v7159, %v7172
        %v7174 = vcombine.low %v5111, %v5113
        %v7175 = vcombine.high %v5111, %v5113
        %v7177 = vunpack.c.l.s4 1983009808
        %v7178 = vunpack.c.0.s8 %v7177
        %v7179 = vlaneseq
        %v7180 = vshrl.u32 %v7179, 7
        %v7181 = vsub.s32 %v7178, %v7180
        %v7182 = vrot.slane %v7174, %v7181
        %v7184 = vunpack.c.l.s4 1983009808
        %v7185 = vunpack.c.0.s8 %v7184
        %v7186 = vlaneseq
        %v7187 = vshrl.u32 %v7186, 7
        %v7188 = vsub.s32 %v7185, %v7187
        %v7189 = vrot.slane %v7175, %v7188
        %v7190 = vcombine.low %v5114, %v5116
        %v7191 = vcombine.high %v5114, %v5116
        %v7193 = vunpack.c.l.s4 1983009808
        %v7194 = vunpack.c.0.s8 %v7193
        %v7195 = vlaneseq
        %v7196 = vshrl.u32 %v7195, 7
        %v7197 = vsub.s32 %v7194, %v7196
        %v7198 = vrot.slane %v7190, %v7197
        %v7200 = vunpack.c.l.s4 1983009808
        %v7201 = vunpack.c.0.s8 %v7200
        %v7202 = vlaneseq
        %v7203 = vshrl.u32 %v7202, 7
        %v7204 = vsub.s32 %v7201, %v7203
        %v7205 = vrot.slane %v7191, %v7204
        %v7206 = vcombine.low %v5115, %v5117
        %v7207 = vcombine.high %v5115, %v5117
        %v7209 = vunpack.c.l.s4 1983009808
        %v7210 = vunpack.c.0.s8 %v7209
        %v7211 = vlaneseq
        %v7212 = vshrl.u32 %v7211, 7
        %v7213 = vsub.s32 %v7210, %v7212
        %v7214 = vrot.slane %v7206, %v7213
        %v7216 = vunpack.c.l.s4 1983009808
        %v7217 = vunpack.c.0.s8 %v7216
        %v7218 = vlaneseq
        %v7219 = vshrl.u32 %v7218, 7
        %v7220 = vsub.s32 %v7217, %v7219
        %v7221 = vrot.slane %v7207, %v7220
        %v7222 = vcombine.low %v7166, %v7182
        %v7223 = vcombine.high %v7166, %v7182
        %v7225 = vunpack.c.l.s4 1934713408
        %v7226 = vunpack.c.0.s8 %v7225
        %v7227 = vlaneseq
        %v7228 = vshrl.u32 %v7227, 7
        %v7229 = vsub.s32 %v7226, %v7228
        %v7230 = vrot.slane %v7222, %v7229
        %v7232 = vunpack.c.l.s4 1934713408
        %v7233 = vunpack.c.0.s8 %v7232
        %v7234 = vlaneseq
        %v7235 = vshrl.u32 %v7234, 7
        %v7236 = vsub.s32 %v7233, %v7235
        %v7237 = vrot.slane %v7223, %v7236
        %v7238 = vcombine.low %v7173, %v7189
        %v7239 = vcombine.high %v7173, %v7189
        %v7241 = vunpack.c.l.s4 1934713408
        %v7242 = vunpack.c.0.s8 %v7241
        %v7243 = vlaneseq
        %v7244 = vshrl.u32 %v7243, 7
        %v7245 = vsub.s32 %v7242, %v7244
        %v7246 = vrot.slane %v7238, %v7245
        %v7248 = vunpack.c.l.s4 1934713408
        %v7249 = vunpack.c.0.s8 %v7248
        %v7250 = vlaneseq
        %v7251 = vshrl.u32 %v7250, 7
        %v7252 = vsub.s32 %v7249, %v7251
        %v7253 = vrot.slane %v7239, %v7252
        %v7254 = vcombine.low %v7198, %v7214
        %v7255 = vcombine.high %v7198, %v7214
        %v7257 = vunpack.c.l.s4 1934713408
        %v7258 = vunpack.c.0.s8 %v7257
        %v7259 = vlaneseq
        %v7260 = vshrl.u32 %v7259, 7
        %v7261 = vsub.s32 %v7258, %v7260
        %v7262 = vrot.slane %v7254, %v7261
        %v7264 = vunpack.c.l.s4 1934713408
        %v7265 = vunpack.c.0.s8 %v7264
        %v7266 = vlaneseq
        %v7267 = vshrl.u32 %v7266, 7
        %v7268 = vsub.s32 %v7265, %v7267
        %v7269 = vrot.slane %v7255, %v7268
        %v7270 = vcombine.low %v7205, %v7221
        %v7271 = vcombine.high %v7205, %v7221
        %v7273 = vunpack.c.l.s4 1934713408
        %v7274 = vunpack.c.0.s8 %v7273
        %v7275 = vlaneseq
        %v7276 = vshrl.u32 %v7275, 7
        %v7277 = vsub.s32 %v7274, %v7276
        %v7278 = vrot.slane %v7270, %v7277
        %v7280 = vunpack.c.l.s4 1934713408
        %v7281 = vunpack.c.0.s8 %v7280
        %v7282 = vlaneseq
        %v7283 = vshrl.u32 %v7282, 7
        %v7284 = vsub.s32 %v7281, %v7283
        %v7285 = vrot.slane %v7271, %v7284
        %v7286 = vcombine.low %v7230, %v7262
        %v7287 = vcombine.high %v7230, %v7262
        %v7288 = vcombine.low %v7237, %v7269
        %v7289 = vcombine.high %v7237, %v7269
        %v7290 = vcombine.low %v7246, %v7278
        %v7291 = vcombine.high %v7246, %v7278
        %v7292 = vcombine.low %v7253, %v7285
        %v7293 = vcombine.high %v7253, %v7285
        %v7294 = vmul.f32 %v5246, %v5246
        %v7295 = vmul.f32 %v5247, %v5247
        %v7296 = vmul.f32 %v5248, %v5248
        %v7297 = vmul.f32 %v5249, %v5249
        %v7298 = vmul.f32 %v5250, %v5250
        %v7299 = vmul.f32 %v5251, %v5251
        %v7300 = vmul.f32 %v5252, %v5252
        %v7301 = vmul.f32 %v5253, %v5253
        %v7302 = vmul.f32 %v5382, %v5382
        %v7303 = vmul.f32 %v5383, %v5383
        %v7304 = vmul.f32 %v5384, %v5384
        %v7305 = vmul.f32 %v5385, %v5385
        %v7306 = vmul.f32 %v5386, %v5386
        %v7307 = vmul.f32 %v5387, %v5387
        %v7308 = vmul.f32 %v5388, %v5388
        %v7309 = vmul.f32 %v5389, %v5389
        %v7310 = vmul.f32 %v5518, %v5518
        %v7311 = vmul.f32 %v5519, %v5519
        %v7312 = vmul.f32 %v5520, %v5520
        %v7313 = vmul.f32 %v5521, %v5521
        %v7314 = vmul.f32 %v5522, %v5522
        %v7315 = vmul.f32 %v5523, %v5523
        %v7316 = vmul.f32 %v5524, %v5524
        %v7317 = vmul.f32 %v5525, %v5525
        %v7318 = vmul.f32 %v5654, %v5654
        %v7319 = vmul.f32 %v5655, %v5655
        %v7320 = vmul.f32 %v5656, %v5656
        %v7321 = vmul.f32 %v5657, %v5657
        %v7322 = vmul.f32 %v5658, %v5658
        %v7323 = vmul.f32 %v5659, %v5659
        %v7324 = vmul.f32 %v5660, %v5660
        %v7325 = vmul.f32 %v5661, %v5661
        %v7326 = vmul.f32 %v5790, %v5790
        %v7327 = vmul.f32 %v5791, %v5791
        %v7328 = vmul.f32 %v5792, %v5792
        %v7329 = vmul.f32 %v5793, %v5793
        %v7330 = vmul.f32 %v5794, %v5794
        %v7331 = vmul.f32 %v5795, %v5795
        %v7332 = vmul.f32 %v5796, %v5796
        %v7333 = vmul.f32 %v5797, %v5797
        %v7334 = vmul.f32 %v5926, %v5926
        %v7335 = vmul.f32 %v5927, %v5927
        %v7336 = vmul.f32 %v5928, %v5928
        %v7337 = vmul.f32 %v5929, %v5929
        %v7338 = vmul.f32 %v5930, %v5930
        %v7339 = vmul.f32 %v5931, %v5931
        %v7340 = vmul.f32 %v5932, %v5932
        %v7341 = vmul.f32 %v5933, %v5933
        %v7342 = vmul.f32 %v6062, %v6062
        %v7343 = vmul.f32 %v6063, %v6063
        %v7344 = vmul.f32 %v6064, %v6064
        %v7345 = vmul.f32 %v6065, %v6065
        %v7346 = vmul.f32 %v6066, %v6066
        %v7347 = vmul.f32 %v6067, %v6067
        %v7348 = vmul.f32 %v6068, %v6068
        %v7349 = vmul.f32 %v6069, %v6069
        %v7350 = vmul.f32 %v6198, %v6198
        %v7351 = vmul.f32 %v6199, %v6199
        %v7352 = vmul.f32 %v6200, %v6200
        %v7353 = vmul.f32 %v6201, %v6201
        %v7354 = vmul.f32 %v6202, %v6202
        %v7355 = vmul.f32 %v6203, %v6203
        %v7356 = vmul.f32 %v6204, %v6204
        %v7357 = vmul.f32 %v6205, %v6205
        %v7358 = vmul.f32 %v6334, %v6334
        %v7359 = vmul.f32 %v6335, %v6335
        %v7360 = vmul.f32 %v6336, %v6336
        %v7361 = vmul.f32 %v6337, %v6337
        %v7362 = vmul.f32 %v6338, %v6338
        %v7363 = vmul.f32 %v6339, %v6339
        %v7364 = vmul.f32 %v6340, %v6340
        %v7365 = vmul.f32 %v6341, %v6341
        %v7366 = vmul.f32 %v6470, %v6470
        %v7367 = vmul.f32 %v6471, %v6471
        %v7368 = vmul.f32 %v6472, %v6472
        %v7369 = vmul.f32 %v6473, %v6473
        %v7370 = vmul.f32 %v6474, %v6474
        %v7371 = vmul.f32 %v6475, %v6475
        %v7372 = vmul.f32 %v6476, %v6476
        %v7373 = vmul.f32 %v6477, %v6477
        %v7374 = vmul.f32 %v6606, %v6606
        %v7375 = vmul.f32 %v6607, %v6607
        %v7376 = vmul.f32 %v6608, %v6608
        %v7377 = vmul.f32 %v6609, %v6609
        %v7378 = vmul.f32 %v6610, %v6610
        %v7379 = vmul.f32 %v6611, %v6611
        %v7380 = vmul.f32 %v6612, %v6612
        %v7381 = vmul.f32 %v6613, %v6613
        %v7382 = vmul.f32 %v6742, %v6742
        %v7383 = vmul.f32 %v6743, %v6743
        %v7384 = vmul.f32 %v6744, %v6744
        %v7385 = vmul.f32 %v6745, %v6745
        %v7386 = vmul.f32 %v6746, %v6746
        %v7387 = vmul.f32 %v6747, %v6747
        %v7388 = vmul.f32 %v6748, %v6748
        %v7389 = vmul.f32 %v6749, %v6749
        %v7390 = vmul.f32 %v6878, %v6878
        %v7391 = vmul.f32 %v6879, %v6879
        %v7392 = vmul.f32 %v6880, %v6880
        %v7393 = vmul.f32 %v6881, %v6881
        %v7394 = vmul.f32 %v6882, %v6882
        %v7395 = vmul.f32 %v6883, %v6883
        %v7396 = vmul.f32 %v6884, %v6884
        %v7397 = vmul.f32 %v6885, %v6885
        %v7398 = vmul.f32 %v7014, %v7014
        %v7399 = vmul.f32 %v7015, %v7015
        %v7400 = vmul.f32 %v7016, %v7016
        %v7401 = vmul.f32 %v7017, %v7017
        %v7402 = vmul.f32 %v7018, %v7018
        %v7403 = vmul.f32 %v7019, %v7019
        %v7404 = vmul.f32 %v7020, %v7020
        %v7405 = vmul.f32 %v7021, %v7021
        %v7406 = vmul.f32 %v7150, %v7150
        %v7407 = vmul.f32 %v7151, %v7151
        %v7408 = vmul.f32 %v7152, %v7152
        %v7409 = vmul.f32 %v7153, %v7153
        %v7410 = vmul.f32 %v7154, %v7154
        %v7411 = vmul.f32 %v7155, %v7155
        %v7412 = vmul.f32 %v7156, %v7156
        %v7413 = vmul.f32 %v7157, %v7157
        %v7414 = vmul.f32 %v7286, %v7286
        %v7415 = vmul.f32 %v7287, %v7287
        %v7416 = vmul.f32 %v7288, %v7288
        %v7417 = vmul.f32 %v7289, %v7289
        %v7418 = vmul.f32 %v7290, %v7290
        %v7419 = vmul.f32 %v7291, %v7291
        %v7420 = vmul.f32 %v7292, %v7292
        %v7421 = vmul.f32 %v7293, %v7293
        %7422 = vadd.xlane.f32.xlu0 %v7294
        %v7423 = vpop.xlane.xlu0 %7422
        %7424 = vadd.xlane.f32.xlu0 %v7295
        %v7425 = vpop.xlane.xlu0 %7424
        %7426 = vadd.xlane.f32.xlu0 %v7296
        %v7427 = vpop.xlane.xlu0 %7426
        %7428 = vadd.xlane.f32.xlu0 %v7297
        %v7429 = vpop.xlane.xlu0 %7428
        %7430 = vadd.xlane.f32.xlu0 %v7298
        %v7431 = vpop.xlane.xlu0 %7430
        %7432 = vadd.xlane.f32.xlu0 %v7299
        %v7433 = vpop.xlane.xlu0 %7432
        %7434 = vadd.xlane.f32.xlu0 %v7300
        %v7435 = vpop.xlane.xlu0 %7434
        %7436 = vadd.xlane.f32.xlu0 %v7301
        %v7437 = vpop.xlane.xlu0 %7436
        %7438 = vadd.xlane.f32.xlu0 %v7302
        %v7439 = vpop.xlane.xlu0 %7438
        %7440 = vadd.xlane.f32.xlu0 %v7303
        %v7441 = vpop.xlane.xlu0 %7440
        %7442 = vadd.xlane.f32.xlu0 %v7304
        %v7443 = vpop.xlane.xlu0 %7442
        %7444 = vadd.xlane.f32.xlu0 %v7305
        %v7445 = vpop.xlane.xlu0 %7444
        %7446 = vadd.xlane.f32.xlu0 %v7306
        %v7447 = vpop.xlane.xlu0 %7446
        %7448 = vadd.xlane.f32.xlu0 %v7307
        %v7449 = vpop.xlane.xlu0 %7448
        %7450 = vadd.xlane.f32.xlu0 %v7308
        %v7451 = vpop.xlane.xlu0 %7450
        %7452 = vadd.xlane.f32.xlu0 %v7309
        %v7453 = vpop.xlane.xlu0 %7452
        %7454 = vadd.xlane.f32.xlu0 %v7310
        %v7455 = vpop.xlane.xlu0 %7454
        %7456 = vadd.xlane.f32.xlu0 %v7311
        %v7457 = vpop.xlane.xlu0 %7456
        %7458 = vadd.xlane.f32.xlu0 %v7312
        %v7459 = vpop.xlane.xlu0 %7458
        %7460 = vadd.xlane.f32.xlu0 %v7313
        %v7461 = vpop.xlane.xlu0 %7460
        %7462 = vadd.xlane.f32.xlu0 %v7314
        %v7463 = vpop.xlane.xlu0 %7462
        %7464 = vadd.xlane.f32.xlu0 %v7315
        %v7465 = vpop.xlane.xlu0 %7464
        %7466 = vadd.xlane.f32.xlu0 %v7316
        %v7467 = vpop.xlane.xlu0 %7466
        %7468 = vadd.xlane.f32.xlu0 %v7317
        %v7469 = vpop.xlane.xlu0 %7468
        %7470 = vadd.xlane.f32.xlu0 %v7318
        %v7471 = vpop.xlane.xlu0 %7470
        %7472 = vadd.xlane.f32.xlu0 %v7319
        %v7473 = vpop.xlane.xlu0 %7472
        %7474 = vadd.xlane.f32.xlu0 %v7320
        %v7475 = vpop.xlane.xlu0 %7474
        %7476 = vadd.xlane.f32.xlu0 %v7321
        %v7477 = vpop.xlane.xlu0 %7476
        %7478 = vadd.xlane.f32.xlu0 %v7322
        %v7479 = vpop.xlane.xlu0 %7478
        %7480 = vadd.xlane.f32.xlu0 %v7323
        %v7481 = vpop.xlane.xlu0 %7480
        %7482 = vadd.xlane.f32.xlu0 %v7324
        %v7483 = vpop.xlane.xlu0 %7482
        %7484 = vadd.xlane.f32.xlu0 %v7325
        %v7485 = vpop.xlane.xlu0 %7484
        %7486 = vadd.xlane.f32.xlu0 %v7326
        %v7487 = vpop.xlane.xlu0 %7486
        %7488 = vadd.xlane.f32.xlu0 %v7327
        %v7489 = vpop.xlane.xlu0 %7488
        %7490 = vadd.xlane.f32.xlu0 %v7328
        %v7491 = vpop.xlane.xlu0 %7490
        %7492 = vadd.xlane.f32.xlu0 %v7329
        %v7493 = vpop.xlane.xlu0 %7492
        %7494 = vadd.xlane.f32.xlu0 %v7330
        %v7495 = vpop.xlane.xlu0 %7494
        %7496 = vadd.xlane.f32.xlu0 %v7331
        %v7497 = vpop.xlane.xlu0 %7496
        %7498 = vadd.xlane.f32.xlu0 %v7332
        %v7499 = vpop.xlane.xlu0 %7498
        %7500 = vadd.xlane.f32.xlu0 %v7333
        %v7501 = vpop.xlane.xlu0 %7500
        %7502 = vadd.xlane.f32.xlu0 %v7334
        %v7503 = vpop.xlane.xlu0 %7502
        %7504 = vadd.xlane.f32.xlu0 %v7335
        %v7505 = vpop.xlane.xlu0 %7504
        %7506 = vadd.xlane.f32.xlu0 %v7336
        %v7507 = vpop.xlane.xlu0 %7506
        %7508 = vadd.xlane.f32.xlu0 %v7337
        %v7509 = vpop.xlane.xlu0 %7508
        %7510 = vadd.xlane.f32.xlu0 %v7338
        %v7511 = vpop.xlane.xlu0 %7510
        %7512 = vadd.xlane.f32.xlu0 %v7339
        %v7513 = vpop.xlane.xlu0 %7512
        %7514 = vadd.xlane.f32.xlu0 %v7340
        %v7515 = vpop.xlane.xlu0 %7514
        %7516 = vadd.xlane.f32.xlu0 %v7341
        %v7517 = vpop.xlane.xlu0 %7516
        %7518 = vadd.xlane.f32.xlu0 %v7342
        %v7519 = vpop.xlane.xlu0 %7518
        %7520 = vadd.xlane.f32.xlu0 %v7343
        %v7521 = vpop.xlane.xlu0 %7520
        %7522 = vadd.xlane.f32.xlu0 %v7344
        %v7523 = vpop.xlane.xlu0 %7522
        %7524 = vadd.xlane.f32.xlu0 %v7345
        %v7525 = vpop.xlane.xlu0 %7524
        %7526 = vadd.xlane.f32.xlu0 %v7346
        %v7527 = vpop.xlane.xlu0 %7526
        %7528 = vadd.xlane.f32.xlu0 %v7347
        %v7529 = vpop.xlane.xlu0 %7528
        %7530 = vadd.xlane.f32.xlu0 %v7348
        %v7531 = vpop.xlane.xlu0 %7530
        %7532 = vadd.xlane.f32.xlu0 %v7349
        %v7533 = vpop.xlane.xlu0 %7532
        %7534 = vadd.xlane.f32.xlu0 %v7350
        %v7535 = vpop.xlane.xlu0 %7534
        %7536 = vadd.xlane.f32.xlu0 %v7351
        %v7537 = vpop.xlane.xlu0 %7536
        %7538 = vadd.xlane.f32.xlu0 %v7352
        %v7539 = vpop.xlane.xlu0 %7538
        %7540 = vadd.xlane.f32.xlu0 %v7353
        %v7541 = vpop.xlane.xlu0 %7540
        %7542 = vadd.xlane.f32.xlu0 %v7354
        %v7543 = vpop.xlane.xlu0 %7542
        %7544 = vadd.xlane.f32.xlu0 %v7355
        %v7545 = vpop.xlane.xlu0 %7544
        %7546 = vadd.xlane.f32.xlu0 %v7356
        %v7547 = vpop.xlane.xlu0 %7546
        %7548 = vadd.xlane.f32.xlu0 %v7357
        %v7549 = vpop.xlane.xlu0 %7548
        %7550 = vadd.xlane.f32.xlu0 %v7358
        %v7551 = vpop.xlane.xlu0 %7550
        %7552 = vadd.xlane.f32.xlu0 %v7359
        %v7553 = vpop.xlane.xlu0 %7552
        %7554 = vadd.xlane.f32.xlu0 %v7360
        %v7555 = vpop.xlane.xlu0 %7554
        %7556 = vadd.xlane.f32.xlu0 %v7361
        %v7557 = vpop.xlane.xlu0 %7556
        %7558 = vadd.xlane.f32.xlu0 %v7362
        %v7559 = vpop.xlane.xlu0 %7558
        %7560 = vadd.xlane.f32.xlu0 %v7363
        %v7561 = vpop.xlane.xlu0 %7560
        %7562 = vadd.xlane.f32.xlu0 %v7364
        %v7563 = vpop.xlane.xlu0 %7562
        %7564 = vadd.xlane.f32.xlu0 %v7365
        %v7565 = vpop.xlane.xlu0 %7564
        %7566 = vadd.xlane.f32.xlu0 %v7366
        %v7567 = vpop.xlane.xlu0 %7566
        %7568 = vadd.xlane.f32.xlu0 %v7367
        %v7569 = vpop.xlane.xlu0 %7568
        %7570 = vadd.xlane.f32.xlu0 %v7368
        %v7571 = vpop.xlane.xlu0 %7570
        %7572 = vadd.xlane.f32.xlu0 %v7369
        %v7573 = vpop.xlane.xlu0 %7572
        %7574 = vadd.xlane.f32.xlu0 %v7370
        %v7575 = vpop.xlane.xlu0 %7574
        %7576 = vadd.xlane.f32.xlu0 %v7371
        %v7577 = vpop.xlane.xlu0 %7576
        %7578 = vadd.xlane.f32.xlu0 %v7372
        %v7579 = vpop.xlane.xlu0 %7578
        %7580 = vadd.xlane.f32.xlu0 %v7373
        %v7581 = vpop.xlane.xlu0 %7580
        %7582 = vadd.xlane.f32.xlu0 %v7374
        %v7583 = vpop.xlane.xlu0 %7582
        %7584 = vadd.xlane.f32.xlu0 %v7375
        %v7585 = vpop.xlane.xlu0 %7584
        %7586 = vadd.xlane.f32.xlu0 %v7376
        %v7587 = vpop.xlane.xlu0 %7586
        %7588 = vadd.xlane.f32.xlu0 %v7377
        %v7589 = vpop.xlane.xlu0 %7588
        %7590 = vadd.xlane.f32.xlu0 %v7378
        %v7591 = vpop.xlane.xlu0 %7590
        %7592 = vadd.xlane.f32.xlu0 %v7379
        %v7593 = vpop.xlane.xlu0 %7592
        %7594 = vadd.xlane.f32.xlu0 %v7380
        %v7595 = vpop.xlane.xlu0 %7594
        %7596 = vadd.xlane.f32.xlu0 %v7381
        %v7597 = vpop.xlane.xlu0 %7596
        %7598 = vadd.xlane.f32.xlu0 %v7382
        %v7599 = vpop.xlane.xlu0 %7598
        %7600 = vadd.xlane.f32.xlu0 %v7383
        %v7601 = vpop.xlane.xlu0 %7600
        %7602 = vadd.xlane.f32.xlu0 %v7384
        %v7603 = vpop.xlane.xlu0 %7602
        %7604 = vadd.xlane.f32.xlu0 %v7385
        %v7605 = vpop.xlane.xlu0 %7604
        %7606 = vadd.xlane.f32.xlu0 %v7386
        %v7607 = vpop.xlane.xlu0 %7606
        %7608 = vadd.xlane.f32.xlu0 %v7387
        %v7609 = vpop.xlane.xlu0 %7608
        %7610 = vadd.xlane.f32.xlu0 %v7388
        %v7611 = vpop.xlane.xlu0 %7610
        %7612 = vadd.xlane.f32.xlu0 %v7389
        %v7613 = vpop.xlane.xlu0 %7612
        %7614 = vadd.xlane.f32.xlu0 %v7390
        %v7615 = vpop.xlane.xlu0 %7614
        %7616 = vadd.xlane.f32.xlu0 %v7391
        %v7617 = vpop.xlane.xlu0 %7616
        %7618 = vadd.xlane.f32.xlu0 %v7392
        %v7619 = vpop.xlane.xlu0 %7618
        %7620 = vadd.xlane.f32.xlu0 %v7393
        %v7621 = vpop.xlane.xlu0 %7620
        %7622 = vadd.xlane.f32.xlu0 %v7394
        %v7623 = vpop.xlane.xlu0 %7622
        %7624 = vadd.xlane.f32.xlu0 %v7395
        %v7625 = vpop.xlane.xlu0 %7624
        %7626 = vadd.xlane.f32.xlu0 %v7396
        %v7627 = vpop.xlane.xlu0 %7626
        %7628 = vadd.xlane.f32.xlu0 %v7397
        %v7629 = vpop.xlane.xlu0 %7628
        %7630 = vadd.xlane.f32.xlu0 %v7398
        %v7631 = vpop.xlane.xlu0 %7630
        %7632 = vadd.xlane.f32.xlu0 %v7399
        %v7633 = vpop.xlane.xlu0 %7632
        %7634 = vadd.xlane.f32.xlu0 %v7400
        %v7635 = vpop.xlane.xlu0 %7634
        %7636 = vadd.xlane.f32.xlu0 %v7401
        %v7637 = vpop.xlane.xlu0 %7636
        %7638 = vadd.xlane.f32.xlu0 %v7402
        %v7639 = vpop.xlane.xlu0 %7638
        %7640 = vadd.xlane.f32.xlu0 %v7403
        %v7641 = vpop.xlane.xlu0 %7640
        %7642 = vadd.xlane.f32.xlu0 %v7404
        %v7643 = vpop.xlane.xlu0 %7642
        %7644 = vadd.xlane.f32.xlu0 %v7405
        %v7645 = vpop.xlane.xlu0 %7644
        %7646 = vadd.xlane.f32.xlu0 %v7406
        %v7647 = vpop.xlane.xlu0 %7646
        %7648 = vadd.xlane.f32.xlu0 %v7407
        %v7649 = vpop.xlane.xlu0 %7648
        %7650 = vadd.xlane.f32.xlu0 %v7408
        %v7651 = vpop.xlane.xlu0 %7650
        %7652 = vadd.xlane.f32.xlu0 %v7409
        %v7653 = vpop.xlane.xlu0 %7652
        %7654 = vadd.xlane.f32.xlu0 %v7410
        %v7655 = vpop.xlane.xlu0 %7654
        %7656 = vadd.xlane.f32.xlu0 %v7411
        %v7657 = vpop.xlane.xlu0 %7656
        %7658 = vadd.xlane.f32.xlu0 %v7412
        %v7659 = vpop.xlane.xlu0 %7658
        %7660 = vadd.xlane.f32.xlu0 %v7413
        %v7661 = vpop.xlane.xlu0 %7660
        %7662 = vadd.xlane.f32.xlu0 %v7414
        %v7663 = vpop.xlane.xlu0 %7662
        %7664 = vadd.xlane.f32.xlu0 %v7415
        %v7665 = vpop.xlane.xlu0 %7664
        %7666 = vadd.xlane.f32.xlu0 %v7416
        %v7667 = vpop.xlane.xlu0 %7666
        %7668 = vadd.xlane.f32.xlu0 %v7417
        %v7669 = vpop.xlane.xlu0 %7668
        %7670 = vadd.xlane.f32.xlu0 %v7418
        %v7671 = vpop.xlane.xlu0 %7670
        %7672 = vadd.xlane.f32.xlu0 %v7419
        %v7673 = vpop.xlane.xlu0 %7672
        %7674 = vadd.xlane.f32.xlu0 %v7420
        %v7675 = vpop.xlane.xlu0 %7674
        %7676 = vadd.xlane.f32.xlu0 %v7421
        %v7677 = vpop.xlane.xlu0 %7676
        %v7678 = vrsqrt.pop %v7423
        %v7679 = vrsqrt.pop %v7425
        %v7680 = vrsqrt.pop %v7427
        %v7681 = vrsqrt.pop %v7429
        %v7682 = vrsqrt.pop %v7431
        %v7683 = vrsqrt.pop %v7433
        %v7684 = vrsqrt.pop %v7435
        %v7685 = vrsqrt.pop %v7437
        %v7686 = vrsqrt.pop %v7439
        %v7687 = vrsqrt.pop %v7441
        %v7688 = vrsqrt.pop %v7443
        %v7689 = vrsqrt.pop %v7445
        %v7690 = vrsqrt.pop %v7447
        %v7691 = vrsqrt.pop %v7449
        %v7692 = vrsqrt.pop %v7451
        %v7693 = vrsqrt.pop %v7453
        %v7694 = vrsqrt.pop %v7455
        %v7695 = vrsqrt.pop %v7457
        %v7696 = vrsqrt.pop %v7459
        %v7697 = vrsqrt.pop %v7461
        %v7698 = vrsqrt.pop %v7463
        %v7699 = vrsqrt.pop %v7465
        %v7700 = vrsqrt.pop %v7467
        %v7701 = vrsqrt.pop %v7469
        %v7702 = vrsqrt.pop %v7471
        %v7703 = vrsqrt.pop %v7473
        %v7704 = vrsqrt.pop %v7475
        %v7705 = vrsqrt.pop %v7477
        %v7706 = vrsqrt.pop %v7479
        %v7707 = vrsqrt.pop %v7481
        %v7708 = vrsqrt.pop %v7483
        %v7709 = vrsqrt.pop %v7485
        %v7710 = vrsqrt.pop %v7487
        %v7711 = vrsqrt.pop %v7489
        %v7712 = vrsqrt.pop %v7491
        %v7713 = vrsqrt.pop %v7493
        %v7714 = vrsqrt.pop %v7495
        %v7715 = vrsqrt.pop %v7497
        %v7716 = vrsqrt.pop %v7499
        %v7717 = vrsqrt.pop %v7501
        %v7718 = vrsqrt.pop %v7503
        %v7719 = vrsqrt.pop %v7505
        %v7720 = vrsqrt.pop %v7507
        %v7721 = vrsqrt.pop %v7509
        %v7722 = vrsqrt.pop %v7511
        %v7723 = vrsqrt.pop %v7513
        %v7724 = vrsqrt.pop %v7515
        %v7725 = vrsqrt.pop %v7517
        %v7726 = vrsqrt.pop %v7519
        %v7727 = vrsqrt.pop %v7521
        %v7728 = vrsqrt.pop %v7523
        %v7729 = vrsqrt.pop %v7525
        %v7730 = vrsqrt.pop %v7527
        %v7731 = vrsqrt.pop %v7529
        %v7732 = vrsqrt.pop %v7531
        %v7733 = vrsqrt.pop %v7533
        %v7734 = vrsqrt.pop %v7535
        %v7735 = vrsqrt.pop %v7537
        %v7736 = vrsqrt.pop %v7539
        %v7737 = vrsqrt.pop %v7541
        %v7738 = vrsqrt.pop %v7543
        %v7739 = vrsqrt.pop %v7545
        %v7740 = vrsqrt.pop %v7547
        %v7741 = vrsqrt.pop %v7549
        %v7742 = vrsqrt.pop %v7551
        %v7743 = vrsqrt.pop %v7553
        %v7744 = vrsqrt.pop %v7555
        %v7745 = vrsqrt.pop %v7557
        %v7746 = vrsqrt.pop %v7559
        %v7747 = vrsqrt.pop %v7561
        %v7748 = vrsqrt.pop %v7563
        %v7749 = vrsqrt.pop %v7565
        %v7750 = vrsqrt.pop %v7567
        %v7751 = vrsqrt.pop %v7569
        %v7752 = vrsqrt.pop %v7571
        %v7753 = vrsqrt.pop %v7573
        %v7754 = vrsqrt.pop %v7575
        %v7755 = vrsqrt.pop %v7577
        %v7756 = vrsqrt.pop %v7579
        %v7757 = vrsqrt.pop %v7581
        %v7758 = vrsqrt.pop %v7583
        %v7759 = vrsqrt.pop %v7585
        %v7760 = vrsqrt.pop %v7587
        %v7761 = vrsqrt.pop %v7589
        %v7762 = vrsqrt.pop %v7591
        %v7763 = vrsqrt.pop %v7593
        %v7764 = vrsqrt.pop %v7595
        %v7765 = vrsqrt.pop %v7597
        %v7766 = vrsqrt.pop %v7599
        %v7767 = vrsqrt.pop %v7601
        %v7768 = vrsqrt.pop %v7603
        %v7769 = vrsqrt.pop %v7605
        %v7770 = vrsqrt.pop %v7607
        %v7771 = vrsqrt.pop %v7609
        %v7772 = vrsqrt.pop %v7611
        %v7773 = vrsqrt.pop %v7613
        %v7774 = vrsqrt.pop %v7615
        %v7775 = vrsqrt.pop %v7617
        %v7776 = vrsqrt.pop %v7619
        %v7777 = vrsqrt.pop %v7621
        %v7778 = vrsqrt.pop %v7623
        %v7779 = vrsqrt.pop %v7625
        %v7780 = vrsqrt.pop %v7627
        %v7781 = vrsqrt.pop %v7629
        %v7782 = vrsqrt.pop %v7631
        %v7783 = vrsqrt.pop %v7633
        %v7784 = vrsqrt.pop %v7635
        %v7785 = vrsqrt.pop %v7637
        %v7786 = vrsqrt.pop %v7639
        %v7787 = vrsqrt.pop %v7641
        %v7788 = vrsqrt.pop %v7643
        %v7789 = vrsqrt.pop %v7645
        %v7790 = vrsqrt.pop %v7647
        %v7791 = vrsqrt.pop %v7649
        %v7792 = vrsqrt.pop %v7651
        %v7793 = vrsqrt.pop %v7653
        %v7794 = vrsqrt.pop %v7655
        %v7795 = vrsqrt.pop %v7657
        %v7796 = vrsqrt.pop %v7659
        %v7797 = vrsqrt.pop %v7661
        %v7798 = vrsqrt.pop %v7663
        %v7799 = vrsqrt.pop %v7665
        %v7800 = vrsqrt.pop %v7667
        %v7801 = vrsqrt.pop %v7669
        %v7802 = vrsqrt.pop %v7671
        %v7803 = vrsqrt.pop %v7673
        %v7804 = vrsqrt.pop %v7675
        %v7805 = vrsqrt.pop %v7677
        %v7806 = vmul.f32 %v5246, %v7678
        %v7807 = vmul.f32 %v5247, %v7679
        %v7808 = vmul.f32 %v5248, %v7680
        %v7809 = vmul.f32 %v5249, %v7681
        %v7810 = vmul.f32 %v5250, %v7682
        %v7811 = vmul.f32 %v5251, %v7683
        %v7812 = vmul.f32 %v5252, %v7684
        %v7813 = vmul.f32 %v5253, %v7685
        %v7814 = vmul.f32 %v5382, %v7686
        %v7815 = vmul.f32 %v5383, %v7687
        %v7816 = vmul.f32 %v5384, %v7688
        %v7817 = vmul.f32 %v5385, %v7689
        %v7818 = vmul.f32 %v5386, %v7690
        %v7819 = vmul.f32 %v5387, %v7691
        %v7820 = vmul.f32 %v5388, %v7692
        %v7821 = vmul.f32 %v5389, %v7693
        %v7822 = vmul.f32 %v5518, %v7694
        %v7823 = vmul.f32 %v5519, %v7695
        %v7824 = vmul.f32 %v5520, %v7696
        %v7825 = vmul.f32 %v5521, %v7697
        %v7826 = vmul.f32 %v5522, %v7698
        %v7827 = vmul.f32 %v5523, %v7699
        %v7828 = vmul.f32 %v5524, %v7700
        %v7829 = vmul.f32 %v5525, %v7701
        %v7830 = vmul.f32 %v5654, %v7702
        %v7831 = vmul.f32 %v5655, %v7703
        %v7832 = vmul.f32 %v5656, %v7704
        %v7833 = vmul.f32 %v5657, %v7705
        %v7834 = vmul.f32 %v5658, %v7706
        %v7835 = vmul.f32 %v5659, %v7707
        %v7836 = vmul.f32 %v5660, %v7708
        %v7837 = vmul.f32 %v5661, %v7709
        %v7838 = vmul.f32 %v5790, %v7710
        %v7839 = vmul.f32 %v5791, %v7711
        %v7840 = vmul.f32 %v5792, %v7712
        %v7841 = vmul.f32 %v5793, %v7713
        %v7842 = vmul.f32 %v5794, %v7714
        %v7843 = vmul.f32 %v5795, %v7715
        %v7844 = vmul.f32 %v5796, %v7716
        %v7845 = vmul.f32 %v5797, %v7717
        %v7846 = vmul.f32 %v5926, %v7718
        %v7847 = vmul.f32 %v5927, %v7719
        %v7848 = vmul.f32 %v5928, %v7720
        %v7849 = vmul.f32 %v5929, %v7721
        %v7850 = vmul.f32 %v5930, %v7722
        %v7851 = vmul.f32 %v5931, %v7723
        %v7852 = vmul.f32 %v5932, %v7724
        %v7853 = vmul.f32 %v5933, %v7725
        %v7854 = vmul.f32 %v6062, %v7726
        %v7855 = vmul.f32 %v6063, %v7727
        %v7856 = vmul.f32 %v6064, %v7728
        %v7857 = vmul.f32 %v6065, %v7729
        %v7858 = vmul.f32 %v6066, %v7730
        %v7859 = vmul.f32 %v6067, %v7731
        %v7860 = vmul.f32 %v6068, %v7732
        %v7861 = vmul.f32 %v6069, %v7733
        %v7862 = vmul.f32 %v6198, %v7734
        %v7863 = vmul.f32 %v6199, %v7735
        %v7864 = vmul.f32 %v6200, %v7736
        %v7865 = vmul.f32 %v6201, %v7737
        %v7866 = vmul.f32 %v6202, %v7738
        %v7867 = vmul.f32 %v6203, %v7739
        %v7868 = vmul.f32 %v6204, %v7740
        %v7869 = vmul.f32 %v6205, %v7741
        %v7870 = vmul.f32 %v6334, %v7742
        %v7871 = vmul.f32 %v6335, %v7743
        %v7872 = vmul.f32 %v6336, %v7744
        %v7873 = vmul.f32 %v6337, %v7745
        %v7874 = vmul.f32 %v6338, %v7746
        %v7875 = vmul.f32 %v6339, %v7747
        %v7876 = vmul.f32 %v6340, %v7748
        %v7877 = vmul.f32 %v6341, %v7749
        %v7878 = vmul.f32 %v6470, %v7750
        %v7879 = vmul.f32 %v6471, %v7751
        %v7880 = vmul.f32 %v6472, %v7752
        %v7881 = vmul.f32 %v6473, %v7753
        %v7882 = vmul.f32 %v6474, %v7754
        %v7883 = vmul.f32 %v6475, %v7755
        %v7884 = vmul.f32 %v6476, %v7756
        %v7885 = vmul.f32 %v6477, %v7757
        %v7886 = vmul.f32 %v6606, %v7758
        %v7887 = vmul.f32 %v6607, %v7759
        %v7888 = vmul.f32 %v6608, %v7760
        %v7889 = vmul.f32 %v6609, %v7761
        %v7890 = vmul.f32 %v6610, %v7762
        %v7891 = vmul.f32 %v6611, %v7763
        %v7892 = vmul.f32 %v6612, %v7764
        %v7893 = vmul.f32 %v6613, %v7765
        %v7894 = vmul.f32 %v6742, %v7766
        %v7895 = vmul.f32 %v6743, %v7767
        %v7896 = vmul.f32 %v6744, %v7768
        %v7897 = vmul.f32 %v6745, %v7769
        %v7898 = vmul.f32 %v6746, %v7770
        %v7899 = vmul.f32 %v6747, %v7771
        %v7900 = vmul.f32 %v6748, %v7772
        %v7901 = vmul.f32 %v6749, %v7773
        %v7902 = vmul.f32 %v6878, %v7774
        %v7903 = vmul.f32 %v6879, %v7775
        %v7904 = vmul.f32 %v6880, %v7776
        %v7905 = vmul.f32 %v6881, %v7777
        %v7906 = vmul.f32 %v6882, %v7778
        %v7907 = vmul.f32 %v6883, %v7779
        %v7908 = vmul.f32 %v6884, %v7780
        %v7909 = vmul.f32 %v6885, %v7781
        %v7910 = vmul.f32 %v7014, %v7782
        %v7911 = vmul.f32 %v7015, %v7783
        %v7912 = vmul.f32 %v7016, %v7784
        %v7913 = vmul.f32 %v7017, %v7785
        %v7914 = vmul.f32 %v7018, %v7786
        %v7915 = vmul.f32 %v7019, %v7787
        %v7916 = vmul.f32 %v7020, %v7788
        %v7917 = vmul.f32 %v7021, %v7789
        %v7918 = vmul.f32 %v7150, %v7790
        %v7919 = vmul.f32 %v7151, %v7791
        %v7920 = vmul.f32 %v7152, %v7792
        %v7921 = vmul.f32 %v7153, %v7793
        %v7922 = vmul.f32 %v7154, %v7794
        %v7923 = vmul.f32 %v7155, %v7795
        %v7924 = vmul.f32 %v7156, %v7796
        %v7925 = vmul.f32 %v7157, %v7797
        %v7926 = vmul.f32 %v7286, %v7798
        %v7927 = vmul.f32 %v7287, %v7799
        %v7928 = vmul.f32 %v7288, %v7800
        %v7929 = vmul.f32 %v7289, %v7801
        %v7930 = vmul.f32 %v7290, %v7802
        %v7931 = vmul.f32 %v7291, %v7803
        %v7932 = vmul.f32 %v7292, %v7804
        %v7933 = vmul.f32 %v7293, %v7805
        %7934 = vst [vmem:[%s187] sm:$0xff] %v7806
        %7935 = vst [vmem:[%s187 + $0x8] sm:$0xff] %v7807
        %7936 = vst [vmem:[%s187 + $0x10] sm:$0xff] %v7808
        %7937 = vst [vmem:[%s187 + $0x18] sm:$0xff] %v7809
        %7938 = vst [vmem:[%s187 + $0x20] sm:$0xff] %v7810
        %7939 = vst [vmem:[%s187 + $0x28] sm:$0xff] %v7811
        %7940 = vst [vmem:[%s187 + $0x30] sm:$0xff] %v7812
        %7941 = vst [vmem:[%s187 + $0x38] sm:$0xff] %v7813
        %7942 = vst [vmem:[%s187 + $0x40] sm:$0xff] %v7814
        %7943 = vst [vmem:[%s187 + $0x48] sm:$0xff] %v7815
        %7944 = vst [vmem:[%s187 + $0x50] sm:$0xff] %v7816
        %7945 = vst [vmem:[%s187 + $0x58] sm:$0xff] %v7817
        %7946 = vst [vmem:[%s187 + $0x60] sm:$0xff] %v7818
        %7947 = vst [vmem:[%s187 + $0x68] sm:$0xff] %v7819
        %7948 = vst [vmem:[%s187 + $0x70] sm:$0xff] %v7820
        %7949 = vst [vmem:[%s187 + $0x78] sm:$0xff] %v7821
        %7950 = vst [vmem:[%s187 + $0x80] sm:$0xff] %v7822
        %7951 = vst [vmem:[%s187 + $0x88] sm:$0xff] %v7823
        %7952 = vst [vmem:[%s187 + $0x90] sm:$0xff] %v7824
        %7953 = vst [vmem:[%s187 + $0x98] sm:$0xff] %v7825
        %7954 = vst [vmem:[%s187 + $0xa0] sm:$0xff] %v7826
        %7955 = vst [vmem:[%s187 + $0xa8] sm:$0xff] %v7827
        %7956 = vst [vmem:[%s187 + $0xb0] sm:$0xff] %v7828
        %7957 = vst [vmem:[%s187 + $0xb8] sm:$0xff] %v7829
        %7958 = vst [vmem:[%s187 + $0xc0] sm:$0xff] %v7830
        %7959 = vst [vmem:[%s187 + $0xc8] sm:$0xff] %v7831
        %7960 = vst [vmem:[%s187 + $0xd0] sm:$0xff] %v7832
        %7961 = vst [vmem:[%s187 + $0xd8] sm:$0xff] %v7833
        %7962 = vst [vmem:[%s187 + $0xe0] sm:$0xff] %v7834
        %7963 = vst [vmem:[%s187 + $0xe8] sm:$0xff] %v7835
        %7964 = vst [vmem:[%s187 + $0xf0] sm:$0xff] %v7836
        %7965 = vst [vmem:[%s187 + $0xf8] sm:$0xff] %v7837
        %7966 = vst [vmem:[%s187 + $0x100] sm:$0xff] %v7838
        %7967 = vst [vmem:[%s187 + $0x108] sm:$0xff] %v7839
        %7968 = vst [vmem:[%s187 + $0x110] sm:$0xff] %v7840
        %7969 = vst [vmem:[%s187 + $0x118] sm:$0xff] %v7841
        %7970 = vst [vmem:[%s187 + $0x120] sm:$0xff] %v7842
        %7971 = vst [vmem:[%s187 + $0x128] sm:$0xff] %v7843
        %7972 = vst [vmem:[%s187 + $0x130] sm:$0xff] %v7844
        %7973 = vst [vmem:[%s187 + $0x138] sm:$0xff] %v7845
        %7974 = vst [vmem:[%s187 + $0x140] sm:$0xff] %v7846
        %7975 = vst [vmem:[%s187 + $0x148] sm:$0xff] %v7847
        %7976 = vst [vmem:[%s187 + $0x150] sm:$0xff] %v7848
        %7977 = vst [vmem:[%s187 + $0x158] sm:$0xff] %v7849
        %7978 = vst [vmem:[%s187 + $0x160] sm:$0xff] %v7850
        %7979 = vst [vmem:[%s187 + $0x168] sm:$0xff] %v7851
        %7980 = vst [vmem:[%s187 + $0x170] sm:$0xff] %v7852
        %7981 = vst [vmem:[%s187 + $0x178] sm:$0xff] %v7853
        %7982 = vst [vmem:[%s187 + $0x180] sm:$0xff] %v7854
        %7983 = vst [vmem:[%s187 + $0x188] sm:$0xff] %v7855
        %7984 = vst [vmem:[%s187 + $0x190] sm:$0xff] %v7856
        %7985 = vst [vmem:[%s187 + $0x198] sm:$0xff] %v7857
        %7986 = vst [vmem:[%s187 + $0x1a0] sm:$0xff] %v7858
        %7987 = vst [vmem:[%s187 + $0x1a8] sm:$0xff] %v7859
        %7988 = vst [vmem:[%s187 + $0x1b0] sm:$0xff] %v7860
        %7989 = vst [vmem:[%s187 + $0x1b8] sm:$0xff] %v7861
        %7990 = vst [vmem:[%s187 + $0x1c0] sm:$0xff] %v7862
        %7991 = vst [vmem:[%s187 + $0x1c8] sm:$0xff] %v7863
        %7992 = vst [vmem:[%s187 + $0x1d0] sm:$0xff] %v7864
        %7993 = vst [vmem:[%s187 + $0x1d8] sm:$0xff] %v7865
        %7994 = vst [vmem:[%s187 + $0x1e0] sm:$0xff] %v7866
        %7995 = vst [vmem:[%s187 + $0x1e8] sm:$0xff] %v7867
        %7996 = vst [vmem:[%s187 + $0x1f0] sm:$0xff] %v7868
        %7997 = vst [vmem:[%s187 + $0x1f8] sm:$0xff] %v7869
        %7998 = vst [vmem:[%s187 + $0x200] sm:$0xff] %v7870
        %7999 = vst [vmem:[%s187 + $0x208] sm:$0xff] %v7871
        %8000 = vst [vmem:[%s187 + $0x210] sm:$0xff] %v7872
        %8001 = vst [vmem:[%s187 + $0x218] sm:$0xff] %v7873
        %8002 = vst [vmem:[%s187 + $0x220] sm:$0xff] %v7874
        %8003 = vst [vmem:[%s187 + $0x228] sm:$0xff] %v7875
        %8004 = vst [vmem:[%s187 + $0x230] sm:$0xff] %v7876
        %8005 = vst [vmem:[%s187 + $0x238] sm:$0xff] %v7877
        %8006 = vst [vmem:[%s187 + $0x240] sm:$0xff] %v7878
        %8007 = vst [vmem:[%s187 + $0x248] sm:$0xff] %v7879
        %8008 = vst [vmem:[%s187 + $0x250] sm:$0xff] %v7880
        %8009 = vst [vmem:[%s187 + $0x258] sm:$0xff] %v7881
        %8010 = vst [vmem:[%s187 + $0x260] sm:$0xff] %v7882
        %8011 = vst [vmem:[%s187 + $0x268] sm:$0xff] %v7883
        %8012 = vst [vmem:[%s187 + $0x270] sm:$0xff] %v7884
        %8013 = vst [vmem:[%s187 + $0x278] sm:$0xff] %v7885
        %8014 = vst [vmem:[%s187 + $0x280] sm:$0xff] %v7886
        %8015 = vst [vmem:[%s187 + $0x288] sm:$0xff] %v7887
        %8016 = vst [vmem:[%s187 + $0x290] sm:$0xff] %v7888
        %8017 = vst [vmem:[%s187 + $0x298] sm:$0xff] %v7889
        %8018 = vst [vmem:[%s187 + $0x2a0] sm:$0xff] %v7890
        %8019 = vst [vmem:[%s187 + $0x2a8] sm:$0xff] %v7891
        %8020 = vst [vmem:[%s187 + $0x2b0] sm:$0xff] %v7892
        %8021 = vst [vmem:[%s187 + $0x2b8] sm:$0xff] %v7893
        %8022 = vst [vmem:[%s187 + $0x2c0] sm:$0xff] %v7894
        %8023 = vst [vmem:[%s187 + $0x2c8] sm:$0xff] %v7895
        %8024 = vst [vmem:[%s187 + $0x2d0] sm:$0xff] %v7896
        %8025 = vst [vmem:[%s187 + $0x2d8] sm:$0xff] %v7897
        %8026 = vst [vmem:[%s187 + $0x2e0] sm:$0xff] %v7898
        %8027 = vst [vmem:[%s187 + $0x2e8] sm:$0xff] %v7899
        %8028 = vst [vmem:[%s187 + $0x2f0] sm:$0xff] %v7900
        %8029 = vst [vmem:[%s187 + $0x2f8] sm:$0xff] %v7901
        %8030 = vst [vmem:[%s187 + $0x300] sm:$0xff] %v7902
        %8031 = vst [vmem:[%s187 + $0x308] sm:$0xff] %v7903
        %8032 = vst [vmem:[%s187 + $0x310] sm:$0xff] %v7904
        %8033 = vst [vmem:[%s187 + $0x318] sm:$0xff] %v7905
        %8034 = vst [vmem:[%s187 + $0x320] sm:$0xff] %v7906
        %8035 = vst [vmem:[%s187 + $0x328] sm:$0xff] %v7907
        %8036 = vst [vmem:[%s187 + $0x330] sm:$0xff] %v7908
        %8037 = vst [vmem:[%s187 + $0x338] sm:$0xff] %v7909
        %8038 = vst [vmem:[%s187 + $0x340] sm:$0xff] %v7910
        %8039 = vst [vmem:[%s187 + $0x348] sm:$0xff] %v7911
        %8040 = vst [vmem:[%s187 + $0x350] sm:$0xff] %v7912
        %8041 = vst [vmem:[%s187 + $0x358] sm:$0xff] %v7913
        %8042 = vst [vmem:[%s187 + $0x360] sm:$0xff] %v7914
        %8043 = vst [vmem:[%s187 + $0x368] sm:$0xff] %v7915
        %8044 = vst [vmem:[%s187 + $0x370] sm:$0xff] %v7916
        %8045 = vst [vmem:[%s187 + $0x378] sm:$0xff] %v7917
        %8046 = vst [vmem:[%s187 + $0x380] sm:$0xff] %v7918
        %8047 = vst [vmem:[%s187 + $0x388] sm:$0xff] %v7919
        %8048 = vst [vmem:[%s187 + $0x390] sm:$0xff] %v7920
        %8049 = vst [vmem:[%s187 + $0x398] sm:$0xff] %v7921
        %8050 = vst [vmem:[%s187 + $0x3a0] sm:$0xff] %v7922
        %8051 = vst [vmem:[%s187 + $0x3a8] sm:$0xff] %v7923
        %8052 = vst [vmem:[%s187 + $0x3b0] sm:$0xff] %v7924
        %8053 = vst [vmem:[%s187 + $0x3b8] sm:$0xff] %v7925
        %8054 = vst [vmem:[%s187 + $0x3c0] sm:$0xff] %v7926
        %8055 = vst [vmem:[%s187 + $0x3c8] sm:$0xff] %v7927
        %8056 = vst [vmem:[%s187 + $0x3d0] sm:$0xff] %v7928
        %8057 = vst [vmem:[%s187 + $0x3d8] sm:$0xff] %v7929
        %8058 = vst [vmem:[%s187 + $0x3e0] sm:$0xff] %v7930
        %8059 = vst [vmem:[%s187 + $0x3e8] sm:$0xff] %v7931
        %8060 = vst [vmem:[%s187 + $0x3f0] sm:$0xff] %v7932
        %8061 = vst [vmem:[%s187 + $0x3f8] sm:$0xff] %v7933
        %s8062 = smul.u32 128, %s15
        %p8063 = scmp.lt.s32.totalorder %s8062, 383
        %s8064 = scalar_select %p8063, %s8062, 383
        %s8065 = smul.addr %s8064, 8
        %s8066 = scalar_lea.vmem %s3, %s8065
        // Predicated region
        $region37: #{decoder_forward.1} parent=31 // pred_check
          %p8067 = pneg %p101
        $region38: #{decoder_forward.1} parent=31 // pred_check_branch
          %8069 = sbr.rel (%p8067) target = $region40
        $region39: #{decoder_forward.1} parent=31 // pred_region
          %s8070 = smul.u32 128, %s15
        $region40: #{decoder_forward.1} parent=31 // pred_fallthru
          _
      $region32: #{decoder_forward.1} parent=5 // pred_fallthru
        _
      %p8071 = scmp.le.s32.totalorder 2, %s10
      // Predicated region
      $region41: #{decoder_forward.1} parent=5 // pred_check
        %p8072 = pneg %p8071
      $region42: #{decoder_forward.1} parent=5 // pred_check_branch
        %8074 = sbr.rel (%p8072) target = $region44
      $region43: #{decoder_forward.1} parent=5 // pred_region
        %s8075 = ssub.s32 %s10, 2
        // Predicated region
        $region45: #{decoder_forward.1} parent=43 // pred_check
          %p8076 = pneg %p107
        $region46: #{decoder_forward.1} parent=43 // pred_check_branch
          %8078 = sbr.rel (%p8076) target = $region48
        $region47: #{decoder_forward.1} parent=43 // pred_region
          %s8079 = smul.u32 128, %s16
          %p8080 = scmp.lt.s32.totalorder %s8079, 383
          %s8081 = scalar_select %p8080, %s8079, 383
          %s8082 = smul.addr %s8081, 8
          %s8083 = scalar_lea.vmem %s3, %s8082
        $region48: #{decoder_forward.1} parent=43 // pred_fallthru
          _
      $region44: #{decoder_forward.1} parent=5 // pred_fallthru
        _
    $region6: #{decoder_forward.1} parent=1 // loop_footer
      %s14 = sadd.s32 1, %s10
    $region7: #{decoder_forward.1} parent=1 // loop_footer_branch
      %9 = sbr.rel target = $region3
    $region8: #{decoder_forward.1} parent=1 // loop_exit
      _
    %8084 = vsyncpa [#allocation3], 1
    %s8085 = scalar_lea.sflag [#allocation3], 1
    %8086 = vsyncpa %s8085, 1

</llo_original>
